<compile_context>
chip_gen: v5e
topology: v5e:2x2
jax: 0.10.0
libtpu: 0.0.40
codegen_flags: <defaults>
</compile_context>

<pallas_src>
import functools
import math

import jax
import jax.numpy as jnp
from jax.experimental import pallas as pl
from jax.experimental.pallas import tpu as pltpu

# ----------------------------- configs (small) -----------------------------
B = 2            # batch
SEQ_LEN = 16     # L
M_VARS = 4       # M (number of series / channels)
PATCH_SIZE = 4
STRIDE = 4
PATCH_NUM = (SEQ_LEN - PATCH_SIZE) // STRIDE + 1 + 1   # +1 for replication pad
D_MODEL = 32
N_HEAD = 4
HEAD_DIM = D_MODEL // N_HEAD
GPT_LAYERS = 6                 # so hidden_states[5] exists (version='first_last')
PRED_LEN = 8

_WEIGHT_ORDER = (
    "in_w", "in_b", "wpe",
    "ln1_g", "ln1_b",
    "wq", "bq", "wk", "bk", "wv", "bv",
    "wo", "proj_b",
    "ln2_g", "ln2_b",
    "fc_w", "fc_b", "fcp_w", "fcp_b",
    "lnf_g", "lnf_b",
    "local_w1x", "local_w1f", "local_b1", "local_w2", "local_b2",
    "global_w1x", "global_w1f", "global_b1", "global_w2", "global_b2",
    "out_w3", "out_b",
)


# ------------------------------ fused kernel --------------------------------

def _logollm_kernel(
    xpat_ref,
    in_w, in_b, wpe,
    ln1_g, ln1_b,
    wq, bq, wk, bk, wv, bv,
    wo, proj_b,
    ln2_g, ln2_b,
    fc_w, fc_b, fcp_w, fcp_b,
    lnf_g, lnf_b,
    lw1x, lw1f, lb1, lw2, lb2,
    gw1x, gw1f, gb1, gw2, gb2,
    out_w3, out_b,
    o_ref,
):
    N = PATCH_NUM
    D = D_MODEL
    scale = 1.0 / math.sqrt(HEAD_DIM)

    def layernorm(x, g, b):
        mu = jnp.mean(x, axis=-1, keepdims=True)
        xc = x - mu
        var = jnp.mean(xc * xc, axis=-1, keepdims=True)
        return xc * jax.lax.rsqrt(var + 1e-5) * g + b

    def gelu_new(x):  # GPT-2 "gelu_new"
        c = math.sqrt(2.0 / math.pi)
        return 0.5 * x * (1.0 + jnp.tanh(c * (x + 0.044715 * x * x * x)))

    # in_layer: (N, P) @ (P, D) + b
    xp = xpat_ref[0]                                               # (N, P)
    x_embed = jnp.dot(xp, in_w[...],
                      preferred_element_type=jnp.float32) + in_b[...]
    h = x_embed + wpe[...]                                         # (N, D)

    # Causal mask built once for all layers/heads.
    row = jax.lax.broadcasted_iota(jnp.int32, (N, N), 0)
    col = jax.lax.broadcasted_iota(jnp.int32, (N, N), 1)
    causal = row >= col

    hidden5 = None
    for l in range(GPT_LAYERS):
        # --- attention sub-block ---
        a = layernorm(h, ln1_g[l], ln1_b[l])
        attn_out = jnp.zeros((N, D), jnp.float32)
        for hh in range(N_HEAD):
            q = jnp.dot(a, wq[l, hh],
                        preferred_element_type=jnp.float32) + bq[l, hh]
            k = jnp.dot(a, wk[l, hh],
                        preferred_element_type=jnp.float32) + bk[l, hh]
            v = jnp.dot(a, wv[l, hh],
                        preferred_element_type=jnp.float32) + bv[l, hh]
            s = jnp.dot(q, k.T, preferred_element_type=jnp.float32) * scale
            s = jnp.where(causal, s, -1e30)
            s = s - jnp.max(s, axis=-1, keepdims=True)
            p = jnp.exp(s)
            p = p * pl.reciprocal(jnp.sum(p, axis=-1, keepdims=True),
                                  approx=True)
            o_h = jnp.dot(p, v, preferred_element_type=jnp.float32)  # (N, HD)
            attn_out = attn_out + jnp.dot(
                o_h, wo[l, hh], preferred_element_type=jnp.float32)
        h = h + attn_out + proj_b[l]

        # --- MLP sub-block ---
        mi = layernorm(h, ln2_g[l], ln2_b[l])
        mh = gelu_new(jnp.dot(mi, fc_w[l],
                              preferred_element_type=jnp.float32) + fc_b[l])
        h = h + jnp.dot(mh, fcp_w[l],
                        preferred_element_type=jnp.float32) + fcp_b[l]

        if l == 4:                      # hidden_states[5] == output of block 4
            hidden5 = h

    h_final = layernorm(h, lnf_g[...], lnf_b[...])   # hidden_states[-1]

    # Mixer blocks: Linear(2D->D) on cat([x_embed, feature]) == split matmuls.
    def mixer(feature, w1x, w1f, b1, w2, b2):
        t = (jnp.dot(x_embed, w1x[...], preferred_element_type=jnp.float32)
             + jnp.dot(feature, w1f[...], preferred_element_type=jnp.float32)
             + b1[...])
        t = jnp.maximum(t, 0.0)
        # TODO(synk): nn.Dropout(0.3) treated as identity (eval mode).
        return jnp.dot(t, w2[...], preferred_element_type=jnp.float32) + b2[...]

    dec_local = mixer(hidden5, lw1x, lw1f, lb1, lw2, lb2)
    dec_global = mixer(h_final, gw1x, gw1f, gb1, gw2, gb2)
    dec = (x_embed + dec_local + dec_global) * (1.0 / 3.0)        # (N, D)

    # out_layer: Linear(N*D -> pred_len) on the row-major flattening of dec.
    # Implemented as sum_n dec[n,:] @ W3[n]; rows are extracted with a one-hot
    # matmul to avoid in-kernel reshapes/unaligned slices.
    col_ids = jax.lax.broadcasted_iota(jnp.int32, (1, N), 1)
    out = out_b[...]                                               # (1, PRED)
    for n in range(N):
        pn = jnp.dot(dec, out_w3[n], preferred_element_type=jnp.float32)
        sel = (col_ids == n).astype(jnp.float32)                   # (1, N)
        out = out + jnp.dot(sel, pn, preferred_element_type=jnp.float32)
    o_ref[0] = out


def fused_forward(params, xpat):
    BM = xpat.shape[0]
    inputs = [xpat] + [params[k] for k in _WEIGHT_ORDER]
    in_specs = [pl.BlockSpec((1, PATCH_NUM, PATCH_SIZE), lambda i: (i, 0, 0))]
    for k in _WEIGHT_ORDER:
        shp = params[k].shape
        # Full-array block, constant index -> DMA'd once, VMEM-resident.
        in_specs.append(pl.BlockSpec(shp, lambda i, z=(0,) * len(shp): z))
    return pl.pallas_call(
        _logollm_kernel,
        out_shape=jax.ShapeDtypeStruct((BM, 1, PRED_LEN), jnp.float32),
        grid=(BM,),
        in_specs=in_specs,
        out_specs=pl.BlockSpec((1, 1, PRED_LEN), lambda i: (i, 0, 0)),
        compiler_params=pltpu.CompilerParams(
            dimension_semantics=("parallel",)),
    )(*inputs)


# --------------------------- XLA pre/post processing -------------------------
# Instance norm, patch unfold and final de-normalization operate on <1 KB of
# data; per the performance review they are kept in plain XLA (a dedicated
# pallas_call here would be pure launch overhead).

def _preprocess(x):
    means = jnp.mean(x, axis=1, keepdims=True)                 # (B, 1, M)
    xc = x - means
    stdev = jnp.sqrt(jnp.mean(xc * xc, axis=1, keepdims=True) + 1e-5)
    xn = xc / stdev
    xt = jnp.transpose(xn, (0, 2, 1))                          # (B, M, L)
    pad = jnp.repeat(xt[..., -1:], STRIDE, axis=-1)            # replication pad
    xp = jnp.concatenate([xt, pad], axis=-1)                   # (B, M, L+stride)
    patches = jnp.stack(
        [xp[..., i * STRIDE:i * STRIDE + PATCH_SIZE] for i in range(PATCH_NUM)],
        axis=2)                                                # (B, M, N, P)
    xpat = patches.reshape(x.shape[0] * x.shape[2], PATCH_NUM, PATCH_SIZE)
    return xpat, means, stdev


def logollm_forward(params, x):
    Bb, L, M = x.shape
    xpat, means, stdev = _preprocess(x)
    out = fused_forward(params, xpat)                          # (BM, 1, PRED)
    out = out.reshape(Bb, M, PRED_LEN).transpose(0, 2, 1)      # (B, PRED, M)
    return out * stdev + means


# ------------------------------ parameter init ------------------------------

def init_params(key):
    keys = iter(jax.random.split(key, 32))

    def nrm(shape):
        return 0.02 * jax.random.normal(next(keys), shape, jnp.float32)

    def zeros(shape):
        return jnp.zeros(shape, jnp.float32)

    def ones(shape):
        return jnp.ones(shape, jnp.float32)

    L, D, H, HD = GPT_LAYERS, D_MODEL, N_HEAD, HEAD_DIM
    p = dict(
        in_w=nrm((PATCH_SIZE, D)), in_b=zeros((1, D)),
        wpe=nrm((PATCH_NUM, D)),                       # first patch_num positions
        ln1_g=ones((L, 1, D)), ln1_b=zeros((L, 1, D)),
        # attention weights stored pre-split per head: (L, H, D, HD)
        wq=nrm((L, H, D, HD)), bq=zeros((L, H, 1, HD)),
        wk=nrm((L, H, D, HD)), bk=zeros((L, H, 1, HD)),
        wv=nrm((L, H, D, HD)), bv=zeros((L, H, 1, HD)),
        wo=nrm((L, H, HD, D)), proj_b=zeros((L, 1, D)),
        ln2_g=ones((L, 1, D)), ln2_b=zeros((L, 1, D)),
        fc_w=nrm((L, D, 4 * D)), fc_b=zeros((L, 1, 4 * D)),
        fcp_w=nrm((L, 4 * D, D)), fcp_b=zeros((L, 1, D)),
        lnf_g=ones((1, D)), lnf_b=zeros((1, D)),
        # Mixer Linear(2D -> D) split into the x_embed / feature halves
        local_w1x=nrm((D, D)), local_w1f=nrm((D, D)), local_b1=zeros((1, D)),
        local_w2=nrm((D, D)), local_b2=zeros((1, D)),
        global_w1x=nrm((D, D)), global_w1f=nrm((D, D)), global_b1=zeros((1, D)),
        global_w2=nrm((D, D)), global_b2=zeros((1, D)),
        # out_layer Linear(N*D -> pred_len) stored as (N, D, PRED)
        out_w3=nrm((PATCH_NUM, D, PRED_LEN)), out_b=zeros((1, PRED_LEN)),
    )
    return p


# ----------------------------------- main -----------------------------------

if __name__ == "__main__":
    root = jax.random.PRNGKey(0)
    k_params, k_x = jax.random.split(root)
    params = init_params(k_params)
    x = jax.random.normal(k_x, (B, SEQ_LEN, M_VARS), jnp.float32)

    fwd = jax.jit(logollm_forward)
    out = jax.block_until_ready(fwd(params, x))

    assert out.shape == (B, PRED_LEN, M_VARS), out.shape
    assert bool(jnp.all(jnp.isfinite(out)))
    print("KERNEL_OK")
</pallas_src>

<mosaic_0001>
module attributes {stable_mosaic.version = 11 : i64} {
  func.func @_logollm_kernel(%arg0: i32, %arg1: memref<1x5x4xf32, #tpu.memory_space<vmem>>, %arg2: memref<4x32xf32, #tpu.memory_space<vmem>>, %arg3: memref<1x32xf32, #tpu.memory_space<vmem>>, %arg4: memref<5x32xf32, #tpu.memory_space<vmem>>, %arg5: memref<6x1x32xf32, #tpu.memory_space<vmem>>, %arg6: memref<6x1x32xf32, #tpu.memory_space<vmem>>, %arg7: memref<6x4x32x8xf32, #tpu.memory_space<vmem>>, %arg8: memref<6x4x1x8xf32, #tpu.memory_space<vmem>>, %arg9: memref<6x4x32x8xf32, #tpu.memory_space<vmem>>, %arg10: memref<6x4x1x8xf32, #tpu.memory_space<vmem>>, %arg11: memref<6x4x32x8xf32, #tpu.memory_space<vmem>>, %arg12: memref<6x4x1x8xf32, #tpu.memory_space<vmem>>, %arg13: memref<6x4x8x32xf32, #tpu.memory_space<vmem>>, %arg14: memref<6x1x32xf32, #tpu.memory_space<vmem>>, %arg15: memref<6x1x32xf32, #tpu.memory_space<vmem>>, %arg16: memref<6x1x32xf32, #tpu.memory_space<vmem>>, %arg17: memref<6x32x128xf32, #tpu.memory_space<vmem>>, %arg18: memref<6x1x128xf32, #tpu.memory_space<vmem>>, %arg19: memref<6x128x32xf32, #tpu.memory_space<vmem>>, %arg20: memref<6x1x32xf32, #tpu.memory_space<vmem>>, %arg21: memref<1x32xf32, #tpu.memory_space<vmem>>, %arg22: memref<1x32xf32, #tpu.memory_space<vmem>>, %arg23: memref<32x32xf32, #tpu.memory_space<vmem>>, %arg24: memref<32x32xf32, #tpu.memory_space<vmem>>, %arg25: memref<1x32xf32, #tpu.memory_space<vmem>>, %arg26: memref<32x32xf32, #tpu.memory_space<vmem>>, %arg27: memref<1x32xf32, #tpu.memory_space<vmem>>, %arg28: memref<32x32xf32, #tpu.memory_space<vmem>>, %arg29: memref<32x32xf32, #tpu.memory_space<vmem>>, %arg30: memref<1x32xf32, #tpu.memory_space<vmem>>, %arg31: memref<32x32xf32, #tpu.memory_space<vmem>>, %arg32: memref<1x32xf32, #tpu.memory_space<vmem>>, %arg33: memref<5x32x8xf32, #tpu.memory_space<vmem>>, %arg34: memref<1x8xf32, #tpu.memory_space<vmem>>, %arg35: memref<1x1x8xf32, #tpu.memory_space<vmem>>) attributes {dimension_semantics = [#tpu.dimension_semantics<parallel>], iteration_bounds = array<i64: 8>, scalar_prefetch = 0 : i64, scratch_operands = 0 : i64, tpu.core_type = #tpu.core_type<tc>, window_params = [{transform_indices = @transform_0, window_bounds = array<i64: 1, 5, 4>}, {pipeline_mode = #tpu.pipeline_mode<synchronous>, transform_indices = @transform_1, window_bounds = array<i64: 4, 32>}, {pipeline_mode = #tpu.pipeline_mode<synchronous>, transform_indices = @transform_2, window_bounds = array<i64: 1, 32>}, {pipeline_mode = #tpu.pipeline_mode<synchronous>, transform_indices = @transform_3, window_bounds = array<i64: 5, 32>}, {pipeline_mode = #tpu.pipeline_mode<synchronous>, transform_indices = @transform_4, window_bounds = array<i64: 6, 1, 32>}, {pipeline_mode = #tpu.pipeline_mode<synchronous>, transform_indices = @transform_5, window_bounds = array<i64: 6, 1, 32>}, {pipeline_mode = #tpu.pipeline_mode<synchronous>, transform_indices = @transform_6, window_bounds = array<i64: 6, 4, 32, 8>}, {pipeline_mode = #tpu.pipeline_mode<synchronous>, transform_indices = @transform_7, window_bounds = array<i64: 6, 4, 1, 8>}, {pipeline_mode = #tpu.pipeline_mode<synchronous>, transform_indices = @transform_8, window_bounds = array<i64: 6, 4, 32, 8>}, {pipeline_mode = #tpu.pipeline_mode<synchronous>, transform_indices = @transform_9, window_bounds = array<i64: 6, 4, 1, 8>}, {pipeline_mode = #tpu.pipeline_mode<synchronous>, transform_indices = @transform_10, window_bounds = array<i64: 6, 4, 32, 8>}, {pipeline_mode = #tpu.pipeline_mode<synchronous>, transform_indices = @transform_11, window_bounds = array<i64: 6, 4, 1, 8>}, {pipeline_mode = #tpu.pipeline_mode<synchronous>, transform_indices = @transform_12, window_bounds = array<i64: 6, 4, 8, 32>}, {pipeline_mode = #tpu.pipeline_mode<synchronous>, transform_indices = @transform_13, window_bounds = array<i64: 6, 1, 32>}, {pipeline_mode = #tpu.pipeline_mode<synchronous>, transform_indices = @transform_14, window_bounds = array<i64: 6, 1, 32>}, {pipeline_mode = #tpu.pipeline_mode<synchronous>, transform_indices = @transform_15, window_bounds = array<i64: 6, 1, 32>}, {pipeline_mode = #tpu.pipeline_mode<synchronous>, transform_indices = @transform_16, window_bounds = array<i64: 6, 32, 128>}, {pipeline_mode = #tpu.pipeline_mode<synchronous>, transform_indices = @transform_17, window_bounds = array<i64: 6, 1, 128>}, {pipeline_mode = #tpu.pipeline_mode<synchronous>, transform_indices = @transform_18, window_bounds = array<i64: 6, 128, 32>}, {pipeline_mode = #tpu.pipeline_mode<synchronous>, transform_indices = @transform_19, window_bounds = array<i64: 6, 1, 32>}, {pipeline_mode = #tpu.pipeline_mode<synchronous>, transform_indices = @transform_20, window_bounds = array<i64: 1, 32>}, {pipeline_mode = #tpu.pipeline_mode<synchronous>, transform_indices = @transform_21, window_bounds = array<i64: 1, 32>}, {pipeline_mode = #tpu.pipeline_mode<synchronous>, transform_indices = @transform_22, window_bounds = array<i64: 32, 32>}, {pipeline_mode = #tpu.pipeline_mode<synchronous>, transform_indices = @transform_23, window_bounds = array<i64: 32, 32>}, {pipeline_mode = #tpu.pipeline_mode<synchronous>, transform_indices = @transform_24, window_bounds = array<i64: 1, 32>}, {pipeline_mode = #tpu.pipeline_mode<synchronous>, transform_indices = @transform_25, window_bounds = array<i64: 32, 32>}, {pipeline_mode = #tpu.pipeline_mode<synchronous>, transform_indices = @transform_26, window_bounds = array<i64: 1, 32>}, {pipeline_mode = #tpu.pipeline_mode<synchronous>, transform_indices = @transform_27, window_bounds = array<i64: 32, 32>}, {pipeline_mode = #tpu.pipeline_mode<synchronous>, transform_indices = @transform_28, window_bounds = array<i64: 32, 32>}, {pipeline_mode = #tpu.pipeline_mode<synchronous>, transform_indices = @transform_29, window_bounds = array<i64: 1, 32>}, {pipeline_mode = #tpu.pipeline_mode<synchronous>, transform_indices = @transform_30, window_bounds = array<i64: 32, 32>}, {pipeline_mode = #tpu.pipeline_mode<synchronous>, transform_indices = @transform_31, window_bounds = array<i64: 1, 32>}, {pipeline_mode = #tpu.pipeline_mode<synchronous>, transform_indices = @transform_32, window_bounds = array<i64: 5, 32, 8>}, {pipeline_mode = #tpu.pipeline_mode<synchronous>, transform_indices = @transform_33, window_bounds = array<i64: 1, 8>}, {transform_indices = @transform_34, window_bounds = array<i64: 1, 1, 8>}]} {
    %c0 = arith.constant 0 : index
    %c0_0 = arith.constant 0 : index
    %c0_1 = arith.constant 0 : index
    %0 = vector.load %arg1[%c0, %c0_0, %c0_1] : memref<1x5x4xf32, #tpu.memory_space<vmem>>, vector<1x5x4xf32>
    %1 = vector.shape_cast %0 : vector<1x5x4xf32> to vector<5x4xf32>
    %c0_2 = arith.constant 0 : index
    %c0_3 = arith.constant 0 : index
    %2 = vector.load %arg2[%c0_2, %c0_3] : memref<4x32xf32, #tpu.memory_space<vmem>>, vector<4x32xf32>
    %cst = arith.constant dense<0.000000e+00> : vector<5x32xf32>
    %3 = tpu.matmul %1, %2, %cst {dimension_numbers = #tpu.dot_dimension_numbers<[1], [0], [0], [1], [0, 0, 1, 1], [], []>} : vector<5x4xf32>, vector<4x32xf32>, vector<5x32xf32> -> vector<5x32xf32>
    %c0_4 = arith.constant 0 : index
    %c0_5 = arith.constant 0 : index
    %4 = vector.load %arg3[%c0_4, %c0_5] : memref<1x32xf32, #tpu.memory_space<vmem>>, vector<1x32xf32>
    %5 = vector.broadcast %4 : vector<1x32xf32> to vector<5x32xf32>
    %6 = arith.addf %3, %5 : vector<5x32xf32>
    %c0_6 = arith.constant 0 : index
    %c0_7 = arith.constant 0 : index
    %7 = vector.load %arg4[%c0_6, %c0_7] : memref<5x32xf32, #tpu.memory_space<vmem>>, vector<5x32xf32>
    %8 = arith.addf %6, %7 : vector<5x32xf32>
    %9 = tpu.iota {dimensions = array<i32: 0>} : vector<5x5xi32>
    %10 = tpu.iota {dimensions = array<i32: 1>} : vector<5x5xi32>
    %11 = arith.cmpi sge, %9, %10 : vector<5x5xi32>
    %c0_8 = arith.constant 0 : index
    %c0_9 = arith.constant 0 : index
    %c0_10 = arith.constant 0 : index
    %12 = vector.load %arg5[%c0_8, %c0_9, %c0_10] : memref<6x1x32xf32, #tpu.memory_space<vmem>>, vector<1x1x32xf32>
    %13 = vector.shape_cast %12 : vector<1x1x32xf32> to vector<1x32xf32>
    %c0_11 = arith.constant 0 : index
    %c0_12 = arith.constant 0 : index
    %c0_13 = arith.constant 0 : index
    %14 = vector.load %arg6[%c0_11, %c0_12, %c0_13] : memref<6x1x32xf32, #tpu.memory_space<vmem>>, vector<1x1x32xf32>
    %15 = vector.shape_cast %14 : vector<1x1x32xf32> to vector<1x32xf32>
    %cst_14 = arith.constant dense<0.000000e+00> : vector<5xf32>
    %16 = vector.multi_reduction <add>, %8, %cst_14 [1] : vector<5x32xf32> to vector<5xf32>
    %17 = vector.shape_cast %16 : vector<5xf32> to vector<5x1xf32>
    %cst_15 = arith.constant 3.200000e+01 : f32
    %18 = vector.broadcast %cst_15 : f32 to vector<5x1xf32>
    %19 = arith.divf %17, %18 : vector<5x1xf32>
    %20 = vector.broadcast %19 : vector<5x1xf32> to vector<5x32xf32>
    %21 = arith.subf %8, %20 : vector<5x32xf32>
    %22 = arith.mulf %21, %21 : vector<5x32xf32>
    %cst_16 = arith.constant dense<0.000000e+00> : vector<5xf32>
    %23 = vector.multi_reduction <add>, %22, %cst_16 [1] : vector<5x32xf32> to vector<5xf32>
    %24 = vector.shape_cast %23 : vector<5xf32> to vector<5x1xf32>
    %cst_17 = arith.constant 3.200000e+01 : f32
    %25 = vector.broadcast %cst_17 : f32 to vector<5x1xf32>
    %26 = arith.divf %24, %25 : vector<5x1xf32>
    %cst_18 = arith.constant 9.99999974E-6 : f32
    %27 = vector.broadcast %cst_18 : f32 to vector<5x1xf32>
    %28 = arith.addf %26, %27 : vector<5x1xf32>
    %29 = math.rsqrt %28 : vector<5x1xf32>
    %30 = vector.broadcast %29 : vector<5x1xf32> to vector<5x32xf32>
    %31 = arith.mulf %21, %30 : vector<5x32xf32>
    %32 = vector.broadcast %13 : vector<1x32xf32> to vector<5x32xf32>
    %33 = arith.mulf %31, %32 : vector<5x32xf32>
    %34 = vector.broadcast %15 : vector<1x32xf32> to vector<5x32xf32>
    %35 = arith.addf %33, %34 : vector<5x32xf32>
    %cst_19 = arith.constant 0.000000e+00 : f32
    %36 = vector.broadcast %cst_19 : f32 to vector<5x32xf32>
    %c0_20 = arith.constant 0 : index
    %c0_21 = arith.constant 0 : index
    %c0_22 = arith.constant 0 : index
    %c0_23 = arith.constant 0 : index
    %37 = vector.load %arg7[%c0_20, %c0_21, %c0_22, %c0_23] : memref<6x4x32x8xf32, #tpu.memory_space<vmem>>, vector<1x1x32x8xf32>
    %38 = vector.shape_cast %37 : vector<1x1x32x8xf32> to vector<32x8xf32>
    %cst_24 = arith.constant dense<0.000000e+00> : vector<5x8xf32>
    %39 = tpu.matmul %35, %38, %cst_24 {dimension_numbers = #tpu.dot_dimension_numbers<[1], [0], [0], [1], [0, 0, 1, 1], [], []>} : vector<5x32xf32>, vector<32x8xf32>, vector<5x8xf32> -> vector<5x8xf32>
    %c0_25 = arith.constant 0 : index
    %c0_26 = arith.constant 0 : index
    %c0_27 = arith.constant 0 : index
    %c0_28 = arith.constant 0 : index
    %40 = vector.load %arg8[%c0_25, %c0_26, %c0_27, %c0_28] : memref<6x4x1x8xf32, #tpu.memory_space<vmem>>, vector<1x1x1x8xf32>
    %41 = vector.shape_cast %40 : vector<1x1x1x8xf32> to vector<1x8xf32>
    %42 = vector.broadcast %41 : vector<1x8xf32> to vector<5x8xf32>
    %43 = arith.addf %39, %42 : vector<5x8xf32>
    %c0_29 = arith.constant 0 : index
    %c0_30 = arith.constant 0 : index
    %c0_31 = arith.constant 0 : index
    %c0_32 = arith.constant 0 : index
    %44 = vector.load %arg9[%c0_29, %c0_30, %c0_31, %c0_32] : memref<6x4x32x8xf32, #tpu.memory_space<vmem>>, vector<1x1x32x8xf32>
    %45 = vector.shape_cast %44 : vector<1x1x32x8xf32> to vector<32x8xf32>
    %cst_33 = arith.constant dense<0.000000e+00> : vector<5x8xf32>
    %46 = tpu.matmul %35, %45, %cst_33 {dimension_numbers = #tpu.dot_dimension_numbers<[1], [0], [0], [1], [0, 0, 1, 1], [], []>} : vector<5x32xf32>, vector<32x8xf32>, vector<5x8xf32> -> vector<5x8xf32>
    %c0_34 = arith.constant 0 : index
    %c0_35 = arith.constant 0 : index
    %c0_36 = arith.constant 0 : index
    %c0_37 = arith.constant 0 : index
    %47 = vector.load %arg10[%c0_34, %c0_35, %c0_36, %c0_37] : memref<6x4x1x8xf32, #tpu.memory_space<vmem>>, vector<1x1x1x8xf32>
    %48 = vector.shape_cast %47 : vector<1x1x1x8xf32> to vector<1x8xf32>
    %49 = vector.broadcast %48 : vector<1x8xf32> to vector<5x8xf32>
    %50 = arith.addf %46, %49 : vector<5x8xf32>
    %c0_38 = arith.constant 0 : index
    %c0_39 = arith.constant 0 : index
    %c0_40 = arith.constant 0 : index
    %c0_41 = arith.constant 0 : index
    %51 = vector.load %arg11[%c0_38, %c0_39, %c0_40, %c0_41] : memref<6x4x32x8xf32, #tpu.memory_space<vmem>>, vector<1x1x32x8xf32>
    %52 = vector.shape_cast %51 : vector<1x1x32x8xf32> to vector<32x8xf32>
    %cst_42 = arith.constant dense<0.000000e+00> : vector<5x8xf32>
    %53 = tpu.matmul %35, %52, %cst_42 {dimension_numbers = #tpu.dot_dimension_numbers<[1], [0], [0], [1], [0, 0, 1, 1], [], []>} : vector<5x32xf32>, vector<32x8xf32>, vector<5x8xf32> -> vector<5x8xf32>
    %c0_43 = arith.constant 0 : index
    %c0_44 = arith.constant 0 : index
    %c0_45 = arith.constant 0 : index
    %c0_46 = arith.constant 0 : index
    %54 = vector.load %arg12[%c0_43, %c0_44, %c0_45, %c0_46] : memref<6x4x1x8xf32, #tpu.memory_space<vmem>>, vector<1x1x1x8xf32>
    %55 = vector.shape_cast %54 : vector<1x1x1x8xf32> to vector<1x8xf32>
    %56 = vector.broadcast %55 : vector<1x8xf32> to vector<5x8xf32>
    %57 = arith.addf %53, %56 : vector<5x8xf32>
    %58 = tpu.transpose %50, [1, 0] : vector<5x8xf32> -> vector<8x5xf32>
    %cst_47 = arith.constant dense<0.000000e+00> : vector<5x5xf32>
    %59 = tpu.matmul %43, %58, %cst_47 {dimension_numbers = #tpu.dot_dimension_numbers<[1], [0], [0], [1], [0, 0, 1, 1], [], []>} : vector<5x8xf32>, vector<8x5xf32>, vector<5x5xf32> -> vector<5x5xf32>
    %cst_48 = arith.constant 0.353553385 : f32
    %60 = vector.broadcast %cst_48 : f32 to vector<5x5xf32>
    %61 = arith.mulf %59, %60 : vector<5x5xf32>
    %cst_49 = arith.constant -1.000000e+30 : f32
    %62 = vector.broadcast %cst_49 : f32 to vector<5x5xf32>
    %63 = arith.select %11, %61, %62 : vector<5x5xi1>, vector<5x5xf32>
    %cst_50 = arith.constant dense<0xFF800000> : vector<5xf32>
    %64 = vector.multi_reduction <maximumf>, %63, %cst_50 [1] : vector<5x5xf32> to vector<5xf32>
    %65 = vector.shape_cast %64 : vector<5xf32> to vector<5x1xf32>
    %66 = vector.broadcast %65 : vector<5x1xf32> to vector<5x5xf32>
    %67 = arith.subf %63, %66 : vector<5x5xf32>
    %68 = math.exp %67 : vector<5x5xf32>
    %cst_51 = arith.constant dense<0.000000e+00> : vector<5xf32>
    %69 = vector.multi_reduction <add>, %68, %cst_51 [1] : vector<5x5xf32> to vector<5xf32>
    %70 = vector.shape_cast %69 : vector<5xf32> to vector<5x1xf32>
    %71 = tpu.reciprocal %70 {approx = true} : vector<5x1xf32> -> vector<5x1xf32>
    %72 = vector.broadcast %71 : vector<5x1xf32> to vector<5x5xf32>
    %73 = arith.mulf %68, %72 : vector<5x5xf32>
    %cst_52 = arith.constant dense<0.000000e+00> : vector<5x8xf32>
    %74 = tpu.matmul %73, %57, %cst_52 {dimension_numbers = #tpu.dot_dimension_numbers<[1], [0], [0], [1], [0, 0, 1, 1], [], []>} : vector<5x5xf32>, vector<5x8xf32>, vector<5x8xf32> -> vector<5x8xf32>
    %c0_53 = arith.constant 0 : index
    %c0_54 = arith.constant 0 : index
    %c0_55 = arith.constant 0 : index
    %c0_56 = arith.constant 0 : index
    %75 = vector.load %arg13[%c0_53, %c0_54, %c0_55, %c0_56] : memref<6x4x8x32xf32, #tpu.memory_space<vmem>>, vector<1x1x8x32xf32>
    %76 = vector.shape_cast %75 : vector<1x1x8x32xf32> to vector<8x32xf32>
    %cst_57 = arith.constant dense<0.000000e+00> : vector<5x32xf32>
    %77 = tpu.matmul %74, %76, %cst_57 {dimension_numbers = #tpu.dot_dimension_numbers<[1], [0], [0], [1], [0, 0, 1, 1], [], []>} : vector<5x8xf32>, vector<8x32xf32>, vector<5x32xf32> -> vector<5x32xf32>
    %78 = arith.addf %36, %77 : vector<5x32xf32>
    %c0_58 = arith.constant 0 : index
    %c1 = arith.constant 1 : index
    %c0_59 = arith.constant 0 : index
    %c0_60 = arith.constant 0 : index
    %79 = vector.load %arg7[%c0_58, %c1, %c0_59, %c0_60] : memref<6x4x32x8xf32, #tpu.memory_space<vmem>>, vector<1x1x32x8xf32>
    %80 = vector.shape_cast %79 : vector<1x1x32x8xf32> to vector<32x8xf32>
    %cst_61 = arith.constant dense<0.000000e+00> : vector<5x8xf32>
    %81 = tpu.matmul %35, %80, %cst_61 {dimension_numbers = #tpu.dot_dimension_numbers<[1], [0], [0], [1], [0, 0, 1, 1], [], []>} : vector<5x32xf32>, vector<32x8xf32>, vector<5x8xf32> -> vector<5x8xf32>
    %c0_62 = arith.constant 0 : index
    %c1_63 = arith.constant 1 : index
    %c0_64 = arith.constant 0 : index
    %c0_65 = arith.constant 0 : index
    %82 = vector.load %arg8[%c0_62, %c1_63, %c0_64, %c0_65] : memref<6x4x1x8xf32, #tpu.memory_space<vmem>>, vector<1x1x1x8xf32>
    %83 = vector.shape_cast %82 : vector<1x1x1x8xf32> to vector<1x8xf32>
    %84 = vector.broadcast %83 : vector<1x8xf32> to vector<5x8xf32>
    %85 = arith.addf %81, %84 : vector<5x8xf32>
    %c0_66 = arith.constant 0 : index
    %c1_67 = arith.constant 1 : index
    %c0_68 = arith.constant 0 : index
    %c0_69 = arith.constant 0 : index
    %86 = vector.load %arg9[%c0_66, %c1_67, %c0_68, %c0_69] : memref<6x4x32x8xf32, #tpu.memory_space<vmem>>, vector<1x1x32x8xf32>
    %87 = vector.shape_cast %86 : vector<1x1x32x8xf32> to vector<32x8xf32>
    %cst_70 = arith.constant dense<0.000000e+00> : vector<5x8xf32>
    %88 = tpu.matmul %35, %87, %cst_70 {dimension_numbers = #tpu.dot_dimension_numbers<[1], [0], [0], [1], [0, 0, 1, 1], [], []>} : vector<5x32xf32>, vector<32x8xf32>, vector<5x8xf32> -> vector<5x8xf32>
    %c0_71 = arith.constant 0 : index
    %c1_72 = arith.constant 1 : index
    %c0_73 = arith.constant 0 : index
    %c0_74 = arith.constant 0 : index
    %89 = vector.load %arg10[%c0_71, %c1_72, %c0_73, %c0_74] : memref<6x4x1x8xf32, #tpu.memory_space<vmem>>, vector<1x1x1x8xf32>
    %90 = vector.shape_cast %89 : vector<1x1x1x8xf32> to vector<1x8xf32>
    %91 = vector.broadcast %90 : vector<1x8xf32> to vector<5x8xf32>
    %92 = arith.addf %88, %91 : vector<5x8xf32>
    %c0_75 = arith.constant 0 : index
    %c1_76 = arith.constant 1 : index
    %c0_77 = arith.constant 0 : index
    %c0_78 = arith.constant 0 : index
    %93 = vector.load %arg11[%c0_75, %c1_76, %c0_77, %c0_78] : memref<6x4x32x8xf32, #tpu.memory_space<vmem>>, vector<1x1x32x8xf32>
    %94 = vector.shape_cast %93 : vector<1x1x32x8xf32> to vector<32x8xf32>
    %cst_79 = arith.constant dense<0.000000e+00> : vector<5x8xf32>
    %95 = tpu.matmul %35, %94, %cst_79 {dimension_numbers = #tpu.dot_dimension_numbers<[1], [0], [0], [1], [0, 0, 1, 1], [], []>} : vector<5x32xf32>, vector<32x8xf32>, vector<5x8xf32> -> vector<5x8xf32>
    %c0_80 = arith.constant 0 : index
    %c1_81 = arith.constant 1 : index
    %c0_82 = arith.constant 0 : index
    %c0_83 = arith.constant 0 : index
    %96 = vector.load %arg12[%c0_80, %c1_81, %c0_82, %c0_83] : memref<6x4x1x8xf32, #tpu.memory_space<vmem>>, vector<1x1x1x8xf32>
    %97 = vector.shape_cast %96 : vector<1x1x1x8xf32> to vector<1x8xf32>
    %98 = vector.broadcast %97 : vector<1x8xf32> to vector<5x8xf32>
    %99 = arith.addf %95, %98 : vector<5x8xf32>
    %100 = tpu.transpose %92, [1, 0] : vector<5x8xf32> -> vector<8x5xf32>
    %cst_84 = arith.constant dense<0.000000e+00> : vector<5x5xf32>
    %101 = tpu.matmul %85, %100, %cst_84 {dimension_numbers = #tpu.dot_dimension_numbers<[1], [0], [0], [1], [0, 0, 1, 1], [], []>} : vector<5x8xf32>, vector<8x5xf32>, vector<5x5xf32> -> vector<5x5xf32>
    %cst_85 = arith.constant 0.353553385 : f32
    %102 = vector.broadcast %cst_85 : f32 to vector<5x5xf32>
    %103 = arith.mulf %101, %102 : vector<5x5xf32>
    %cst_86 = arith.constant -1.000000e+30 : f32
    %104 = vector.broadcast %cst_86 : f32 to vector<5x5xf32>
    %105 = arith.select %11, %103, %104 : vector<5x5xi1>, vector<5x5xf32>
    %cst_87 = arith.constant dense<0xFF800000> : vector<5xf32>
    %106 = vector.multi_reduction <maximumf>, %105, %cst_87 [1] : vector<5x5xf32> to vector<5xf32>
    %107 = vector.shape_cast %106 : vector<5xf32> to vector<5x1xf32>
    %108 = vector.broadcast %107 : vector<5x1xf32> to vector<5x5xf32>
    %109 = arith.subf %105, %108 : vector<5x5xf32>
    %110 = math.exp %109 : vector<5x5xf32>
    %cst_88 = arith.constant dense<0.000000e+00> : vector<5xf32>
    %111 = vector.multi_reduction <add>, %110, %cst_88 [1] : vector<5x5xf32> to vector<5xf32>
    %112 = vector.shape_cast %111 : vector<5xf32> to vector<5x1xf32>
    %113 = tpu.reciprocal %112 {approx = true} : vector<5x1xf32> -> vector<5x1xf32>
    %114 = vector.broadcast %113 : vector<5x1xf32> to vector<5x5xf32>
    %115 = arith.mulf %110, %114 : vector<5x5xf32>
    %cst_89 = arith.constant dense<0.000000e+00> : vector<5x8xf32>
    %116 = tpu.matmul %115, %99, %cst_89 {dimension_numbers = #tpu.dot_dimension_numbers<[1], [0], [0], [1], [0, 0, 1, 1], [], []>} : vector<5x5xf32>, vector<5x8xf32>, vector<5x8xf32> -> vector<5x8xf32>
    %c0_90 = arith.constant 0 : index
    %c1_91 = arith.constant 1 : index
    %c0_92 = arith.constant 0 : index
    %c0_93 = arith.constant 0 : index
    %117 = vector.load %arg13[%c0_90, %c1_91, %c0_92, %c0_93] : memref<6x4x8x32xf32, #tpu.memory_space<vmem>>, vector<1x1x8x32xf32>
    %118 = vector.shape_cast %117 : vector<1x1x8x32xf32> to vector<8x32xf32>
    %cst_94 = arith.constant dense<0.000000e+00> : vector<5x32xf32>
    %119 = tpu.matmul %116, %118, %cst_94 {dimension_numbers = #tpu.dot_dimension_numbers<[1], [0], [0], [1], [0, 0, 1, 1], [], []>} : vector<5x8xf32>, vector<8x32xf32>, vector<5x32xf32> -> vector<5x32xf32>
    %120 = arith.addf %78, %119 : vector<5x32xf32>
    %c0_95 = arith.constant 0 : index
    %c2 = arith.constant 2 : index
    %c0_96 = arith.constant 0 : index
    %c0_97 = arith.constant 0 : index
    %121 = vector.load %arg7[%c0_95, %c2, %c0_96, %c0_97] : memref<6x4x32x8xf32, #tpu.memory_space<vmem>>, vector<1x1x32x8xf32>
    %122 = vector.shape_cast %121 : vector<1x1x32x8xf32> to vector<32x8xf32>
    %cst_98 = arith.constant dense<0.000000e+00> : vector<5x8xf32>
    %123 = tpu.matmul %35, %122, %cst_98 {dimension_numbers = #tpu.dot_dimension_numbers<[1], [0], [0], [1], [0, 0, 1, 1], [], []>} : vector<5x32xf32>, vector<32x8xf32>, vector<5x8xf32> -> vector<5x8xf32>
    %c0_99 = arith.constant 0 : index
    %c2_100 = arith.constant 2 : index
    %c0_101 = arith.constant 0 : index
    %c0_102 = arith.constant 0 : index
    %124 = vector.load %arg8[%c0_99, %c2_100, %c0_101, %c0_102] : memref<6x4x1x8xf32, #tpu.memory_space<vmem>>, vector<1x1x1x8xf32>
    %125 = vector.shape_cast %124 : vector<1x1x1x8xf32> to vector<1x8xf32>
    %126 = vector.broadcast %125 : vector<1x8xf32> to vector<5x8xf32>
    %127 = arith.addf %123, %126 : vector<5x8xf32>
    %c0_103 = arith.constant 0 : index
    %c2_104 = arith.constant 2 : index
    %c0_105 = arith.constant 0 : index
    %c0_106 = arith.constant 0 : index
    %128 = vector.load %arg9[%c0_103, %c2_104, %c0_105, %c0_106] : memref<6x4x32x8xf32, #tpu.memory_space<vmem>>, vector<1x1x32x8xf32>
    %129 = vector.shape_cast %128 : vector<1x1x32x8xf32> to vector<32x8xf32>
    %cst_107 = arith.constant dense<0.000000e+00> : vector<5x8xf32>
    %130 = tpu.matmul %35, %129, %cst_107 {dimension_numbers = #tpu.dot_dimension_numbers<[1], [0], [0], [1], [0, 0, 1, 1], [], []>} : vector<5x32xf32>, vector<32x8xf32>, vector<5x8xf32> -> vector<5x8xf32>
    %c0_108 = arith.constant 0 : index
    %c2_109 = arith.constant 2 : index
    %c0_110 = arith.constant 0 : index
    %c0_111 = arith.constant 0 : index
    %131 = vector.load %arg10[%c0_108, %c2_109, %c0_110, %c0_111] : memref<6x4x1x8xf32, #tpu.memory_space<vmem>>, vector<1x1x1x8xf32>
    %132 = vector.shape_cast %131 : vector<1x1x1x8xf32> to vector<1x8xf32>
    %133 = vector.broadcast %132 : vector<1x8xf32> to vector<5x8xf32>
    %134 = arith.addf %130, %133 : vector<5x8xf32>
    %c0_112 = arith.constant 0 : index
    %c2_113 = arith.constant 2 : index
    %c0_114 = arith.constant 0 : index
    %c0_115 = arith.constant 0 : index
    %135 = vector.load %arg11[%c0_112, %c2_113, %c0_114, %c0_115] : memref<6x4x32x8xf32, #tpu.memory_space<vmem>>, vector<1x1x32x8xf32>
    %136 = vector.shape_cast %135 : vector<1x1x32x8xf32> to vector<32x8xf32>
    %cst_116 = arith.constant dense<0.000000e+00> : vector<5x8xf32>
    %137 = tpu.matmul %35, %136, %cst_116 {dimension_numbers = #tpu.dot_dimension_numbers<[1], [0], [0], [1], [0, 0, 1, 1], [], []>} : vector<5x32xf32>, vector<32x8xf32>, vector<5x8xf32> -> vector<5x8xf32>
    %c0_117 = arith.constant 0 : index
    %c2_118 = arith.constant 2 : index
    %c0_119 = arith.constant 0 : index
    %c0_120 = arith.constant 0 : index
    %138 = vector.load %arg12[%c0_117, %c2_118, %c0_119, %c0_120] : memref<6x4x1x8xf32, #tpu.memory_space<vmem>>, vector<1x1x1x8xf32>
    %139 = vector.shape_cast %138 : vector<1x1x1x8xf32> to vector<1x8xf32>
    %140 = vector.broadcast %139 : vector<1x8xf32> to vector<5x8xf32>
    %141 = arith.addf %137, %140 : vector<5x8xf32>
    %142 = tpu.transpose %134, [1, 0] : vector<5x8xf32> -> vector<8x5xf32>
    %cst_121 = arith.constant dense<0.000000e+00> : vector<5x5xf32>
    %143 = tpu.matmul %127, %142, %cst_121 {dimension_numbers = #tpu.dot_dimension_numbers<[1], [0], [0], [1], [0, 0, 1, 1], [], []>} : vector<5x8xf32>, vector<8x5xf32>, vector<5x5xf32> -> vector<5x5xf32>
    %cst_122 = arith.constant 0.353553385 : f32
    %144 = vector.broadcast %cst_122 : f32 to vector<5x5xf32>
    %145 = arith.mulf %143, %144 : vector<5x5xf32>
    %cst_123 = arith.constant -1.000000e+30 : f32
    %146 = vector.broadcast %cst_123 : f32 to vector<5x5xf32>
    %147 = arith.select %11, %145, %146 : vector<5x5xi1>, vector<5x5xf32>
    %cst_124 = arith.constant dense<0xFF800000> : vector<5xf32>
    %148 = vector.multi_reduction <maximumf>, %147, %cst_124 [1] : vector<5x5xf32> to vector<5xf32>
    %149 = vector.shape_cast %148 : vector<5xf32> to vector<5x1xf32>
    %150 = vector.broadcast %149 : vector<5x1xf32> to vector<5x5xf32>
    %151 = arith.subf %147, %150 : vector<5x5xf32>
    %152 = math.exp %151 : vector<5x5xf32>
    %cst_125 = arith.constant dense<0.000000e+00> : vector<5xf32>
    %153 = vector.multi_reduction <add>, %152, %cst_125 [1] : vector<5x5xf32> to vector<5xf32>
    %154 = vector.shape_cast %153 : vector<5xf32> to vector<5x1xf32>
    %155 = tpu.reciprocal %154 {approx = true} : vector<5x1xf32> -> vector<5x1xf32>
    %156 = vector.broadcast %155 : vector<5x1xf32> to vector<5x5xf32>
    %157 = arith.mulf %152, %156 : vector<5x5xf32>
    %cst_126 = arith.constant dense<0.000000e+00> : vector<5x8xf32>
    %158 = tpu.matmul %157, %141, %cst_126 {dimension_numbers = #tpu.dot_dimension_numbers<[1], [0], [0], [1], [0, 0, 1, 1], [], []>} : vector<5x5xf32>, vector<5x8xf32>, vector<5x8xf32> -> vector<5x8xf32>
    %c0_127 = arith.constant 0 : index
    %c2_128 = arith.constant 2 : index
    %c0_129 = arith.constant 0 : index
    %c0_130 = arith.constant 0 : index
    %159 = vector.load %arg13[%c0_127, %c2_128, %c0_129, %c0_130] : memref<6x4x8x32xf32, #tpu.memory_space<vmem>>, vector<1x1x8x32xf32>
    %160 = vector.shape_cast %159 : vector<1x1x8x32xf32> to vector<8x32xf32>
    %cst_131 = arith.constant dense<0.000000e+00> : vector<5x32xf32>
    %161 = tpu.matmul %158, %160, %cst_131 {dimension_numbers = #tpu.dot_dimension_numbers<[1], [0], [0], [1], [0, 0, 1, 1], [], []>} : vector<5x8xf32>, vector<8x32xf32>, vector<5x32xf32> -> vector<5x32xf32>
    %162 = arith.addf %120, %161 : vector<5x32xf32>
    %c0_132 = arith.constant 0 : index
    %c3 = arith.constant 3 : index
    %c0_133 = arith.constant 0 : index
    %c0_134 = arith.constant 0 : index
    %163 = vector.load %arg7[%c0_132, %c3, %c0_133, %c0_134] : memref<6x4x32x8xf32, #tpu.memory_space<vmem>>, vector<1x1x32x8xf32>
    %164 = vector.shape_cast %163 : vector<1x1x32x8xf32> to vector<32x8xf32>
    %cst_135 = arith.constant dense<0.000000e+00> : vector<5x8xf32>
    %165 = tpu.matmul %35, %164, %cst_135 {dimension_numbers = #tpu.dot_dimension_numbers<[1], [0], [0], [1], [0, 0, 1, 1], [], []>} : vector<5x32xf32>, vector<32x8xf32>, vector<5x8xf32> -> vector<5x8xf32>
    %c0_136 = arith.constant 0 : index
    %c3_137 = arith.constant 3 : index
    %c0_138 = arith.constant 0 : index
    %c0_139 = arith.constant 0 : index
    %166 = vector.load %arg8[%c0_136, %c3_137, %c0_138, %c0_139] : memref<6x4x1x8xf32, #tpu.memory_space<vmem>>, vector<1x1x1x8xf32>
    %167 = vector.shape_cast %166 : vector<1x1x1x8xf32> to vector<1x8xf32>
    %168 = vector.broadcast %167 : vector<1x8xf32> to vector<5x8xf32>
    %169 = arith.addf %165, %168 : vector<5x8xf32>
    %c0_140 = arith.constant 0 : index
    %c3_141 = arith.constant 3 : index
    %c0_142 = arith.constant 0 : index
    %c0_143 = arith.constant 0 : index
    %170 = vector.load %arg9[%c0_140, %c3_141, %c0_142, %c0_143] : memref<6x4x32x8xf32, #tpu.memory_space<vmem>>, vector<1x1x32x8xf32>
    %171 = vector.shape_cast %170 : vector<1x1x32x8xf32> to vector<32x8xf32>
    %cst_144 = arith.constant dense<0.000000e+00> : vector<5x8xf32>
    %172 = tpu.matmul %35, %171, %cst_144 {dimension_numbers = #tpu.dot_dimension_numbers<[1], [0], [0], [1], [0, 0, 1, 1], [], []>} : vector<5x32xf32>, vector<32x8xf32>, vector<5x8xf32> -> vector<5x8xf32>
    %c0_145 = arith.constant 0 : index
    %c3_146 = arith.constant 3 : index
    %c0_147 = arith.constant 0 : index
    %c0_148 = arith.constant 0 : index
    %173 = vector.load %arg10[%c0_145, %c3_146, %c0_147, %c0_148] : memref<6x4x1x8xf32, #tpu.memory_space<vmem>>, vector<1x1x1x8xf32>
    %174 = vector.shape_cast %173 : vector<1x1x1x8xf32> to vector<1x8xf32>
    %175 = vector.broadcast %174 : vector<1x8xf32> to vector<5x8xf32>
    %176 = arith.addf %172, %175 : vector<5x8xf32>
    %c0_149 = arith.constant 0 : index
    %c3_150 = arith.constant 3 : index
    %c0_151 = arith.constant 0 : index
    %c0_152 = arith.constant 0 : index
    %177 = vector.load %arg11[%c0_149, %c3_150, %c0_151, %c0_152] : memref<6x4x32x8xf32, #tpu.memory_space<vmem>>, vector<1x1x32x8xf32>
    %178 = vector.shape_cast %177 : vector<1x1x32x8xf32> to vector<32x8xf32>
    %cst_153 = arith.constant dense<0.000000e+00> : vector<5x8xf32>
    %179 = tpu.matmul %35, %178, %cst_153 {dimension_numbers = #tpu.dot_dimension_numbers<[1], [0], [0], [1], [0, 0, 1, 1], [], []>} : vector<5x32xf32>, vector<32x8xf32>, vector<5x8xf32> -> vector<5x8xf32>
    %c0_154 = arith.constant 0 : index
    %c3_155 = arith.constant 3 : index
    %c0_156 = arith.constant 0 : index
    %c0_157 = arith.constant 0 : index
    %180 = vector.load %arg12[%c0_154, %c3_155, %c0_156, %c0_157] : memref<6x4x1x8xf32, #tpu.memory_space<vmem>>, vector<1x1x1x8xf32>
    %181 = vector.shape_cast %180 : vector<1x1x1x8xf32> to vector<1x8xf32>
    %182 = vector.broadcast %181 : vector<1x8xf32> to vector<5x8xf32>
    %183 = arith.addf %179, %182 : vector<5x8xf32>
    %184 = tpu.transpose %176, [1, 0] : vector<5x8xf32> -> vector<8x5xf32>
    %cst_158 = arith.constant dense<0.000000e+00> : vector<5x5xf32>
    %185 = tpu.matmul %169, %184, %cst_158 {dimension_numbers = #tpu.dot_dimension_numbers<[1], [0], [0], [1], [0, 0, 1, 1], [], []>} : vector<5x8xf32>, vector<8x5xf32>, vector<5x5xf32> -> vector<5x5xf32>
    %cst_159 = arith.constant 0.353553385 : f32
    %186 = vector.broadcast %cst_159 : f32 to vector<5x5xf32>
    %187 = arith.mulf %185, %186 : vector<5x5xf32>
    %cst_160 = arith.constant -1.000000e+30 : f32
    %188 = vector.broadcast %cst_160 : f32 to vector<5x5xf32>
    %189 = arith.select %11, %187, %188 : vector<5x5xi1>, vector<5x5xf32>
    %cst_161 = arith.constant dense<0xFF800000> : vector<5xf32>
    %190 = vector.multi_reduction <maximumf>, %189, %cst_161 [1] : vector<5x5xf32> to vector<5xf32>
    %191 = vector.shape_cast %190 : vector<5xf32> to vector<5x1xf32>
    %192 = vector.broadcast %191 : vector<5x1xf32> to vector<5x5xf32>
    %193 = arith.subf %189, %192 : vector<5x5xf32>
    %194 = math.exp %193 : vector<5x5xf32>
    %cst_162 = arith.constant dense<0.000000e+00> : vector<5xf32>
    %195 = vector.multi_reduction <add>, %194, %cst_162 [1] : vector<5x5xf32> to vector<5xf32>
    %196 = vector.shape_cast %195 : vector<5xf32> to vector<5x1xf32>
    %197 = tpu.reciprocal %196 {approx = true} : vector<5x1xf32> -> vector<5x1xf32>
    %198 = vector.broadcast %197 : vector<5x1xf32> to vector<5x5xf32>
    %199 = arith.mulf %194, %198 : vector<5x5xf32>
    %cst_163 = arith.constant dense<0.000000e+00> : vector<5x8xf32>
    %200 = tpu.matmul %199, %183, %cst_163 {dimension_numbers = #tpu.dot_dimension_numbers<[1], [0], [0], [1], [0, 0, 1, 1], [], []>} : vector<5x5xf32>, vector<5x8xf32>, vector<5x8xf32> -> vector<5x8xf32>
    %c0_164 = arith.constant 0 : index
    %c3_165 = arith.constant 3 : index
    %c0_166 = arith.constant 0 : index
    %c0_167 = arith.constant 0 : index
    %201 = vector.load %arg13[%c0_164, %c3_165, %c0_166, %c0_167] : memref<6x4x8x32xf32, #tpu.memory_space<vmem>>, vector<1x1x8x32xf32>
    %202 = vector.shape_cast %201 : vector<1x1x8x32xf32> to vector<8x32xf32>
    %cst_168 = arith.constant dense<0.000000e+00> : vector<5x32xf32>
    %203 = tpu.matmul %200, %202, %cst_168 {dimension_numbers = #tpu.dot_dimension_numbers<[1], [0], [0], [1], [0, 0, 1, 1], [], []>} : vector<5x8xf32>, vector<8x32xf32>, vector<5x32xf32> -> vector<5x32xf32>
    %204 = arith.addf %162, %203 : vector<5x32xf32>
    %205 = arith.addf %8, %204 : vector<5x32xf32>
    %c0_169 = arith.constant 0 : index
    %c0_170 = arith.constant 0 : index
    %c0_171 = arith.constant 0 : index
    %206 = vector.load %arg14[%c0_169, %c0_170, %c0_171] : memref<6x1x32xf32, #tpu.memory_space<vmem>>, vector<1x1x32xf32>
    %207 = vector.shape_cast %206 : vector<1x1x32xf32> to vector<1x32xf32>
    %208 = vector.broadcast %207 : vector<1x32xf32> to vector<5x32xf32>
    %209 = arith.addf %205, %208 : vector<5x32xf32>
    %c0_172 = arith.constant 0 : index
    %c0_173 = arith.constant 0 : index
    %c0_174 = arith.constant 0 : index
    %210 = vector.load %arg15[%c0_172, %c0_173, %c0_174] : memref<6x1x32xf32, #tpu.memory_space<vmem>>, vector<1x1x32xf32>
    %211 = vector.shape_cast %210 : vector<1x1x32xf32> to vector<1x32xf32>
    %c0_175 = arith.constant 0 : index
    %c0_176 = arith.constant 0 : index
    %c0_177 = arith.constant 0 : index
    %212 = vector.load %arg16[%c0_175, %c0_176, %c0_177] : memref<6x1x32xf32, #tpu.memory_space<vmem>>, vector<1x1x32xf32>
    %213 = vector.shape_cast %212 : vector<1x1x32xf32> to vector<1x32xf32>
    %cst_178 = arith.constant dense<0.000000e+00> : vector<5xf32>
    %214 = vector.multi_reduction <add>, %209, %cst_178 [1] : vector<5x32xf32> to vector<5xf32>
    %215 = vector.shape_cast %214 : vector<5xf32> to vector<5x1xf32>
    %cst_179 = arith.constant 3.200000e+01 : f32
    %216 = vector.broadcast %cst_179 : f32 to vector<5x1xf32>
    %217 = arith.divf %215, %216 : vector<5x1xf32>
    %218 = vector.broadcast %217 : vector<5x1xf32> to vector<5x32xf32>
    %219 = arith.subf %209, %218 : vector<5x32xf32>
    %220 = arith.mulf %219, %219 : vector<5x32xf32>
    %cst_180 = arith.constant dense<0.000000e+00> : vector<5xf32>
    %221 = vector.multi_reduction <add>, %220, %cst_180 [1] : vector<5x32xf32> to vector<5xf32>
    %222 = vector.shape_cast %221 : vector<5xf32> to vector<5x1xf32>
    %cst_181 = arith.constant 3.200000e+01 : f32
    %223 = vector.broadcast %cst_181 : f32 to vector<5x1xf32>
    %224 = arith.divf %222, %223 : vector<5x1xf32>
    %cst_182 = arith.constant 9.99999974E-6 : f32
    %225 = vector.broadcast %cst_182 : f32 to vector<5x1xf32>
    %226 = arith.addf %224, %225 : vector<5x1xf32>
    %227 = math.rsqrt %226 : vector<5x1xf32>
    %228 = vector.broadcast %227 : vector<5x1xf32> to vector<5x32xf32>
    %229 = arith.mulf %219, %228 : vector<5x32xf32>
    %230 = vector.broadcast %211 : vector<1x32xf32> to vector<5x32xf32>
    %231 = arith.mulf %229, %230 : vector<5x32xf32>
    %232 = vector.broadcast %213 : vector<1x32xf32> to vector<5x32xf32>
    %233 = arith.addf %231, %232 : vector<5x32xf32>
    %c0_183 = arith.constant 0 : index
    %c0_184 = arith.constant 0 : index
    %c0_185 = arith.constant 0 : index
    %234 = vector.load %arg17[%c0_183, %c0_184, %c0_185] : memref<6x32x128xf32, #tpu.memory_space<vmem>>, vector<1x32x128xf32>
    %235 = vector.shape_cast %234 : vector<1x32x128xf32> to vector<32x128xf32>
    %cst_186 = arith.constant dense<0.000000e+00> : vector<5x128xf32>
    %236 = tpu.matmul %233, %235, %cst_186 {dimension_numbers = #tpu.dot_dimension_numbers<[1], [0], [0], [1], [0, 0, 1, 1], [], []>} : vector<5x32xf32>, vector<32x128xf32>, vector<5x128xf32> -> vector<5x128xf32>
    %c0_187 = arith.constant 0 : index
    %c0_188 = arith.constant 0 : index
    %c0_189 = arith.constant 0 : index
    %237 = vector.load %arg18[%c0_187, %c0_188, %c0_189] : memref<6x1x128xf32, #tpu.memory_space<vmem>>, vector<1x1x128xf32>
    %238 = vector.shape_cast %237 : vector<1x1x128xf32> to vector<1x128xf32>
    %239 = vector.broadcast %238 : vector<1x128xf32> to vector<5x128xf32>
    %240 = arith.addf %236, %239 : vector<5x128xf32>
    %cst_190 = arith.constant 5.000000e-01 : f32
    %241 = vector.broadcast %cst_190 : f32 to vector<5x128xf32>
    %242 = arith.mulf %241, %240 : vector<5x128xf32>
    %cst_191 = arith.constant 4.471500e-02 : f32
    %243 = vector.broadcast %cst_191 : f32 to vector<5x128xf32>
    %244 = arith.mulf %243, %240 : vector<5x128xf32>
    %245 = arith.mulf %244, %240 : vector<5x128xf32>
    %246 = arith.mulf %245, %240 : vector<5x128xf32>
    %247 = arith.addf %240, %246 : vector<5x128xf32>
    %cst_192 = arith.constant 0.797884583 : f32
    %248 = vector.broadcast %cst_192 : f32 to vector<5x128xf32>
    %249 = arith.mulf %248, %247 : vector<5x128xf32>
    %250 = math.tanh %249 : vector<5x128xf32>
    %cst_193 = arith.constant 1.000000e+00 : f32
    %251 = vector.broadcast %cst_193 : f32 to vector<5x128xf32>
    %252 = arith.addf %251, %250 : vector<5x128xf32>
    %253 = arith.mulf %242, %252 : vector<5x128xf32>
    %c0_194 = arith.constant 0 : index
    %c0_195 = arith.constant 0 : index
    %c0_196 = arith.constant 0 : index
    %254 = vector.load %arg19[%c0_194, %c0_195, %c0_196] : memref<6x128x32xf32, #tpu.memory_space<vmem>>, vector<1x128x32xf32>
    %255 = vector.shape_cast %254 : vector<1x128x32xf32> to vector<128x32xf32>
    %cst_197 = arith.constant dense<0.000000e+00> : vector<5x32xf32>
    %256 = tpu.matmul %253, %255, %cst_197 {dimension_numbers = #tpu.dot_dimension_numbers<[1], [0], [0], [1], [0, 0, 1, 1], [], []>} : vector<5x128xf32>, vector<128x32xf32>, vector<5x32xf32> -> vector<5x32xf32>
    %257 = arith.addf %209, %256 : vector<5x32xf32>
    %c0_198 = arith.constant 0 : index
    %c0_199 = arith.constant 0 : index
    %c0_200 = arith.constant 0 : index
    %258 = vector.load %arg20[%c0_198, %c0_199, %c0_200] : memref<6x1x32xf32, #tpu.memory_space<vmem>>, vector<1x1x32xf32>
    %259 = vector.shape_cast %258 : vector<1x1x32xf32> to vector<1x32xf32>
    %260 = vector.broadcast %259 : vector<1x32xf32> to vector<5x32xf32>
    %261 = arith.addf %257, %260 : vector<5x32xf32>
    %c1_201 = arith.constant 1 : index
    %c0_202 = arith.constant 0 : index
    %c0_203 = arith.constant 0 : index
    %262 = vector.load %arg5[%c1_201, %c0_202, %c0_203] : memref<6x1x32xf32, #tpu.memory_space<vmem>>, vector<1x1x32xf32>
    %263 = vector.shape_cast %262 : vector<1x1x32xf32> to vector<1x32xf32>
    %c1_204 = arith.constant 1 : index
    %c0_205 = arith.constant 0 : index
    %c0_206 = arith.constant 0 : index
    %264 = vector.load %arg6[%c1_204, %c0_205, %c0_206] : memref<6x1x32xf32, #tpu.memory_space<vmem>>, vector<1x1x32xf32>
    %265 = vector.shape_cast %264 : vector<1x1x32xf32> to vector<1x32xf32>
    %cst_207 = arith.constant dense<0.000000e+00> : vector<5xf32>
    %266 = vector.multi_reduction <add>, %261, %cst_207 [1] : vector<5x32xf32> to vector<5xf32>
    %267 = vector.shape_cast %266 : vector<5xf32> to vector<5x1xf32>
    %cst_208 = arith.constant 3.200000e+01 : f32
    %268 = vector.broadcast %cst_208 : f32 to vector<5x1xf32>
    %269 = arith.divf %267, %268 : vector<5x1xf32>
    %270 = vector.broadcast %269 : vector<5x1xf32> to vector<5x32xf32>
    %271 = arith.subf %261, %270 : vector<5x32xf32>
    %272 = arith.mulf %271, %271 : vector<5x32xf32>
    %cst_209 = arith.constant dense<0.000000e+00> : vector<5xf32>
    %273 = vector.multi_reduction <add>, %272, %cst_209 [1] : vector<5x32xf32> to vector<5xf32>
    %274 = vector.shape_cast %273 : vector<5xf32> to vector<5x1xf32>
    %cst_210 = arith.constant 3.200000e+01 : f32
    %275 = vector.broadcast %cst_210 : f32 to vector<5x1xf32>
    %276 = arith.divf %274, %275 : vector<5x1xf32>
    %cst_211 = arith.constant 9.99999974E-6 : f32
    %277 = vector.broadcast %cst_211 : f32 to vector<5x1xf32>
    %278 = arith.addf %276, %277 : vector<5x1xf32>
    %279 = math.rsqrt %278 : vector<5x1xf32>
    %280 = vector.broadcast %279 : vector<5x1xf32> to vector<5x32xf32>
    %281 = arith.mulf %271, %280 : vector<5x32xf32>
    %282 = vector.broadcast %263 : vector<1x32xf32> to vector<5x32xf32>
    %283 = arith.mulf %281, %282 : vector<5x32xf32>
    %284 = vector.broadcast %265 : vector<1x32xf32> to vector<5x32xf32>
    %285 = arith.addf %283, %284 : vector<5x32xf32>
    %cst_212 = arith.constant 0.000000e+00 : f32
    %286 = vector.broadcast %cst_212 : f32 to vector<5x32xf32>
    %c1_213 = arith.constant 1 : index
    %c0_214 = arith.constant 0 : index
    %c0_215 = arith.constant 0 : index
    %c0_216 = arith.constant 0 : index
    %287 = vector.load %arg7[%c1_213, %c0_214, %c0_215, %c0_216] : memref<6x4x32x8xf32, #tpu.memory_space<vmem>>, vector<1x1x32x8xf32>
    %288 = vector.shape_cast %287 : vector<1x1x32x8xf32> to vector<32x8xf32>
    %cst_217 = arith.constant dense<0.000000e+00> : vector<5x8xf32>
    %289 = tpu.matmul %285, %288, %cst_217 {dimension_numbers = #tpu.dot_dimension_numbers<[1], [0], [0], [1], [0, 0, 1, 1], [], []>} : vector<5x32xf32>, vector<32x8xf32>, vector<5x8xf32> -> vector<5x8xf32>
    %c1_218 = arith.constant 1 : index
    %c0_219 = arith.constant 0 : index
    %c0_220 = arith.constant 0 : index
    %c0_221 = arith.constant 0 : index
    %290 = vector.load %arg8[%c1_218, %c0_219, %c0_220, %c0_221] : memref<6x4x1x8xf32, #tpu.memory_space<vmem>>, vector<1x1x1x8xf32>
    %291 = vector.shape_cast %290 : vector<1x1x1x8xf32> to vector<1x8xf32>
    %292 = vector.broadcast %291 : vector<1x8xf32> to vector<5x8xf32>
    %293 = arith.addf %289, %292 : vector<5x8xf32>
    %c1_222 = arith.constant 1 : index
    %c0_223 = arith.constant 0 : index
    %c0_224 = arith.constant 0 : index
    %c0_225 = arith.constant 0 : index
    %294 = vector.load %arg9[%c1_222, %c0_223, %c0_224, %c0_225] : memref<6x4x32x8xf32, #tpu.memory_space<vmem>>, vector<1x1x32x8xf32>
    %295 = vector.shape_cast %294 : vector<1x1x32x8xf32> to vector<32x8xf32>
    %cst_226 = arith.constant dense<0.000000e+00> : vector<5x8xf32>
    %296 = tpu.matmul %285, %295, %cst_226 {dimension_numbers = #tpu.dot_dimension_numbers<[1], [0], [0], [1], [0, 0, 1, 1], [], []>} : vector<5x32xf32>, vector<32x8xf32>, vector<5x8xf32> -> vector<5x8xf32>
    %c1_227 = arith.constant 1 : index
    %c0_228 = arith.constant 0 : index
    %c0_229 = arith.constant 0 : index
    %c0_230 = arith.constant 0 : index
    %297 = vector.load %arg10[%c1_227, %c0_228, %c0_229, %c0_230] : memref<6x4x1x8xf32, #tpu.memory_space<vmem>>, vector<1x1x1x8xf32>
    %298 = vector.shape_cast %297 : vector<1x1x1x8xf32> to vector<1x8xf32>
    %299 = vector.broadcast %298 : vector<1x8xf32> to vector<5x8xf32>
    %300 = arith.addf %296, %299 : vector<5x8xf32>
    %c1_231 = arith.constant 1 : index
    %c0_232 = arith.constant 0 : index
    %c0_233 = arith.constant 0 : index
    %c0_234 = arith.constant 0 : index
    %301 = vector.load %arg11[%c1_231, %c0_232, %c0_233, %c0_234] : memref<6x4x32x8xf32, #tpu.memory_space<vmem>>, vector<1x1x32x8xf32>
    %302 = vector.shape_cast %301 : vector<1x1x32x8xf32> to vector<32x8xf32>
    %cst_235 = arith.constant dense<0.000000e+00> : vector<5x8xf32>
    %303 = tpu.matmul %285, %302, %cst_235 {dimension_numbers = #tpu.dot_dimension_numbers<[1], [0], [0], [1], [0, 0, 1, 1], [], []>} : vector<5x32xf32>, vector<32x8xf32>, vector<5x8xf32> -> vector<5x8xf32>
    %c1_236 = arith.constant 1 : index
    %c0_237 = arith.constant 0 : index
    %c0_238 = arith.constant 0 : index
    %c0_239 = arith.constant 0 : index
    %304 = vector.load %arg12[%c1_236, %c0_237, %c0_238, %c0_239] : memref<6x4x1x8xf32, #tpu.memory_space<vmem>>, vector<1x1x1x8xf32>
    %305 = vector.shape_cast %304 : vector<1x1x1x8xf32> to vector<1x8xf32>
    %306 = vector.broadcast %305 : vector<1x8xf32> to vector<5x8xf32>
    %307 = arith.addf %303, %306 : vector<5x8xf32>
    %308 = tpu.transpose %300, [1, 0] : vector<5x8xf32> -> vector<8x5xf32>
    %cst_240 = arith.constant dense<0.000000e+00> : vector<5x5xf32>
    %309 = tpu.matmul %293, %308, %cst_240 {dimension_numbers = #tpu.dot_dimension_numbers<[1], [0], [0], [1], [0, 0, 1, 1], [], []>} : vector<5x8xf32>, vector<8x5xf32>, vector<5x5xf32> -> vector<5x5xf32>
    %cst_241 = arith.constant 0.353553385 : f32
    %310 = vector.broadcast %cst_241 : f32 to vector<5x5xf32>
    %311 = arith.mulf %309, %310 : vector<5x5xf32>
    %cst_242 = arith.constant -1.000000e+30 : f32
    %312 = vector.broadcast %cst_242 : f32 to vector<5x5xf32>
    %313 = arith.select %11, %311, %312 : vector<5x5xi1>, vector<5x5xf32>
    %cst_243 = arith.constant dense<0xFF800000> : vector<5xf32>
    %314 = vector.multi_reduction <maximumf>, %313, %cst_243 [1] : vector<5x5xf32> to vector<5xf32>
    %315 = vector.shape_cast %314 : vector<5xf32> to vector<5x1xf32>
    %316 = vector.broadcast %315 : vector<5x1xf32> to vector<5x5xf32>
    %317 = arith.subf %313, %316 : vector<5x5xf32>
    %318 = math.exp %317 : vector<5x5xf32>
    %cst_244 = arith.constant dense<0.000000e+00> : vector<5xf32>
    %319 = vector.multi_reduction <add>, %318, %cst_244 [1] : vector<5x5xf32> to vector<5xf32>
    %320 = vector.shape_cast %319 : vector<5xf32> to vector<5x1xf32>
    %321 = tpu.reciprocal %320 {approx = true} : vector<5x1xf32> -> vector<5x1xf32>
    %322 = vector.broadcast %321 : vector<5x1xf32> to vector<5x5xf32>
    %323 = arith.mulf %318, %322 : vector<5x5xf32>
    %cst_245 = arith.constant dense<0.000000e+00> : vector<5x8xf32>
    %324 = tpu.matmul %323, %307, %cst_245 {dimension_numbers = #tpu.dot_dimension_numbers<[1], [0], [0], [1], [0, 0, 1, 1], [], []>} : vector<5x5xf32>, vector<5x8xf32>, vector<5x8xf32> -> vector<5x8xf32>
    %c1_246 = arith.constant 1 : index
    %c0_247 = arith.constant 0 : index
    %c0_248 = arith.constant 0 : index
    %c0_249 = arith.constant 0 : index
    %325 = vector.load %arg13[%c1_246, %c0_247, %c0_248, %c0_249] : memref<6x4x8x32xf32, #tpu.memory_space<vmem>>, vector<1x1x8x32xf32>
    %326 = vector.shape_cast %325 : vector<1x1x8x32xf32> to vector<8x32xf32>
    %cst_250 = arith.constant dense<0.000000e+00> : vector<5x32xf32>
    %327 = tpu.matmul %324, %326, %cst_250 {dimension_numbers = #tpu.dot_dimension_numbers<[1], [0], [0], [1], [0, 0, 1, 1], [], []>} : vector<5x8xf32>, vector<8x32xf32>, vector<5x32xf32> -> vector<5x32xf32>
    %328 = arith.addf %286, %327 : vector<5x32xf32>
    %c1_251 = arith.constant 1 : index
    %c1_252 = arith.constant 1 : index
    %c0_253 = arith.constant 0 : index
    %c0_254 = arith.constant 0 : index
    %329 = vector.load %arg7[%c1_251, %c1_252, %c0_253, %c0_254] : memref<6x4x32x8xf32, #tpu.memory_space<vmem>>, vector<1x1x32x8xf32>
    %330 = vector.shape_cast %329 : vector<1x1x32x8xf32> to vector<32x8xf32>
    %cst_255 = arith.constant dense<0.000000e+00> : vector<5x8xf32>
    %331 = tpu.matmul %285, %330, %cst_255 {dimension_numbers = #tpu.dot_dimension_numbers<[1], [0], [0], [1], [0, 0, 1, 1], [], []>} : vector<5x32xf32>, vector<32x8xf32>, vector<5x8xf32> -> vector<5x8xf32>
    %c1_256 = arith.constant 1 : index
    %c1_257 = arith.constant 1 : index
    %c0_258 = arith.constant 0 : index
    %c0_259 = arith.constant 0 : index
    %332 = vector.load %arg8[%c1_256, %c1_257, %c0_258, %c0_259] : memref<6x4x1x8xf32, #tpu.memory_space<vmem>>, vector<1x1x1x8xf32>
    %333 = vector.shape_cast %332 : vector<1x1x1x8xf32> to vector<1x8xf32>
    %334 = vector.broadcast %333 : vector<1x8xf32> to vector<5x8xf32>
    %335 = arith.addf %331, %334 : vector<5x8xf32>
    %c1_260 = arith.constant 1 : index
    %c1_261 = arith.constant 1 : index
    %c0_262 = arith.constant 0 : index
    %c0_263 = arith.constant 0 : index
    %336 = vector.load %arg9[%c1_260, %c1_261, %c0_262, %c0_263] : memref<6x4x32x8xf32, #tpu.memory_space<vmem>>, vector<1x1x32x8xf32>
    %337 = vector.shape_cast %336 : vector<1x1x32x8xf32> to vector<32x8xf32>
    %cst_264 = arith.constant dense<0.000000e+00> : vector<5x8xf32>
    %338 = tpu.matmul %285, %337, %cst_264 {dimension_numbers = #tpu.dot_dimension_numbers<[1], [0], [0], [1], [0, 0, 1, 1], [], []>} : vector<5x32xf32>, vector<32x8xf32>, vector<5x8xf32> -> vector<5x8xf32>
    %c1_265 = arith.constant 1 : index
    %c1_266 = arith.constant 1 : index
    %c0_267 = arith.constant 0 : index
    %c0_268 = arith.constant 0 : index
    %339 = vector.load %arg10[%c1_265, %c1_266, %c0_267, %c0_268] : memref<6x4x1x8xf32, #tpu.memory_space<vmem>>, vector<1x1x1x8xf32>
    %340 = vector.shape_cast %339 : vector<1x1x1x8xf32> to vector<1x8xf32>
    %341 = vector.broadcast %340 : vector<1x8xf32> to vector<5x8xf32>
    %342 = arith.addf %338, %341 : vector<5x8xf32>
    %c1_269 = arith.constant 1 : index
    %c1_270 = arith.constant 1 : index
    %c0_271 = arith.constant 0 : index
    %c0_272 = arith.constant 0 : index
    %343 = vector.load %arg11[%c1_269, %c1_270, %c0_271, %c0_272] : memref<6x4x32x8xf32, #tpu.memory_space<vmem>>, vector<1x1x32x8xf32>
    %344 = vector.shape_cast %343 : vector<1x1x32x8xf32> to vector<32x8xf32>
    %cst_273 = arith.constant dense<0.000000e+00> : vector<5x8xf32>
    %345 = tpu.matmul %285, %344, %cst_273 {dimension_numbers = #tpu.dot_dimension_numbers<[1], [0], [0], [1], [0, 0, 1, 1], [], []>} : vector<5x32xf32>, vector<32x8xf32>, vector<5x8xf32> -> vector<5x8xf32>
    %c1_274 = arith.constant 1 : index
    %c1_275 = arith.constant 1 : index
    %c0_276 = arith.constant 0 : index
    %c0_277 = arith.constant 0 : index
    %346 = vector.load %arg12[%c1_274, %c1_275, %c0_276, %c0_277] : memref<6x4x1x8xf32, #tpu.memory_space<vmem>>, vector<1x1x1x8xf32>
    %347 = vector.shape_cast %346 : vector<1x1x1x8xf32> to vector<1x8xf32>
    %348 = vector.broadcast %347 : vector<1x8xf32> to vector<5x8xf32>
    %349 = arith.addf %345, %348 : vector<5x8xf32>
    %350 = tpu.transpose %342, [1, 0] : vector<5x8xf32> -> vector<8x5xf32>
    %cst_278 = arith.constant dense<0.000000e+00> : vector<5x5xf32>
    %351 = tpu.matmul %335, %350, %cst_278 {dimension_numbers = #tpu.dot_dimension_numbers<[1], [0], [0], [1], [0, 0, 1, 1], [], []>} : vector<5x8xf32>, vector<8x5xf32>, vector<5x5xf32> -> vector<5x5xf32>
    %cst_279 = arith.constant 0.353553385 : f32
    %352 = vector.broadcast %cst_279 : f32 to vector<5x5xf32>
    %353 = arith.mulf %351, %352 : vector<5x5xf32>
    %cst_280 = arith.constant -1.000000e+30 : f32
    %354 = vector.broadcast %cst_280 : f32 to vector<5x5xf32>
    %355 = arith.select %11, %353, %354 : vector<5x5xi1>, vector<5x5xf32>
    %cst_281 = arith.constant dense<0xFF800000> : vector<5xf32>
    %356 = vector.multi_reduction <maximumf>, %355, %cst_281 [1] : vector<5x5xf32> to vector<5xf32>
    %357 = vector.shape_cast %356 : vector<5xf32> to vector<5x1xf32>
    %358 = vector.broadcast %357 : vector<5x1xf32> to vector<5x5xf32>
    %359 = arith.subf %355, %358 : vector<5x5xf32>
    %360 = math.exp %359 : vector<5x5xf32>
    %cst_282 = arith.constant dense<0.000000e+00> : vector<5xf32>
    %361 = vector.multi_reduction <add>, %360, %cst_282 [1] : vector<5x5xf32> to vector<5xf32>
    %362 = vector.shape_cast %361 : vector<5xf32> to vector<5x1xf32>
    %363 = tpu.reciprocal %362 {approx = true} : vector<5x1xf32> -> vector<5x1xf32>
    %364 = vector.broadcast %363 : vector<5x1xf32> to vector<5x5xf32>
    %365 = arith.mulf %360, %364 : vector<5x5xf32>
    %cst_283 = arith.constant dense<0.000000e+00> : vector<5x8xf32>
    %366 = tpu.matmul %365, %349, %cst_283 {dimension_numbers = #tpu.dot_dimension_numbers<[1], [0], [0], [1], [0, 0, 1, 1], [], []>} : vector<5x5xf32>, vector<5x8xf32>, vector<5x8xf32> -> vector<5x8xf32>
    %c1_284 = arith.constant 1 : index
    %c1_285 = arith.constant 1 : index
    %c0_286 = arith.constant 0 : index
    %c0_287 = arith.constant 0 : index
    %367 = vector.load %arg13[%c1_284, %c1_285, %c0_286, %c0_287] : memref<6x4x8x32xf32, #tpu.memory_space<vmem>>, vector<1x1x8x32xf32>
    %368 = vector.shape_cast %367 : vector<1x1x8x32xf32> to vector<8x32xf32>
    %cst_288 = arith.constant dense<0.000000e+00> : vector<5x32xf32>
    %369 = tpu.matmul %366, %368, %cst_288 {dimension_numbers = #tpu.dot_dimension_numbers<[1], [0], [0], [1], [0, 0, 1, 1], [], []>} : vector<5x8xf32>, vector<8x32xf32>, vector<5x32xf32> -> vector<5x32xf32>
    %370 = arith.addf %328, %369 : vector<5x32xf32>
    %c1_289 = arith.constant 1 : index
    %c2_290 = arith.constant 2 : index
    %c0_291 = arith.constant 0 : index
    %c0_292 = arith.constant 0 : index
    %371 = vector.load %arg7[%c1_289, %c2_290, %c0_291, %c0_292] : memref<6x4x32x8xf32, #tpu.memory_space<vmem>>, vector<1x1x32x8xf32>
    %372 = vector.shape_cast %371 : vector<1x1x32x8xf32> to vector<32x8xf32>
    %cst_293 = arith.constant dense<0.000000e+00> : vector<5x8xf32>
    %373 = tpu.matmul %285, %372, %cst_293 {dimension_numbers = #tpu.dot_dimension_numbers<[1], [0], [0], [1], [0, 0, 1, 1], [], []>} : vector<5x32xf32>, vector<32x8xf32>, vector<5x8xf32> -> vector<5x8xf32>
    %c1_294 = arith.constant 1 : index
    %c2_295 = arith.constant 2 : index
    %c0_296 = arith.constant 0 : index
    %c0_297 = arith.constant 0 : index
    %374 = vector.load %arg8[%c1_294, %c2_295, %c0_296, %c0_297] : memref<6x4x1x8xf32, #tpu.memory_space<vmem>>, vector<1x1x1x8xf32>
    %375 = vector.shape_cast %374 : vector<1x1x1x8xf32> to vector<1x8xf32>
    %376 = vector.broadcast %375 : vector<1x8xf32> to vector<5x8xf32>
    %377 = arith.addf %373, %376 : vector<5x8xf32>
    %c1_298 = arith.constant 1 : index
    %c2_299 = arith.constant 2 : index
    %c0_300 = arith.constant 0 : index
    %c0_301 = arith.constant 0 : index
    %378 = vector.load %arg9[%c1_298, %c2_299, %c0_300, %c0_301] : memref<6x4x32x8xf32, #tpu.memory_space<vmem>>, vector<1x1x32x8xf32>
    %379 = vector.shape_cast %378 : vector<1x1x32x8xf32> to vector<32x8xf32>
    %cst_302 = arith.constant dense<0.000000e+00> : vector<5x8xf32>
    %380 = tpu.matmul %285, %379, %cst_302 {dimension_numbers = #tpu.dot_dimension_numbers<[1], [0], [0], [1], [0, 0, 1, 1], [], []>} : vector<5x32xf32>, vector<32x8xf32>, vector<5x8xf32> -> vector<5x8xf32>
    %c1_303 = arith.constant 1 : index
    %c2_304 = arith.constant 2 : index
    %c0_305 = arith.constant 0 : index
    %c0_306 = arith.constant 0 : index
    %381 = vector.load %arg10[%c1_303, %c2_304, %c0_305, %c0_306] : memref<6x4x1x8xf32, #tpu.memory_space<vmem>>, vector<1x1x1x8xf32>
    %382 = vector.shape_cast %381 : vector<1x1x1x8xf32> to vector<1x8xf32>
    %383 = vector.broadcast %382 : vector<1x8xf32> to vector<5x8xf32>
    %384 = arith.addf %380, %383 : vector<5x8xf32>
    %c1_307 = arith.constant 1 : index
    %c2_308 = arith.constant 2 : index
    %c0_309 = arith.constant 0 : index
    %c0_310 = arith.constant 0 : index
    %385 = vector.load %arg11[%c1_307, %c2_308, %c0_309, %c0_310] : memref<6x4x32x8xf32, #tpu.memory_space<vmem>>, vector<1x1x32x8xf32>
    %386 = vector.shape_cast %385 : vector<1x1x32x8xf32> to vector<32x8xf32>
    %cst_311 = arith.constant dense<0.000000e+00> : vector<5x8xf32>
    %387 = tpu.matmul %285, %386, %cst_311 {dimension_numbers = #tpu.dot_dimension_numbers<[1], [0], [0], [1], [0, 0, 1, 1], [], []>} : vector<5x32xf32>, vector<32x8xf32>, vector<5x8xf32> -> vector<5x8xf32>
    %c1_312 = arith.constant 1 : index
    %c2_313 = arith.constant 2 : index
    %c0_314 = arith.constant 0 : index
    %c0_315 = arith.constant 0 : index
    %388 = vector.load %arg12[%c1_312, %c2_313, %c0_314, %c0_315] : memref<6x4x1x8xf32, #tpu.memory_space<vmem>>, vector<1x1x1x8xf32>
    %389 = vector.shape_cast %388 : vector<1x1x1x8xf32> to vector<1x8xf32>
    %390 = vector.broadcast %389 : vector<1x8xf32> to vector<5x8xf32>
    %391 = arith.addf %387, %390 : vector<5x8xf32>
    %392 = tpu.transpose %384, [1, 0] : vector<5x8xf32> -> vector<8x5xf32>
    %cst_316 = arith.constant dense<0.000000e+00> : vector<5x5xf32>
    %393 = tpu.matmul %377, %392, %cst_316 {dimension_numbers = #tpu.dot_dimension_numbers<[1], [0], [0], [1], [0, 0, 1, 1], [], []>} : vector<5x8xf32>, vector<8x5xf32>, vector<5x5xf32> -> vector<5x5xf32>
    %cst_317 = arith.constant 0.353553385 : f32
    %394 = vector.broadcast %cst_317 : f32 to vector<5x5xf32>
    %395 = arith.mulf %393, %394 : vector<5x5xf32>
    %cst_318 = arith.constant -1.000000e+30 : f32
    %396 = vector.broadcast %cst_318 : f32 to vector<5x5xf32>
    %397 = arith.select %11, %395, %396 : vector<5x5xi1>, vector<5x5xf32>
    %cst_319 = arith.constant dense<0xFF800000> : vector<5xf32>
    %398 = vector.multi_reduction <maximumf>, %397, %cst_319 [1] : vector<5x5xf32> to vector<5xf32>
    %399 = vector.shape_cast %398 : vector<5xf32> to vector<5x1xf32>
    %400 = vector.broadcast %399 : vector<5x1xf32> to vector<5x5xf32>
    %401 = arith.subf %397, %400 : vector<5x5xf32>
    %402 = math.exp %401 : vector<5x5xf32>
    %cst_320 = arith.constant dense<0.000000e+00> : vector<5xf32>
    %403 = vector.multi_reduction <add>, %402, %cst_320 [1] : vector<5x5xf32> to vector<5xf32>
    %404 = vector.shape_cast %403 : vector<5xf32> to vector<5x1xf32>
    %405 = tpu.reciprocal %404 {approx = true} : vector<5x1xf32> -> vector<5x1xf32>
    %406 = vector.broadcast %405 : vector<5x1xf32> to vector<5x5xf32>
    %407 = arith.mulf %402, %406 : vector<5x5xf32>
    %cst_321 = arith.constant dense<0.000000e+00> : vector<5x8xf32>
    %408 = tpu.matmul %407, %391, %cst_321 {dimension_numbers = #tpu.dot_dimension_numbers<[1], [0], [0], [1], [0, 0, 1, 1], [], []>} : vector<5x5xf32>, vector<5x8xf32>, vector<5x8xf32> -> vector<5x8xf32>
    %c1_322 = arith.constant 1 : index
    %c2_323 = arith.constant 2 : index
    %c0_324 = arith.constant 0 : index
    %c0_325 = arith.constant 0 : index
    %409 = vector.load %arg13[%c1_322, %c2_323, %c0_324, %c0_325] : memref<6x4x8x32xf32, #tpu.memory_space<vmem>>, vector<1x1x8x32xf32>
    %410 = vector.shape_cast %409 : vector<1x1x8x32xf32> to vector<8x32xf32>
    %cst_326 = arith.constant dense<0.000000e+00> : vector<5x32xf32>
    %411 = tpu.matmul %408, %410, %cst_326 {dimension_numbers = #tpu.dot_dimension_numbers<[1], [0], [0], [1], [0, 0, 1, 1], [], []>} : vector<5x8xf32>, vector<8x32xf32>, vector<5x32xf32> -> vector<5x32xf32>
    %412 = arith.addf %370, %411 : vector<5x32xf32>
    %c1_327 = arith.constant 1 : index
    %c3_328 = arith.constant 3 : index
    %c0_329 = arith.constant 0 : index
    %c0_330 = arith.constant 0 : index
    %413 = vector.load %arg7[%c1_327, %c3_328, %c0_329, %c0_330] : memref<6x4x32x8xf32, #tpu.memory_space<vmem>>, vector<1x1x32x8xf32>
    %414 = vector.shape_cast %413 : vector<1x1x32x8xf32> to vector<32x8xf32>
    %cst_331 = arith.constant dense<0.000000e+00> : vector<5x8xf32>
    %415 = tpu.matmul %285, %414, %cst_331 {dimension_numbers = #tpu.dot_dimension_numbers<[1], [0], [0], [1], [0, 0, 1, 1], [], []>} : vector<5x32xf32>, vector<32x8xf32>, vector<5x8xf32> -> vector<5x8xf32>
    %c1_332 = arith.constant 1 : index
    %c3_333 = arith.constant 3 : index
    %c0_334 = arith.constant 0 : index
    %c0_335 = arith.constant 0 : index
    %416 = vector.load %arg8[%c1_332, %c3_333, %c0_334, %c0_335] : memref<6x4x1x8xf32, #tpu.memory_space<vmem>>, vector<1x1x1x8xf32>
    %417 = vector.shape_cast %416 : vector<1x1x1x8xf32> to vector<1x8xf32>
    %418 = vector.broadcast %417 : vector<1x8xf32> to vector<5x8xf32>
    %419 = arith.addf %415, %418 : vector<5x8xf32>
    %c1_336 = arith.constant 1 : index
    %c3_337 = arith.constant 3 : index
    %c0_338 = arith.constant 0 : index
    %c0_339 = arith.constant 0 : index
    %420 = vector.load %arg9[%c1_336, %c3_337, %c0_338, %c0_339] : memref<6x4x32x8xf32, #tpu.memory_space<vmem>>, vector<1x1x32x8xf32>
    %421 = vector.shape_cast %420 : vector<1x1x32x8xf32> to vector<32x8xf32>
    %cst_340 = arith.constant dense<0.000000e+00> : vector<5x8xf32>
    %422 = tpu.matmul %285, %421, %cst_340 {dimension_numbers = #tpu.dot_dimension_numbers<[1], [0], [0], [1], [0, 0, 1, 1], [], []>} : vector<5x32xf32>, vector<32x8xf32>, vector<5x8xf32> -> vector<5x8xf32>
    %c1_341 = arith.constant 1 : index
    %c3_342 = arith.constant 3 : index
    %c0_343 = arith.constant 0 : index
    %c0_344 = arith.constant 0 : index
    %423 = vector.load %arg10[%c1_341, %c3_342, %c0_343, %c0_344] : memref<6x4x1x8xf32, #tpu.memory_space<vmem>>, vector<1x1x1x8xf32>
    %424 = vector.shape_cast %423 : vector<1x1x1x8xf32> to vector<1x8xf32>
    %425 = vector.broadcast %424 : vector<1x8xf32> to vector<5x8xf32>
    %426 = arith.addf %422, %425 : vector<5x8xf32>
    %c1_345 = arith.constant 1 : index
    %c3_346 = arith.constant 3 : index
    %c0_347 = arith.constant 0 : index
    %c0_348 = arith.constant 0 : index
    %427 = vector.load %arg11[%c1_345, %c3_346, %c0_347, %c0_348] : memref<6x4x32x8xf32, #tpu.memory_space<vmem>>, vector<1x1x32x8xf32>
    %428 = vector.shape_cast %427 : vector<1x1x32x8xf32> to vector<32x8xf32>
    %cst_349 = arith.constant dense<0.000000e+00> : vector<5x8xf32>
    %429 = tpu.matmul %285, %428, %cst_349 {dimension_numbers = #tpu.dot_dimension_numbers<[1], [0], [0], [1], [0, 0, 1, 1], [], []>} : vector<5x32xf32>, vector<32x8xf32>, vector<5x8xf32> -> vector<5x8xf32>
    %c1_350 = arith.constant 1 : index
    %c3_351 = arith.constant 3 : index
    %c0_352 = arith.constant 0 : index
    %c0_353 = arith.constant 0 : index
    %430 = vector.load %arg12[%c1_350, %c3_351, %c0_352, %c0_353] : memref<6x4x1x8xf32, #tpu.memory_space<vmem>>, vector<1x1x1x8xf32>
    %431 = vector.shape_cast %430 : vector<1x1x1x8xf32> to vector<1x8xf32>
    %432 = vector.broadcast %431 : vector<1x8xf32> to vector<5x8xf32>
    %433 = arith.addf %429, %432 : vector<5x8xf32>
    %434 = tpu.transpose %426, [1, 0] : vector<5x8xf32> -> vector<8x5xf32>
    %cst_354 = arith.constant dense<0.000000e+00> : vector<5x5xf32>
    %435 = tpu.matmul %419, %434, %cst_354 {dimension_numbers = #tpu.dot_dimension_numbers<[1], [0], [0], [1], [0, 0, 1, 1], [], []>} : vector<5x8xf32>, vector<8x5xf32>, vector<5x5xf32> -> vector<5x5xf32>
    %cst_355 = arith.constant 0.353553385 : f32
    %436 = vector.broadcast %cst_355 : f32 to vector<5x5xf32>
    %437 = arith.mulf %435, %436 : vector<5x5xf32>
    %cst_356 = arith.constant -1.000000e+30 : f32
    %438 = vector.broadcast %cst_356 : f32 to vector<5x5xf32>
    %439 = arith.select %11, %437, %438 : vector<5x5xi1>, vector<5x5xf32>
    %cst_357 = arith.constant dense<0xFF800000> : vector<5xf32>
    %440 = vector.multi_reduction <maximumf>, %439, %cst_357 [1] : vector<5x5xf32> to vector<5xf32>
    %441 = vector.shape_cast %440 : vector<5xf32> to vector<5x1xf32>
    %442 = vector.broadcast %441 : vector<5x1xf32> to vector<5x5xf32>
    %443 = arith.subf %439, %442 : vector<5x5xf32>
    %444 = math.exp %443 : vector<5x5xf32>
    %cst_358 = arith.constant dense<0.000000e+00> : vector<5xf32>
    %445 = vector.multi_reduction <add>, %444, %cst_358 [1] : vector<5x5xf32> to vector<5xf32>
    %446 = vector.shape_cast %445 : vector<5xf32> to vector<5x1xf32>
    %447 = tpu.reciprocal %446 {approx = true} : vector<5x1xf32> -> vector<5x1xf32>
    %448 = vector.broadcast %447 : vector<5x1xf32> to vector<5x5xf32>
    %449 = arith.mulf %444, %448 : vector<5x5xf32>
    %cst_359 = arith.constant dense<0.000000e+00> : vector<5x8xf32>
    %450 = tpu.matmul %449, %433, %cst_359 {dimension_numbers = #tpu.dot_dimension_numbers<[1], [0], [0], [1], [0, 0, 1, 1], [], []>} : vector<5x5xf32>, vector<5x8xf32>, vector<5x8xf32> -> vector<5x8xf32>
    %c1_360 = arith.constant 1 : index
    %c3_361 = arith.constant 3 : index
    %c0_362 = arith.constant 0 : index
    %c0_363 = arith.constant 0 : index
    %451 = vector.load %arg13[%c1_360, %c3_361, %c0_362, %c0_363] : memref<6x4x8x32xf32, #tpu.memory_space<vmem>>, vector<1x1x8x32xf32>
    %452 = vector.shape_cast %451 : vector<1x1x8x32xf32> to vector<8x32xf32>
    %cst_364 = arith.constant dense<0.000000e+00> : vector<5x32xf32>
    %453 = tpu.matmul %450, %452, %cst_364 {dimension_numbers = #tpu.dot_dimension_numbers<[1], [0], [0], [1], [0, 0, 1, 1], [], []>} : vector<5x8xf32>, vector<8x32xf32>, vector<5x32xf32> -> vector<5x32xf32>
    %454 = arith.addf %412, %453 : vector<5x32xf32>
    %455 = arith.addf %261, %454 : vector<5x32xf32>
    %c1_365 = arith.constant 1 : index
    %c0_366 = arith.constant 0 : index
    %c0_367 = arith.constant 0 : index
    %456 = vector.load %arg14[%c1_365, %c0_366, %c0_367] : memref<6x1x32xf32, #tpu.memory_space<vmem>>, vector<1x1x32xf32>
    %457 = vector.shape_cast %456 : vector<1x1x32xf32> to vector<1x32xf32>
    %458 = vector.broadcast %457 : vector<1x32xf32> to vector<5x32xf32>
    %459 = arith.addf %455, %458 : vector<5x32xf32>
    %c1_368 = arith.constant 1 : index
    %c0_369 = arith.constant 0 : index
    %c0_370 = arith.constant 0 : index
    %460 = vector.load %arg15[%c1_368, %c0_369, %c0_370] : memref<6x1x32xf32, #tpu.memory_space<vmem>>, vector<1x1x32xf32>
    %461 = vector.shape_cast %460 : vector<1x1x32xf32> to vector<1x32xf32>
    %c1_371 = arith.constant 1 : index
    %c0_372 = arith.constant 0 : index
    %c0_373 = arith.constant 0 : index
    %462 = vector.load %arg16[%c1_371, %c0_372, %c0_373] : memref<6x1x32xf32, #tpu.memory_space<vmem>>, vector<1x1x32xf32>
    %463 = vector.shape_cast %462 : vector<1x1x32xf32> to vector<1x32xf32>
    %cst_374 = arith.constant dense<0.000000e+00> : vector<5xf32>
    %464 = vector.multi_reduction <add>, %459, %cst_374 [1] : vector<5x32xf32> to vector<5xf32>
    %465 = vector.shape_cast %464 : vector<5xf32> to vector<5x1xf32>
    %cst_375 = arith.constant 3.200000e+01 : f32
    %466 = vector.broadcast %cst_375 : f32 to vector<5x1xf32>
    %467 = arith.divf %465, %466 : vector<5x1xf32>
    %468 = vector.broadcast %467 : vector<5x1xf32> to vector<5x32xf32>
    %469 = arith.subf %459, %468 : vector<5x32xf32>
    %470 = arith.mulf %469, %469 : vector<5x32xf32>
    %cst_376 = arith.constant dense<0.000000e+00> : vector<5xf32>
    %471 = vector.multi_reduction <add>, %470, %cst_376 [1] : vector<5x32xf32> to vector<5xf32>
    %472 = vector.shape_cast %471 : vector<5xf32> to vector<5x1xf32>
    %cst_377 = arith.constant 3.200000e+01 : f32
    %473 = vector.broadcast %cst_377 : f32 to vector<5x1xf32>
    %474 = arith.divf %472, %473 : vector<5x1xf32>
    %cst_378 = arith.constant 9.99999974E-6 : f32
    %475 = vector.broadcast %cst_378 : f32 to vector<5x1xf32>
    %476 = arith.addf %474, %475 : vector<5x1xf32>
    %477 = math.rsqrt %476 : vector<5x1xf32>
    %478 = vector.broadcast %477 : vector<5x1xf32> to vector<5x32xf32>
    %479 = arith.mulf %469, %478 : vector<5x32xf32>
    %480 = vector.broadcast %461 : vector<1x32xf32> to vector<5x32xf32>
    %481 = arith.mulf %479, %480 : vector<5x32xf32>
    %482 = vector.broadcast %463 : vector<1x32xf32> to vector<5x32xf32>
    %483 = arith.addf %481, %482 : vector<5x32xf32>
    %c1_379 = arith.constant 1 : index
    %c0_380 = arith.constant 0 : index
    %c0_381 = arith.constant 0 : index
    %484 = vector.load %arg17[%c1_379, %c0_380, %c0_381] : memref<6x32x128xf32, #tpu.memory_space<vmem>>, vector<1x32x128xf32>
    %485 = vector.shape_cast %484 : vector<1x32x128xf32> to vector<32x128xf32>
    %cst_382 = arith.constant dense<0.000000e+00> : vector<5x128xf32>
    %486 = tpu.matmul %483, %485, %cst_382 {dimension_numbers = #tpu.dot_dimension_numbers<[1], [0], [0], [1], [0, 0, 1, 1], [], []>} : vector<5x32xf32>, vector<32x128xf32>, vector<5x128xf32> -> vector<5x128xf32>
    %c1_383 = arith.constant 1 : index
    %c0_384 = arith.constant 0 : index
    %c0_385 = arith.constant 0 : index
    %487 = vector.load %arg18[%c1_383, %c0_384, %c0_385] : memref<6x1x128xf32, #tpu.memory_space<vmem>>, vector<1x1x128xf32>
    %488 = vector.shape_cast %487 : vector<1x1x128xf32> to vector<1x128xf32>
    %489 = vector.broadcast %488 : vector<1x128xf32> to vector<5x128xf32>
    %490 = arith.addf %486, %489 : vector<5x128xf32>
    %cst_386 = arith.constant 5.000000e-01 : f32
    %491 = vector.broadcast %cst_386 : f32 to vector<5x128xf32>
    %492 = arith.mulf %491, %490 : vector<5x128xf32>
    %cst_387 = arith.constant 4.471500e-02 : f32
    %493 = vector.broadcast %cst_387 : f32 to vector<5x128xf32>
    %494 = arith.mulf %493, %490 : vector<5x128xf32>
    %495 = arith.mulf %494, %490 : vector<5x128xf32>
    %496 = arith.mulf %495, %490 : vector<5x128xf32>
    %497 = arith.addf %490, %496 : vector<5x128xf32>
    %cst_388 = arith.constant 0.797884583 : f32
    %498 = vector.broadcast %cst_388 : f32 to vector<5x128xf32>
    %499 = arith.mulf %498, %497 : vector<5x128xf32>
    %500 = math.tanh %499 : vector<5x128xf32>
    %cst_389 = arith.constant 1.000000e+00 : f32
    %501 = vector.broadcast %cst_389 : f32 to vector<5x128xf32>
    %502 = arith.addf %501, %500 : vector<5x128xf32>
    %503 = arith.mulf %492, %502 : vector<5x128xf32>
    %c1_390 = arith.constant 1 : index
    %c0_391 = arith.constant 0 : index
    %c0_392 = arith.constant 0 : index
    %504 = vector.load %arg19[%c1_390, %c0_391, %c0_392] : memref<6x128x32xf32, #tpu.memory_space<vmem>>, vector<1x128x32xf32>
    %505 = vector.shape_cast %504 : vector<1x128x32xf32> to vector<128x32xf32>
    %cst_393 = arith.constant dense<0.000000e+00> : vector<5x32xf32>
    %506 = tpu.matmul %503, %505, %cst_393 {dimension_numbers = #tpu.dot_dimension_numbers<[1], [0], [0], [1], [0, 0, 1, 1], [], []>} : vector<5x128xf32>, vector<128x32xf32>, vector<5x32xf32> -> vector<5x32xf32>
    %507 = arith.addf %459, %506 : vector<5x32xf32>
    %c1_394 = arith.constant 1 : index
    %c0_395 = arith.constant 0 : index
    %c0_396 = arith.constant 0 : index
    %508 = vector.load %arg20[%c1_394, %c0_395, %c0_396] : memref<6x1x32xf32, #tpu.memory_space<vmem>>, vector<1x1x32xf32>
    %509 = vector.shape_cast %508 : vector<1x1x32xf32> to vector<1x32xf32>
    %510 = vector.broadcast %509 : vector<1x32xf32> to vector<5x32xf32>
    %511 = arith.addf %507, %510 : vector<5x32xf32>
    %c2_397 = arith.constant 2 : index
    %c0_398 = arith.constant 0 : index
    %c0_399 = arith.constant 0 : index
    %512 = vector.load %arg5[%c2_397, %c0_398, %c0_399] : memref<6x1x32xf32, #tpu.memory_space<vmem>>, vector<1x1x32xf32>
    %513 = vector.shape_cast %512 : vector<1x1x32xf32> to vector<1x32xf32>
    %c2_400 = arith.constant 2 : index
    %c0_401 = arith.constant 0 : index
    %c0_402 = arith.constant 0 : index
    %514 = vector.load %arg6[%c2_400, %c0_401, %c0_402] : memref<6x1x32xf32, #tpu.memory_space<vmem>>, vector<1x1x32xf32>
    %515 = vector.shape_cast %514 : vector<1x1x32xf32> to vector<1x32xf32>
    %cst_403 = arith.constant dense<0.000000e+00> : vector<5xf32>
    %516 = vector.multi_reduction <add>, %511, %cst_403 [1] : vector<5x32xf32> to vector<5xf32>
    %517 = vector.shape_cast %516 : vector<5xf32> to vector<5x1xf32>
    %cst_404 = arith.constant 3.200000e+01 : f32
    %518 = vector.broadcast %cst_404 : f32 to vector<5x1xf32>
    %519 = arith.divf %517, %518 : vector<5x1xf32>
    %520 = vector.broadcast %519 : vector<5x1xf32> to vector<5x32xf32>
    %521 = arith.subf %511, %520 : vector<5x32xf32>
    %522 = arith.mulf %521, %521 : vector<5x32xf32>
    %cst_405 = arith.constant dense<0.000000e+00> : vector<5xf32>
    %523 = vector.multi_reduction <add>, %522, %cst_405 [1] : vector<5x32xf32> to vector<5xf32>
    %524 = vector.shape_cast %523 : vector<5xf32> to vector<5x1xf32>
    %cst_406 = arith.constant 3.200000e+01 : f32
    %525 = vector.broadcast %cst_406 : f32 to vector<5x1xf32>
    %526 = arith.divf %524, %525 : vector<5x1xf32>
    %cst_407 = arith.constant 9.99999974E-6 : f32
    %527 = vector.broadcast %cst_407 : f32 to vector<5x1xf32>
    %528 = arith.addf %526, %527 : vector<5x1xf32>
    %529 = math.rsqrt %528 : vector<5x1xf32>
    %530 = vector.broadcast %529 : vector<5x1xf32> to vector<5x32xf32>
    %531 = arith.mulf %521, %530 : vector<5x32xf32>
    %532 = vector.broadcast %513 : vector<1x32xf32> to vector<5x32xf32>
    %533 = arith.mulf %531, %532 : vector<5x32xf32>
    %534 = vector.broadcast %515 : vector<1x32xf32> to vector<5x32xf32>
    %535 = arith.addf %533, %534 : vector<5x32xf32>
    %cst_408 = arith.constant 0.000000e+00 : f32
    %536 = vector.broadcast %cst_408 : f32 to vector<5x32xf32>
    %c2_409 = arith.constant 2 : index
    %c0_410 = arith.constant 0 : index
    %c0_411 = arith.constant 0 : index
    %c0_412 = arith.constant 0 : index
    %537 = vector.load %arg7[%c2_409, %c0_410, %c0_411, %c0_412] : memref<6x4x32x8xf32, #tpu.memory_space<vmem>>, vector<1x1x32x8xf32>
    %538 = vector.shape_cast %537 : vector<1x1x32x8xf32> to vector<32x8xf32>
    %cst_413 = arith.constant dense<0.000000e+00> : vector<5x8xf32>
    %539 = tpu.matmul %535, %538, %cst_413 {dimension_numbers = #tpu.dot_dimension_numbers<[1], [0], [0], [1], [0, 0, 1, 1], [], []>} : vector<5x32xf32>, vector<32x8xf32>, vector<5x8xf32> -> vector<5x8xf32>
    %c2_414 = arith.constant 2 : index
    %c0_415 = arith.constant 0 : index
    %c0_416 = arith.constant 0 : index
    %c0_417 = arith.constant 0 : index
    %540 = vector.load %arg8[%c2_414, %c0_415, %c0_416, %c0_417] : memref<6x4x1x8xf32, #tpu.memory_space<vmem>>, vector<1x1x1x8xf32>
    %541 = vector.shape_cast %540 : vector<1x1x1x8xf32> to vector<1x8xf32>
    %542 = vector.broadcast %541 : vector<1x8xf32> to vector<5x8xf32>
    %543 = arith.addf %539, %542 : vector<5x8xf32>
    %c2_418 = arith.constant 2 : index
    %c0_419 = arith.constant 0 : index
    %c0_420 = arith.constant 0 : index
    %c0_421 = arith.constant 0 : index
    %544 = vector.load %arg9[%c2_418, %c0_419, %c0_420, %c0_421] : memref<6x4x32x8xf32, #tpu.memory_space<vmem>>, vector<1x1x32x8xf32>
    %545 = vector.shape_cast %544 : vector<1x1x32x8xf32> to vector<32x8xf32>
    %cst_422 = arith.constant dense<0.000000e+00> : vector<5x8xf32>
    %546 = tpu.matmul %535, %545, %cst_422 {dimension_numbers = #tpu.dot_dimension_numbers<[1], [0], [0], [1], [0, 0, 1, 1], [], []>} : vector<5x32xf32>, vector<32x8xf32>, vector<5x8xf32> -> vector<5x8xf32>
    %c2_423 = arith.constant 2 : index
    %c0_424 = arith.constant 0 : index
    %c0_425 = arith.constant 0 : index
    %c0_426 = arith.constant 0 : index
    %547 = vector.load %arg10[%c2_423, %c0_424, %c0_425, %c0_426] : memref<6x4x1x8xf32, #tpu.memory_space<vmem>>, vector<1x1x1x8xf32>
    %548 = vector.shape_cast %547 : vector<1x1x1x8xf32> to vector<1x8xf32>
    %549 = vector.broadcast %548 : vector<1x8xf32> to vector<5x8xf32>
    %550 = arith.addf %546, %549 : vector<5x8xf32>
    %c2_427 = arith.constant 2 : index
    %c0_428 = arith.constant 0 : index
    %c0_429 = arith.constant 0 : index
    %c0_430 = arith.constant 0 : index
    %551 = vector.load %arg11[%c2_427, %c0_428, %c0_429, %c0_430] : memref<6x4x32x8xf32, #tpu.memory_space<vmem>>, vector<1x1x32x8xf32>
    %552 = vector.shape_cast %551 : vector<1x1x32x8xf32> to vector<32x8xf32>
    %cst_431 = arith.constant dense<0.000000e+00> : vector<5x8xf32>
    %553 = tpu.matmul %535, %552, %cst_431 {dimension_numbers = #tpu.dot_dimension_numbers<[1], [0], [0], [1], [0, 0, 1, 1], [], []>} : vector<5x32xf32>, vector<32x8xf32>, vector<5x8xf32> -> vector<5x8xf32>
    %c2_432 = arith.constant 2 : index
    %c0_433 = arith.constant 0 : index
    %c0_434 = arith.constant 0 : index
    %c0_435 = arith.constant 0 : index
    %554 = vector.load %arg12[%c2_432, %c0_433, %c0_434, %c0_435] : memref<6x4x1x8xf32, #tpu.memory_space<vmem>>, vector<1x1x1x8xf32>
    %555 = vector.shape_cast %554 : vector<1x1x1x8xf32> to vector<1x8xf32>
    %556 = vector.broadcast %555 : vector<1x8xf32> to vector<5x8xf32>
    %557 = arith.addf %553, %556 : vector<5x8xf32>
    %558 = tpu.transpose %550, [1, 0] : vector<5x8xf32> -> vector<8x5xf32>
    %cst_436 = arith.constant dense<0.000000e+00> : vector<5x5xf32>
    %559 = tpu.matmul %543, %558, %cst_436 {dimension_numbers = #tpu.dot_dimension_numbers<[1], [0], [0], [1], [0, 0, 1, 1], [], []>} : vector<5x8xf32>, vector<8x5xf32>, vector<5x5xf32> -> vector<5x5xf32>
    %cst_437 = arith.constant 0.353553385 : f32
    %560 = vector.broadcast %cst_437 : f32 to vector<5x5xf32>
    %561 = arith.mulf %559, %560 : vector<5x5xf32>
    %cst_438 = arith.constant -1.000000e+30 : f32
    %562 = vector.broadcast %cst_438 : f32 to vector<5x5xf32>
    %563 = arith.select %11, %561, %562 : vector<5x5xi1>, vector<5x5xf32>
    %cst_439 = arith.constant dense<0xFF800000> : vector<5xf32>
    %564 = vector.multi_reduction <maximumf>, %563, %cst_439 [1] : vector<5x5xf32> to vector<5xf32>
    %565 = vector.shape_cast %564 : vector<5xf32> to vector<5x1xf32>
    %566 = vector.broadcast %565 : vector<5x1xf32> to vector<5x5xf32>
    %567 = arith.subf %563, %566 : vector<5x5xf32>
    %568 = math.exp %567 : vector<5x5xf32>
    %cst_440 = arith.constant dense<0.000000e+00> : vector<5xf32>
    %569 = vector.multi_reduction <add>, %568, %cst_440 [1] : vector<5x5xf32> to vector<5xf32>
    %570 = vector.shape_cast %569 : vector<5xf32> to vector<5x1xf32>
    %571 = tpu.reciprocal %570 {approx = true} : vector<5x1xf32> -> vector<5x1xf32>
    %572 = vector.broadcast %571 : vector<5x1xf32> to vector<5x5xf32>
    %573 = arith.mulf %568, %572 : vector<5x5xf32>
    %cst_441 = arith.constant dense<0.000000e+00> : vector<5x8xf32>
    %574 = tpu.matmul %573, %557, %cst_441 {dimension_numbers = #tpu.dot_dimension_numbers<[1], [0], [0], [1], [0, 0, 1, 1], [], []>} : vector<5x5xf32>, vector<5x8xf32>, vector<5x8xf32> -> vector<5x8xf32>
    %c2_442 = arith.constant 2 : index
    %c0_443 = arith.constant 0 : index
    %c0_444 = arith.constant 0 : index
    %c0_445 = arith.constant 0 : index
    %575 = vector.load %arg13[%c2_442, %c0_443, %c0_444, %c0_445] : memref<6x4x8x32xf32, #tpu.memory_space<vmem>>, vector<1x1x8x32xf32>
    %576 = vector.shape_cast %575 : vector<1x1x8x32xf32> to vector<8x32xf32>
    %cst_446 = arith.constant dense<0.000000e+00> : vector<5x32xf32>
    %577 = tpu.matmul %574, %576, %cst_446 {dimension_numbers = #tpu.dot_dimension_numbers<[1], [0], [0], [1], [0, 0, 1, 1], [], []>} : vector<5x8xf32>, vector<8x32xf32>, vector<5x32xf32> -> vector<5x32xf32>
    %578 = arith.addf %536, %577 : vector<5x32xf32>
    %c2_447 = arith.constant 2 : index
    %c1_448 = arith.constant 1 : index
    %c0_449 = arith.constant 0 : index
    %c0_450 = arith.constant 0 : index
    %579 = vector.load %arg7[%c2_447, %c1_448, %c0_449, %c0_450] : memref<6x4x32x8xf32, #tpu.memory_space<vmem>>, vector<1x1x32x8xf32>
    %580 = vector.shape_cast %579 : vector<1x1x32x8xf32> to vector<32x8xf32>
    %cst_451 = arith.constant dense<0.000000e+00> : vector<5x8xf32>
    %581 = tpu.matmul %535, %580, %cst_451 {dimension_numbers = #tpu.dot_dimension_numbers<[1], [0], [0], [1], [0, 0, 1, 1], [], []>} : vector<5x32xf32>, vector<32x8xf32>, vector<5x8xf32> -> vector<5x8xf32>
    %c2_452 = arith.constant 2 : index
    %c1_453 = arith.constant 1 : index
    %c0_454 = arith.constant 0 : index
    %c0_455 = arith.constant 0 : index
    %582 = vector.load %arg8[%c2_452, %c1_453, %c0_454, %c0_455] : memref<6x4x1x8xf32, #tpu.memory_space<vmem>>, vector<1x1x1x8xf32>
    %583 = vector.shape_cast %582 : vector<1x1x1x8xf32> to vector<1x8xf32>
    %584 = vector.broadcast %583 : vector<1x8xf32> to vector<5x8xf32>
    %585 = arith.addf %581, %584 : vector<5x8xf32>
    %c2_456 = arith.constant 2 : index
    %c1_457 = arith.constant 1 : index
    %c0_458 = arith.constant 0 : index
    %c0_459 = arith.constant 0 : index
    %586 = vector.load %arg9[%c2_456, %c1_457, %c0_458, %c0_459] : memref<6x4x32x8xf32, #tpu.memory_space<vmem>>, vector<1x1x32x8xf32>
    %587 = vector.shape_cast %586 : vector<1x1x32x8xf32> to vector<32x8xf32>
    %cst_460 = arith.constant dense<0.000000e+00> : vector<5x8xf32>
    %588 = tpu.matmul %535, %587, %cst_460 {dimension_numbers = #tpu.dot_dimension_numbers<[1], [0], [0], [1], [0, 0, 1, 1], [], []>} : vector<5x32xf32>, vector<32x8xf32>, vector<5x8xf32> -> vector<5x8xf32>
    %c2_461 = arith.constant 2 : index
    %c1_462 = arith.constant 1 : index
    %c0_463 = arith.constant 0 : index
    %c0_464 = arith.constant 0 : index
    %589 = vector.load %arg10[%c2_461, %c1_462, %c0_463, %c0_464] : memref<6x4x1x8xf32, #tpu.memory_space<vmem>>, vector<1x1x1x8xf32>
    %590 = vector.shape_cast %589 : vector<1x1x1x8xf32> to vector<1x8xf32>
    %591 = vector.broadcast %590 : vector<1x8xf32> to vector<5x8xf32>
    %592 = arith.addf %588, %591 : vector<5x8xf32>
    %c2_465 = arith.constant 2 : index
    %c1_466 = arith.constant 1 : index
    %c0_467 = arith.constant 0 : index
    %c0_468 = arith.constant 0 : index
    %593 = vector.load %arg11[%c2_465, %c1_466, %c0_467, %c0_468] : memref<6x4x32x8xf32, #tpu.memory_space<vmem>>, vector<1x1x32x8xf32>
    %594 = vector.shape_cast %593 : vector<1x1x32x8xf32> to vector<32x8xf32>
    %cst_469 = arith.constant dense<0.000000e+00> : vector<5x8xf32>
    %595 = tpu.matmul %535, %594, %cst_469 {dimension_numbers = #tpu.dot_dimension_numbers<[1], [0], [0], [1], [0, 0, 1, 1], [], []>} : vector<5x32xf32>, vector<32x8xf32>, vector<5x8xf32> -> vector<5x8xf32>
    %c2_470 = arith.constant 2 : index
    %c1_471 = arith.constant 1 : index
    %c0_472 = arith.constant 0 : index
    %c0_473 = arith.constant 0 : index
    %596 = vector.load %arg12[%c2_470, %c1_471, %c0_472, %c0_473] : memref<6x4x1x8xf32, #tpu.memory_space<vmem>>, vector<1x1x1x8xf32>
    %597 = vector.shape_cast %596 : vector<1x1x1x8xf32> to vector<1x8xf32>
    %598 = vector.broadcast %597 : vector<1x8xf32> to vector<5x8xf32>
    %599 = arith.addf %595, %598 : vector<5x8xf32>
    %600 = tpu.transpose %592, [1, 0] : vector<5x8xf32> -> vector<8x5xf32>
    %cst_474 = arith.constant dense<0.000000e+00> : vector<5x5xf32>
    %601 = tpu.matmul %585, %600, %cst_474 {dimension_numbers = #tpu.dot_dimension_numbers<[1], [0], [0], [1], [0, 0, 1, 1], [], []>} : vector<5x8xf32>, vector<8x5xf32>, vector<5x5xf32> -> vector<5x5xf32>
    %cst_475 = arith.constant 0.353553385 : f32
    %602 = vector.broadcast %cst_475 : f32 to vector<5x5xf32>
    %603 = arith.mulf %601, %602 : vector<5x5xf32>
    %cst_476 = arith.constant -1.000000e+30 : f32
    %604 = vector.broadcast %cst_476 : f32 to vector<5x5xf32>
    %605 = arith.select %11, %603, %604 : vector<5x5xi1>, vector<5x5xf32>
    %cst_477 = arith.constant dense<0xFF800000> : vector<5xf32>
    %606 = vector.multi_reduction <maximumf>, %605, %cst_477 [1] : vector<5x5xf32> to vector<5xf32>
    %607 = vector.shape_cast %606 : vector<5xf32> to vector<5x1xf32>
    %608 = vector.broadcast %607 : vector<5x1xf32> to vector<5x5xf32>
    %609 = arith.subf %605, %608 : vector<5x5xf32>
    %610 = math.exp %609 : vector<5x5xf32>
    %cst_478 = arith.constant dense<0.000000e+00> : vector<5xf32>
    %611 = vector.multi_reduction <add>, %610, %cst_478 [1] : vector<5x5xf32> to vector<5xf32>
    %612 = vector.shape_cast %611 : vector<5xf32> to vector<5x1xf32>
    %613 = tpu.reciprocal %612 {approx = true} : vector<5x1xf32> -> vector<5x1xf32>
    %614 = vector.broadcast %613 : vector<5x1xf32> to vector<5x5xf32>
    %615 = arith.mulf %610, %614 : vector<5x5xf32>
    %cst_479 = arith.constant dense<0.000000e+00> : vector<5x8xf32>
    %616 = tpu.matmul %615, %599, %cst_479 {dimension_numbers = #tpu.dot_dimension_numbers<[1], [0], [0], [1], [0, 0, 1, 1], [], []>} : vector<5x5xf32>, vector<5x8xf32>, vector<5x8xf32> -> vector<5x8xf32>
    %c2_480 = arith.constant 2 : index
    %c1_481 = arith.constant 1 : index
    %c0_482 = arith.constant 0 : index
    %c0_483 = arith.constant 0 : index
    %617 = vector.load %arg13[%c2_480, %c1_481, %c0_482, %c0_483] : memref<6x4x8x32xf32, #tpu.memory_space<vmem>>, vector<1x1x8x32xf32>
    %618 = vector.shape_cast %617 : vector<1x1x8x32xf32> to vector<8x32xf32>
    %cst_484 = arith.constant dense<0.000000e+00> : vector<5x32xf32>
    %619 = tpu.matmul %616, %618, %cst_484 {dimension_numbers = #tpu.dot_dimension_numbers<[1], [0], [0], [1], [0, 0, 1, 1], [], []>} : vector<5x8xf32>, vector<8x32xf32>, vector<5x32xf32> -> vector<5x32xf32>
    %620 = arith.addf %578, %619 : vector<5x32xf32>
    %c2_485 = arith.constant 2 : index
    %c2_486 = arith.constant 2 : index
    %c0_487 = arith.constant 0 : index
    %c0_488 = arith.constant 0 : index
    %621 = vector.load %arg7[%c2_485, %c2_486, %c0_487, %c0_488] : memref<6x4x32x8xf32, #tpu.memory_space<vmem>>, vector<1x1x32x8xf32>
    %622 = vector.shape_cast %621 : vector<1x1x32x8xf32> to vector<32x8xf32>
    %cst_489 = arith.constant dense<0.000000e+00> : vector<5x8xf32>
    %623 = tpu.matmul %535, %622, %cst_489 {dimension_numbers = #tpu.dot_dimension_numbers<[1], [0], [0], [1], [0, 0, 1, 1], [], []>} : vector<5x32xf32>, vector<32x8xf32>, vector<5x8xf32> -> vector<5x8xf32>
    %c2_490 = arith.constant 2 : index
    %c2_491 = arith.constant 2 : index
    %c0_492 = arith.constant 0 : index
    %c0_493 = arith.constant 0 : index
    %624 = vector.load %arg8[%c2_490, %c2_491, %c0_492, %c0_493] : memref<6x4x1x8xf32, #tpu.memory_space<vmem>>, vector<1x1x1x8xf32>
    %625 = vector.shape_cast %624 : vector<1x1x1x8xf32> to vector<1x8xf32>
    %626 = vector.broadcast %625 : vector<1x8xf32> to vector<5x8xf32>
    %627 = arith.addf %623, %626 : vector<5x8xf32>
    %c2_494 = arith.constant 2 : index
    %c2_495 = arith.constant 2 : index
    %c0_496 = arith.constant 0 : index
    %c0_497 = arith.constant 0 : index
    %628 = vector.load %arg9[%c2_494, %c2_495, %c0_496, %c0_497] : memref<6x4x32x8xf32, #tpu.memory_space<vmem>>, vector<1x1x32x8xf32>
    %629 = vector.shape_cast %628 : vector<1x1x32x8xf32> to vector<32x8xf32>
    %cst_498 = arith.constant dense<0.000000e+00> : vector<5x8xf32>
    %630 = tpu.matmul %535, %629, %cst_498 {dimension_numbers = #tpu.dot_dimension_numbers<[1], [0], [0], [1], [0, 0, 1, 1], [], []>} : vector<5x32xf32>, vector<32x8xf32>, vector<5x8xf32> -> vector<5x8xf32>
    %c2_499 = arith.constant 2 : index
    %c2_500 = arith.constant 2 : index
    %c0_501 = arith.constant 0 : index
    %c0_502 = arith.constant 0 : index
    %631 = vector.load %arg10[%c2_499, %c2_500, %c0_501, %c0_502] : memref<6x4x1x8xf32, #tpu.memory_space<vmem>>, vector<1x1x1x8xf32>
    %632 = vector.shape_cast %631 : vector<1x1x1x8xf32> to vector<1x8xf32>
    %633 = vector.broadcast %632 : vector<1x8xf32> to vector<5x8xf32>
    %634 = arith.addf %630, %633 : vector<5x8xf32>
    %c2_503 = arith.constant 2 : index
    %c2_504 = arith.constant 2 : index
    %c0_505 = arith.constant 0 : index
    %c0_506 = arith.constant 0 : index
    %635 = vector.load %arg11[%c2_503, %c2_504, %c0_505, %c0_506] : memref<6x4x32x8xf32, #tpu.memory_space<vmem>>, vector<1x1x32x8xf32>
    %636 = vector.shape_cast %635 : vector<1x1x32x8xf32> to vector<32x8xf32>
    %cst_507 = arith.constant dense<0.000000e+00> : vector<5x8xf32>
    %637 = tpu.matmul %535, %636, %cst_507 {dimension_numbers = #tpu.dot_dimension_numbers<[1], [0], [0], [1], [0, 0, 1, 1], [], []>} : vector<5x32xf32>, vector<32x8xf32>, vector<5x8xf32> -> vector<5x8xf32>
    %c2_508 = arith.constant 2 : index
    %c2_509 = arith.constant 2 : index
    %c0_510 = arith.constant 0 : index
    %c0_511 = arith.constant 0 : index
    %638 = vector.load %arg12[%c2_508, %c2_509, %c0_510, %c0_511] : memref<6x4x1x8xf32, #tpu.memory_space<vmem>>, vector<1x1x1x8xf32>
    %639 = vector.shape_cast %638 : vector<1x1x1x8xf32> to vector<1x8xf32>
    %640 = vector.broadcast %639 : vector<1x8xf32> to vector<5x8xf32>
    %641 = arith.addf %637, %640 : vector<5x8xf32>
    %642 = tpu.transpose %634, [1, 0] : vector<5x8xf32> -> vector<8x5xf32>
    %cst_512 = arith.constant dense<0.000000e+00> : vector<5x5xf32>
    %643 = tpu.matmul %627, %642, %cst_512 {dimension_numbers = #tpu.dot_dimension_numbers<[1], [0], [0], [1], [0, 0, 1, 1], [], []>} : vector<5x8xf32>, vector<8x5xf32>, vector<5x5xf32> -> vector<5x5xf32>
    %cst_513 = arith.constant 0.353553385 : f32
    %644 = vector.broadcast %cst_513 : f32 to vector<5x5xf32>
    %645 = arith.mulf %643, %644 : vector<5x5xf32>
    %cst_514 = arith.constant -1.000000e+30 : f32
    %646 = vector.broadcast %cst_514 : f32 to vector<5x5xf32>
    %647 = arith.select %11, %645, %646 : vector<5x5xi1>, vector<5x5xf32>
    %cst_515 = arith.constant dense<0xFF800000> : vector<5xf32>
    %648 = vector.multi_reduction <maximumf>, %647, %cst_515 [1] : vector<5x5xf32> to vector<5xf32>
    %649 = vector.shape_cast %648 : vector<5xf32> to vector<5x1xf32>
    %650 = vector.broadcast %649 : vector<5x1xf32> to vector<5x5xf32>
    %651 = arith.subf %647, %650 : vector<5x5xf32>
    %652 = math.exp %651 : vector<5x5xf32>
    %cst_516 = arith.constant dense<0.000000e+00> : vector<5xf32>
    %653 = vector.multi_reduction <add>, %652, %cst_516 [1] : vector<5x5xf32> to vector<5xf32>
    %654 = vector.shape_cast %653 : vector<5xf32> to vector<5x1xf32>
    %655 = tpu.reciprocal %654 {approx = true} : vector<5x1xf32> -> vector<5x1xf32>
    %656 = vector.broadcast %655 : vector<5x1xf32> to vector<5x5xf32>
    %657 = arith.mulf %652, %656 : vector<5x5xf32>
    %cst_517 = arith.constant dense<0.000000e+00> : vector<5x8xf32>
    %658 = tpu.matmul %657, %641, %cst_517 {dimension_numbers = #tpu.dot_dimension_numbers<[1], [0], [0], [1], [0, 0, 1, 1], [], []>} : vector<5x5xf32>, vector<5x8xf32>, vector<5x8xf32> -> vector<5x8xf32>
    %c2_518 = arith.constant 2 : index
    %c2_519 = arith.constant 2 : index
    %c0_520 = arith.constant 0 : index
    %c0_521 = arith.constant 0 : index
    %659 = vector.load %arg13[%c2_518, %c2_519, %c0_520, %c0_521] : memref<6x4x8x32xf32, #tpu.memory_space<vmem>>, vector<1x1x8x32xf32>
    %660 = vector.shape_cast %659 : vector<1x1x8x32xf32> to vector<8x32xf32>
    %cst_522 = arith.constant dense<0.000000e+00> : vector<5x32xf32>
    %661 = tpu.matmul %658, %660, %cst_522 {dimension_numbers = #tpu.dot_dimension_numbers<[1], [0], [0], [1], [0, 0, 1, 1], [], []>} : vector<5x8xf32>, vector<8x32xf32>, vector<5x32xf32> -> vector<5x32xf32>
    %662 = arith.addf %620, %661 : vector<5x32xf32>
    %c2_523 = arith.constant 2 : index
    %c3_524 = arith.constant 3 : index
    %c0_525 = arith.constant 0 : index
    %c0_526 = arith.constant 0 : index
    %663 = vector.load %arg7[%c2_523, %c3_524, %c0_525, %c0_526] : memref<6x4x32x8xf32, #tpu.memory_space<vmem>>, vector<1x1x32x8xf32>
    %664 = vector.shape_cast %663 : vector<1x1x32x8xf32> to vector<32x8xf32>
    %cst_527 = arith.constant dense<0.000000e+00> : vector<5x8xf32>
    %665 = tpu.matmul %535, %664, %cst_527 {dimension_numbers = #tpu.dot_dimension_numbers<[1], [0], [0], [1], [0, 0, 1, 1], [], []>} : vector<5x32xf32>, vector<32x8xf32>, vector<5x8xf32> -> vector<5x8xf32>
    %c2_528 = arith.constant 2 : index
    %c3_529 = arith.constant 3 : index
    %c0_530 = arith.constant 0 : index
    %c0_531 = arith.constant 0 : index
    %666 = vector.load %arg8[%c2_528, %c3_529, %c0_530, %c0_531] : memref<6x4x1x8xf32, #tpu.memory_space<vmem>>, vector<1x1x1x8xf32>
    %667 = vector.shape_cast %666 : vector<1x1x1x8xf32> to vector<1x8xf32>
    %668 = vector.broadcast %667 : vector<1x8xf32> to vector<5x8xf32>
    %669 = arith.addf %665, %668 : vector<5x8xf32>
    %c2_532 = arith.constant 2 : index
    %c3_533 = arith.constant 3 : index
    %c0_534 = arith.constant 0 : index
    %c0_535 = arith.constant 0 : index
    %670 = vector.load %arg9[%c2_532, %c3_533, %c0_534, %c0_535] : memref<6x4x32x8xf32, #tpu.memory_space<vmem>>, vector<1x1x32x8xf32>
    %671 = vector.shape_cast %670 : vector<1x1x32x8xf32> to vector<32x8xf32>
    %cst_536 = arith.constant dense<0.000000e+00> : vector<5x8xf32>
    %672 = tpu.matmul %535, %671, %cst_536 {dimension_numbers = #tpu.dot_dimension_numbers<[1], [0], [0], [1], [0, 0, 1, 1], [], []>} : vector<5x32xf32>, vector<32x8xf32>, vector<5x8xf32> -> vector<5x8xf32>
    %c2_537 = arith.constant 2 : index
    %c3_538 = arith.constant 3 : index
    %c0_539 = arith.constant 0 : index
    %c0_540 = arith.constant 0 : index
    %673 = vector.load %arg10[%c2_537, %c3_538, %c0_539, %c0_540] : memref<6x4x1x8xf32, #tpu.memory_space<vmem>>, vector<1x1x1x8xf32>
    %674 = vector.shape_cast %673 : vector<1x1x1x8xf32> to vector<1x8xf32>
    %675 = vector.broadcast %674 : vector<1x8xf32> to vector<5x8xf32>
    %676 = arith.addf %672, %675 : vector<5x8xf32>
    %c2_541 = arith.constant 2 : index
    %c3_542 = arith.constant 3 : index
    %c0_543 = arith.constant 0 : index
    %c0_544 = arith.constant 0 : index
    %677 = vector.load %arg11[%c2_541, %c3_542, %c0_543, %c0_544] : memref<6x4x32x8xf32, #tpu.memory_space<vmem>>, vector<1x1x32x8xf32>
    %678 = vector.shape_cast %677 : vector<1x1x32x8xf32> to vector<32x8xf32>
    %cst_545 = arith.constant dense<0.000000e+00> : vector<5x8xf32>
    %679 = tpu.matmul %535, %678, %cst_545 {dimension_numbers = #tpu.dot_dimension_numbers<[1], [0], [0], [1], [0, 0, 1, 1], [], []>} : vector<5x32xf32>, vector<32x8xf32>, vector<5x8xf32> -> vector<5x8xf32>
    %c2_546 = arith.constant 2 : index
    %c3_547 = arith.constant 3 : index
    %c0_548 = arith.constant 0 : index
    %c0_549 = arith.constant 0 : index
    %680 = vector.load %arg12[%c2_546, %c3_547, %c0_548, %c0_549] : memref<6x4x1x8xf32, #tpu.memory_space<vmem>>, vector<1x1x1x8xf32>
    %681 = vector.shape_cast %680 : vector<1x1x1x8xf32> to vector<1x8xf32>
    %682 = vector.broadcast %681 : vector<1x8xf32> to vector<5x8xf32>
    %683 = arith.addf %679, %682 : vector<5x8xf32>
    %684 = tpu.transpose %676, [1, 0] : vector<5x8xf32> -> vector<8x5xf32>
    %cst_550 = arith.constant dense<0.000000e+00> : vector<5x5xf32>
    %685 = tpu.matmul %669, %684, %cst_550 {dimension_numbers = #tpu.dot_dimension_numbers<[1], [0], [0], [1], [0, 0, 1, 1], [], []>} : vector<5x8xf32>, vector<8x5xf32>, vector<5x5xf32> -> vector<5x5xf32>
    %cst_551 = arith.constant 0.353553385 : f32
    %686 = vector.broadcast %cst_551 : f32 to vector<5x5xf32>
    %687 = arith.mulf %685, %686 : vector<5x5xf32>
    %cst_552 = arith.constant -1.000000e+30 : f32
    %688 = vector.broadcast %cst_552 : f32 to vector<5x5xf32>
    %689 = arith.select %11, %687, %688 : vector<5x5xi1>, vector<5x5xf32>
    %cst_553 = arith.constant dense<0xFF800000> : vector<5xf32>
    %690 = vector.multi_reduction <maximumf>, %689, %cst_553 [1] : vector<5x5xf32> to vector<5xf32>
    %691 = vector.shape_cast %690 : vector<5xf32> to vector<5x1xf32>
    %692 = vector.broadcast %691 : vector<5x1xf32> to vector<5x5xf32>
    %693 = arith.subf %689, %692 : vector<5x5xf32>
    %694 = math.exp %693 : vector<5x5xf32>
    %cst_554 = arith.constant dense<0.000000e+00> : vector<5xf32>
    %695 = vector.multi_reduction <add>, %694, %cst_554 [1] : vector<5x5xf32> to vector<5xf32>
    %696 = vector.shape_cast %695 : vector<5xf32> to vector<5x1xf32>
    %697 = tpu.reciprocal %696 {approx = true} : vector<5x1xf32> -> vector<5x1xf32>
    %698 = vector.broadcast %697 : vector<5x1xf32> to vector<5x5xf32>
    %699 = arith.mulf %694, %698 : vector<5x5xf32>
    %cst_555 = arith.constant dense<0.000000e+00> : vector<5x8xf32>
    %700 = tpu.matmul %699, %683, %cst_555 {dimension_numbers = #tpu.dot_dimension_numbers<[1], [0], [0], [1], [0, 0, 1, 1], [], []>} : vector<5x5xf32>, vector<5x8xf32>, vector<5x8xf32> -> vector<5x8xf32>
    %c2_556 = arith.constant 2 : index
    %c3_557 = arith.constant 3 : index
    %c0_558 = arith.constant 0 : index
    %c0_559 = arith.constant 0 : index
    %701 = vector.load %arg13[%c2_556, %c3_557, %c0_558, %c0_559] : memref<6x4x8x32xf32, #tpu.memory_space<vmem>>, vector<1x1x8x32xf32>
    %702 = vector.shape_cast %701 : vector<1x1x8x32xf32> to vector<8x32xf32>
    %cst_560 = arith.constant dense<0.000000e+00> : vector<5x32xf32>
    %703 = tpu.matmul %700, %702, %cst_560 {dimension_numbers = #tpu.dot_dimension_numbers<[1], [0], [0], [1], [0, 0, 1, 1], [], []>} : vector<5x8xf32>, vector<8x32xf32>, vector<5x32xf32> -> vector<5x32xf32>
    %704 = arith.addf %662, %703 : vector<5x32xf32>
    %705 = arith.addf %511, %704 : vector<5x32xf32>
    %c2_561 = arith.constant 2 : index
    %c0_562 = arith.constant 0 : index
    %c0_563 = arith.constant 0 : index
    %706 = vector.load %arg14[%c2_561, %c0_562, %c0_563] : memref<6x1x32xf32, #tpu.memory_space<vmem>>, vector<1x1x32xf32>
    %707 = vector.shape_cast %706 : vector<1x1x32xf32> to vector<1x32xf32>
    %708 = vector.broadcast %707 : vector<1x32xf32> to vector<5x32xf32>
    %709 = arith.addf %705, %708 : vector<5x32xf32>
    %c2_564 = arith.constant 2 : index
    %c0_565 = arith.constant 0 : index
    %c0_566 = arith.constant 0 : index
    %710 = vector.load %arg15[%c2_564, %c0_565, %c0_566] : memref<6x1x32xf32, #tpu.memory_space<vmem>>, vector<1x1x32xf32>
    %711 = vector.shape_cast %710 : vector<1x1x32xf32> to vector<1x32xf32>
    %c2_567 = arith.constant 2 : index
    %c0_568 = arith.constant 0 : index
    %c0_569 = arith.constant 0 : index
    %712 = vector.load %arg16[%c2_567, %c0_568, %c0_569] : memref<6x1x32xf32, #tpu.memory_space<vmem>>, vector<1x1x32xf32>
    %713 = vector.shape_cast %712 : vector<1x1x32xf32> to vector<1x32xf32>
    %cst_570 = arith.constant dense<0.000000e+00> : vector<5xf32>
    %714 = vector.multi_reduction <add>, %709, %cst_570 [1] : vector<5x32xf32> to vector<5xf32>
    %715 = vector.shape_cast %714 : vector<5xf32> to vector<5x1xf32>
    %cst_571 = arith.constant 3.200000e+01 : f32
    %716 = vector.broadcast %cst_571 : f32 to vector<5x1xf32>
    %717 = arith.divf %715, %716 : vector<5x1xf32>
    %718 = vector.broadcast %717 : vector<5x1xf32> to vector<5x32xf32>
    %719 = arith.subf %709, %718 : vector<5x32xf32>
    %720 = arith.mulf %719, %719 : vector<5x32xf32>
    %cst_572 = arith.constant dense<0.000000e+00> : vector<5xf32>
    %721 = vector.multi_reduction <add>, %720, %cst_572 [1] : vector<5x32xf32> to vector<5xf32>
    %722 = vector.shape_cast %721 : vector<5xf32> to vector<5x1xf32>
    %cst_573 = arith.constant 3.200000e+01 : f32
    %723 = vector.broadcast %cst_573 : f32 to vector<5x1xf32>
    %724 = arith.divf %722, %723 : vector<5x1xf32>
    %cst_574 = arith.constant 9.99999974E-6 : f32
    %725 = vector.broadcast %cst_574 : f32 to vector<5x1xf32>
    %726 = arith.addf %724, %725 : vector<5x1xf32>
    %727 = math.rsqrt %726 : vector<5x1xf32>
    %728 = vector.broadcast %727 : vector<5x1xf32> to vector<5x32xf32>
    %729 = arith.mulf %719, %728 : vector<5x32xf32>
    %730 = vector.broadcast %711 : vector<1x32xf32> to vector<5x32xf32>
    %731 = arith.mulf %729, %730 : vector<5x32xf32>
    %732 = vector.broadcast %713 : vector<1x32xf32> to vector<5x32xf32>
    %733 = arith.addf %731, %732 : vector<5x32xf32>
    %c2_575 = arith.constant 2 : index
    %c0_576 = arith.constant 0 : index
    %c0_577 = arith.constant 0 : index
    %734 = vector.load %arg17[%c2_575, %c0_576, %c0_577] : memref<6x32x128xf32, #tpu.memory_space<vmem>>, vector<1x32x128xf32>
    %735 = vector.shape_cast %734 : vector<1x32x128xf32> to vector<32x128xf32>
    %cst_578 = arith.constant dense<0.000000e+00> : vector<5x128xf32>
    %736 = tpu.matmul %733, %735, %cst_578 {dimension_numbers = #tpu.dot_dimension_numbers<[1], [0], [0], [1], [0, 0, 1, 1], [], []>} : vector<5x32xf32>, vector<32x128xf32>, vector<5x128xf32> -> vector<5x128xf32>
    %c2_579 = arith.constant 2 : index
    %c0_580 = arith.constant 0 : index
    %c0_581 = arith.constant 0 : index
    %737 = vector.load %arg18[%c2_579, %c0_580, %c0_581] : memref<6x1x128xf32, #tpu.memory_space<vmem>>, vector<1x1x128xf32>
    %738 = vector.shape_cast %737 : vector<1x1x128xf32> to vector<1x128xf32>
    %739 = vector.broadcast %738 : vector<1x128xf32> to vector<5x128xf32>
    %740 = arith.addf %736, %739 : vector<5x128xf32>
    %cst_582 = arith.constant 5.000000e-01 : f32
    %741 = vector.broadcast %cst_582 : f32 to vector<5x128xf32>
    %742 = arith.mulf %741, %740 : vector<5x128xf32>
    %cst_583 = arith.constant 4.471500e-02 : f32
    %743 = vector.broadcast %cst_583 : f32 to vector<5x128xf32>
    %744 = arith.mulf %743, %740 : vector<5x128xf32>
    %745 = arith.mulf %744, %740 : vector<5x128xf32>
    %746 = arith.mulf %745, %740 : vector<5x128xf32>
    %747 = arith.addf %740, %746 : vector<5x128xf32>
    %cst_584 = arith.constant 0.797884583 : f32
    %748 = vector.broadcast %cst_584 : f32 to vector<5x128xf32>
    %749 = arith.mulf %748, %747 : vector<5x128xf32>
    %750 = math.tanh %749 : vector<5x128xf32>
    %cst_585 = arith.constant 1.000000e+00 : f32
    %751 = vector.broadcast %cst_585 : f32 to vector<5x128xf32>
    %752 = arith.addf %751, %750 : vector<5x128xf32>
    %753 = arith.mulf %742, %752 : vector<5x128xf32>
    %c2_586 = arith.constant 2 : index
    %c0_587 = arith.constant 0 : index
    %c0_588 = arith.constant 0 : index
    %754 = vector.load %arg19[%c2_586, %c0_587, %c0_588] : memref<6x128x32xf32, #tpu.memory_space<vmem>>, vector<1x128x32xf32>
    %755 = vector.shape_cast %754 : vector<1x128x32xf32> to vector<128x32xf32>
    %cst_589 = arith.constant dense<0.000000e+00> : vector<5x32xf32>
    %756 = tpu.matmul %753, %755, %cst_589 {dimension_numbers = #tpu.dot_dimension_numbers<[1], [0], [0], [1], [0, 0, 1, 1], [], []>} : vector<5x128xf32>, vector<128x32xf32>, vector<5x32xf32> -> vector<5x32xf32>
    %757 = arith.addf %709, %756 : vector<5x32xf32>
    %c2_590 = arith.constant 2 : index
    %c0_591 = arith.constant 0 : index
    %c0_592 = arith.constant 0 : index
    %758 = vector.load %arg20[%c2_590, %c0_591, %c0_592] : memref<6x1x32xf32, #tpu.memory_space<vmem>>, vector<1x1x32xf32>
    %759 = vector.shape_cast %758 : vector<1x1x32xf32> to vector<1x32xf32>
    %760 = vector.broadcast %759 : vector<1x32xf32> to vector<5x32xf32>
    %761 = arith.addf %757, %760 : vector<5x32xf32>
    %c3_593 = arith.constant 3 : index
    %c0_594 = arith.constant 0 : index
    %c0_595 = arith.constant 0 : index
    %762 = vector.load %arg5[%c3_593, %c0_594, %c0_595] : memref<6x1x32xf32, #tpu.memory_space<vmem>>, vector<1x1x32xf32>
    %763 = vector.shape_cast %762 : vector<1x1x32xf32> to vector<1x32xf32>
    %c3_596 = arith.constant 3 : index
    %c0_597 = arith.constant 0 : index
    %c0_598 = arith.constant 0 : index
    %764 = vector.load %arg6[%c3_596, %c0_597, %c0_598] : memref<6x1x32xf32, #tpu.memory_space<vmem>>, vector<1x1x32xf32>
    %765 = vector.shape_cast %764 : vector<1x1x32xf32> to vector<1x32xf32>
    %cst_599 = arith.constant dense<0.000000e+00> : vector<5xf32>
    %766 = vector.multi_reduction <add>, %761, %cst_599 [1] : vector<5x32xf32> to vector<5xf32>
    %767 = vector.shape_cast %766 : vector<5xf32> to vector<5x1xf32>
    %cst_600 = arith.constant 3.200000e+01 : f32
    %768 = vector.broadcast %cst_600 : f32 to vector<5x1xf32>
    %769 = arith.divf %767, %768 : vector<5x1xf32>
    %770 = vector.broadcast %769 : vector<5x1xf32> to vector<5x32xf32>
    %771 = arith.subf %761, %770 : vector<5x32xf32>
    %772 = arith.mulf %771, %771 : vector<5x32xf32>
    %cst_601 = arith.constant dense<0.000000e+00> : vector<5xf32>
    %773 = vector.multi_reduction <add>, %772, %cst_601 [1] : vector<5x32xf32> to vector<5xf32>
    %774 = vector.shape_cast %773 : vector<5xf32> to vector<5x1xf32>
    %cst_602 = arith.constant 3.200000e+01 : f32
    %775 = vector.broadcast %cst_602 : f32 to vector<5x1xf32>
    %776 = arith.divf %774, %775 : vector<5x1xf32>
    %cst_603 = arith.constant 9.99999974E-6 : f32
    %777 = vector.broadcast %cst_603 : f32 to vector<5x1xf32>
    %778 = arith.addf %776, %777 : vector<5x1xf32>
    %779 = math.rsqrt %778 : vector<5x1xf32>
    %780 = vector.broadcast %779 : vector<5x1xf32> to vector<5x32xf32>
    %781 = arith.mulf %771, %780 : vector<5x32xf32>
    %782 = vector.broadcast %763 : vector<1x32xf32> to vector<5x32xf32>
    %783 = arith.mulf %781, %782 : vector<5x32xf32>
    %784 = vector.broadcast %765 : vector<1x32xf32> to vector<5x32xf32>
    %785 = arith.addf %783, %784 : vector<5x32xf32>
    %cst_604 = arith.constant 0.000000e+00 : f32
    %786 = vector.broadcast %cst_604 : f32 to vector<5x32xf32>
    %c3_605 = arith.constant 3 : index
    %c0_606 = arith.constant 0 : index
    %c0_607 = arith.constant 0 : index
    %c0_608 = arith.constant 0 : index
    %787 = vector.load %arg7[%c3_605, %c0_606, %c0_607, %c0_608] : memref<6x4x32x8xf32, #tpu.memory_space<vmem>>, vector<1x1x32x8xf32>
    %788 = vector.shape_cast %787 : vector<1x1x32x8xf32> to vector<32x8xf32>
    %cst_609 = arith.constant dense<0.000000e+00> : vector<5x8xf32>
    %789 = tpu.matmul %785, %788, %cst_609 {dimension_numbers = #tpu.dot_dimension_numbers<[1], [0], [0], [1], [0, 0, 1, 1], [], []>} : vector<5x32xf32>, vector<32x8xf32>, vector<5x8xf32> -> vector<5x8xf32>
    %c3_610 = arith.constant 3 : index
    %c0_611 = arith.constant 0 : index
    %c0_612 = arith.constant 0 : index
    %c0_613 = arith.constant 0 : index
    %790 = vector.load %arg8[%c3_610, %c0_611, %c0_612, %c0_613] : memref<6x4x1x8xf32, #tpu.memory_space<vmem>>, vector<1x1x1x8xf32>
    %791 = vector.shape_cast %790 : vector<1x1x1x8xf32> to vector<1x8xf32>
    %792 = vector.broadcast %791 : vector<1x8xf32> to vector<5x8xf32>
    %793 = arith.addf %789, %792 : vector<5x8xf32>
    %c3_614 = arith.constant 3 : index
    %c0_615 = arith.constant 0 : index
    %c0_616 = arith.constant 0 : index
    %c0_617 = arith.constant 0 : index
    %794 = vector.load %arg9[%c3_614, %c0_615, %c0_616, %c0_617] : memref<6x4x32x8xf32, #tpu.memory_space<vmem>>, vector<1x1x32x8xf32>
    %795 = vector.shape_cast %794 : vector<1x1x32x8xf32> to vector<32x8xf32>
    %cst_618 = arith.constant dense<0.000000e+00> : vector<5x8xf32>
    %796 = tpu.matmul %785, %795, %cst_618 {dimension_numbers = #tpu.dot_dimension_numbers<[1], [0], [0], [1], [0, 0, 1, 1], [], []>} : vector<5x32xf32>, vector<32x8xf32>, vector<5x8xf32> -> vector<5x8xf32>
    %c3_619 = arith.constant 3 : index
    %c0_620 = arith.constant 0 : index
    %c0_621 = arith.constant 0 : index
    %c0_622 = arith.constant 0 : index
    %797 = vector.load %arg10[%c3_619, %c0_620, %c0_621, %c0_622] : memref<6x4x1x8xf32, #tpu.memory_space<vmem>>, vector<1x1x1x8xf32>
    %798 = vector.shape_cast %797 : vector<1x1x1x8xf32> to vector<1x8xf32>
    %799 = vector.broadcast %798 : vector<1x8xf32> to vector<5x8xf32>
    %800 = arith.addf %796, %799 : vector<5x8xf32>
    %c3_623 = arith.constant 3 : index
    %c0_624 = arith.constant 0 : index
    %c0_625 = arith.constant 0 : index
    %c0_626 = arith.constant 0 : index
    %801 = vector.load %arg11[%c3_623, %c0_624, %c0_625, %c0_626] : memref<6x4x32x8xf32, #tpu.memory_space<vmem>>, vector<1x1x32x8xf32>
    %802 = vector.shape_cast %801 : vector<1x1x32x8xf32> to vector<32x8xf32>
    %cst_627 = arith.constant dense<0.000000e+00> : vector<5x8xf32>
    %803 = tpu.matmul %785, %802, %cst_627 {dimension_numbers = #tpu.dot_dimension_numbers<[1], [0], [0], [1], [0, 0, 1, 1], [], []>} : vector<5x32xf32>, vector<32x8xf32>, vector<5x8xf32> -> vector<5x8xf32>
    %c3_628 = arith.constant 3 : index
    %c0_629 = arith.constant 0 : index
    %c0_630 = arith.constant 0 : index
    %c0_631 = arith.constant 0 : index
    %804 = vector.load %arg12[%c3_628, %c0_629, %c0_630, %c0_631] : memref<6x4x1x8xf32, #tpu.memory_space<vmem>>, vector<1x1x1x8xf32>
    %805 = vector.shape_cast %804 : vector<1x1x1x8xf32> to vector<1x8xf32>
    %806 = vector.broadcast %805 : vector<1x8xf32> to vector<5x8xf32>
    %807 = arith.addf %803, %806 : vector<5x8xf32>
    %808 = tpu.transpose %800, [1, 0] : vector<5x8xf32> -> vector<8x5xf32>
    %cst_632 = arith.constant dense<0.000000e+00> : vector<5x5xf32>
    %809 = tpu.matmul %793, %808, %cst_632 {dimension_numbers = #tpu.dot_dimension_numbers<[1], [0], [0], [1], [0, 0, 1, 1], [], []>} : vector<5x8xf32>, vector<8x5xf32>, vector<5x5xf32> -> vector<5x5xf32>
    %cst_633 = arith.constant 0.353553385 : f32
    %810 = vector.broadcast %cst_633 : f32 to vector<5x5xf32>
    %811 = arith.mulf %809, %810 : vector<5x5xf32>
    %cst_634 = arith.constant -1.000000e+30 : f32
    %812 = vector.broadcast %cst_634 : f32 to vector<5x5xf32>
    %813 = arith.select %11, %811, %812 : vector<5x5xi1>, vector<5x5xf32>
    %cst_635 = arith.constant dense<0xFF800000> : vector<5xf32>
    %814 = vector.multi_reduction <maximumf>, %813, %cst_635 [1] : vector<5x5xf32> to vector<5xf32>
    %815 = vector.shape_cast %814 : vector<5xf32> to vector<5x1xf32>
    %816 = vector.broadcast %815 : vector<5x1xf32> to vector<5x5xf32>
    %817 = arith.subf %813, %816 : vector<5x5xf32>
    %818 = math.exp %817 : vector<5x5xf32>
    %cst_636 = arith.constant dense<0.000000e+00> : vector<5xf32>
    %819 = vector.multi_reduction <add>, %818, %cst_636 [1] : vector<5x5xf32> to vector<5xf32>
    %820 = vector.shape_cast %819 : vector<5xf32> to vector<5x1xf32>
    %821 = tpu.reciprocal %820 {approx = true} : vector<5x1xf32> -> vector<5x1xf32>
    %822 = vector.broadcast %821 : vector<5x1xf32> to vector<5x5xf32>
    %823 = arith.mulf %818, %822 : vector<5x5xf32>
    %cst_637 = arith.constant dense<0.000000e+00> : vector<5x8xf32>
    %824 = tpu.matmul %823, %807, %cst_637 {dimension_numbers = #tpu.dot_dimension_numbers<[1], [0], [0], [1], [0, 0, 1, 1], [], []>} : vector<5x5xf32>, vector<5x8xf32>, vector<5x8xf32> -> vector<5x8xf32>
    %c3_638 = arith.constant 3 : index
    %c0_639 = arith.constant 0 : index
    %c0_640 = arith.constant 0 : index
    %c0_641 = arith.constant 0 : index
    %825 = vector.load %arg13[%c3_638, %c0_639, %c0_640, %c0_641] : memref<6x4x8x32xf32, #tpu.memory_space<vmem>>, vector<1x1x8x32xf32>
    %826 = vector.shape_cast %825 : vector<1x1x8x32xf32> to vector<8x32xf32>
    %cst_642 = arith.constant dense<0.000000e+00> : vector<5x32xf32>
    %827 = tpu.matmul %824, %826, %cst_642 {dimension_numbers = #tpu.dot_dimension_numbers<[1], [0], [0], [1], [0, 0, 1, 1], [], []>} : vector<5x8xf32>, vector<8x32xf32>, vector<5x32xf32> -> vector<5x32xf32>
    %828 = arith.addf %786, %827 : vector<5x32xf32>
    %c3_643 = arith.constant 3 : index
    %c1_644 = arith.constant 1 : index
    %c0_645 = arith.constant 0 : index
    %c0_646 = arith.constant 0 : index
    %829 = vector.load %arg7[%c3_643, %c1_644, %c0_645, %c0_646] : memref<6x4x32x8xf32, #tpu.memory_space<vmem>>, vector<1x1x32x8xf32>
    %830 = vector.shape_cast %829 : vector<1x1x32x8xf32> to vector<32x8xf32>
    %cst_647 = arith.constant dense<0.000000e+00> : vector<5x8xf32>
    %831 = tpu.matmul %785, %830, %cst_647 {dimension_numbers = #tpu.dot_dimension_numbers<[1], [0], [0], [1], [0, 0, 1, 1], [], []>} : vector<5x32xf32>, vector<32x8xf32>, vector<5x8xf32> -> vector<5x8xf32>
    %c3_648 = arith.constant 3 : index
    %c1_649 = arith.constant 1 : index
    %c0_650 = arith.constant 0 : index
    %c0_651 = arith.constant 0 : index
    %832 = vector.load %arg8[%c3_648, %c1_649, %c0_650, %c0_651] : memref<6x4x1x8xf32, #tpu.memory_space<vmem>>, vector<1x1x1x8xf32>
    %833 = vector.shape_cast %832 : vector<1x1x1x8xf32> to vector<1x8xf32>
    %834 = vector.broadcast %833 : vector<1x8xf32> to vector<5x8xf32>
    %835 = arith.addf %831, %834 : vector<5x8xf32>
    %c3_652 = arith.constant 3 : index
    %c1_653 = arith.constant 1 : index
    %c0_654 = arith.constant 0 : index
    %c0_655 = arith.constant 0 : index
    %836 = vector.load %arg9[%c3_652, %c1_653, %c0_654, %c0_655] : memref<6x4x32x8xf32, #tpu.memory_space<vmem>>, vector<1x1x32x8xf32>
    %837 = vector.shape_cast %836 : vector<1x1x32x8xf32> to vector<32x8xf32>
    %cst_656 = arith.constant dense<0.000000e+00> : vector<5x8xf32>
    %838 = tpu.matmul %785, %837, %cst_656 {dimension_numbers = #tpu.dot_dimension_numbers<[1], [0], [0], [1], [0, 0, 1, 1], [], []>} : vector<5x32xf32>, vector<32x8xf32>, vector<5x8xf32> -> vector<5x8xf32>
    %c3_657 = arith.constant 3 : index
    %c1_658 = arith.constant 1 : index
    %c0_659 = arith.constant 0 : index
    %c0_660 = arith.constant 0 : index
    %839 = vector.load %arg10[%c3_657, %c1_658, %c0_659, %c0_660] : memref<6x4x1x8xf32, #tpu.memory_space<vmem>>, vector<1x1x1x8xf32>
    %840 = vector.shape_cast %839 : vector<1x1x1x8xf32> to vector<1x8xf32>
    %841 = vector.broadcast %840 : vector<1x8xf32> to vector<5x8xf32>
    %842 = arith.addf %838, %841 : vector<5x8xf32>
    %c3_661 = arith.constant 3 : index
    %c1_662 = arith.constant 1 : index
    %c0_663 = arith.constant 0 : index
    %c0_664 = arith.constant 0 : index
    %843 = vector.load %arg11[%c3_661, %c1_662, %c0_663, %c0_664] : memref<6x4x32x8xf32, #tpu.memory_space<vmem>>, vector<1x1x32x8xf32>
    %844 = vector.shape_cast %843 : vector<1x1x32x8xf32> to vector<32x8xf32>
    %cst_665 = arith.constant dense<0.000000e+00> : vector<5x8xf32>
    %845 = tpu.matmul %785, %844, %cst_665 {dimension_numbers = #tpu.dot_dimension_numbers<[1], [0], [0], [1], [0, 0, 1, 1], [], []>} : vector<5x32xf32>, vector<32x8xf32>, vector<5x8xf32> -> vector<5x8xf32>
    %c3_666 = arith.constant 3 : index
    %c1_667 = arith.constant 1 : index
    %c0_668 = arith.constant 0 : index
    %c0_669 = arith.constant 0 : index
    %846 = vector.load %arg12[%c3_666, %c1_667, %c0_668, %c0_669] : memref<6x4x1x8xf32, #tpu.memory_space<vmem>>, vector<1x1x1x8xf32>
    %847 = vector.shape_cast %846 : vector<1x1x1x8xf32> to vector<1x8xf32>
    %848 = vector.broadcast %847 : vector<1x8xf32> to vector<5x8xf32>
    %849 = arith.addf %845, %848 : vector<5x8xf32>
    %850 = tpu.transpose %842, [1, 0] : vector<5x8xf32> -> vector<8x5xf32>
    %cst_670 = arith.constant dense<0.000000e+00> : vector<5x5xf32>
    %851 = tpu.matmul %835, %850, %cst_670 {dimension_numbers = #tpu.dot_dimension_numbers<[1], [0], [0], [1], [0, 0, 1, 1], [], []>} : vector<5x8xf32>, vector<8x5xf32>, vector<5x5xf32> -> vector<5x5xf32>
    %cst_671 = arith.constant 0.353553385 : f32
    %852 = vector.broadcast %cst_671 : f32 to vector<5x5xf32>
    %853 = arith.mulf %851, %852 : vector<5x5xf32>
    %cst_672 = arith.constant -1.000000e+30 : f32
    %854 = vector.broadcast %cst_672 : f32 to vector<5x5xf32>
    %855 = arith.select %11, %853, %854 : vector<5x5xi1>, vector<5x5xf32>
    %cst_673 = arith.constant dense<0xFF800000> : vector<5xf32>
    %856 = vector.multi_reduction <maximumf>, %855, %cst_673 [1] : vector<5x5xf32> to vector<5xf32>
    %857 = vector.shape_cast %856 : vector<5xf32> to vector<5x1xf32>
    %858 = vector.broadcast %857 : vector<5x1xf32> to vector<5x5xf32>
    %859 = arith.subf %855, %858 : vector<5x5xf32>
    %860 = math.exp %859 : vector<5x5xf32>
    %cst_674 = arith.constant dense<0.000000e+00> : vector<5xf32>
    %861 = vector.multi_reduction <add>, %860, %cst_674 [1] : vector<5x5xf32> to vector<5xf32>
    %862 = vector.shape_cast %861 : vector<5xf32> to vector<5x1xf32>
    %863 = tpu.reciprocal %862 {approx = true} : vector<5x1xf32> -> vector<5x1xf32>
    %864 = vector.broadcast %863 : vector<5x1xf32> to vector<5x5xf32>
    %865 = arith.mulf %860, %864 : vector<5x5xf32>
    %cst_675 = arith.constant dense<0.000000e+00> : vector<5x8xf32>
    %866 = tpu.matmul %865, %849, %cst_675 {dimension_numbers = #tpu.dot_dimension_numbers<[1], [0], [0], [1], [0, 0, 1, 1], [], []>} : vector<5x5xf32>, vector<5x8xf32>, vector<5x8xf32> -> vector<5x8xf32>
    %c3_676 = arith.constant 3 : index
    %c1_677 = arith.constant 1 : index
    %c0_678 = arith.constant 0 : index
    %c0_679 = arith.constant 0 : index
    %867 = vector.load %arg13[%c3_676, %c1_677, %c0_678, %c0_679] : memref<6x4x8x32xf32, #tpu.memory_space<vmem>>, vector<1x1x8x32xf32>
    %868 = vector.shape_cast %867 : vector<1x1x8x32xf32> to vector<8x32xf32>
    %cst_680 = arith.constant dense<0.000000e+00> : vector<5x32xf32>
    %869 = tpu.matmul %866, %868, %cst_680 {dimension_numbers = #tpu.dot_dimension_numbers<[1], [0], [0], [1], [0, 0, 1, 1], [], []>} : vector<5x8xf32>, vector<8x32xf32>, vector<5x32xf32> -> vector<5x32xf32>
    %870 = arith.addf %828, %869 : vector<5x32xf32>
    %c3_681 = arith.constant 3 : index
    %c2_682 = arith.constant 2 : index
    %c0_683 = arith.constant 0 : index
    %c0_684 = arith.constant 0 : index
    %871 = vector.load %arg7[%c3_681, %c2_682, %c0_683, %c0_684] : memref<6x4x32x8xf32, #tpu.memory_space<vmem>>, vector<1x1x32x8xf32>
    %872 = vector.shape_cast %871 : vector<1x1x32x8xf32> to vector<32x8xf32>
    %cst_685 = arith.constant dense<0.000000e+00> : vector<5x8xf32>
    %873 = tpu.matmul %785, %872, %cst_685 {dimension_numbers = #tpu.dot_dimension_numbers<[1], [0], [0], [1], [0, 0, 1, 1], [], []>} : vector<5x32xf32>, vector<32x8xf32>, vector<5x8xf32> -> vector<5x8xf32>
    %c3_686 = arith.constant 3 : index
    %c2_687 = arith.constant 2 : index
    %c0_688 = arith.constant 0 : index
    %c0_689 = arith.constant 0 : index
    %874 = vector.load %arg8[%c3_686, %c2_687, %c0_688, %c0_689] : memref<6x4x1x8xf32, #tpu.memory_space<vmem>>, vector<1x1x1x8xf32>
    %875 = vector.shape_cast %874 : vector<1x1x1x8xf32> to vector<1x8xf32>
    %876 = vector.broadcast %875 : vector<1x8xf32> to vector<5x8xf32>
    %877 = arith.addf %873, %876 : vector<5x8xf32>
    %c3_690 = arith.constant 3 : index
    %c2_691 = arith.constant 2 : index
    %c0_692 = arith.constant 0 : index
    %c0_693 = arith.constant 0 : index
    %878 = vector.load %arg9[%c3_690, %c2_691, %c0_692, %c0_693] : memref<6x4x32x8xf32, #tpu.memory_space<vmem>>, vector<1x1x32x8xf32>
    %879 = vector.shape_cast %878 : vector<1x1x32x8xf32> to vector<32x8xf32>
    %cst_694 = arith.constant dense<0.000000e+00> : vector<5x8xf32>
    %880 = tpu.matmul %785, %879, %cst_694 {dimension_numbers = #tpu.dot_dimension_numbers<[1], [0], [0], [1], [0, 0, 1, 1], [], []>} : vector<5x32xf32>, vector<32x8xf32>, vector<5x8xf32> -> vector<5x8xf32>
    %c3_695 = arith.constant 3 : index
    %c2_696 = arith.constant 2 : index
    %c0_697 = arith.constant 0 : index
    %c0_698 = arith.constant 0 : index
    %881 = vector.load %arg10[%c3_695, %c2_696, %c0_697, %c0_698] : memref<6x4x1x8xf32, #tpu.memory_space<vmem>>, vector<1x1x1x8xf32>
    %882 = vector.shape_cast %881 : vector<1x1x1x8xf32> to vector<1x8xf32>
    %883 = vector.broadcast %882 : vector<1x8xf32> to vector<5x8xf32>
    %884 = arith.addf %880, %883 : vector<5x8xf32>
    %c3_699 = arith.constant 3 : index
    %c2_700 = arith.constant 2 : index
    %c0_701 = arith.constant 0 : index
    %c0_702 = arith.constant 0 : index
    %885 = vector.load %arg11[%c3_699, %c2_700, %c0_701, %c0_702] : memref<6x4x32x8xf32, #tpu.memory_space<vmem>>, vector<1x1x32x8xf32>
    %886 = vector.shape_cast %885 : vector<1x1x32x8xf32> to vector<32x8xf32>
    %cst_703 = arith.constant dense<0.000000e+00> : vector<5x8xf32>
    %887 = tpu.matmul %785, %886, %cst_703 {dimension_numbers = #tpu.dot_dimension_numbers<[1], [0], [0], [1], [0, 0, 1, 1], [], []>} : vector<5x32xf32>, vector<32x8xf32>, vector<5x8xf32> -> vector<5x8xf32>
    %c3_704 = arith.constant 3 : index
    %c2_705 = arith.constant 2 : index
    %c0_706 = arith.constant 0 : index
    %c0_707 = arith.constant 0 : index
    %888 = vector.load %arg12[%c3_704, %c2_705, %c0_706, %c0_707] : memref<6x4x1x8xf32, #tpu.memory_space<vmem>>, vector<1x1x1x8xf32>
    %889 = vector.shape_cast %888 : vector<1x1x1x8xf32> to vector<1x8xf32>
    %890 = vector.broadcast %889 : vector<1x8xf32> to vector<5x8xf32>
    %891 = arith.addf %887, %890 : vector<5x8xf32>
    %892 = tpu.transpose %884, [1, 0] : vector<5x8xf32> -> vector<8x5xf32>
    %cst_708 = arith.constant dense<0.000000e+00> : vector<5x5xf32>
    %893 = tpu.matmul %877, %892, %cst_708 {dimension_numbers = #tpu.dot_dimension_numbers<[1], [0], [0], [1], [0, 0, 1, 1], [], []>} : vector<5x8xf32>, vector<8x5xf32>, vector<5x5xf32> -> vector<5x5xf32>
    %cst_709 = arith.constant 0.353553385 : f32
    %894 = vector.broadcast %cst_709 : f32 to vector<5x5xf32>
    %895 = arith.mulf %893, %894 : vector<5x5xf32>
    %cst_710 = arith.constant -1.000000e+30 : f32
    %896 = vector.broadcast %cst_710 : f32 to vector<5x5xf32>
    %897 = arith.select %11, %895, %896 : vector<5x5xi1>, vector<5x5xf32>
    %cst_711 = arith.constant dense<0xFF800000> : vector<5xf32>
    %898 = vector.multi_reduction <maximumf>, %897, %cst_711 [1] : vector<5x5xf32> to vector<5xf32>
    %899 = vector.shape_cast %898 : vector<5xf32> to vector<5x1xf32>
    %900 = vector.broadcast %899 : vector<5x1xf32> to vector<5x5xf32>
    %901 = arith.subf %897, %900 : vector<5x5xf32>
    %902 = math.exp %901 : vector<5x5xf32>
    %cst_712 = arith.constant dense<0.000000e+00> : vector<5xf32>
    %903 = vector.multi_reduction <add>, %902, %cst_712 [1] : vector<5x5xf32> to vector<5xf32>
    %904 = vector.shape_cast %903 : vector<5xf32> to vector<5x1xf32>
    %905 = tpu.reciprocal %904 {approx = true} : vector<5x1xf32> -> vector<5x1xf32>
    %906 = vector.broadcast %905 : vector<5x1xf32> to vector<5x5xf32>
    %907 = arith.mulf %902, %906 : vector<5x5xf32>
    %cst_713 = arith.constant dense<0.000000e+00> : vector<5x8xf32>
    %908 = tpu.matmul %907, %891, %cst_713 {dimension_numbers = #tpu.dot_dimension_numbers<[1], [0], [0], [1], [0, 0, 1, 1], [], []>} : vector<5x5xf32>, vector<5x8xf32>, vector<5x8xf32> -> vector<5x8xf32>
    %c3_714 = arith.constant 3 : index
    %c2_715 = arith.constant 2 : index
    %c0_716 = arith.constant 0 : index
    %c0_717 = arith.constant 0 : index
    %909 = vector.load %arg13[%c3_714, %c2_715, %c0_716, %c0_717] : memref<6x4x8x32xf32, #tpu.memory_space<vmem>>, vector<1x1x8x32xf32>
    %910 = vector.shape_cast %909 : vector<1x1x8x32xf32> to vector<8x32xf32>
    %cst_718 = arith.constant dense<0.000000e+00> : vector<5x32xf32>
    %911 = tpu.matmul %908, %910, %cst_718 {dimension_numbers = #tpu.dot_dimension_numbers<[1], [0], [0], [1], [0, 0, 1, 1], [], []>} : vector<5x8xf32>, vector<8x32xf32>, vector<5x32xf32> -> vector<5x32xf32>
    %912 = arith.addf %870, %911 : vector<5x32xf32>
    %c3_719 = arith.constant 3 : index
    %c3_720 = arith.constant 3 : index
    %c0_721 = arith.constant 0 : index
    %c0_722 = arith.constant 0 : index
    %913 = vector.load %arg7[%c3_719, %c3_720, %c0_721, %c0_722] : memref<6x4x32x8xf32, #tpu.memory_space<vmem>>, vector<1x1x32x8xf32>
    %914 = vector.shape_cast %913 : vector<1x1x32x8xf32> to vector<32x8xf32>
    %cst_723 = arith.constant dense<0.000000e+00> : vector<5x8xf32>
    %915 = tpu.matmul %785, %914, %cst_723 {dimension_numbers = #tpu.dot_dimension_numbers<[1], [0], [0], [1], [0, 0, 1, 1], [], []>} : vector<5x32xf32>, vector<32x8xf32>, vector<5x8xf32> -> vector<5x8xf32>
    %c3_724 = arith.constant 3 : index
    %c3_725 = arith.constant 3 : index
    %c0_726 = arith.constant 0 : index
    %c0_727 = arith.constant 0 : index
    %916 = vector.load %arg8[%c3_724, %c3_725, %c0_726, %c0_727] : memref<6x4x1x8xf32, #tpu.memory_space<vmem>>, vector<1x1x1x8xf32>
    %917 = vector.shape_cast %916 : vector<1x1x1x8xf32> to vector<1x8xf32>
    %918 = vector.broadcast %917 : vector<1x8xf32> to vector<5x8xf32>
    %919 = arith.addf %915, %918 : vector<5x8xf32>
    %c3_728 = arith.constant 3 : index
    %c3_729 = arith.constant 3 : index
    %c0_730 = arith.constant 0 : index
    %c0_731 = arith.constant 0 : index
    %920 = vector.load %arg9[%c3_728, %c3_729, %c0_730, %c0_731] : memref<6x4x32x8xf32, #tpu.memory_space<vmem>>, vector<1x1x32x8xf32>
    %921 = vector.shape_cast %920 : vector<1x1x32x8xf32> to vector<32x8xf32>
    %cst_732 = arith.constant dense<0.000000e+00> : vector<5x8xf32>
    %922 = tpu.matmul %785, %921, %cst_732 {dimension_numbers = #tpu.dot_dimension_numbers<[1], [0], [0], [1], [0, 0, 1, 1], [], []>} : vector<5x32xf32>, vector<32x8xf32>, vector<5x8xf32> -> vector<5x8xf32>
    %c3_733 = arith.constant 3 : index
    %c3_734 = arith.constant 3 : index
    %c0_735 = arith.constant 0 : index
    %c0_736 = arith.constant 0 : index
    %923 = vector.load %arg10[%c3_733, %c3_734, %c0_735, %c0_736] : memref<6x4x1x8xf32, #tpu.memory_space<vmem>>, vector<1x1x1x8xf32>
    %924 = vector.shape_cast %923 : vector<1x1x1x8xf32> to vector<1x8xf32>
    %925 = vector.broadcast %924 : vector<1x8xf32> to vector<5x8xf32>
    %926 = arith.addf %922, %925 : vector<5x8xf32>
    %c3_737 = arith.constant 3 : index
    %c3_738 = arith.constant 3 : index
    %c0_739 = arith.constant 0 : index
    %c0_740 = arith.constant 0 : index
    %927 = vector.load %arg11[%c3_737, %c3_738, %c0_739, %c0_740] : memref<6x4x32x8xf32, #tpu.memory_space<vmem>>, vector<1x1x32x8xf32>
    %928 = vector.shape_cast %927 : vector<1x1x32x8xf32> to vector<32x8xf32>
    %cst_741 = arith.constant dense<0.000000e+00> : vector<5x8xf32>
    %929 = tpu.matmul %785, %928, %cst_741 {dimension_numbers = #tpu.dot_dimension_numbers<[1], [0], [0], [1], [0, 0, 1, 1], [], []>} : vector<5x32xf32>, vector<32x8xf32>, vector<5x8xf32> -> vector<5x8xf32>
    %c3_742 = arith.constant 3 : index
    %c3_743 = arith.constant 3 : index
    %c0_744 = arith.constant 0 : index
    %c0_745 = arith.constant 0 : index
    %930 = vector.load %arg12[%c3_742, %c3_743, %c0_744, %c0_745] : memref<6x4x1x8xf32, #tpu.memory_space<vmem>>, vector<1x1x1x8xf32>
    %931 = vector.shape_cast %930 : vector<1x1x1x8xf32> to vector<1x8xf32>
    %932 = vector.broadcast %931 : vector<1x8xf32> to vector<5x8xf32>
    %933 = arith.addf %929, %932 : vector<5x8xf32>
    %934 = tpu.transpose %926, [1, 0] : vector<5x8xf32> -> vector<8x5xf32>
    %cst_746 = arith.constant dense<0.000000e+00> : vector<5x5xf32>
    %935 = tpu.matmul %919, %934, %cst_746 {dimension_numbers = #tpu.dot_dimension_numbers<[1], [0], [0], [1], [0, 0, 1, 1], [], []>} : vector<5x8xf32>, vector<8x5xf32>, vector<5x5xf32> -> vector<5x5xf32>
    %cst_747 = arith.constant 0.353553385 : f32
    %936 = vector.broadcast %cst_747 : f32 to vector<5x5xf32>
    %937 = arith.mulf %935, %936 : vector<5x5xf32>
    %cst_748 = arith.constant -1.000000e+30 : f32
    %938 = vector.broadcast %cst_748 : f32 to vector<5x5xf32>
    %939 = arith.select %11, %937, %938 : vector<5x5xi1>, vector<5x5xf32>
    %cst_749 = arith.constant dense<0xFF800000> : vector<5xf32>
    %940 = vector.multi_reduction <maximumf>, %939, %cst_749 [1] : vector<5x5xf32> to vector<5xf32>
    %941 = vector.shape_cast %940 : vector<5xf32> to vector<5x1xf32>
    %942 = vector.broadcast %941 : vector<5x1xf32> to vector<5x5xf32>
    %943 = arith.subf %939, %942 : vector<5x5xf32>
    %944 = math.exp %943 : vector<5x5xf32>
    %cst_750 = arith.constant dense<0.000000e+00> : vector<5xf32>
    %945 = vector.multi_reduction <add>, %944, %cst_750 [1] : vector<5x5xf32> to vector<5xf32>
    %946 = vector.shape_cast %945 : vector<5xf32> to vector<5x1xf32>
    %947 = tpu.reciprocal %946 {approx = true} : vector<5x1xf32> -> vector<5x1xf32>
    %948 = vector.broadcast %947 : vector<5x1xf32> to vector<5x5xf32>
    %949 = arith.mulf %944, %948 : vector<5x5xf32>
    %cst_751 = arith.constant dense<0.000000e+00> : vector<5x8xf32>
    %950 = tpu.matmul %949, %933, %cst_751 {dimension_numbers = #tpu.dot_dimension_numbers<[1], [0], [0], [1], [0, 0, 1, 1], [], []>} : vector<5x5xf32>, vector<5x8xf32>, vector<5x8xf32> -> vector<5x8xf32>
    %c3_752 = arith.constant 3 : index
    %c3_753 = arith.constant 3 : index
    %c0_754 = arith.constant 0 : index
    %c0_755 = arith.constant 0 : index
    %951 = vector.load %arg13[%c3_752, %c3_753, %c0_754, %c0_755] : memref<6x4x8x32xf32, #tpu.memory_space<vmem>>, vector<1x1x8x32xf32>
    %952 = vector.shape_cast %951 : vector<1x1x8x32xf32> to vector<8x32xf32>
    %cst_756 = arith.constant dense<0.000000e+00> : vector<5x32xf32>
    %953 = tpu.matmul %950, %952, %cst_756 {dimension_numbers = #tpu.dot_dimension_numbers<[1], [0], [0], [1], [0, 0, 1, 1], [], []>} : vector<5x8xf32>, vector<8x32xf32>, vector<5x32xf32> -> vector<5x32xf32>
    %954 = arith.addf %912, %953 : vector<5x32xf32>
    %955 = arith.addf %761, %954 : vector<5x32xf32>
    %c3_757 = arith.constant 3 : index
    %c0_758 = arith.constant 0 : index
    %c0_759 = arith.constant 0 : index
    %956 = vector.load %arg14[%c3_757, %c0_758, %c0_759] : memref<6x1x32xf32, #tpu.memory_space<vmem>>, vector<1x1x32xf32>
    %957 = vector.shape_cast %956 : vector<1x1x32xf32> to vector<1x32xf32>
    %958 = vector.broadcast %957 : vector<1x32xf32> to vector<5x32xf32>
    %959 = arith.addf %955, %958 : vector<5x32xf32>
    %c3_760 = arith.constant 3 : index
    %c0_761 = arith.constant 0 : index
    %c0_762 = arith.constant 0 : index
    %960 = vector.load %arg15[%c3_760, %c0_761, %c0_762] : memref<6x1x32xf32, #tpu.memory_space<vmem>>, vector<1x1x32xf32>
    %961 = vector.shape_cast %960 : vector<1x1x32xf32> to vector<1x32xf32>
    %c3_763 = arith.constant 3 : index
    %c0_764 = arith.constant 0 : index
    %c0_765 = arith.constant 0 : index
    %962 = vector.load %arg16[%c3_763, %c0_764, %c0_765] : memref<6x1x32xf32, #tpu.memory_space<vmem>>, vector<1x1x32xf32>
    %963 = vector.shape_cast %962 : vector<1x1x32xf32> to vector<1x32xf32>
    %cst_766 = arith.constant dense<0.000000e+00> : vector<5xf32>
    %964 = vector.multi_reduction <add>, %959, %cst_766 [1] : vector<5x32xf32> to vector<5xf32>
    %965 = vector.shape_cast %964 : vector<5xf32> to vector<5x1xf32>
    %cst_767 = arith.constant 3.200000e+01 : f32
    %966 = vector.broadcast %cst_767 : f32 to vector<5x1xf32>
    %967 = arith.divf %965, %966 : vector<5x1xf32>
    %968 = vector.broadcast %967 : vector<5x1xf32> to vector<5x32xf32>
    %969 = arith.subf %959, %968 : vector<5x32xf32>
    %970 = arith.mulf %969, %969 : vector<5x32xf32>
    %cst_768 = arith.constant dense<0.000000e+00> : vector<5xf32>
    %971 = vector.multi_reduction <add>, %970, %cst_768 [1] : vector<5x32xf32> to vector<5xf32>
    %972 = vector.shape_cast %971 : vector<5xf32> to vector<5x1xf32>
    %cst_769 = arith.constant 3.200000e+01 : f32
    %973 = vector.broadcast %cst_769 : f32 to vector<5x1xf32>
    %974 = arith.divf %972, %973 : vector<5x1xf32>
    %cst_770 = arith.constant 9.99999974E-6 : f32
    %975 = vector.broadcast %cst_770 : f32 to vector<5x1xf32>
    %976 = arith.addf %974, %975 : vector<5x1xf32>
    %977 = math.rsqrt %976 : vector<5x1xf32>
    %978 = vector.broadcast %977 : vector<5x1xf32> to vector<5x32xf32>
    %979 = arith.mulf %969, %978 : vector<5x32xf32>
    %980 = vector.broadcast %961 : vector<1x32xf32> to vector<5x32xf32>
    %981 = arith.mulf %979, %980 : vector<5x32xf32>
    %982 = vector.broadcast %963 : vector<1x32xf32> to vector<5x32xf32>
    %983 = arith.addf %981, %982 : vector<5x32xf32>
    %c3_771 = arith.constant 3 : index
    %c0_772 = arith.constant 0 : index
    %c0_773 = arith.constant 0 : index
    %984 = vector.load %arg17[%c3_771, %c0_772, %c0_773] : memref<6x32x128xf32, #tpu.memory_space<vmem>>, vector<1x32x128xf32>
    %985 = vector.shape_cast %984 : vector<1x32x128xf32> to vector<32x128xf32>
    %cst_774 = arith.constant dense<0.000000e+00> : vector<5x128xf32>
    %986 = tpu.matmul %983, %985, %cst_774 {dimension_numbers = #tpu.dot_dimension_numbers<[1], [0], [0], [1], [0, 0, 1, 1], [], []>} : vector<5x32xf32>, vector<32x128xf32>, vector<5x128xf32> -> vector<5x128xf32>
    %c3_775 = arith.constant 3 : index
    %c0_776 = arith.constant 0 : index
    %c0_777 = arith.constant 0 : index
    %987 = vector.load %arg18[%c3_775, %c0_776, %c0_777] : memref<6x1x128xf32, #tpu.memory_space<vmem>>, vector<1x1x128xf32>
    %988 = vector.shape_cast %987 : vector<1x1x128xf32> to vector<1x128xf32>
    %989 = vector.broadcast %988 : vector<1x128xf32> to vector<5x128xf32>
    %990 = arith.addf %986, %989 : vector<5x128xf32>
    %cst_778 = arith.constant 5.000000e-01 : f32
    %991 = vector.broadcast %cst_778 : f32 to vector<5x128xf32>
    %992 = arith.mulf %991, %990 : vector<5x128xf32>
    %cst_779 = arith.constant 4.471500e-02 : f32
    %993 = vector.broadcast %cst_779 : f32 to vector<5x128xf32>
    %994 = arith.mulf %993, %990 : vector<5x128xf32>
    %995 = arith.mulf %994, %990 : vector<5x128xf32>
    %996 = arith.mulf %995, %990 : vector<5x128xf32>
    %997 = arith.addf %990, %996 : vector<5x128xf32>
    %cst_780 = arith.constant 0.797884583 : f32
    %998 = vector.broadcast %cst_780 : f32 to vector<5x128xf32>
    %999 = arith.mulf %998, %997 : vector<5x128xf32>
    %1000 = math.tanh %999 : vector<5x128xf32>
    %cst_781 = arith.constant 1.000000e+00 : f32
    %1001 = vector.broadcast %cst_781 : f32 to vector<5x128xf32>
    %1002 = arith.addf %1001, %1000 : vector<5x128xf32>
    %1003 = arith.mulf %992, %1002 : vector<5x128xf32>
    %c3_782 = arith.constant 3 : index
    %c0_783 = arith.constant 0 : index
    %c0_784 = arith.constant 0 : index
    %1004 = vector.load %arg19[%c3_782, %c0_783, %c0_784] : memref<6x128x32xf32, #tpu.memory_space<vmem>>, vector<1x128x32xf32>
    %1005 = vector.shape_cast %1004 : vector<1x128x32xf32> to vector<128x32xf32>
    %cst_785 = arith.constant dense<0.000000e+00> : vector<5x32xf32>
    %1006 = tpu.matmul %1003, %1005, %cst_785 {dimension_numbers = #tpu.dot_dimension_numbers<[1], [0], [0], [1], [0, 0, 1, 1], [], []>} : vector<5x128xf32>, vector<128x32xf32>, vector<5x32xf32> -> vector<5x32xf32>
    %1007 = arith.addf %959, %1006 : vector<5x32xf32>
    %c3_786 = arith.constant 3 : index
    %c0_787 = arith.constant 0 : index
    %c0_788 = arith.constant 0 : index
    %1008 = vector.load %arg20[%c3_786, %c0_787, %c0_788] : memref<6x1x32xf32, #tpu.memory_space<vmem>>, vector<1x1x32xf32>
    %1009 = vector.shape_cast %1008 : vector<1x1x32xf32> to vector<1x32xf32>
    %1010 = vector.broadcast %1009 : vector<1x32xf32> to vector<5x32xf32>
    %1011 = arith.addf %1007, %1010 : vector<5x32xf32>
    %c4 = arith.constant 4 : index
    %c0_789 = arith.constant 0 : index
    %c0_790 = arith.constant 0 : index
    %1012 = vector.load %arg5[%c4, %c0_789, %c0_790] : memref<6x1x32xf32, #tpu.memory_space<vmem>>, vector<1x1x32xf32>
    %1013 = vector.shape_cast %1012 : vector<1x1x32xf32> to vector<1x32xf32>
    %c4_791 = arith.constant 4 : index
    %c0_792 = arith.constant 0 : index
    %c0_793 = arith.constant 0 : index
    %1014 = vector.load %arg6[%c4_791, %c0_792, %c0_793] : memref<6x1x32xf32, #tpu.memory_space<vmem>>, vector<1x1x32xf32>
    %1015 = vector.shape_cast %1014 : vector<1x1x32xf32> to vector<1x32xf32>
    %cst_794 = arith.constant dense<0.000000e+00> : vector<5xf32>
    %1016 = vector.multi_reduction <add>, %1011, %cst_794 [1] : vector<5x32xf32> to vector<5xf32>
    %1017 = vector.shape_cast %1016 : vector<5xf32> to vector<5x1xf32>
    %cst_795 = arith.constant 3.200000e+01 : f32
    %1018 = vector.broadcast %cst_795 : f32 to vector<5x1xf32>
    %1019 = arith.divf %1017, %1018 : vector<5x1xf32>
    %1020 = vector.broadcast %1019 : vector<5x1xf32> to vector<5x32xf32>
    %1021 = arith.subf %1011, %1020 : vector<5x32xf32>
    %1022 = arith.mulf %1021, %1021 : vector<5x32xf32>
    %cst_796 = arith.constant dense<0.000000e+00> : vector<5xf32>
    %1023 = vector.multi_reduction <add>, %1022, %cst_796 [1] : vector<5x32xf32> to vector<5xf32>
    %1024 = vector.shape_cast %1023 : vector<5xf32> to vector<5x1xf32>
    %cst_797 = arith.constant 3.200000e+01 : f32
    %1025 = vector.broadcast %cst_797 : f32 to vector<5x1xf32>
    %1026 = arith.divf %1024, %1025 : vector<5x1xf32>
    %cst_798 = arith.constant 9.99999974E-6 : f32
    %1027 = vector.broadcast %cst_798 : f32 to vector<5x1xf32>
    %1028 = arith.addf %1026, %1027 : vector<5x1xf32>
    %1029 = math.rsqrt %1028 : vector<5x1xf32>
    %1030 = vector.broadcast %1029 : vector<5x1xf32> to vector<5x32xf32>
    %1031 = arith.mulf %1021, %1030 : vector<5x32xf32>
    %1032 = vector.broadcast %1013 : vector<1x32xf32> to vector<5x32xf32>
    %1033 = arith.mulf %1031, %1032 : vector<5x32xf32>
    %1034 = vector.broadcast %1015 : vector<1x32xf32> to vector<5x32xf32>
    %1035 = arith.addf %1033, %1034 : vector<5x32xf32>
    %cst_799 = arith.constant 0.000000e+00 : f32
    %1036 = vector.broadcast %cst_799 : f32 to vector<5x32xf32>
    %c4_800 = arith.constant 4 : index
    %c0_801 = arith.constant 0 : index
    %c0_802 = arith.constant 0 : index
    %c0_803 = arith.constant 0 : index
    %1037 = vector.load %arg7[%c4_800, %c0_801, %c0_802, %c0_803] : memref<6x4x32x8xf32, #tpu.memory_space<vmem>>, vector<1x1x32x8xf32>
    %1038 = vector.shape_cast %1037 : vector<1x1x32x8xf32> to vector<32x8xf32>
    %cst_804 = arith.constant dense<0.000000e+00> : vector<5x8xf32>
    %1039 = tpu.matmul %1035, %1038, %cst_804 {dimension_numbers = #tpu.dot_dimension_numbers<[1], [0], [0], [1], [0, 0, 1, 1], [], []>} : vector<5x32xf32>, vector<32x8xf32>, vector<5x8xf32> -> vector<5x8xf32>
    %c4_805 = arith.constant 4 : index
    %c0_806 = arith.constant 0 : index
    %c0_807 = arith.constant 0 : index
    %c0_808 = arith.constant 0 : index
    %1040 = vector.load %arg8[%c4_805, %c0_806, %c0_807, %c0_808] : memref<6x4x1x8xf32, #tpu.memory_space<vmem>>, vector<1x1x1x8xf32>
    %1041 = vector.shape_cast %1040 : vector<1x1x1x8xf32> to vector<1x8xf32>
    %1042 = vector.broadcast %1041 : vector<1x8xf32> to vector<5x8xf32>
    %1043 = arith.addf %1039, %1042 : vector<5x8xf32>
    %c4_809 = arith.constant 4 : index
    %c0_810 = arith.constant 0 : index
    %c0_811 = arith.constant 0 : index
    %c0_812 = arith.constant 0 : index
    %1044 = vector.load %arg9[%c4_809, %c0_810, %c0_811, %c0_812] : memref<6x4x32x8xf32, #tpu.memory_space<vmem>>, vector<1x1x32x8xf32>
    %1045 = vector.shape_cast %1044 : vector<1x1x32x8xf32> to vector<32x8xf32>
    %cst_813 = arith.constant dense<0.000000e+00> : vector<5x8xf32>
    %1046 = tpu.matmul %1035, %1045, %cst_813 {dimension_numbers = #tpu.dot_dimension_numbers<[1], [0], [0], [1], [0, 0, 1, 1], [], []>} : vector<5x32xf32>, vector<32x8xf32>, vector<5x8xf32> -> vector<5x8xf32>
    %c4_814 = arith.constant 4 : index
    %c0_815 = arith.constant 0 : index
    %c0_816 = arith.constant 0 : index
    %c0_817 = arith.constant 0 : index
    %1047 = vector.load %arg10[%c4_814, %c0_815, %c0_816, %c0_817] : memref<6x4x1x8xf32, #tpu.memory_space<vmem>>, vector<1x1x1x8xf32>
    %1048 = vector.shape_cast %1047 : vector<1x1x1x8xf32> to vector<1x8xf32>
    %1049 = vector.broadcast %1048 : vector<1x8xf32> to vector<5x8xf32>
    %1050 = arith.addf %1046, %1049 : vector<5x8xf32>
    %c4_818 = arith.constant 4 : index
    %c0_819 = arith.constant 0 : index
    %c0_820 = arith.constant 0 : index
    %c0_821 = arith.constant 0 : index
    %1051 = vector.load %arg11[%c4_818, %c0_819, %c0_820, %c0_821] : memref<6x4x32x8xf32, #tpu.memory_space<vmem>>, vector<1x1x32x8xf32>
    %1052 = vector.shape_cast %1051 : vector<1x1x32x8xf32> to vector<32x8xf32>
    %cst_822 = arith.constant dense<0.000000e+00> : vector<5x8xf32>
    %1053 = tpu.matmul %1035, %1052, %cst_822 {dimension_numbers = #tpu.dot_dimension_numbers<[1], [0], [0], [1], [0, 0, 1, 1], [], []>} : vector<5x32xf32>, vector<32x8xf32>, vector<5x8xf32> -> vector<5x8xf32>
    %c4_823 = arith.constant 4 : index
    %c0_824 = arith.constant 0 : index
    %c0_825 = arith.constant 0 : index
    %c0_826 = arith.constant 0 : index
    %1054 = vector.load %arg12[%c4_823, %c0_824, %c0_825, %c0_826] : memref<6x4x1x8xf32, #tpu.memory_space<vmem>>, vector<1x1x1x8xf32>
    %1055 = vector.shape_cast %1054 : vector<1x1x1x8xf32> to vector<1x8xf32>
    %1056 = vector.broadcast %1055 : vector<1x8xf32> to vector<5x8xf32>
    %1057 = arith.addf %1053, %1056 : vector<5x8xf32>
    %1058 = tpu.transpose %1050, [1, 0] : vector<5x8xf32> -> vector<8x5xf32>
    %cst_827 = arith.constant dense<0.000000e+00> : vector<5x5xf32>
    %1059 = tpu.matmul %1043, %1058, %cst_827 {dimension_numbers = #tpu.dot_dimension_numbers<[1], [0], [0], [1], [0, 0, 1, 1], [], []>} : vector<5x8xf32>, vector<8x5xf32>, vector<5x5xf32> -> vector<5x5xf32>
    %cst_828 = arith.constant 0.353553385 : f32
    %1060 = vector.broadcast %cst_828 : f32 to vector<5x5xf32>
    %1061 = arith.mulf %1059, %1060 : vector<5x5xf32>
    %cst_829 = arith.constant -1.000000e+30 : f32
    %1062 = vector.broadcast %cst_829 : f32 to vector<5x5xf32>
    %1063 = arith.select %11, %1061, %1062 : vector<5x5xi1>, vector<5x5xf32>
    %cst_830 = arith.constant dense<0xFF800000> : vector<5xf32>
    %1064 = vector.multi_reduction <maximumf>, %1063, %cst_830 [1] : vector<5x5xf32> to vector<5xf32>
    %1065 = vector.shape_cast %1064 : vector<5xf32> to vector<5x1xf32>
    %1066 = vector.broadcast %1065 : vector<5x1xf32> to vector<5x5xf32>
    %1067 = arith.subf %1063, %1066 : vector<5x5xf32>
    %1068 = math.exp %1067 : vector<5x5xf32>
    %cst_831 = arith.constant dense<0.000000e+00> : vector<5xf32>
    %1069 = vector.multi_reduction <add>, %1068, %cst_831 [1] : vector<5x5xf32> to vector<5xf32>
    %1070 = vector.shape_cast %1069 : vector<5xf32> to vector<5x1xf32>
    %1071 = tpu.reciprocal %1070 {approx = true} : vector<5x1xf32> -> vector<5x1xf32>
    %1072 = vector.broadcast %1071 : vector<5x1xf32> to vector<5x5xf32>
    %1073 = arith.mulf %1068, %1072 : vector<5x5xf32>
    %cst_832 = arith.constant dense<0.000000e+00> : vector<5x8xf32>
    %1074 = tpu.matmul %1073, %1057, %cst_832 {dimension_numbers = #tpu.dot_dimension_numbers<[1], [0], [0], [1], [0, 0, 1, 1], [], []>} : vector<5x5xf32>, vector<5x8xf32>, vector<5x8xf32> -> vector<5x8xf32>
    %c4_833 = arith.constant 4 : index
    %c0_834 = arith.constant 0 : index
    %c0_835 = arith.constant 0 : index
    %c0_836 = arith.constant 0 : index
    %1075 = vector.load %arg13[%c4_833, %c0_834, %c0_835, %c0_836] : memref<6x4x8x32xf32, #tpu.memory_space<vmem>>, vector<1x1x8x32xf32>
    %1076 = vector.shape_cast %1075 : vector<1x1x8x32xf32> to vector<8x32xf32>
    %cst_837 = arith.constant dense<0.000000e+00> : vector<5x32xf32>
    %1077 = tpu.matmul %1074, %1076, %cst_837 {dimension_numbers = #tpu.dot_dimension_numbers<[1], [0], [0], [1], [0, 0, 1, 1], [], []>} : vector<5x8xf32>, vector<8x32xf32>, vector<5x32xf32> -> vector<5x32xf32>
    %1078 = arith.addf %1036, %1077 : vector<5x32xf32>
    %c4_838 = arith.constant 4 : index
    %c1_839 = arith.constant 1 : index
    %c0_840 = arith.constant 0 : index
    %c0_841 = arith.constant 0 : index
    %1079 = vector.load %arg7[%c4_838, %c1_839, %c0_840, %c0_841] : memref<6x4x32x8xf32, #tpu.memory_space<vmem>>, vector<1x1x32x8xf32>
    %1080 = vector.shape_cast %1079 : vector<1x1x32x8xf32> to vector<32x8xf32>
    %cst_842 = arith.constant dense<0.000000e+00> : vector<5x8xf32>
    %1081 = tpu.matmul %1035, %1080, %cst_842 {dimension_numbers = #tpu.dot_dimension_numbers<[1], [0], [0], [1], [0, 0, 1, 1], [], []>} : vector<5x32xf32>, vector<32x8xf32>, vector<5x8xf32> -> vector<5x8xf32>
    %c4_843 = arith.constant 4 : index
    %c1_844 = arith.constant 1 : index
    %c0_845 = arith.constant 0 : index
    %c0_846 = arith.constant 0 : index
    %1082 = vector.load %arg8[%c4_843, %c1_844, %c0_845, %c0_846] : memref<6x4x1x8xf32, #tpu.memory_space<vmem>>, vector<1x1x1x8xf32>
    %1083 = vector.shape_cast %1082 : vector<1x1x1x8xf32> to vector<1x8xf32>
    %1084 = vector.broadcast %1083 : vector<1x8xf32> to vector<5x8xf32>
    %1085 = arith.addf %1081, %1084 : vector<5x8xf32>
    %c4_847 = arith.constant 4 : index
    %c1_848 = arith.constant 1 : index
    %c0_849 = arith.constant 0 : index
    %c0_850 = arith.constant 0 : index
    %1086 = vector.load %arg9[%c4_847, %c1_848, %c0_849, %c0_850] : memref<6x4x32x8xf32, #tpu.memory_space<vmem>>, vector<1x1x32x8xf32>
    %1087 = vector.shape_cast %1086 : vector<1x1x32x8xf32> to vector<32x8xf32>
    %cst_851 = arith.constant dense<0.000000e+00> : vector<5x8xf32>
    %1088 = tpu.matmul %1035, %1087, %cst_851 {dimension_numbers = #tpu.dot_dimension_numbers<[1], [0], [0], [1], [0, 0, 1, 1], [], []>} : vector<5x32xf32>, vector<32x8xf32>, vector<5x8xf32> -> vector<5x8xf32>
    %c4_852 = arith.constant 4 : index
    %c1_853 = arith.constant 1 : index
    %c0_854 = arith.constant 0 : index
    %c0_855 = arith.constant 0 : index
    %1089 = vector.load %arg10[%c4_852, %c1_853, %c0_854, %c0_855] : memref<6x4x1x8xf32, #tpu.memory_space<vmem>>, vector<1x1x1x8xf32>
    %1090 = vector.shape_cast %1089 : vector<1x1x1x8xf32> to vector<1x8xf32>
    %1091 = vector.broadcast %1090 : vector<1x8xf32> to vector<5x8xf32>
    %1092 = arith.addf %1088, %1091 : vector<5x8xf32>
    %c4_856 = arith.constant 4 : index
    %c1_857 = arith.constant 1 : index
    %c0_858 = arith.constant 0 : index
    %c0_859 = arith.constant 0 : index
    %1093 = vector.load %arg11[%c4_856, %c1_857, %c0_858, %c0_859] : memref<6x4x32x8xf32, #tpu.memory_space<vmem>>, vector<1x1x32x8xf32>
    %1094 = vector.shape_cast %1093 : vector<1x1x32x8xf32> to vector<32x8xf32>
    %cst_860 = arith.constant dense<0.000000e+00> : vector<5x8xf32>
    %1095 = tpu.matmul %1035, %1094, %cst_860 {dimension_numbers = #tpu.dot_dimension_numbers<[1], [0], [0], [1], [0, 0, 1, 1], [], []>} : vector<5x32xf32>, vector<32x8xf32>, vector<5x8xf32> -> vector<5x8xf32>
    %c4_861 = arith.constant 4 : index
    %c1_862 = arith.constant 1 : index
    %c0_863 = arith.constant 0 : index
    %c0_864 = arith.constant 0 : index
    %1096 = vector.load %arg12[%c4_861, %c1_862, %c0_863, %c0_864] : memref<6x4x1x8xf32, #tpu.memory_space<vmem>>, vector<1x1x1x8xf32>
    %1097 = vector.shape_cast %1096 : vector<1x1x1x8xf32> to vector<1x8xf32>
    %1098 = vector.broadcast %1097 : vector<1x8xf32> to vector<5x8xf32>
    %1099 = arith.addf %1095, %1098 : vector<5x8xf32>
    %1100 = tpu.transpose %1092, [1, 0] : vector<5x8xf32> -> vector<8x5xf32>
    %cst_865 = arith.constant dense<0.000000e+00> : vector<5x5xf32>
    %1101 = tpu.matmul %1085, %1100, %cst_865 {dimension_numbers = #tpu.dot_dimension_numbers<[1], [0], [0], [1], [0, 0, 1, 1], [], []>} : vector<5x8xf32>, vector<8x5xf32>, vector<5x5xf32> -> vector<5x5xf32>
    %cst_866 = arith.constant 0.353553385 : f32
    %1102 = vector.broadcast %cst_866 : f32 to vector<5x5xf32>
    %1103 = arith.mulf %1101, %1102 : vector<5x5xf32>
    %cst_867 = arith.constant -1.000000e+30 : f32
    %1104 = vector.broadcast %cst_867 : f32 to vector<5x5xf32>
    %1105 = arith.select %11, %1103, %1104 : vector<5x5xi1>, vector<5x5xf32>
    %cst_868 = arith.constant dense<0xFF800000> : vector<5xf32>
    %1106 = vector.multi_reduction <maximumf>, %1105, %cst_868 [1] : vector<5x5xf32> to vector<5xf32>
    %1107 = vector.shape_cast %1106 : vector<5xf32> to vector<5x1xf32>
    %1108 = vector.broadcast %1107 : vector<5x1xf32> to vector<5x5xf32>
    %1109 = arith.subf %1105, %1108 : vector<5x5xf32>
    %1110 = math.exp %1109 : vector<5x5xf32>
    %cst_869 = arith.constant dense<0.000000e+00> : vector<5xf32>
    %1111 = vector.multi_reduction <add>, %1110, %cst_869 [1] : vector<5x5xf32> to vector<5xf32>
    %1112 = vector.shape_cast %1111 : vector<5xf32> to vector<5x1xf32>
    %1113 = tpu.reciprocal %1112 {approx = true} : vector<5x1xf32> -> vector<5x1xf32>
    %1114 = vector.broadcast %1113 : vector<5x1xf32> to vector<5x5xf32>
    %1115 = arith.mulf %1110, %1114 : vector<5x5xf32>
    %cst_870 = arith.constant dense<0.000000e+00> : vector<5x8xf32>
    %1116 = tpu.matmul %1115, %1099, %cst_870 {dimension_numbers = #tpu.dot_dimension_numbers<[1], [0], [0], [1], [0, 0, 1, 1], [], []>} : vector<5x5xf32>, vector<5x8xf32>, vector<5x8xf32> -> vector<5x8xf32>
    %c4_871 = arith.constant 4 : index
    %c1_872 = arith.constant 1 : index
    %c0_873 = arith.constant 0 : index
    %c0_874 = arith.constant 0 : index
    %1117 = vector.load %arg13[%c4_871, %c1_872, %c0_873, %c0_874] : memref<6x4x8x32xf32, #tpu.memory_space<vmem>>, vector<1x1x8x32xf32>
    %1118 = vector.shape_cast %1117 : vector<1x1x8x32xf32> to vector<8x32xf32>
    %cst_875 = arith.constant dense<0.000000e+00> : vector<5x32xf32>
    %1119 = tpu.matmul %1116, %1118, %cst_875 {dimension_numbers = #tpu.dot_dimension_numbers<[1], [0], [0], [1], [0, 0, 1, 1], [], []>} : vector<5x8xf32>, vector<8x32xf32>, vector<5x32xf32> -> vector<5x32xf32>
    %1120 = arith.addf %1078, %1119 : vector<5x32xf32>
    %c4_876 = arith.constant 4 : index
    %c2_877 = arith.constant 2 : index
    %c0_878 = arith.constant 0 : index
    %c0_879 = arith.constant 0 : index
    %1121 = vector.load %arg7[%c4_876, %c2_877, %c0_878, %c0_879] : memref<6x4x32x8xf32, #tpu.memory_space<vmem>>, vector<1x1x32x8xf32>
    %1122 = vector.shape_cast %1121 : vector<1x1x32x8xf32> to vector<32x8xf32>
    %cst_880 = arith.constant dense<0.000000e+00> : vector<5x8xf32>
    %1123 = tpu.matmul %1035, %1122, %cst_880 {dimension_numbers = #tpu.dot_dimension_numbers<[1], [0], [0], [1], [0, 0, 1, 1], [], []>} : vector<5x32xf32>, vector<32x8xf32>, vector<5x8xf32> -> vector<5x8xf32>
    %c4_881 = arith.constant 4 : index
    %c2_882 = arith.constant 2 : index
    %c0_883 = arith.constant 0 : index
    %c0_884 = arith.constant 0 : index
    %1124 = vector.load %arg8[%c4_881, %c2_882, %c0_883, %c0_884] : memref<6x4x1x8xf32, #tpu.memory_space<vmem>>, vector<1x1x1x8xf32>
    %1125 = vector.shape_cast %1124 : vector<1x1x1x8xf32> to vector<1x8xf32>
    %1126 = vector.broadcast %1125 : vector<1x8xf32> to vector<5x8xf32>
    %1127 = arith.addf %1123, %1126 : vector<5x8xf32>
    %c4_885 = arith.constant 4 : index
    %c2_886 = arith.constant 2 : index
    %c0_887 = arith.constant 0 : index
    %c0_888 = arith.constant 0 : index
    %1128 = vector.load %arg9[%c4_885, %c2_886, %c0_887, %c0_888] : memref<6x4x32x8xf32, #tpu.memory_space<vmem>>, vector<1x1x32x8xf32>
    %1129 = vector.shape_cast %1128 : vector<1x1x32x8xf32> to vector<32x8xf32>
    %cst_889 = arith.constant dense<0.000000e+00> : vector<5x8xf32>
    %1130 = tpu.matmul %1035, %1129, %cst_889 {dimension_numbers = #tpu.dot_dimension_numbers<[1], [0], [0], [1], [0, 0, 1, 1], [], []>} : vector<5x32xf32>, vector<32x8xf32>, vector<5x8xf32> -> vector<5x8xf32>
    %c4_890 = arith.constant 4 : index
    %c2_891 = arith.constant 2 : index
    %c0_892 = arith.constant 0 : index
    %c0_893 = arith.constant 0 : index
    %1131 = vector.load %arg10[%c4_890, %c2_891, %c0_892, %c0_893] : memref<6x4x1x8xf32, #tpu.memory_space<vmem>>, vector<1x1x1x8xf32>
    %1132 = vector.shape_cast %1131 : vector<1x1x1x8xf32> to vector<1x8xf32>
    %1133 = vector.broadcast %1132 : vector<1x8xf32> to vector<5x8xf32>
    %1134 = arith.addf %1130, %1133 : vector<5x8xf32>
    %c4_894 = arith.constant 4 : index
    %c2_895 = arith.constant 2 : index
    %c0_896 = arith.constant 0 : index
    %c0_897 = arith.constant 0 : index
    %1135 = vector.load %arg11[%c4_894, %c2_895, %c0_896, %c0_897] : memref<6x4x32x8xf32, #tpu.memory_space<vmem>>, vector<1x1x32x8xf32>
    %1136 = vector.shape_cast %1135 : vector<1x1x32x8xf32> to vector<32x8xf32>
    %cst_898 = arith.constant dense<0.000000e+00> : vector<5x8xf32>
    %1137 = tpu.matmul %1035, %1136, %cst_898 {dimension_numbers = #tpu.dot_dimension_numbers<[1], [0], [0], [1], [0, 0, 1, 1], [], []>} : vector<5x32xf32>, vector<32x8xf32>, vector<5x8xf32> -> vector<5x8xf32>
    %c4_899 = arith.constant 4 : index
    %c2_900 = arith.constant 2 : index
    %c0_901 = arith.constant 0 : index
    %c0_902 = arith.constant 0 : index
    %1138 = vector.load %arg12[%c4_899, %c2_900, %c0_901, %c0_902] : memref<6x4x1x8xf32, #tpu.memory_space<vmem>>, vector<1x1x1x8xf32>
    %1139 = vector.shape_cast %1138 : vector<1x1x1x8xf32> to vector<1x8xf32>
    %1140 = vector.broadcast %1139 : vector<1x8xf32> to vector<5x8xf32>
    %1141 = arith.addf %1137, %1140 : vector<5x8xf32>
    %1142 = tpu.transpose %1134, [1, 0] : vector<5x8xf32> -> vector<8x5xf32>
    %cst_903 = arith.constant dense<0.000000e+00> : vector<5x5xf32>
    %1143 = tpu.matmul %1127, %1142, %cst_903 {dimension_numbers = #tpu.dot_dimension_numbers<[1], [0], [0], [1], [0, 0, 1, 1], [], []>} : vector<5x8xf32>, vector<8x5xf32>, vector<5x5xf32> -> vector<5x5xf32>
    %cst_904 = arith.constant 0.353553385 : f32
    %1144 = vector.broadcast %cst_904 : f32 to vector<5x5xf32>
    %1145 = arith.mulf %1143, %1144 : vector<5x5xf32>
    %cst_905 = arith.constant -1.000000e+30 : f32
    %1146 = vector.broadcast %cst_905 : f32 to vector<5x5xf32>
    %1147 = arith.select %11, %1145, %1146 : vector<5x5xi1>, vector<5x5xf32>
    %cst_906 = arith.constant dense<0xFF800000> : vector<5xf32>
    %1148 = vector.multi_reduction <maximumf>, %1147, %cst_906 [1] : vector<5x5xf32> to vector<5xf32>
    %1149 = vector.shape_cast %1148 : vector<5xf32> to vector<5x1xf32>
    %1150 = vector.broadcast %1149 : vector<5x1xf32> to vector<5x5xf32>
    %1151 = arith.subf %1147, %1150 : vector<5x5xf32>
    %1152 = math.exp %1151 : vector<5x5xf32>
    %cst_907 = arith.constant dense<0.000000e+00> : vector<5xf32>
    %1153 = vector.multi_reduction <add>, %1152, %cst_907 [1] : vector<5x5xf32> to vector<5xf32>
    %1154 = vector.shape_cast %1153 : vector<5xf32> to vector<5x1xf32>
    %1155 = tpu.reciprocal %1154 {approx = true} : vector<5x1xf32> -> vector<5x1xf32>
    %1156 = vector.broadcast %1155 : vector<5x1xf32> to vector<5x5xf32>
    %1157 = arith.mulf %1152, %1156 : vector<5x5xf32>
    %cst_908 = arith.constant dense<0.000000e+00> : vector<5x8xf32>
    %1158 = tpu.matmul %1157, %1141, %cst_908 {dimension_numbers = #tpu.dot_dimension_numbers<[1], [0], [0], [1], [0, 0, 1, 1], [], []>} : vector<5x5xf32>, vector<5x8xf32>, vector<5x8xf32> -> vector<5x8xf32>
    %c4_909 = arith.constant 4 : index
    %c2_910 = arith.constant 2 : index
    %c0_911 = arith.constant 0 : index
    %c0_912 = arith.constant 0 : index
    %1159 = vector.load %arg13[%c4_909, %c2_910, %c0_911, %c0_912] : memref<6x4x8x32xf32, #tpu.memory_space<vmem>>, vector<1x1x8x32xf32>
    %1160 = vector.shape_cast %1159 : vector<1x1x8x32xf32> to vector<8x32xf32>
    %cst_913 = arith.constant dense<0.000000e+00> : vector<5x32xf32>
    %1161 = tpu.matmul %1158, %1160, %cst_913 {dimension_numbers = #tpu.dot_dimension_numbers<[1], [0], [0], [1], [0, 0, 1, 1], [], []>} : vector<5x8xf32>, vector<8x32xf32>, vector<5x32xf32> -> vector<5x32xf32>
    %1162 = arith.addf %1120, %1161 : vector<5x32xf32>
    %c4_914 = arith.constant 4 : index
    %c3_915 = arith.constant 3 : index
    %c0_916 = arith.constant 0 : index
    %c0_917 = arith.constant 0 : index
    %1163 = vector.load %arg7[%c4_914, %c3_915, %c0_916, %c0_917] : memref<6x4x32x8xf32, #tpu.memory_space<vmem>>, vector<1x1x32x8xf32>
    %1164 = vector.shape_cast %1163 : vector<1x1x32x8xf32> to vector<32x8xf32>
    %cst_918 = arith.constant dense<0.000000e+00> : vector<5x8xf32>
    %1165 = tpu.matmul %1035, %1164, %cst_918 {dimension_numbers = #tpu.dot_dimension_numbers<[1], [0], [0], [1], [0, 0, 1, 1], [], []>} : vector<5x32xf32>, vector<32x8xf32>, vector<5x8xf32> -> vector<5x8xf32>
    %c4_919 = arith.constant 4 : index
    %c3_920 = arith.constant 3 : index
    %c0_921 = arith.constant 0 : index
    %c0_922 = arith.constant 0 : index
    %1166 = vector.load %arg8[%c4_919, %c3_920, %c0_921, %c0_922] : memref<6x4x1x8xf32, #tpu.memory_space<vmem>>, vector<1x1x1x8xf32>
    %1167 = vector.shape_cast %1166 : vector<1x1x1x8xf32> to vector<1x8xf32>
    %1168 = vector.broadcast %1167 : vector<1x8xf32> to vector<5x8xf32>
    %1169 = arith.addf %1165, %1168 : vector<5x8xf32>
    %c4_923 = arith.constant 4 : index
    %c3_924 = arith.constant 3 : index
    %c0_925 = arith.constant 0 : index
    %c0_926 = arith.constant 0 : index
    %1170 = vector.load %arg9[%c4_923, %c3_924, %c0_925, %c0_926] : memref<6x4x32x8xf32, #tpu.memory_space<vmem>>, vector<1x1x32x8xf32>
    %1171 = vector.shape_cast %1170 : vector<1x1x32x8xf32> to vector<32x8xf32>
    %cst_927 = arith.constant dense<0.000000e+00> : vector<5x8xf32>
    %1172 = tpu.matmul %1035, %1171, %cst_927 {dimension_numbers = #tpu.dot_dimension_numbers<[1], [0], [0], [1], [0, 0, 1, 1], [], []>} : vector<5x32xf32>, vector<32x8xf32>, vector<5x8xf32> -> vector<5x8xf32>
    %c4_928 = arith.constant 4 : index
    %c3_929 = arith.constant 3 : index
    %c0_930 = arith.constant 0 : index
    %c0_931 = arith.constant 0 : index
    %1173 = vector.load %arg10[%c4_928, %c3_929, %c0_930, %c0_931] : memref<6x4x1x8xf32, #tpu.memory_space<vmem>>, vector<1x1x1x8xf32>
    %1174 = vector.shape_cast %1173 : vector<1x1x1x8xf32> to vector<1x8xf32>
    %1175 = vector.broadcast %1174 : vector<1x8xf32> to vector<5x8xf32>
    %1176 = arith.addf %1172, %1175 : vector<5x8xf32>
    %c4_932 = arith.constant 4 : index
    %c3_933 = arith.constant 3 : index
    %c0_934 = arith.constant 0 : index
    %c0_935 = arith.constant 0 : index
    %1177 = vector.load %arg11[%c4_932, %c3_933, %c0_934, %c0_935] : memref<6x4x32x8xf32, #tpu.memory_space<vmem>>, vector<1x1x32x8xf32>
    %1178 = vector.shape_cast %1177 : vector<1x1x32x8xf32> to vector<32x8xf32>
    %cst_936 = arith.constant dense<0.000000e+00> : vector<5x8xf32>
    %1179 = tpu.matmul %1035, %1178, %cst_936 {dimension_numbers = #tpu.dot_dimension_numbers<[1], [0], [0], [1], [0, 0, 1, 1], [], []>} : vector<5x32xf32>, vector<32x8xf32>, vector<5x8xf32> -> vector<5x8xf32>
    %c4_937 = arith.constant 4 : index
    %c3_938 = arith.constant 3 : index
    %c0_939 = arith.constant 0 : index
    %c0_940 = arith.constant 0 : index
    %1180 = vector.load %arg12[%c4_937, %c3_938, %c0_939, %c0_940] : memref<6x4x1x8xf32, #tpu.memory_space<vmem>>, vector<1x1x1x8xf32>
    %1181 = vector.shape_cast %1180 : vector<1x1x1x8xf32> to vector<1x8xf32>
    %1182 = vector.broadcast %1181 : vector<1x8xf32> to vector<5x8xf32>
    %1183 = arith.addf %1179, %1182 : vector<5x8xf32>
    %1184 = tpu.transpose %1176, [1, 0] : vector<5x8xf32> -> vector<8x5xf32>
    %cst_941 = arith.constant dense<0.000000e+00> : vector<5x5xf32>
    %1185 = tpu.matmul %1169, %1184, %cst_941 {dimension_numbers = #tpu.dot_dimension_numbers<[1], [0], [0], [1], [0, 0, 1, 1], [], []>} : vector<5x8xf32>, vector<8x5xf32>, vector<5x5xf32> -> vector<5x5xf32>
    %cst_942 = arith.constant 0.353553385 : f32
    %1186 = vector.broadcast %cst_942 : f32 to vector<5x5xf32>
    %1187 = arith.mulf %1185, %1186 : vector<5x5xf32>
    %cst_943 = arith.constant -1.000000e+30 : f32
    %1188 = vector.broadcast %cst_943 : f32 to vector<5x5xf32>
    %1189 = arith.select %11, %1187, %1188 : vector<5x5xi1>, vector<5x5xf32>
    %cst_944 = arith.constant dense<0xFF800000> : vector<5xf32>
    %1190 = vector.multi_reduction <maximumf>, %1189, %cst_944 [1] : vector<5x5xf32> to vector<5xf32>
    %1191 = vector.shape_cast %1190 : vector<5xf32> to vector<5x1xf32>
    %1192 = vector.broadcast %1191 : vector<5x1xf32> to vector<5x5xf32>
    %1193 = arith.subf %1189, %1192 : vector<5x5xf32>
    %1194 = math.exp %1193 : vector<5x5xf32>
    %cst_945 = arith.constant dense<0.000000e+00> : vector<5xf32>
    %1195 = vector.multi_reduction <add>, %1194, %cst_945 [1] : vector<5x5xf32> to vector<5xf32>
    %1196 = vector.shape_cast %1195 : vector<5xf32> to vector<5x1xf32>
    %1197 = tpu.reciprocal %1196 {approx = true} : vector<5x1xf32> -> vector<5x1xf32>
    %1198 = vector.broadcast %1197 : vector<5x1xf32> to vector<5x5xf32>
    %1199 = arith.mulf %1194, %1198 : vector<5x5xf32>
    %cst_946 = arith.constant dense<0.000000e+00> : vector<5x8xf32>
    %1200 = tpu.matmul %1199, %1183, %cst_946 {dimension_numbers = #tpu.dot_dimension_numbers<[1], [0], [0], [1], [0, 0, 1, 1], [], []>} : vector<5x5xf32>, vector<5x8xf32>, vector<5x8xf32> -> vector<5x8xf32>
    %c4_947 = arith.constant 4 : index
    %c3_948 = arith.constant 3 : index
    %c0_949 = arith.constant 0 : index
    %c0_950 = arith.constant 0 : index
    %1201 = vector.load %arg13[%c4_947, %c3_948, %c0_949, %c0_950] : memref<6x4x8x32xf32, #tpu.memory_space<vmem>>, vector<1x1x8x32xf32>
    %1202 = vector.shape_cast %1201 : vector<1x1x8x32xf32> to vector<8x32xf32>
    %cst_951 = arith.constant dense<0.000000e+00> : vector<5x32xf32>
    %1203 = tpu.matmul %1200, %1202, %cst_951 {dimension_numbers = #tpu.dot_dimension_numbers<[1], [0], [0], [1], [0, 0, 1, 1], [], []>} : vector<5x8xf32>, vector<8x32xf32>, vector<5x32xf32> -> vector<5x32xf32>
    %1204 = arith.addf %1162, %1203 : vector<5x32xf32>
    %1205 = arith.addf %1011, %1204 : vector<5x32xf32>
    %c4_952 = arith.constant 4 : index
    %c0_953 = arith.constant 0 : index
    %c0_954 = arith.constant 0 : index
    %1206 = vector.load %arg14[%c4_952, %c0_953, %c0_954] : memref<6x1x32xf32, #tpu.memory_space<vmem>>, vector<1x1x32xf32>
    %1207 = vector.shape_cast %1206 : vector<1x1x32xf32> to vector<1x32xf32>
    %1208 = vector.broadcast %1207 : vector<1x32xf32> to vector<5x32xf32>
    %1209 = arith.addf %1205, %1208 : vector<5x32xf32>
    %c4_955 = arith.constant 4 : index
    %c0_956 = arith.constant 0 : index
    %c0_957 = arith.constant 0 : index
    %1210 = vector.load %arg15[%c4_955, %c0_956, %c0_957] : memref<6x1x32xf32, #tpu.memory_space<vmem>>, vector<1x1x32xf32>
    %1211 = vector.shape_cast %1210 : vector<1x1x32xf32> to vector<1x32xf32>
    %c4_958 = arith.constant 4 : index
    %c0_959 = arith.constant 0 : index
    %c0_960 = arith.constant 0 : index
    %1212 = vector.load %arg16[%c4_958, %c0_959, %c0_960] : memref<6x1x32xf32, #tpu.memory_space<vmem>>, vector<1x1x32xf32>
    %1213 = vector.shape_cast %1212 : vector<1x1x32xf32> to vector<1x32xf32>
    %cst_961 = arith.constant dense<0.000000e+00> : vector<5xf32>
    %1214 = vector.multi_reduction <add>, %1209, %cst_961 [1] : vector<5x32xf32> to vector<5xf32>
    %1215 = vector.shape_cast %1214 : vector<5xf32> to vector<5x1xf32>
    %cst_962 = arith.constant 3.200000e+01 : f32
    %1216 = vector.broadcast %cst_962 : f32 to vector<5x1xf32>
    %1217 = arith.divf %1215, %1216 : vector<5x1xf32>
    %1218 = vector.broadcast %1217 : vector<5x1xf32> to vector<5x32xf32>
    %1219 = arith.subf %1209, %1218 : vector<5x32xf32>
    %1220 = arith.mulf %1219, %1219 : vector<5x32xf32>
    %cst_963 = arith.constant dense<0.000000e+00> : vector<5xf32>
    %1221 = vector.multi_reduction <add>, %1220, %cst_963 [1] : vector<5x32xf32> to vector<5xf32>
    %1222 = vector.shape_cast %1221 : vector<5xf32> to vector<5x1xf32>
    %cst_964 = arith.constant 3.200000e+01 : f32
    %1223 = vector.broadcast %cst_964 : f32 to vector<5x1xf32>
    %1224 = arith.divf %1222, %1223 : vector<5x1xf32>
    %cst_965 = arith.constant 9.99999974E-6 : f32
    %1225 = vector.broadcast %cst_965 : f32 to vector<5x1xf32>
    %1226 = arith.addf %1224, %1225 : vector<5x1xf32>
    %1227 = math.rsqrt %1226 : vector<5x1xf32>
    %1228 = vector.broadcast %1227 : vector<5x1xf32> to vector<5x32xf32>
    %1229 = arith.mulf %1219, %1228 : vector<5x32xf32>
    %1230 = vector.broadcast %1211 : vector<1x32xf32> to vector<5x32xf32>
    %1231 = arith.mulf %1229, %1230 : vector<5x32xf32>
    %1232 = vector.broadcast %1213 : vector<1x32xf32> to vector<5x32xf32>
    %1233 = arith.addf %1231, %1232 : vector<5x32xf32>
    %c4_966 = arith.constant 4 : index
    %c0_967 = arith.constant 0 : index
    %c0_968 = arith.constant 0 : index
    %1234 = vector.load %arg17[%c4_966, %c0_967, %c0_968] : memref<6x32x128xf32, #tpu.memory_space<vmem>>, vector<1x32x128xf32>
    %1235 = vector.shape_cast %1234 : vector<1x32x128xf32> to vector<32x128xf32>
    %cst_969 = arith.constant dense<0.000000e+00> : vector<5x128xf32>
    %1236 = tpu.matmul %1233, %1235, %cst_969 {dimension_numbers = #tpu.dot_dimension_numbers<[1], [0], [0], [1], [0, 0, 1, 1], [], []>} : vector<5x32xf32>, vector<32x128xf32>, vector<5x128xf32> -> vector<5x128xf32>
    %c4_970 = arith.constant 4 : index
    %c0_971 = arith.constant 0 : index
    %c0_972 = arith.constant 0 : index
    %1237 = vector.load %arg18[%c4_970, %c0_971, %c0_972] : memref<6x1x128xf32, #tpu.memory_space<vmem>>, vector<1x1x128xf32>
    %1238 = vector.shape_cast %1237 : vector<1x1x128xf32> to vector<1x128xf32>
    %1239 = vector.broadcast %1238 : vector<1x128xf32> to vector<5x128xf32>
    %1240 = arith.addf %1236, %1239 : vector<5x128xf32>
    %cst_973 = arith.constant 5.000000e-01 : f32
    %1241 = vector.broadcast %cst_973 : f32 to vector<5x128xf32>
    %1242 = arith.mulf %1241, %1240 : vector<5x128xf32>
    %cst_974 = arith.constant 4.471500e-02 : f32
    %1243 = vector.broadcast %cst_974 : f32 to vector<5x128xf32>
    %1244 = arith.mulf %1243, %1240 : vector<5x128xf32>
    %1245 = arith.mulf %1244, %1240 : vector<5x128xf32>
    %1246 = arith.mulf %1245, %1240 : vector<5x128xf32>
    %1247 = arith.addf %1240, %1246 : vector<5x128xf32>
    %cst_975 = arith.constant 0.797884583 : f32
    %1248 = vector.broadcast %cst_975 : f32 to vector<5x128xf32>
    %1249 = arith.mulf %1248, %1247 : vector<5x128xf32>
    %1250 = math.tanh %1249 : vector<5x128xf32>
    %cst_976 = arith.constant 1.000000e+00 : f32
    %1251 = vector.broadcast %cst_976 : f32 to vector<5x128xf32>
    %1252 = arith.addf %1251, %1250 : vector<5x128xf32>
    %1253 = arith.mulf %1242, %1252 : vector<5x128xf32>
    %c4_977 = arith.constant 4 : index
    %c0_978 = arith.constant 0 : index
    %c0_979 = arith.constant 0 : index
    %1254 = vector.load %arg19[%c4_977, %c0_978, %c0_979] : memref<6x128x32xf32, #tpu.memory_space<vmem>>, vector<1x128x32xf32>
    %1255 = vector.shape_cast %1254 : vector<1x128x32xf32> to vector<128x32xf32>
    %cst_980 = arith.constant dense<0.000000e+00> : vector<5x32xf32>
    %1256 = tpu.matmul %1253, %1255, %cst_980 {dimension_numbers = #tpu.dot_dimension_numbers<[1], [0], [0], [1], [0, 0, 1, 1], [], []>} : vector<5x128xf32>, vector<128x32xf32>, vector<5x32xf32> -> vector<5x32xf32>
    %1257 = arith.addf %1209, %1256 : vector<5x32xf32>
    %c4_981 = arith.constant 4 : index
    %c0_982 = arith.constant 0 : index
    %c0_983 = arith.constant 0 : index
    %1258 = vector.load %arg20[%c4_981, %c0_982, %c0_983] : memref<6x1x32xf32, #tpu.memory_space<vmem>>, vector<1x1x32xf32>
    %1259 = vector.shape_cast %1258 : vector<1x1x32xf32> to vector<1x32xf32>
    %1260 = vector.broadcast %1259 : vector<1x32xf32> to vector<5x32xf32>
    %1261 = arith.addf %1257, %1260 : vector<5x32xf32>
    %c5 = arith.constant 5 : index
    %c0_984 = arith.constant 0 : index
    %c0_985 = arith.constant 0 : index
    %1262 = vector.load %arg5[%c5, %c0_984, %c0_985] : memref<6x1x32xf32, #tpu.memory_space<vmem>>, vector<1x1x32xf32>
    %1263 = vector.shape_cast %1262 : vector<1x1x32xf32> to vector<1x32xf32>
    %c5_986 = arith.constant 5 : index
    %c0_987 = arith.constant 0 : index
    %c0_988 = arith.constant 0 : index
    %1264 = vector.load %arg6[%c5_986, %c0_987, %c0_988] : memref<6x1x32xf32, #tpu.memory_space<vmem>>, vector<1x1x32xf32>
    %1265 = vector.shape_cast %1264 : vector<1x1x32xf32> to vector<1x32xf32>
    %cst_989 = arith.constant dense<0.000000e+00> : vector<5xf32>
    %1266 = vector.multi_reduction <add>, %1261, %cst_989 [1] : vector<5x32xf32> to vector<5xf32>
    %1267 = vector.shape_cast %1266 : vector<5xf32> to vector<5x1xf32>
    %cst_990 = arith.constant 3.200000e+01 : f32
    %1268 = vector.broadcast %cst_990 : f32 to vector<5x1xf32>
    %1269 = arith.divf %1267, %1268 : vector<5x1xf32>
    %1270 = vector.broadcast %1269 : vector<5x1xf32> to vector<5x32xf32>
    %1271 = arith.subf %1261, %1270 : vector<5x32xf32>
    %1272 = arith.mulf %1271, %1271 : vector<5x32xf32>
    %cst_991 = arith.constant dense<0.000000e+00> : vector<5xf32>
    %1273 = vector.multi_reduction <add>, %1272, %cst_991 [1] : vector<5x32xf32> to vector<5xf32>
    %1274 = vector.shape_cast %1273 : vector<5xf32> to vector<5x1xf32>
    %cst_992 = arith.constant 3.200000e+01 : f32
    %1275 = vector.broadcast %cst_992 : f32 to vector<5x1xf32>
    %1276 = arith.divf %1274, %1275 : vector<5x1xf32>
    %cst_993 = arith.constant 9.99999974E-6 : f32
    %1277 = vector.broadcast %cst_993 : f32 to vector<5x1xf32>
    %1278 = arith.addf %1276, %1277 : vector<5x1xf32>
    %1279 = math.rsqrt %1278 : vector<5x1xf32>
    %1280 = vector.broadcast %1279 : vector<5x1xf32> to vector<5x32xf32>
    %1281 = arith.mulf %1271, %1280 : vector<5x32xf32>
    %1282 = vector.broadcast %1263 : vector<1x32xf32> to vector<5x32xf32>
    %1283 = arith.mulf %1281, %1282 : vector<5x32xf32>
    %1284 = vector.broadcast %1265 : vector<1x32xf32> to vector<5x32xf32>
    %1285 = arith.addf %1283, %1284 : vector<5x32xf32>
    %cst_994 = arith.constant 0.000000e+00 : f32
    %1286 = vector.broadcast %cst_994 : f32 to vector<5x32xf32>
    %c5_995 = arith.constant 5 : index
    %c0_996 = arith.constant 0 : index
    %c0_997 = arith.constant 0 : index
    %c0_998 = arith.constant 0 : index
    %1287 = vector.load %arg7[%c5_995, %c0_996, %c0_997, %c0_998] : memref<6x4x32x8xf32, #tpu.memory_space<vmem>>, vector<1x1x32x8xf32>
    %1288 = vector.shape_cast %1287 : vector<1x1x32x8xf32> to vector<32x8xf32>
    %cst_999 = arith.constant dense<0.000000e+00> : vector<5x8xf32>
    %1289 = tpu.matmul %1285, %1288, %cst_999 {dimension_numbers = #tpu.dot_dimension_numbers<[1], [0], [0], [1], [0, 0, 1, 1], [], []>} : vector<5x32xf32>, vector<32x8xf32>, vector<5x8xf32> -> vector<5x8xf32>
    %c5_1000 = arith.constant 5 : index
    %c0_1001 = arith.constant 0 : index
    %c0_1002 = arith.constant 0 : index
    %c0_1003 = arith.constant 0 : index
    %1290 = vector.load %arg8[%c5_1000, %c0_1001, %c0_1002, %c0_1003] : memref<6x4x1x8xf32, #tpu.memory_space<vmem>>, vector<1x1x1x8xf32>
    %1291 = vector.shape_cast %1290 : vector<1x1x1x8xf32> to vector<1x8xf32>
    %1292 = vector.broadcast %1291 : vector<1x8xf32> to vector<5x8xf32>
    %1293 = arith.addf %1289, %1292 : vector<5x8xf32>
    %c5_1004 = arith.constant 5 : index
    %c0_1005 = arith.constant 0 : index
    %c0_1006 = arith.constant 0 : index
    %c0_1007 = arith.constant 0 : index
    %1294 = vector.load %arg9[%c5_1004, %c0_1005, %c0_1006, %c0_1007] : memref<6x4x32x8xf32, #tpu.memory_space<vmem>>, vector<1x1x32x8xf32>
    %1295 = vector.shape_cast %1294 : vector<1x1x32x8xf32> to vector<32x8xf32>
    %cst_1008 = arith.constant dense<0.000000e+00> : vector<5x8xf32>
    %1296 = tpu.matmul %1285, %1295, %cst_1008 {dimension_numbers = #tpu.dot_dimension_numbers<[1], [0], [0], [1], [0, 0, 1, 1], [], []>} : vector<5x32xf32>, vector<32x8xf32>, vector<5x8xf32> -> vector<5x8xf32>
    %c5_1009 = arith.constant 5 : index
    %c0_1010 = arith.constant 0 : index
    %c0_1011 = arith.constant 0 : index
    %c0_1012 = arith.constant 0 : index
    %1297 = vector.load %arg10[%c5_1009, %c0_1010, %c0_1011, %c0_1012] : memref<6x4x1x8xf32, #tpu.memory_space<vmem>>, vector<1x1x1x8xf32>
    %1298 = vector.shape_cast %1297 : vector<1x1x1x8xf32> to vector<1x8xf32>
    %1299 = vector.broadcast %1298 : vector<1x8xf32> to vector<5x8xf32>
    %1300 = arith.addf %1296, %1299 : vector<5x8xf32>
    %c5_1013 = arith.constant 5 : index
    %c0_1014 = arith.constant 0 : index
    %c0_1015 = arith.constant 0 : index
    %c0_1016 = arith.constant 0 : index
    %1301 = vector.load %arg11[%c5_1013, %c0_1014, %c0_1015, %c0_1016] : memref<6x4x32x8xf32, #tpu.memory_space<vmem>>, vector<1x1x32x8xf32>
    %1302 = vector.shape_cast %1301 : vector<1x1x32x8xf32> to vector<32x8xf32>
    %cst_1017 = arith.constant dense<0.000000e+00> : vector<5x8xf32>
    %1303 = tpu.matmul %1285, %1302, %cst_1017 {dimension_numbers = #tpu.dot_dimension_numbers<[1], [0], [0], [1], [0, 0, 1, 1], [], []>} : vector<5x32xf32>, vector<32x8xf32>, vector<5x8xf32> -> vector<5x8xf32>
    %c5_1018 = arith.constant 5 : index
    %c0_1019 = arith.constant 0 : index
    %c0_1020 = arith.constant 0 : index
    %c0_1021 = arith.constant 0 : index
    %1304 = vector.load %arg12[%c5_1018, %c0_1019, %c0_1020, %c0_1021] : memref<6x4x1x8xf32, #tpu.memory_space<vmem>>, vector<1x1x1x8xf32>
    %1305 = vector.shape_cast %1304 : vector<1x1x1x8xf32> to vector<1x8xf32>
    %1306 = vector.broadcast %1305 : vector<1x8xf32> to vector<5x8xf32>
    %1307 = arith.addf %1303, %1306 : vector<5x8xf32>
    %1308 = tpu.transpose %1300, [1, 0] : vector<5x8xf32> -> vector<8x5xf32>
    %cst_1022 = arith.constant dense<0.000000e+00> : vector<5x5xf32>
    %1309 = tpu.matmul %1293, %1308, %cst_1022 {dimension_numbers = #tpu.dot_dimension_numbers<[1], [0], [0], [1], [0, 0, 1, 1], [], []>} : vector<5x8xf32>, vector<8x5xf32>, vector<5x5xf32> -> vector<5x5xf32>
    %cst_1023 = arith.constant 0.353553385 : f32
    %1310 = vector.broadcast %cst_1023 : f32 to vector<5x5xf32>
    %1311 = arith.mulf %1309, %1310 : vector<5x5xf32>
    %cst_1024 = arith.constant -1.000000e+30 : f32
    %1312 = vector.broadcast %cst_1024 : f32 to vector<5x5xf32>
    %1313 = arith.select %11, %1311, %1312 : vector<5x5xi1>, vector<5x5xf32>
    %cst_1025 = arith.constant dense<0xFF800000> : vector<5xf32>
    %1314 = vector.multi_reduction <maximumf>, %1313, %cst_1025 [1] : vector<5x5xf32> to vector<5xf32>
    %1315 = vector.shape_cast %1314 : vector<5xf32> to vector<5x1xf32>
    %1316 = vector.broadcast %1315 : vector<5x1xf32> to vector<5x5xf32>
    %1317 = arith.subf %1313, %1316 : vector<5x5xf32>
    %1318 = math.exp %1317 : vector<5x5xf32>
    %cst_1026 = arith.constant dense<0.000000e+00> : vector<5xf32>
    %1319 = vector.multi_reduction <add>, %1318, %cst_1026 [1] : vector<5x5xf32> to vector<5xf32>
    %1320 = vector.shape_cast %1319 : vector<5xf32> to vector<5x1xf32>
    %1321 = tpu.reciprocal %1320 {approx = true} : vector<5x1xf32> -> vector<5x1xf32>
    %1322 = vector.broadcast %1321 : vector<5x1xf32> to vector<5x5xf32>
    %1323 = arith.mulf %1318, %1322 : vector<5x5xf32>
    %cst_1027 = arith.constant dense<0.000000e+00> : vector<5x8xf32>
    %1324 = tpu.matmul %1323, %1307, %cst_1027 {dimension_numbers = #tpu.dot_dimension_numbers<[1], [0], [0], [1], [0, 0, 1, 1], [], []>} : vector<5x5xf32>, vector<5x8xf32>, vector<5x8xf32> -> vector<5x8xf32>
    %c5_1028 = arith.constant 5 : index
    %c0_1029 = arith.constant 0 : index
    %c0_1030 = arith.constant 0 : index
    %c0_1031 = arith.constant 0 : index
    %1325 = vector.load %arg13[%c5_1028, %c0_1029, %c0_1030, %c0_1031] : memref<6x4x8x32xf32, #tpu.memory_space<vmem>>, vector<1x1x8x32xf32>
    %1326 = vector.shape_cast %1325 : vector<1x1x8x32xf32> to vector<8x32xf32>
    %cst_1032 = arith.constant dense<0.000000e+00> : vector<5x32xf32>
    %1327 = tpu.matmul %1324, %1326, %cst_1032 {dimension_numbers = #tpu.dot_dimension_numbers<[1], [0], [0], [1], [0, 0, 1, 1], [], []>} : vector<5x8xf32>, vector<8x32xf32>, vector<5x32xf32> -> vector<5x32xf32>
    %1328 = arith.addf %1286, %1327 : vector<5x32xf32>
    %c5_1033 = arith.constant 5 : index
    %c1_1034 = arith.constant 1 : index
    %c0_1035 = arith.constant 0 : index
    %c0_1036 = arith.constant 0 : index
    %1329 = vector.load %arg7[%c5_1033, %c1_1034, %c0_1035, %c0_1036] : memref<6x4x32x8xf32, #tpu.memory_space<vmem>>, vector<1x1x32x8xf32>
    %1330 = vector.shape_cast %1329 : vector<1x1x32x8xf32> to vector<32x8xf32>
    %cst_1037 = arith.constant dense<0.000000e+00> : vector<5x8xf32>
    %1331 = tpu.matmul %1285, %1330, %cst_1037 {dimension_numbers = #tpu.dot_dimension_numbers<[1], [0], [0], [1], [0, 0, 1, 1], [], []>} : vector<5x32xf32>, vector<32x8xf32>, vector<5x8xf32> -> vector<5x8xf32>
    %c5_1038 = arith.constant 5 : index
    %c1_1039 = arith.constant 1 : index
    %c0_1040 = arith.constant 0 : index
    %c0_1041 = arith.constant 0 : index
    %1332 = vector.load %arg8[%c5_1038, %c1_1039, %c0_1040, %c0_1041] : memref<6x4x1x8xf32, #tpu.memory_space<vmem>>, vector<1x1x1x8xf32>
    %1333 = vector.shape_cast %1332 : vector<1x1x1x8xf32> to vector<1x8xf32>
    %1334 = vector.broadcast %1333 : vector<1x8xf32> to vector<5x8xf32>
    %1335 = arith.addf %1331, %1334 : vector<5x8xf32>
    %c5_1042 = arith.constant 5 : index
    %c1_1043 = arith.constant 1 : index
    %c0_1044 = arith.constant 0 : index
    %c0_1045 = arith.constant 0 : index
    %1336 = vector.load %arg9[%c5_1042, %c1_1043, %c0_1044, %c0_1045] : memref<6x4x32x8xf32, #tpu.memory_space<vmem>>, vector<1x1x32x8xf32>
    %1337 = vector.shape_cast %1336 : vector<1x1x32x8xf32> to vector<32x8xf32>
    %cst_1046 = arith.constant dense<0.000000e+00> : vector<5x8xf32>
    %1338 = tpu.matmul %1285, %1337, %cst_1046 {dimension_numbers = #tpu.dot_dimension_numbers<[1], [0], [0], [1], [0, 0, 1, 1], [], []>} : vector<5x32xf32>, vector<32x8xf32>, vector<5x8xf32> -> vector<5x8xf32>
    %c5_1047 = arith.constant 5 : index
    %c1_1048 = arith.constant 1 : index
    %c0_1049 = arith.constant 0 : index
    %c0_1050 = arith.constant 0 : index
    %1339 = vector.load %arg10[%c5_1047, %c1_1048, %c0_1049, %c0_1050] : memref<6x4x1x8xf32, #tpu.memory_space<vmem>>, vector<1x1x1x8xf32>
    %1340 = vector.shape_cast %1339 : vector<1x1x1x8xf32> to vector<1x8xf32>
    %1341 = vector.broadcast %1340 : vector<1x8xf32> to vector<5x8xf32>
    %1342 = arith.addf %1338, %1341 : vector<5x8xf32>
    %c5_1051 = arith.constant 5 : index
    %c1_1052 = arith.constant 1 : index
    %c0_1053 = arith.constant 0 : index
    %c0_1054 = arith.constant 0 : index
    %1343 = vector.load %arg11[%c5_1051, %c1_1052, %c0_1053, %c0_1054] : memref<6x4x32x8xf32, #tpu.memory_space<vmem>>, vector<1x1x32x8xf32>
    %1344 = vector.shape_cast %1343 : vector<1x1x32x8xf32> to vector<32x8xf32>
    %cst_1055 = arith.constant dense<0.000000e+00> : vector<5x8xf32>
    %1345 = tpu.matmul %1285, %1344, %cst_1055 {dimension_numbers = #tpu.dot_dimension_numbers<[1], [0], [0], [1], [0, 0, 1, 1], [], []>} : vector<5x32xf32>, vector<32x8xf32>, vector<5x8xf32> -> vector<5x8xf32>
    %c5_1056 = arith.constant 5 : index
    %c1_1057 = arith.constant 1 : index
    %c0_1058 = arith.constant 0 : index
    %c0_1059 = arith.constant 0 : index
    %1346 = vector.load %arg12[%c5_1056, %c1_1057, %c0_1058, %c0_1059] : memref<6x4x1x8xf32, #tpu.memory_space<vmem>>, vector<1x1x1x8xf32>
    %1347 = vector.shape_cast %1346 : vector<1x1x1x8xf32> to vector<1x8xf32>
    %1348 = vector.broadcast %1347 : vector<1x8xf32> to vector<5x8xf32>
    %1349 = arith.addf %1345, %1348 : vector<5x8xf32>
    %1350 = tpu.transpose %1342, [1, 0] : vector<5x8xf32> -> vector<8x5xf32>
    %cst_1060 = arith.constant dense<0.000000e+00> : vector<5x5xf32>
    %1351 = tpu.matmul %1335, %1350, %cst_1060 {dimension_numbers = #tpu.dot_dimension_numbers<[1], [0], [0], [1], [0, 0, 1, 1], [], []>} : vector<5x8xf32>, vector<8x5xf32>, vector<5x5xf32> -> vector<5x5xf32>
    %cst_1061 = arith.constant 0.353553385 : f32
    %1352 = vector.broadcast %cst_1061 : f32 to vector<5x5xf32>
    %1353 = arith.mulf %1351, %1352 : vector<5x5xf32>
    %cst_1062 = arith.constant -1.000000e+30 : f32
    %1354 = vector.broadcast %cst_1062 : f32 to vector<5x5xf32>
    %1355 = arith.select %11, %1353, %1354 : vector<5x5xi1>, vector<5x5xf32>
    %cst_1063 = arith.constant dense<0xFF800000> : vector<5xf32>
    %1356 = vector.multi_reduction <maximumf>, %1355, %cst_1063 [1] : vector<5x5xf32> to vector<5xf32>
    %1357 = vector.shape_cast %1356 : vector<5xf32> to vector<5x1xf32>
    %1358 = vector.broadcast %1357 : vector<5x1xf32> to vector<5x5xf32>
    %1359 = arith.subf %1355, %1358 : vector<5x5xf32>
    %1360 = math.exp %1359 : vector<5x5xf32>
    %cst_1064 = arith.constant dense<0.000000e+00> : vector<5xf32>
    %1361 = vector.multi_reduction <add>, %1360, %cst_1064 [1] : vector<5x5xf32> to vector<5xf32>
    %1362 = vector.shape_cast %1361 : vector<5xf32> to vector<5x1xf32>
    %1363 = tpu.reciprocal %1362 {approx = true} : vector<5x1xf32> -> vector<5x1xf32>
    %1364 = vector.broadcast %1363 : vector<5x1xf32> to vector<5x5xf32>
    %1365 = arith.mulf %1360, %1364 : vector<5x5xf32>
    %cst_1065 = arith.constant dense<0.000000e+00> : vector<5x8xf32>
    %1366 = tpu.matmul %1365, %1349, %cst_1065 {dimension_numbers = #tpu.dot_dimension_numbers<[1], [0], [0], [1], [0, 0, 1, 1], [], []>} : vector<5x5xf32>, vector<5x8xf32>, vector<5x8xf32> -> vector<5x8xf32>
    %c5_1066 = arith.constant 5 : index
    %c1_1067 = arith.constant 1 : index
    %c0_1068 = arith.constant 0 : index
    %c0_1069 = arith.constant 0 : index
    %1367 = vector.load %arg13[%c5_1066, %c1_1067, %c0_1068, %c0_1069] : memref<6x4x8x32xf32, #tpu.memory_space<vmem>>, vector<1x1x8x32xf32>
    %1368 = vector.shape_cast %1367 : vector<1x1x8x32xf32> to vector<8x32xf32>
    %cst_1070 = arith.constant dense<0.000000e+00> : vector<5x32xf32>
    %1369 = tpu.matmul %1366, %1368, %cst_1070 {dimension_numbers = #tpu.dot_dimension_numbers<[1], [0], [0], [1], [0, 0, 1, 1], [], []>} : vector<5x8xf32>, vector<8x32xf32>, vector<5x32xf32> -> vector<5x32xf32>
    %1370 = arith.addf %1328, %1369 : vector<5x32xf32>
    %c5_1071 = arith.constant 5 : index
    %c2_1072 = arith.constant 2 : index
    %c0_1073 = arith.constant 0 : index
    %c0_1074 = arith.constant 0 : index
    %1371 = vector.load %arg7[%c5_1071, %c2_1072, %c0_1073, %c0_1074] : memref<6x4x32x8xf32, #tpu.memory_space<vmem>>, vector<1x1x32x8xf32>
    %1372 = vector.shape_cast %1371 : vector<1x1x32x8xf32> to vector<32x8xf32>
    %cst_1075 = arith.constant dense<0.000000e+00> : vector<5x8xf32>
    %1373 = tpu.matmul %1285, %1372, %cst_1075 {dimension_numbers = #tpu.dot_dimension_numbers<[1], [0], [0], [1], [0, 0, 1, 1], [], []>} : vector<5x32xf32>, vector<32x8xf32>, vector<5x8xf32> -> vector<5x8xf32>
    %c5_1076 = arith.constant 5 : index
    %c2_1077 = arith.constant 2 : index
    %c0_1078 = arith.constant 0 : index
    %c0_1079 = arith.constant 0 : index
    %1374 = vector.load %arg8[%c5_1076, %c2_1077, %c0_1078, %c0_1079] : memref<6x4x1x8xf32, #tpu.memory_space<vmem>>, vector<1x1x1x8xf32>
    %1375 = vector.shape_cast %1374 : vector<1x1x1x8xf32> to vector<1x8xf32>
    %1376 = vector.broadcast %1375 : vector<1x8xf32> to vector<5x8xf32>
    %1377 = arith.addf %1373, %1376 : vector<5x8xf32>
    %c5_1080 = arith.constant 5 : index
    %c2_1081 = arith.constant 2 : index
    %c0_1082 = arith.constant 0 : index
    %c0_1083 = arith.constant 0 : index
    %1378 = vector.load %arg9[%c5_1080, %c2_1081, %c0_1082, %c0_1083] : memref<6x4x32x8xf32, #tpu.memory_space<vmem>>, vector<1x1x32x8xf32>
    %1379 = vector.shape_cast %1378 : vector<1x1x32x8xf32> to vector<32x8xf32>
    %cst_1084 = arith.constant dense<0.000000e+00> : vector<5x8xf32>
    %1380 = tpu.matmul %1285, %1379, %cst_1084 {dimension_numbers = #tpu.dot_dimension_numbers<[1], [0], [0], [1], [0, 0, 1, 1], [], []>} : vector<5x32xf32>, vector<32x8xf32>, vector<5x8xf32> -> vector<5x8xf32>
    %c5_1085 = arith.constant 5 : index
    %c2_1086 = arith.constant 2 : index
    %c0_1087 = arith.constant 0 : index
    %c0_1088 = arith.constant 0 : index
    %1381 = vector.load %arg10[%c5_1085, %c2_1086, %c0_1087, %c0_1088] : memref<6x4x1x8xf32, #tpu.memory_space<vmem>>, vector<1x1x1x8xf32>
    %1382 = vector.shape_cast %1381 : vector<1x1x1x8xf32> to vector<1x8xf32>
    %1383 = vector.broadcast %1382 : vector<1x8xf32> to vector<5x8xf32>
    %1384 = arith.addf %1380, %1383 : vector<5x8xf32>
    %c5_1089 = arith.constant 5 : index
    %c2_1090 = arith.constant 2 : index
    %c0_1091 = arith.constant 0 : index
    %c0_1092 = arith.constant 0 : index
    %1385 = vector.load %arg11[%c5_1089, %c2_1090, %c0_1091, %c0_1092] : memref<6x4x32x8xf32, #tpu.memory_space<vmem>>, vector<1x1x32x8xf32>
    %1386 = vector.shape_cast %1385 : vector<1x1x32x8xf32> to vector<32x8xf32>
    %cst_1093 = arith.constant dense<0.000000e+00> : vector<5x8xf32>
    %1387 = tpu.matmul %1285, %1386, %cst_1093 {dimension_numbers = #tpu.dot_dimension_numbers<[1], [0], [0], [1], [0, 0, 1, 1], [], []>} : vector<5x32xf32>, vector<32x8xf32>, vector<5x8xf32> -> vector<5x8xf32>
    %c5_1094 = arith.constant 5 : index
    %c2_1095 = arith.constant 2 : index
    %c0_1096 = arith.constant 0 : index
    %c0_1097 = arith.constant 0 : index
    %1388 = vector.load %arg12[%c5_1094, %c2_1095, %c0_1096, %c0_1097] : memref<6x4x1x8xf32, #tpu.memory_space<vmem>>, vector<1x1x1x8xf32>
    %1389 = vector.shape_cast %1388 : vector<1x1x1x8xf32> to vector<1x8xf32>
    %1390 = vector.broadcast %1389 : vector<1x8xf32> to vector<5x8xf32>
    %1391 = arith.addf %1387, %1390 : vector<5x8xf32>
    %1392 = tpu.transpose %1384, [1, 0] : vector<5x8xf32> -> vector<8x5xf32>
    %cst_1098 = arith.constant dense<0.000000e+00> : vector<5x5xf32>
    %1393 = tpu.matmul %1377, %1392, %cst_1098 {dimension_numbers = #tpu.dot_dimension_numbers<[1], [0], [0], [1], [0, 0, 1, 1], [], []>} : vector<5x8xf32>, vector<8x5xf32>, vector<5x5xf32> -> vector<5x5xf32>
    %cst_1099 = arith.constant 0.353553385 : f32
    %1394 = vector.broadcast %cst_1099 : f32 to vector<5x5xf32>
    %1395 = arith.mulf %1393, %1394 : vector<5x5xf32>
    %cst_1100 = arith.constant -1.000000e+30 : f32
    %1396 = vector.broadcast %cst_1100 : f32 to vector<5x5xf32>
    %1397 = arith.select %11, %1395, %1396 : vector<5x5xi1>, vector<5x5xf32>
    %cst_1101 = arith.constant dense<0xFF800000> : vector<5xf32>
    %1398 = vector.multi_reduction <maximumf>, %1397, %cst_1101 [1] : vector<5x5xf32> to vector<5xf32>
    %1399 = vector.shape_cast %1398 : vector<5xf32> to vector<5x1xf32>
    %1400 = vector.broadcast %1399 : vector<5x1xf32> to vector<5x5xf32>
    %1401 = arith.subf %1397, %1400 : vector<5x5xf32>
    %1402 = math.exp %1401 : vector<5x5xf32>
    %cst_1102 = arith.constant dense<0.000000e+00> : vector<5xf32>
    %1403 = vector.multi_reduction <add>, %1402, %cst_1102 [1] : vector<5x5xf32> to vector<5xf32>
    %1404 = vector.shape_cast %1403 : vector<5xf32> to vector<5x1xf32>
    %1405 = tpu.reciprocal %1404 {approx = true} : vector<5x1xf32> -> vector<5x1xf32>
    %1406 = vector.broadcast %1405 : vector<5x1xf32> to vector<5x5xf32>
    %1407 = arith.mulf %1402, %1406 : vector<5x5xf32>
    %cst_1103 = arith.constant dense<0.000000e+00> : vector<5x8xf32>
    %1408 = tpu.matmul %1407, %1391, %cst_1103 {dimension_numbers = #tpu.dot_dimension_numbers<[1], [0], [0], [1], [0, 0, 1, 1], [], []>} : vector<5x5xf32>, vector<5x8xf32>, vector<5x8xf32> -> vector<5x8xf32>
    %c5_1104 = arith.constant 5 : index
    %c2_1105 = arith.constant 2 : index
    %c0_1106 = arith.constant 0 : index
    %c0_1107 = arith.constant 0 : index
    %1409 = vector.load %arg13[%c5_1104, %c2_1105, %c0_1106, %c0_1107] : memref<6x4x8x32xf32, #tpu.memory_space<vmem>>, vector<1x1x8x32xf32>
    %1410 = vector.shape_cast %1409 : vector<1x1x8x32xf32> to vector<8x32xf32>
    %cst_1108 = arith.constant dense<0.000000e+00> : vector<5x32xf32>
    %1411 = tpu.matmul %1408, %1410, %cst_1108 {dimension_numbers = #tpu.dot_dimension_numbers<[1], [0], [0], [1], [0, 0, 1, 1], [], []>} : vector<5x8xf32>, vector<8x32xf32>, vector<5x32xf32> -> vector<5x32xf32>
    %1412 = arith.addf %1370, %1411 : vector<5x32xf32>
    %c5_1109 = arith.constant 5 : index
    %c3_1110 = arith.constant 3 : index
    %c0_1111 = arith.constant 0 : index
    %c0_1112 = arith.constant 0 : index
    %1413 = vector.load %arg7[%c5_1109, %c3_1110, %c0_1111, %c0_1112] : memref<6x4x32x8xf32, #tpu.memory_space<vmem>>, vector<1x1x32x8xf32>
    %1414 = vector.shape_cast %1413 : vector<1x1x32x8xf32> to vector<32x8xf32>
    %cst_1113 = arith.constant dense<0.000000e+00> : vector<5x8xf32>
    %1415 = tpu.matmul %1285, %1414, %cst_1113 {dimension_numbers = #tpu.dot_dimension_numbers<[1], [0], [0], [1], [0, 0, 1, 1], [], []>} : vector<5x32xf32>, vector<32x8xf32>, vector<5x8xf32> -> vector<5x8xf32>
    %c5_1114 = arith.constant 5 : index
    %c3_1115 = arith.constant 3 : index
    %c0_1116 = arith.constant 0 : index
    %c0_1117 = arith.constant 0 : index
    %1416 = vector.load %arg8[%c5_1114, %c3_1115, %c0_1116, %c0_1117] : memref<6x4x1x8xf32, #tpu.memory_space<vmem>>, vector<1x1x1x8xf32>
    %1417 = vector.shape_cast %1416 : vector<1x1x1x8xf32> to vector<1x8xf32>
    %1418 = vector.broadcast %1417 : vector<1x8xf32> to vector<5x8xf32>
    %1419 = arith.addf %1415, %1418 : vector<5x8xf32>
    %c5_1118 = arith.constant 5 : index
    %c3_1119 = arith.constant 3 : index
    %c0_1120 = arith.constant 0 : index
    %c0_1121 = arith.constant 0 : index
    %1420 = vector.load %arg9[%c5_1118, %c3_1119, %c0_1120, %c0_1121] : memref<6x4x32x8xf32, #tpu.memory_space<vmem>>, vector<1x1x32x8xf32>
    %1421 = vector.shape_cast %1420 : vector<1x1x32x8xf32> to vector<32x8xf32>
    %cst_1122 = arith.constant dense<0.000000e+00> : vector<5x8xf32>
    %1422 = tpu.matmul %1285, %1421, %cst_1122 {dimension_numbers = #tpu.dot_dimension_numbers<[1], [0], [0], [1], [0, 0, 1, 1], [], []>} : vector<5x32xf32>, vector<32x8xf32>, vector<5x8xf32> -> vector<5x8xf32>
    %c5_1123 = arith.constant 5 : index
    %c3_1124 = arith.constant 3 : index
    %c0_1125 = arith.constant 0 : index
    %c0_1126 = arith.constant 0 : index
    %1423 = vector.load %arg10[%c5_1123, %c3_1124, %c0_1125, %c0_1126] : memref<6x4x1x8xf32, #tpu.memory_space<vmem>>, vector<1x1x1x8xf32>
    %1424 = vector.shape_cast %1423 : vector<1x1x1x8xf32> to vector<1x8xf32>
    %1425 = vector.broadcast %1424 : vector<1x8xf32> to vector<5x8xf32>
    %1426 = arith.addf %1422, %1425 : vector<5x8xf32>
    %c5_1127 = arith.constant 5 : index
    %c3_1128 = arith.constant 3 : index
    %c0_1129 = arith.constant 0 : index
    %c0_1130 = arith.constant 0 : index
    %1427 = vector.load %arg11[%c5_1127, %c3_1128, %c0_1129, %c0_1130] : memref<6x4x32x8xf32, #tpu.memory_space<vmem>>, vector<1x1x32x8xf32>
    %1428 = vector.shape_cast %1427 : vector<1x1x32x8xf32> to vector<32x8xf32>
    %cst_1131 = arith.constant dense<0.000000e+00> : vector<5x8xf32>
    %1429 = tpu.matmul %1285, %1428, %cst_1131 {dimension_numbers = #tpu.dot_dimension_numbers<[1], [0], [0], [1], [0, 0, 1, 1], [], []>} : vector<5x32xf32>, vector<32x8xf32>, vector<5x8xf32> -> vector<5x8xf32>
    %c5_1132 = arith.constant 5 : index
    %c3_1133 = arith.constant 3 : index
    %c0_1134 = arith.constant 0 : index
    %c0_1135 = arith.constant 0 : index
    %1430 = vector.load %arg12[%c5_1132, %c3_1133, %c0_1134, %c0_1135] : memref<6x4x1x8xf32, #tpu.memory_space<vmem>>, vector<1x1x1x8xf32>
    %1431 = vector.shape_cast %1430 : vector<1x1x1x8xf32> to vector<1x8xf32>
    %1432 = vector.broadcast %1431 : vector<1x8xf32> to vector<5x8xf32>
    %1433 = arith.addf %1429, %1432 : vector<5x8xf32>
    %1434 = tpu.transpose %1426, [1, 0] : vector<5x8xf32> -> vector<8x5xf32>
    %cst_1136 = arith.constant dense<0.000000e+00> : vector<5x5xf32>
    %1435 = tpu.matmul %1419, %1434, %cst_1136 {dimension_numbers = #tpu.dot_dimension_numbers<[1], [0], [0], [1], [0, 0, 1, 1], [], []>} : vector<5x8xf32>, vector<8x5xf32>, vector<5x5xf32> -> vector<5x5xf32>
    %cst_1137 = arith.constant 0.353553385 : f32
    %1436 = vector.broadcast %cst_1137 : f32 to vector<5x5xf32>
    %1437 = arith.mulf %1435, %1436 : vector<5x5xf32>
    %cst_1138 = arith.constant -1.000000e+30 : f32
    %1438 = vector.broadcast %cst_1138 : f32 to vector<5x5xf32>
    %1439 = arith.select %11, %1437, %1438 : vector<5x5xi1>, vector<5x5xf32>
    %cst_1139 = arith.constant dense<0xFF800000> : vector<5xf32>
    %1440 = vector.multi_reduction <maximumf>, %1439, %cst_1139 [1] : vector<5x5xf32> to vector<5xf32>
    %1441 = vector.shape_cast %1440 : vector<5xf32> to vector<5x1xf32>
    %1442 = vector.broadcast %1441 : vector<5x1xf32> to vector<5x5xf32>
    %1443 = arith.subf %1439, %1442 : vector<5x5xf32>
    %1444 = math.exp %1443 : vector<5x5xf32>
    %cst_1140 = arith.constant dense<0.000000e+00> : vector<5xf32>
    %1445 = vector.multi_reduction <add>, %1444, %cst_1140 [1] : vector<5x5xf32> to vector<5xf32>
    %1446 = vector.shape_cast %1445 : vector<5xf32> to vector<5x1xf32>
    %1447 = tpu.reciprocal %1446 {approx = true} : vector<5x1xf32> -> vector<5x1xf32>
    %1448 = vector.broadcast %1447 : vector<5x1xf32> to vector<5x5xf32>
    %1449 = arith.mulf %1444, %1448 : vector<5x5xf32>
    %cst_1141 = arith.constant dense<0.000000e+00> : vector<5x8xf32>
    %1450 = tpu.matmul %1449, %1433, %cst_1141 {dimension_numbers = #tpu.dot_dimension_numbers<[1], [0], [0], [1], [0, 0, 1, 1], [], []>} : vector<5x5xf32>, vector<5x8xf32>, vector<5x8xf32> -> vector<5x8xf32>
    %c5_1142 = arith.constant 5 : index
    %c3_1143 = arith.constant 3 : index
    %c0_1144 = arith.constant 0 : index
    %c0_1145 = arith.constant 0 : index
    %1451 = vector.load %arg13[%c5_1142, %c3_1143, %c0_1144, %c0_1145] : memref<6x4x8x32xf32, #tpu.memory_space<vmem>>, vector<1x1x8x32xf32>
    %1452 = vector.shape_cast %1451 : vector<1x1x8x32xf32> to vector<8x32xf32>
    %cst_1146 = arith.constant dense<0.000000e+00> : vector<5x32xf32>
    %1453 = tpu.matmul %1450, %1452, %cst_1146 {dimension_numbers = #tpu.dot_dimension_numbers<[1], [0], [0], [1], [0, 0, 1, 1], [], []>} : vector<5x8xf32>, vector<8x32xf32>, vector<5x32xf32> -> vector<5x32xf32>
    %1454 = arith.addf %1412, %1453 : vector<5x32xf32>
    %1455 = arith.addf %1261, %1454 : vector<5x32xf32>
    %c5_1147 = arith.constant 5 : index
    %c0_1148 = arith.constant 0 : index
    %c0_1149 = arith.constant 0 : index
    %1456 = vector.load %arg14[%c5_1147, %c0_1148, %c0_1149] : memref<6x1x32xf32, #tpu.memory_space<vmem>>, vector<1x1x32xf32>
    %1457 = vector.shape_cast %1456 : vector<1x1x32xf32> to vector<1x32xf32>
    %1458 = vector.broadcast %1457 : vector<1x32xf32> to vector<5x32xf32>
    %1459 = arith.addf %1455, %1458 : vector<5x32xf32>
    %c5_1150 = arith.constant 5 : index
    %c0_1151 = arith.constant 0 : index
    %c0_1152 = arith.constant 0 : index
    %1460 = vector.load %arg15[%c5_1150, %c0_1151, %c0_1152] : memref<6x1x32xf32, #tpu.memory_space<vmem>>, vector<1x1x32xf32>
    %1461 = vector.shape_cast %1460 : vector<1x1x32xf32> to vector<1x32xf32>
    %c5_1153 = arith.constant 5 : index
    %c0_1154 = arith.constant 0 : index
    %c0_1155 = arith.constant 0 : index
    %1462 = vector.load %arg16[%c5_1153, %c0_1154, %c0_1155] : memref<6x1x32xf32, #tpu.memory_space<vmem>>, vector<1x1x32xf32>
    %1463 = vector.shape_cast %1462 : vector<1x1x32xf32> to vector<1x32xf32>
    %cst_1156 = arith.constant dense<0.000000e+00> : vector<5xf32>
    %1464 = vector.multi_reduction <add>, %1459, %cst_1156 [1] : vector<5x32xf32> to vector<5xf32>
    %1465 = vector.shape_cast %1464 : vector<5xf32> to vector<5x1xf32>
    %cst_1157 = arith.constant 3.200000e+01 : f32
    %1466 = vector.broadcast %cst_1157 : f32 to vector<5x1xf32>
    %1467 = arith.divf %1465, %1466 : vector<5x1xf32>
    %1468 = vector.broadcast %1467 : vector<5x1xf32> to vector<5x32xf32>
    %1469 = arith.subf %1459, %1468 : vector<5x32xf32>
    %1470 = arith.mulf %1469, %1469 : vector<5x32xf32>
    %cst_1158 = arith.constant dense<0.000000e+00> : vector<5xf32>
    %1471 = vector.multi_reduction <add>, %1470, %cst_1158 [1] : vector<5x32xf32> to vector<5xf32>
    %1472 = vector.shape_cast %1471 : vector<5xf32> to vector<5x1xf32>
    %cst_1159 = arith.constant 3.200000e+01 : f32
    %1473 = vector.broadcast %cst_1159 : f32 to vector<5x1xf32>
    %1474 = arith.divf %1472, %1473 : vector<5x1xf32>
    %cst_1160 = arith.constant 9.99999974E-6 : f32
    %1475 = vector.broadcast %cst_1160 : f32 to vector<5x1xf32>
    %1476 = arith.addf %1474, %1475 : vector<5x1xf32>
    %1477 = math.rsqrt %1476 : vector<5x1xf32>
    %1478 = vector.broadcast %1477 : vector<5x1xf32> to vector<5x32xf32>
    %1479 = arith.mulf %1469, %1478 : vector<5x32xf32>
    %1480 = vector.broadcast %1461 : vector<1x32xf32> to vector<5x32xf32>
    %1481 = arith.mulf %1479, %1480 : vector<5x32xf32>
    %1482 = vector.broadcast %1463 : vector<1x32xf32> to vector<5x32xf32>
    %1483 = arith.addf %1481, %1482 : vector<5x32xf32>
    %c5_1161 = arith.constant 5 : index
    %c0_1162 = arith.constant 0 : index
    %c0_1163 = arith.constant 0 : index
    %1484 = vector.load %arg17[%c5_1161, %c0_1162, %c0_1163] : memref<6x32x128xf32, #tpu.memory_space<vmem>>, vector<1x32x128xf32>
    %1485 = vector.shape_cast %1484 : vector<1x32x128xf32> to vector<32x128xf32>
    %cst_1164 = arith.constant dense<0.000000e+00> : vector<5x128xf32>
    %1486 = tpu.matmul %1483, %1485, %cst_1164 {dimension_numbers = #tpu.dot_dimension_numbers<[1], [0], [0], [1], [0, 0, 1, 1], [], []>} : vector<5x32xf32>, vector<32x128xf32>, vector<5x128xf32> -> vector<5x128xf32>
    %c5_1165 = arith.constant 5 : index
    %c0_1166 = arith.constant 0 : index
    %c0_1167 = arith.constant 0 : index
    %1487 = vector.load %arg18[%c5_1165, %c0_1166, %c0_1167] : memref<6x1x128xf32, #tpu.memory_space<vmem>>, vector<1x1x128xf32>
    %1488 = vector.shape_cast %1487 : vector<1x1x128xf32> to vector<1x128xf32>
    %1489 = vector.broadcast %1488 : vector<1x128xf32> to vector<5x128xf32>
    %1490 = arith.addf %1486, %1489 : vector<5x128xf32>
    %cst_1168 = arith.constant 5.000000e-01 : f32
    %1491 = vector.broadcast %cst_1168 : f32 to vector<5x128xf32>
    %1492 = arith.mulf %1491, %1490 : vector<5x128xf32>
    %cst_1169 = arith.constant 4.471500e-02 : f32
    %1493 = vector.broadcast %cst_1169 : f32 to vector<5x128xf32>
    %1494 = arith.mulf %1493, %1490 : vector<5x128xf32>
    %1495 = arith.mulf %1494, %1490 : vector<5x128xf32>
    %1496 = arith.mulf %1495, %1490 : vector<5x128xf32>
    %1497 = arith.addf %1490, %1496 : vector<5x128xf32>
    %cst_1170 = arith.constant 0.797884583 : f32
    %1498 = vector.broadcast %cst_1170 : f32 to vector<5x128xf32>
    %1499 = arith.mulf %1498, %1497 : vector<5x128xf32>
    %1500 = math.tanh %1499 : vector<5x128xf32>
    %cst_1171 = arith.constant 1.000000e+00 : f32
    %1501 = vector.broadcast %cst_1171 : f32 to vector<5x128xf32>
    %1502 = arith.addf %1501, %1500 : vector<5x128xf32>
    %1503 = arith.mulf %1492, %1502 : vector<5x128xf32>
    %c5_1172 = arith.constant 5 : index
    %c0_1173 = arith.constant 0 : index
    %c0_1174 = arith.constant 0 : index
    %1504 = vector.load %arg19[%c5_1172, %c0_1173, %c0_1174] : memref<6x128x32xf32, #tpu.memory_space<vmem>>, vector<1x128x32xf32>
    %1505 = vector.shape_cast %1504 : vector<1x128x32xf32> to vector<128x32xf32>
    %cst_1175 = arith.constant dense<0.000000e+00> : vector<5x32xf32>
    %1506 = tpu.matmul %1503, %1505, %cst_1175 {dimension_numbers = #tpu.dot_dimension_numbers<[1], [0], [0], [1], [0, 0, 1, 1], [], []>} : vector<5x128xf32>, vector<128x32xf32>, vector<5x32xf32> -> vector<5x32xf32>
    %1507 = arith.addf %1459, %1506 : vector<5x32xf32>
    %c5_1176 = arith.constant 5 : index
    %c0_1177 = arith.constant 0 : index
    %c0_1178 = arith.constant 0 : index
    %1508 = vector.load %arg20[%c5_1176, %c0_1177, %c0_1178] : memref<6x1x32xf32, #tpu.memory_space<vmem>>, vector<1x1x32xf32>
    %1509 = vector.shape_cast %1508 : vector<1x1x32xf32> to vector<1x32xf32>
    %1510 = vector.broadcast %1509 : vector<1x32xf32> to vector<5x32xf32>
    %1511 = arith.addf %1507, %1510 : vector<5x32xf32>
    %c0_1179 = arith.constant 0 : index
    %c0_1180 = arith.constant 0 : index
    %1512 = vector.load %arg21[%c0_1179, %c0_1180] : memref<1x32xf32, #tpu.memory_space<vmem>>, vector<1x32xf32>
    %c0_1181 = arith.constant 0 : index
    %c0_1182 = arith.constant 0 : index
    %1513 = vector.load %arg22[%c0_1181, %c0_1182] : memref<1x32xf32, #tpu.memory_space<vmem>>, vector<1x32xf32>
    %cst_1183 = arith.constant dense<0.000000e+00> : vector<5xf32>
    %1514 = vector.multi_reduction <add>, %1511, %cst_1183 [1] : vector<5x32xf32> to vector<5xf32>
    %1515 = vector.shape_cast %1514 : vector<5xf32> to vector<5x1xf32>
    %cst_1184 = arith.constant 3.200000e+01 : f32
    %1516 = vector.broadcast %cst_1184 : f32 to vector<5x1xf32>
    %1517 = arith.divf %1515, %1516 : vector<5x1xf32>
    %1518 = vector.broadcast %1517 : vector<5x1xf32> to vector<5x32xf32>
    %1519 = arith.subf %1511, %1518 : vector<5x32xf32>
    %1520 = arith.mulf %1519, %1519 : vector<5x32xf32>
    %cst_1185 = arith.constant dense<0.000000e+00> : vector<5xf32>
    %1521 = vector.multi_reduction <add>, %1520, %cst_1185 [1] : vector<5x32xf32> to vector<5xf32>
    %1522 = vector.shape_cast %1521 : vector<5xf32> to vector<5x1xf32>
    %cst_1186 = arith.constant 3.200000e+01 : f32
    %1523 = vector.broadcast %cst_1186 : f32 to vector<5x1xf32>
    %1524 = arith.divf %1522, %1523 : vector<5x1xf32>
    %cst_1187 = arith.constant 9.99999974E-6 : f32
    %1525 = vector.broadcast %cst_1187 : f32 to vector<5x1xf32>
    %1526 = arith.addf %1524, %1525 : vector<5x1xf32>
    %1527 = math.rsqrt %1526 : vector<5x1xf32>
    %1528 = vector.broadcast %1527 : vector<5x1xf32> to vector<5x32xf32>
    %1529 = arith.mulf %1519, %1528 : vector<5x32xf32>
    %1530 = vector.broadcast %1512 : vector<1x32xf32> to vector<5x32xf32>
    %1531 = arith.mulf %1529, %1530 : vector<5x32xf32>
    %1532 = vector.broadcast %1513 : vector<1x32xf32> to vector<5x32xf32>
    %1533 = arith.addf %1531, %1532 : vector<5x32xf32>
    %c0_1188 = arith.constant 0 : index
    %c0_1189 = arith.constant 0 : index
    %1534 = vector.load %arg23[%c0_1188, %c0_1189] : memref<32x32xf32, #tpu.memory_space<vmem>>, vector<32x32xf32>
    %cst_1190 = arith.constant dense<0.000000e+00> : vector<5x32xf32>
    %1535 = tpu.matmul %6, %1534, %cst_1190 {dimension_numbers = #tpu.dot_dimension_numbers<[1], [0], [0], [1], [0, 0, 1, 1], [], []>} : vector<5x32xf32>, vector<32x32xf32>, vector<5x32xf32> -> vector<5x32xf32>
    %c0_1191 = arith.constant 0 : index
    %c0_1192 = arith.constant 0 : index
    %1536 = vector.load %arg24[%c0_1191, %c0_1192] : memref<32x32xf32, #tpu.memory_space<vmem>>, vector<32x32xf32>
    %cst_1193 = arith.constant dense<0.000000e+00> : vector<5x32xf32>
    %1537 = tpu.matmul %1261, %1536, %cst_1193 {dimension_numbers = #tpu.dot_dimension_numbers<[1], [0], [0], [1], [0, 0, 1, 1], [], []>} : vector<5x32xf32>, vector<32x32xf32>, vector<5x32xf32> -> vector<5x32xf32>
    %1538 = arith.addf %1535, %1537 : vector<5x32xf32>
    %c0_1194 = arith.constant 0 : index
    %c0_1195 = arith.constant 0 : index
    %1539 = vector.load %arg25[%c0_1194, %c0_1195] : memref<1x32xf32, #tpu.memory_space<vmem>>, vector<1x32xf32>
    %1540 = vector.broadcast %1539 : vector<1x32xf32> to vector<5x32xf32>
    %1541 = arith.addf %1538, %1540 : vector<5x32xf32>
    %cst_1196 = arith.constant 0.000000e+00 : f32
    %1542 = vector.broadcast %cst_1196 : f32 to vector<5x32xf32>
    %1543 = arith.maximumf %1541, %1542 : vector<5x32xf32>
    %c0_1197 = arith.constant 0 : index
    %c0_1198 = arith.constant 0 : index
    %1544 = vector.load %arg26[%c0_1197, %c0_1198] : memref<32x32xf32, #tpu.memory_space<vmem>>, vector<32x32xf32>
    %cst_1199 = arith.constant dense<0.000000e+00> : vector<5x32xf32>
    %1545 = tpu.matmul %1543, %1544, %cst_1199 {dimension_numbers = #tpu.dot_dimension_numbers<[1], [0], [0], [1], [0, 0, 1, 1], [], []>} : vector<5x32xf32>, vector<32x32xf32>, vector<5x32xf32> -> vector<5x32xf32>
    %c0_1200 = arith.constant 0 : index
    %c0_1201 = arith.constant 0 : index
    %1546 = vector.load %arg27[%c0_1200, %c0_1201] : memref<1x32xf32, #tpu.memory_space<vmem>>, vector<1x32xf32>
    %1547 = vector.broadcast %1546 : vector<1x32xf32> to vector<5x32xf32>
    %1548 = arith.addf %1545, %1547 : vector<5x32xf32>
    %c0_1202 = arith.constant 0 : index
    %c0_1203 = arith.constant 0 : index
    %1549 = vector.load %arg28[%c0_1202, %c0_1203] : memref<32x32xf32, #tpu.memory_space<vmem>>, vector<32x32xf32>
    %cst_1204 = arith.constant dense<0.000000e+00> : vector<5x32xf32>
    %1550 = tpu.matmul %6, %1549, %cst_1204 {dimension_numbers = #tpu.dot_dimension_numbers<[1], [0], [0], [1], [0, 0, 1, 1], [], []>} : vector<5x32xf32>, vector<32x32xf32>, vector<5x32xf32> -> vector<5x32xf32>
    %c0_1205 = arith.constant 0 : index
    %c0_1206 = arith.constant 0 : index
    %1551 = vector.load %arg29[%c0_1205, %c0_1206] : memref<32x32xf32, #tpu.memory_space<vmem>>, vector<32x32xf32>
    %cst_1207 = arith.constant dense<0.000000e+00> : vector<5x32xf32>
    %1552 = tpu.matmul %1533, %1551, %cst_1207 {dimension_numbers = #tpu.dot_dimension_numbers<[1], [0], [0], [1], [0, 0, 1, 1], [], []>} : vector<5x32xf32>, vector<32x32xf32>, vector<5x32xf32> -> vector<5x32xf32>
    %1553 = arith.addf %1550, %1552 : vector<5x32xf32>
    %c0_1208 = arith.constant 0 : index
    %c0_1209 = arith.constant 0 : index
    %1554 = vector.load %arg30[%c0_1208, %c0_1209] : memref<1x32xf32, #tpu.memory_space<vmem>>, vector<1x32xf32>
    %1555 = vector.broadcast %1554 : vector<1x32xf32> to vector<5x32xf32>
    %1556 = arith.addf %1553, %1555 : vector<5x32xf32>
    %cst_1210 = arith.constant 0.000000e+00 : f32
    %1557 = vector.broadcast %cst_1210 : f32 to vector<5x32xf32>
    %1558 = arith.maximumf %1556, %1557 : vector<5x32xf32>
    %c0_1211 = arith.constant 0 : index
    %c0_1212 = arith.constant 0 : index
    %1559 = vector.load %arg31[%c0_1211, %c0_1212] : memref<32x32xf32, #tpu.memory_space<vmem>>, vector<32x32xf32>
    %cst_1213 = arith.constant dense<0.000000e+00> : vector<5x32xf32>
    %1560 = tpu.matmul %1558, %1559, %cst_1213 {dimension_numbers = #tpu.dot_dimension_numbers<[1], [0], [0], [1], [0, 0, 1, 1], [], []>} : vector<5x32xf32>, vector<32x32xf32>, vector<5x32xf32> -> vector<5x32xf32>
    %c0_1214 = arith.constant 0 : index
    %c0_1215 = arith.constant 0 : index
    %1561 = vector.load %arg32[%c0_1214, %c0_1215] : memref<1x32xf32, #tpu.memory_space<vmem>>, vector<1x32xf32>
    %1562 = vector.broadcast %1561 : vector<1x32xf32> to vector<5x32xf32>
    %1563 = arith.addf %1560, %1562 : vector<5x32xf32>
    %1564 = arith.addf %6, %1548 : vector<5x32xf32>
    %1565 = arith.addf %1564, %1563 : vector<5x32xf32>
    %cst_1216 = arith.constant 0.333333343 : f32
    %1566 = vector.broadcast %cst_1216 : f32 to vector<5x32xf32>
    %1567 = arith.mulf %1565, %1566 : vector<5x32xf32>
    %1568 = tpu.iota {dimensions = array<i32: 1>} : vector<1x5xi32>
    %c0_1217 = arith.constant 0 : index
    %c0_1218 = arith.constant 0 : index
    %1569 = vector.load %arg34[%c0_1217, %c0_1218] : memref<1x8xf32, #tpu.memory_space<vmem>>, vector<1x8xf32>
    %c0_1219 = arith.constant 0 : index
    %c0_1220 = arith.constant 0 : index
    %c0_1221 = arith.constant 0 : index
    %1570 = vector.load %arg33[%c0_1219, %c0_1220, %c0_1221] : memref<5x32x8xf32, #tpu.memory_space<vmem>>, vector<1x32x8xf32>
    %1571 = vector.shape_cast %1570 : vector<1x32x8xf32> to vector<32x8xf32>
    %cst_1222 = arith.constant dense<0.000000e+00> : vector<5x8xf32>
    %1572 = tpu.matmul %1567, %1571, %cst_1222 {dimension_numbers = #tpu.dot_dimension_numbers<[1], [0], [0], [1], [0, 0, 1, 1], [], []>} : vector<5x32xf32>, vector<32x8xf32>, vector<5x8xf32> -> vector<5x8xf32>
    %c0_i32 = arith.constant 0 : i32
    %1573 = vector.broadcast %c0_i32 : i32 to vector<1x5xi32>
    %1574 = arith.cmpi eq, %1568, %1573 : vector<1x5xi32>
    %1575 = arith.extui %1574 : vector<1x5xi1> to vector<1x5xi32>
    %1576 = arith.sitofp %1575 : vector<1x5xi32> to vector<1x5xf32>
    %cst_1223 = arith.constant dense<0.000000e+00> : vector<1x8xf32>
    %1577 = tpu.matmul %1576, %1572, %cst_1223 {dimension_numbers = #tpu.dot_dimension_numbers<[1], [0], [0], [1], [0, 0, 1, 1], [], []>} : vector<1x5xf32>, vector<5x8xf32>, vector<1x8xf32> -> vector<1x8xf32>
    %1578 = arith.addf %1569, %1577 : vector<1x8xf32>
    %c1_1224 = arith.constant 1 : index
    %c0_1225 = arith.constant 0 : index
    %c0_1226 = arith.constant 0 : index
    %1579 = vector.load %arg33[%c1_1224, %c0_1225, %c0_1226] : memref<5x32x8xf32, #tpu.memory_space<vmem>>, vector<1x32x8xf32>
    %1580 = vector.shape_cast %1579 : vector<1x32x8xf32> to vector<32x8xf32>
    %cst_1227 = arith.constant dense<0.000000e+00> : vector<5x8xf32>
    %1581 = tpu.matmul %1567, %1580, %cst_1227 {dimension_numbers = #tpu.dot_dimension_numbers<[1], [0], [0], [1], [0, 0, 1, 1], [], []>} : vector<5x32xf32>, vector<32x8xf32>, vector<5x8xf32> -> vector<5x8xf32>
    %c1_i32 = arith.constant 1 : i32
    %1582 = vector.broadcast %c1_i32 : i32 to vector<1x5xi32>
    %1583 = arith.cmpi eq, %1568, %1582 : vector<1x5xi32>
    %1584 = arith.extui %1583 : vector<1x5xi1> to vector<1x5xi32>
    %1585 = arith.sitofp %1584 : vector<1x5xi32> to vector<1x5xf32>
    %cst_1228 = arith.constant dense<0.000000e+00> : vector<1x8xf32>
    %1586 = tpu.matmul %1585, %1581, %cst_1228 {dimension_numbers = #tpu.dot_dimension_numbers<[1], [0], [0], [1], [0, 0, 1, 1], [], []>} : vector<1x5xf32>, vector<5x8xf32>, vector<1x8xf32> -> vector<1x8xf32>
    %1587 = arith.addf %1578, %1586 : vector<1x8xf32>
    %c2_1229 = arith.constant 2 : index
    %c0_1230 = arith.constant 0 : index
    %c0_1231 = arith.constant 0 : index
    %1588 = vector.load %arg33[%c2_1229, %c0_1230, %c0_1231] : memref<5x32x8xf32, #tpu.memory_space<vmem>>, vector<1x32x8xf32>
    %1589 = vector.shape_cast %1588 : vector<1x32x8xf32> to vector<32x8xf32>
    %cst_1232 = arith.constant dense<0.000000e+00> : vector<5x8xf32>
    %1590 = tpu.matmul %1567, %1589, %cst_1232 {dimension_numbers = #tpu.dot_dimension_numbers<[1], [0], [0], [1], [0, 0, 1, 1], [], []>} : vector<5x32xf32>, vector<32x8xf32>, vector<5x8xf32> -> vector<5x8xf32>
    %c2_i32 = arith.constant 2 : i32
    %1591 = vector.broadcast %c2_i32 : i32 to vector<1x5xi32>
    %1592 = arith.cmpi eq, %1568, %1591 : vector<1x5xi32>
    %1593 = arith.extui %1592 : vector<1x5xi1> to vector<1x5xi32>
    %1594 = arith.sitofp %1593 : vector<1x5xi32> to vector<1x5xf32>
    %cst_1233 = arith.constant dense<0.000000e+00> : vector<1x8xf32>
    %1595 = tpu.matmul %1594, %1590, %cst_1233 {dimension_numbers = #tpu.dot_dimension_numbers<[1], [0], [0], [1], [0, 0, 1, 1], [], []>} : vector<1x5xf32>, vector<5x8xf32>, vector<1x8xf32> -> vector<1x8xf32>
    %1596 = arith.addf %1587, %1595 : vector<1x8xf32>
    %c3_1234 = arith.constant 3 : index
    %c0_1235 = arith.constant 0 : index
    %c0_1236 = arith.constant 0 : index
    %1597 = vector.load %arg33[%c3_1234, %c0_1235, %c0_1236] : memref<5x32x8xf32, #tpu.memory_space<vmem>>, vector<1x32x8xf32>
    %1598 = vector.shape_cast %1597 : vector<1x32x8xf32> to vector<32x8xf32>
    %cst_1237 = arith.constant dense<0.000000e+00> : vector<5x8xf32>
    %1599 = tpu.matmul %1567, %1598, %cst_1237 {dimension_numbers = #tpu.dot_dimension_numbers<[1], [0], [0], [1], [0, 0, 1, 1], [], []>} : vector<5x32xf32>, vector<32x8xf32>, vector<5x8xf32> -> vector<5x8xf32>
    %c3_i32 = arith.constant 3 : i32
    %1600 = vector.broadcast %c3_i32 : i32 to vector<1x5xi32>
    %1601 = arith.cmpi eq, %1568, %1600 : vector<1x5xi32>
    %1602 = arith.extui %1601 : vector<1x5xi1> to vector<1x5xi32>
    %1603 = arith.sitofp %1602 : vector<1x5xi32> to vector<1x5xf32>
    %cst_1238 = arith.constant dense<0.000000e+00> : vector<1x8xf32>
    %1604 = tpu.matmul %1603, %1599, %cst_1238 {dimension_numbers = #tpu.dot_dimension_numbers<[1], [0], [0], [1], [0, 0, 1, 1], [], []>} : vector<1x5xf32>, vector<5x8xf32>, vector<1x8xf32> -> vector<1x8xf32>
    %1605 = arith.addf %1596, %1604 : vector<1x8xf32>
    %c4_1239 = arith.constant 4 : index
    %c0_1240 = arith.constant 0 : index
    %c0_1241 = arith.constant 0 : index
    %1606 = vector.load %arg33[%c4_1239, %c0_1240, %c0_1241] : memref<5x32x8xf32, #tpu.memory_space<vmem>>, vector<1x32x8xf32>
    %1607 = vector.shape_cast %1606 : vector<1x32x8xf32> to vector<32x8xf32>
    %cst_1242 = arith.constant dense<0.000000e+00> : vector<5x8xf32>
    %1608 = tpu.matmul %1567, %1607, %cst_1242 {dimension_numbers = #tpu.dot_dimension_numbers<[1], [0], [0], [1], [0, 0, 1, 1], [], []>} : vector<5x32xf32>, vector<32x8xf32>, vector<5x8xf32> -> vector<5x8xf32>
    %c4_i32 = arith.constant 4 : i32
    %1609 = vector.broadcast %c4_i32 : i32 to vector<1x5xi32>
    %1610 = arith.cmpi eq, %1568, %1609 : vector<1x5xi32>
    %1611 = arith.extui %1610 : vector<1x5xi1> to vector<1x5xi32>
    %1612 = arith.sitofp %1611 : vector<1x5xi32> to vector<1x5xf32>
    %cst_1243 = arith.constant dense<0.000000e+00> : vector<1x8xf32>
    %1613 = tpu.matmul %1612, %1608, %cst_1243 {dimension_numbers = #tpu.dot_dimension_numbers<[1], [0], [0], [1], [0, 0, 1, 1], [], []>} : vector<1x5xf32>, vector<5x8xf32>, vector<1x8xf32> -> vector<1x8xf32>
    %1614 = arith.addf %1605, %1613 : vector<1x8xf32>
    %c0_1244 = arith.constant 0 : index
    %c0_1245 = arith.constant 0 : index
    %c0_1246 = arith.constant 0 : index
    %1615 = vector.load %arg35[%c0_1244, %c0_1245, %c0_1246] : memref<1x1x8xf32, #tpu.memory_space<vmem>>, vector<1x1x8xf32>
    %1616 = vector.shape_cast %1615 : vector<1x1x8xf32> to vector<1x8xf32>
    %1617 = vector.shape_cast %1614 : vector<1x8xf32> to vector<1x1x8xf32>
    tpu.vector_store %arg35[%c0_1244, %c0_1245, %c0_1246], %1617 {strides = array<i32>} : memref<1x1x8xf32, #tpu.memory_space<vmem>>, vector<1x1x8xf32>,
    return
  }
  func.func @transform_0(%arg0: i32) -> (i32, i32, i32) {
    %c0_i32 = arith.constant 0 : i32
    %c0_i32_0 = arith.constant 0 : i32
    %c0_i32_1 = arith.constant 0 : i32
    return %arg0, %c0_i32, %c0_i32_0 : i32, i32, i32
  }
  func.func @transform_1(%arg0: i32) -> (i32, i32) {
    %c0_i32 = arith.constant 0 : i32
    %c0_i32_0 = arith.constant 0 : i32
    %c0_i32_1 = arith.constant 0 : i32
    return %c0_i32, %c0_i32_0 : i32, i32
  }
  func.func @transform_2(%arg0: i32) -> (i32, i32) {
    %c0_i32 = arith.constant 0 : i32
    %c0_i32_0 = arith.constant 0 : i32
    %c0_i32_1 = arith.constant 0 : i32
    return %c0_i32, %c0_i32_0 : i32, i32
  }
  func.func @transform_3(%arg0: i32) -> (i32, i32) {
    %c0_i32 = arith.constant 0 : i32
    %c0_i32_0 = arith.constant 0 : i32
    %c0_i32_1 = arith.constant 0 : i32
    return %c0_i32, %c0_i32_0 : i32, i32
  }
  func.func @transform_4(%arg0: i32) -> (i32, i32, i32) {
    %c0_i32 = arith.constant 0 : i32
    %c0_i32_0 = arith.constant 0 : i32
    %c0_i32_1 = arith.constant 0 : i32
    %c0_i32_2 = arith.constant 0 : i32
    return %c0_i32, %c0_i32_0, %c0_i32_1 : i32, i32, i32
  }
  func.func @transform_5(%arg0: i32) -> (i32, i32, i32) {
    %c0_i32 = arith.constant 0 : i32
    %c0_i32_0 = arith.constant 0 : i32
    %c0_i32_1 = arith.constant 0 : i32
    %c0_i32_2 = arith.constant 0 : i32
    return %c0_i32, %c0_i32_0, %c0_i32_1 : i32, i32, i32
  }
  func.func @transform_6(%arg0: i32) -> (i32, i32, i32, i32) {
    %c0_i32 = arith.constant 0 : i32
    %c0_i32_0 = arith.constant 0 : i32
    %c0_i32_1 = arith.constant 0 : i32
    %c0_i32_2 = arith.constant 0 : i32
    %c0_i32_3 = arith.constant 0 : i32
    return %c0_i32, %c0_i32_0, %c0_i32_1, %c0_i32_2 : i32, i32, i32, i32
  }
  func.func @transform_7(%arg0: i32) -> (i32, i32, i32, i32) {
    %c0_i32 = arith.constant 0 : i32
    %c0_i32_0 = arith.constant 0 : i32
    %c0_i32_1 = arith.constant 0 : i32
    %c0_i32_2 = arith.constant 0 : i32
    %c0_i32_3 = arith.constant 0 : i32
    return %c0_i32, %c0_i32_0, %c0_i32_1, %c0_i32_2 : i32, i32, i32, i32
  }
  func.func @transform_8(%arg0: i32) -> (i32, i32, i32, i32) {
    %c0_i32 = arith.constant 0 : i32
    %c0_i32_0 = arith.constant 0 : i32
    %c0_i32_1 = arith.constant 0 : i32
    %c0_i32_2 = arith.constant 0 : i32
    %c0_i32_3 = arith.constant 0 : i32
    return %c0_i32, %c0_i32_0, %c0_i32_1, %c0_i32_2 : i32, i32, i32, i32
  }
  func.func @transform_9(%arg0: i32) -> (i32, i32, i32, i32) {
    %c0_i32 = arith.constant 0 : i32
    %c0_i32_0 = arith.constant 0 : i32
    %c0_i32_1 = arith.constant 0 : i32
    %c0_i32_2 = arith.constant 0 : i32
    %c0_i32_3 = arith.constant 0 : i32
    return %c0_i32, %c0_i32_0, %c0_i32_1, %c0_i32_2 : i32, i32, i32, i32
  }
  func.func @transform_10(%arg0: i32) -> (i32, i32, i32, i32) {
    %c0_i32 = arith.constant 0 : i32
    %c0_i32_0 = arith.constant 0 : i32
    %c0_i32_1 = arith.constant 0 : i32
    %c0_i32_2 = arith.constant 0 : i32
    %c0_i32_3 = arith.constant 0 : i32
    return %c0_i32, %c0_i32_0, %c0_i32_1, %c0_i32_2 : i32, i32, i32, i32
  }
  func.func @transform_11(%arg0: i32) -> (i32, i32, i32, i32) {
    %c0_i32 = arith.constant 0 : i32
    %c0_i32_0 = arith.constant 0 : i32
    %c0_i32_1 = arith.constant 0 : i32
    %c0_i32_2 = arith.constant 0 : i32
    %c0_i32_3 = arith.constant 0 : i32
    return %c0_i32, %c0_i32_0, %c0_i32_1, %c0_i32_2 : i32, i32, i32, i32
  }
  func.func @transform_12(%arg0: i32) -> (i32, i32, i32, i32) {
    %c0_i32 = arith.constant 0 : i32
    %c0_i32_0 = arith.constant 0 : i32
    %c0_i32_1 = arith.constant 0 : i32
    %c0_i32_2 = arith.constant 0 : i32
    %c0_i32_3 = arith.constant 0 : i32
    return %c0_i32, %c0_i32_0, %c0_i32_1, %c0_i32_2 : i32, i32, i32, i32
  }
  func.func @transform_13(%arg0: i32) -> (i32, i32, i32) {
    %c0_i32 = arith.constant 0 : i32
    %c0_i32_0 = arith.constant 0 : i32
    %c0_i32_1 = arith.constant 0 : i32
    %c0_i32_2 = arith.constant 0 : i32
    return %c0_i32, %c0_i32_0, %c0_i32_1 : i32, i32, i32
  }
  func.func @transform_14(%arg0: i32) -> (i32, i32, i32) {
    %c0_i32 = arith.constant 0 : i32
    %c0_i32_0 = arith.constant 0 : i32
    %c0_i32_1 = arith.constant 0 : i32
    %c0_i32_2 = arith.constant 0 : i32
    return %c0_i32, %c0_i32_0, %c0_i32_1 : i32, i32, i32
  }
  func.func @transform_15(%arg0: i32) -> (i32, i32, i32) {
    %c0_i32 = arith.constant 0 : i32
    %c0_i32_0 = arith.constant 0 : i32
    %c0_i32_1 = arith.constant 0 : i32
    %c0_i32_2 = arith.constant 0 : i32
    return %c0_i32, %c0_i32_0, %c0_i32_1 : i32, i32, i32
  }
  func.func @transform_16(%arg0: i32) -> (i32, i32, i32) {
    %c0_i32 = arith.constant 0 : i32
    %c0_i32_0 = arith.constant 0 : i32
    %c0_i32_1 = arith.constant 0 : i32
    %c0_i32_2 = arith.constant 0 : i32
    return %c0_i32, %c0_i32_0, %c0_i32_1 : i32, i32, i32
  }
  func.func @transform_17(%arg0: i32) -> (i32, i32, i32) {
    %c0_i32 = arith.constant 0 : i32
    %c0_i32_0 = arith.constant 0 : i32
    %c0_i32_1 = arith.constant 0 : i32
    %c0_i32_2 = arith.constant 0 : i32
    return %c0_i32, %c0_i32_0, %c0_i32_1 : i32, i32, i32
  }
  func.func @transform_18(%arg0: i32) -> (i32, i32, i32) {
    %c0_i32 = arith.constant 0 : i32
    %c0_i32_0 = arith.constant 0 : i32
    %c0_i32_1 = arith.constant 0 : i32
    %c0_i32_2 = arith.constant 0 : i32
    return %c0_i32, %c0_i32_0, %c0_i32_1 : i32, i32, i32
  }
  func.func @transform_19(%arg0: i32) -> (i32, i32, i32) {
    %c0_i32 = arith.constant 0 : i32
    %c0_i32_0 = arith.constant 0 : i32
    %c0_i32_1 = arith.constant 0 : i32
    %c0_i32_2 = arith.constant 0 : i32
    return %c0_i32, %c0_i32_0, %c0_i32_1 : i32, i32, i32
  }
  func.func @transform_20(%arg0: i32) -> (i32, i32) {
    %c0_i32 = arith.constant 0 : i32
    %c0_i32_0 = arith.constant 0 : i32
    %c0_i32_1 = arith.constant 0 : i32
    return %c0_i32, %c0_i32_0 : i32, i32
  }
  func.func @transform_21(%arg0: i32) -> (i32, i32) {
    %c0_i32 = arith.constant 0 : i32
    %c0_i32_0 = arith.constant 0 : i32
    %c0_i32_1 = arith.constant 0 : i32
    return %c0_i32, %c0_i32_0 : i32, i32
  }
  func.func @transform_22(%arg0: i32) -> (i32, i32) {
    %c0_i32 = arith.constant 0 : i32
    %c0_i32_0 = arith.constant 0 : i32
    %c0_i32_1 = arith.constant 0 : i32
    return %c0_i32, %c0_i32_0 : i32, i32
  }
  func.func @transform_23(%arg0: i32) -> (i32, i32) {
    %c0_i32 = arith.constant 0 : i32
    %c0_i32_0 = arith.constant 0 : i32
    %c0_i32_1 = arith.constant 0 : i32
    return %c0_i32, %c0_i32_0 : i32, i32
  }
  func.func @transform_24(%arg0: i32) -> (i32, i32) {
    %c0_i32 = arith.constant 0 : i32
    %c0_i32_0 = arith.constant 0 : i32
    %c0_i32_1 = arith.constant 0 : i32
    return %c0_i32, %c0_i32_0 : i32, i32
  }
  func.func @transform_25(%arg0: i32) -> (i32, i32) {
    %c0_i32 = arith.constant 0 : i32
    %c0_i32_0 = arith.constant 0 : i32
    %c0_i32_1 = arith.constant 0 : i32
    return %c0_i32, %c0_i32_0 : i32, i32
  }
  func.func @transform_26(%arg0: i32) -> (i32, i32) {
    %c0_i32 = arith.constant 0 : i32
    %c0_i32_0 = arith.constant 0 : i32
    %c0_i32_1 = arith.constant 0 : i32
    return %c0_i32, %c0_i32_0 : i32, i32
  }
  func.func @transform_27(%arg0: i32) -> (i32, i32) {
    %c0_i32 = arith.constant 0 : i32
    %c0_i32_0 = arith.constant 0 : i32
    %c0_i32_1 = arith.constant 0 : i32
    return %c0_i32, %c0_i32_0 : i32, i32
  }
  func.func @transform_28(%arg0: i32) -> (i32, i32) {
    %c0_i32 = arith.constant 0 : i32
    %c0_i32_0 = arith.constant 0 : i32
    %c0_i32_1 = arith.constant 0 : i32
    return %c0_i32, %c0_i32_0 : i32, i32
  }
  func.func @transform_29(%arg0: i32) -> (i32, i32) {
    %c0_i32 = arith.constant 0 : i32
    %c0_i32_0 = arith.constant 0 : i32
    %c0_i32_1 = arith.constant 0 : i32
    return %c0_i32, %c0_i32_0 : i32, i32
  }
  func.func @transform_30(%arg0: i32) -> (i32, i32) {
    %c0_i32 = arith.constant 0 : i32
    %c0_i32_0 = arith.constant 0 : i32
    %c0_i32_1 = arith.constant 0 : i32
    return %c0_i32, %c0_i32_0 : i32, i32
  }
  func.func @transform_31(%arg0: i32) -> (i32, i32) {
    %c0_i32 = arith.constant 0 : i32
    %c0_i32_0 = arith.constant 0 : i32
    %c0_i32_1 = arith.constant 0 : i32
    return %c0_i32, %c0_i32_0 : i32, i32
  }
  func.func @transform_32(%arg0: i32) -> (i32, i32, i32) {
    %c0_i32 = arith.constant 0 : i32
    %c0_i32_0 = arith.constant 0 : i32
    %c0_i32_1 = arith.constant 0 : i32
    %c0_i32_2 = arith.constant 0 : i32
    return %c0_i32, %c0_i32_0, %c0_i32_1 : i32, i32, i32
  }
  func.func @transform_33(%arg0: i32) -> (i32, i32) {
    %c0_i32 = arith.constant 0 : i32
    %c0_i32_0 = arith.constant 0 : i32
    %c0_i32_1 = arith.constant 0 : i32
    return %c0_i32, %c0_i32_0 : i32, i32
  }
  func.func @transform_34(%arg0: i32) -> (i32, i32, i32) {
    %c0_i32 = arith.constant 0 : i32
    %c0_i32_0 = arith.constant 0 : i32
    %c0_i32_1 = arith.constant 0 : i32
    return %arg0, %c0_i32, %c0_i32_0 : i32, i32, i32
  }
}

</mosaic_0001>

<llo_original>
// kernel: logollm_forward.1
$region0: #{logollm_forward.1}
  #allocation0 [shape = 'u32[]', space=smem, size = 0x4, offset = 0x4, fixed_abs, tag = 'smem constant byte address 0x4 - core index']
  #allocation1 [shape = 'u32[72,128]{1,0:T(1,128)}', space=vmem, size = 0x9000, scoped, tag = 'internal scratch']
  %s0 = inlined_call_operand.smem [shape: u32[35], index: -1, kind: input, shape index: {}]
  %s1 = sld [smem:[%s0]]
  %s2 = scalar_lea.smem %s0, 1
  %s3 = sld [smem:[%s2]]
  %s4 = scalar_lea.smem %s0, 2
  %s5 = sld [smem:[%s4]]
  %s6 = scalar_lea.smem %s0, 3
  %s7 = sld [smem:[%s6]]
  %s8 = scalar_lea.smem %s0, 4
  %s9 = sld [smem:[%s8]]
  %s10 = scalar_lea.smem %s0, 5
  %s11 = sld [smem:[%s10]]
  %s12 = scalar_lea.smem %s0, 6
  %s13 = sld [smem:[%s12]]
  %s14 = scalar_lea.smem %s0, 7
  %s15 = sld [smem:[%s14]]
  %s16 = scalar_lea.smem %s0, 8
  %s17 = sld [smem:[%s16]]
  %s18 = scalar_lea.smem %s0, 9
  %s19 = sld [smem:[%s18]]
  %s20 = scalar_lea.smem %s0, 10
  %s21 = sld [smem:[%s20]]
  %s22 = scalar_lea.smem %s0, 11
  %s23 = sld [smem:[%s22]]
  %s24 = scalar_lea.smem %s0, 12
  %s25 = sld [smem:[%s24]]
  %s26 = scalar_lea.smem %s0, 13
  %s27 = sld [smem:[%s26]]
  %s28 = scalar_lea.smem %s0, 14
  %s29 = sld [smem:[%s28]]
  %s30 = scalar_lea.smem %s0, 15
  %s31 = sld [smem:[%s30]]
  %s32 = scalar_lea.smem %s0, 16
  %s33 = sld [smem:[%s32]]
  %s34 = scalar_lea.smem %s0, 17
  %s35 = sld [smem:[%s34]]
  %s36 = scalar_lea.smem %s0, 18
  %s37 = sld [smem:[%s36]]
  %s38 = scalar_lea.smem %s0, 19
  %s39 = sld [smem:[%s38]]
  %s40 = scalar_lea.smem %s0, 20
  %s41 = sld [smem:[%s40]]
  %s42 = scalar_lea.smem %s0, 21
  %s43 = sld [smem:[%s42]]
  %s44 = scalar_lea.smem %s0, 22
  %s45 = sld [smem:[%s44]]
  %s46 = scalar_lea.smem %s0, 23
  %s47 = sld [smem:[%s46]]
  %s48 = scalar_lea.smem %s0, 24
  %s49 = sld [smem:[%s48]]
  %s50 = scalar_lea.smem %s0, 25
  %s51 = sld [smem:[%s50]]
  %s52 = scalar_lea.smem %s0, 26
  %s53 = sld [smem:[%s52]]
  %s54 = scalar_lea.smem %s0, 27
  %s55 = sld [smem:[%s54]]
  %s56 = scalar_lea.smem %s0, 28
  %s57 = sld [smem:[%s56]]
  %s58 = scalar_lea.smem %s0, 29
  %s59 = sld [smem:[%s58]]
  %s60 = scalar_lea.smem %s0, 30
  %s61 = sld [smem:[%s60]]
  %s62 = scalar_lea.smem %s0, 31
  %s63 = sld [smem:[%s62]]
  %s64 = scalar_lea.smem %s0, 32
  %s65 = sld [smem:[%s64]]
  %s66 = scalar_lea.smem %s0, 33
  %s67 = sld [smem:[%s66]]
  %s68 = scalar_lea.smem %s0, 34
  %s69 = sld [smem:[%s68]]
  %s70 = sld [smem:[#allocation0]]
  $region169: #{logollm_forward.1} parent=0
    _
  %s72 = ssub.s32 1, %s70
  %s73 = scalar_select 0, %s72, %s70
  loop: start=0, step=1, limit=10
  $region2: #{logollm_forward.1} parent=0 // loop_pre_header
    _
  $region3: #{logollm_forward.1} parent=0 // loop_header
    %s75 = sphi 0, %s79
    %p76 = scmp.ge.s32.totalorder %s75, 10
    %s85 = sphi 0, %s87
    %s88 = sphi 0, %s85
    %s89 = sphi 0, %s88
    %s105 = sphi 0, %s89
    %s109 = sphi 0, %s109
    %s111 = sphi 0, %s109
    %s112 = sphi 0, %s111
    %s126 = sphi 0, %s112
    %s130 = sphi 0, %s130
    %s132 = sphi 0, %s130
    %s133 = sphi 0, %s132
    %s147 = sphi 0, %s133
    %s151 = sphi 0, %s151
    %s153 = sphi 0, %s151
    %s154 = sphi 0, %s153
    %s168 = sphi 0, %s154
    %s172 = sphi 0, %s172
    %s174 = sphi 0, %s172
    %s175 = sphi 0, %s174
    %s189 = sphi 0, %s175
    %s193 = sphi 0, %s193
    %s195 = sphi 0, %s193
    %s196 = sphi 0, %s195
    %s210 = sphi 0, %s196
    %s214 = sphi 0, %s214
    %s216 = sphi 0, %s214
    %s217 = sphi 0, %s216
    %s231 = sphi 0, %s217
    %s235 = sphi 0, %s235
    %s237 = sphi 0, %s235
    %s238 = sphi 0, %s237
    %s252 = sphi 0, %s238
    %s256 = sphi 0, %s256
    %s258 = sphi 0, %s256
    %s259 = sphi 0, %s258
    %s273 = sphi 0, %s259
    %s277 = sphi 0, %s277
    %s279 = sphi 0, %s277
    %s280 = sphi 0, %s279
    %s294 = sphi 0, %s280
    %s298 = sphi 0, %s298
    %s300 = sphi 0, %s298
    %s301 = sphi 0, %s300
    %s315 = sphi 0, %s301
    %s319 = sphi 0, %s319
    %s321 = sphi 0, %s319
    %s322 = sphi 0, %s321
    %s336 = sphi 0, %s322
    %s340 = sphi 0, %s340
    %s342 = sphi 0, %s340
    %s343 = sphi 0, %s342
    %s357 = sphi 0, %s343
    %s361 = sphi 0, %s361
    %s363 = sphi 0, %s361
    %s364 = sphi 0, %s363
    %s378 = sphi 0, %s364
    %s382 = sphi 0, %s382
    %s384 = sphi 0, %s382
    %s385 = sphi 0, %s384
    %s399 = sphi 0, %s385
    %s403 = sphi 0, %s403
    %s405 = sphi 0, %s403
    %s406 = sphi 0, %s405
    %s420 = sphi 0, %s406
    %s424 = sphi 0, %s424
    %s426 = sphi 0, %s424
    %s427 = sphi 0, %s426
    %s441 = sphi 0, %s427
    %s445 = sphi 0, %s445
    %s447 = sphi 0, %s445
    %s448 = sphi 0, %s447
    %s462 = sphi 0, %s448
    %s466 = sphi 0, %s466
    %s468 = sphi 0, %s466
    %s469 = sphi 0, %s468
    %s483 = sphi 0, %s469
    %s487 = sphi 0, %s487
    %s489 = sphi 0, %s487
    %s490 = sphi 0, %s489
    %s504 = sphi 0, %s490
    %s508 = sphi 0, %s508
    %s510 = sphi 0, %s508
    %s511 = sphi 0, %s510
    %s525 = sphi 0, %s511
    %s529 = sphi 0, %s529
    %s531 = sphi 0, %s529
    %s532 = sphi 0, %s531
    %s546 = sphi 0, %s532
    %s550 = sphi 0, %s550
    %s552 = sphi 0, %s550
    %s553 = sphi 0, %s552
    %s567 = sphi 0, %s553
    %s571 = sphi 0, %s571
    %s573 = sphi 0, %s571
    %s574 = sphi 0, %s573
    %s588 = sphi 0, %s574
    %s592 = sphi 0, %s592
    %s594 = sphi 0, %s592
    %s595 = sphi 0, %s594
    %s609 = sphi 0, %s595
    %s613 = sphi 0, %s613
    %s615 = sphi 0, %s613
    %s616 = sphi 0, %s615
    %s630 = sphi 0, %s616
    %s634 = sphi 0, %s634
    %s636 = sphi 0, %s634
    %s637 = sphi 0, %s636
    %s651 = sphi 0, %s637
    %s655 = sphi 0, %s655
    %s657 = sphi 0, %s655
    %s658 = sphi 0, %s657
    %s672 = sphi 0, %s658
    %s676 = sphi 0, %s676
    %s678 = sphi 0, %s676
    %s679 = sphi 0, %s678
    %s693 = sphi 0, %s679
    %s697 = sphi 0, %s697
    %s699 = sphi 0, %s697
    %s700 = sphi 0, %s699
    %s714 = sphi 0, %s700
    %s718 = sphi 0, %s718
    %s720 = sphi 0, %s718
    %s721 = sphi 0, %s720
    %s735 = sphi 0, %s721
    %s739 = sphi 0, %s739
    %s741 = sphi 0, %s739
    %s742 = sphi 0, %s741
    %s756 = sphi 0, %s742
    %s760 = sphi 0, %s760
    %s762 = sphi 0, %s760
    %s763 = sphi 0, %s762
    %s777 = sphi 0, %s763
    %s781 = sphi 0, %s781
    %s783 = sphi 0, %s781
    %s784 = sphi 0, %s783
    %s798 = sphi 0, %s784
    %s804 = sphi 0, %s806
    %s807 = sphi 0, %s804
    %s808 = sphi 0, %s807
    %s824 = sphi 0, %s808
  $region4: #{logollm_forward.1} parent=0 // loop_header_branch
    %78 = sbr.rel (%p76) target = $region8
  $region5: #{logollm_forward.1} parent=0 // loop_body
    %s80 = ssub.s32 %s75, 1
    %s81 = ssub.s32 %s75, 2
    %s82 = sadd.s32 %s75, 1
    %s83 = ssub.s32 %s75, %s82
    %p84 = scmp.eq.s32.totalorder %s83, 0
    %s86 = sadd.s32 %s85, 1
    %s87 = scalar_select %p84, %s85, %s86
    %p90 = pneg %p84
    %p91 = scmp.eq.s32.totalorder %s75, 7
    %p92 = por %p90, %p91
    %p93 = scmp.ne.s32.totalorder %s85, %s88
    %p94 = scmp.eq.s32.totalorder %s75, 0
    %p95 = por %p93, %p94
    %p96 = scmp.ne.s32.totalorder %s85, %s88
    %p97 = scmp.eq.s32.totalorder %s80, 7
    %p98 = por %p96, %p97
    %p99 = scmp.ne.s32.totalorder %s88, %s89
    %p100 = scmp.eq.s32.totalorder %s80, 0
    %p101 = por %p99, %p100
    %p102 = scmp.ne.s32.totalorder %s88, %s89
    %p103 = scmp.eq.s32.totalorder %s81, 7
    %p104 = por %p102, %p103
    %p106 = scmp.ne.s32.totalorder %s89, %s105
    %p107 = scmp.eq.s32.totalorder %s81, 0
    %p108 = por %p106, %p107
    %s110 = sadd.s32 %s109, 1
    %p113 = scmp.eq.s32.totalorder %s75, 7
    %p114 = scmp.ne.s32.totalorder %s109, %s111
    %p115 = scmp.eq.s32.totalorder %s75, 0
    %p116 = por %p114, %p115
    %p117 = scmp.ne.s32.totalorder %s109, %s111
    %p118 = scmp.eq.s32.totalorder %s80, 7
    %p119 = por %p117, %p118
    %p120 = scmp.ne.s32.totalorder %s111, %s112
    %p121 = scmp.eq.s32.totalorder %s80, 0
    %p122 = por %p120, %p121
    %p123 = scmp.ne.s32.totalorder %s111, %s112
    %p124 = scmp.eq.s32.totalorder %s81, 7
    %p125 = por %p123, %p124
    %p127 = scmp.ne.s32.totalorder %s112, %s126
    %p128 = scmp.eq.s32.totalorder %s81, 0
    %p129 = por %p127, %p128
    %s131 = sadd.s32 %s130, 1
    %p134 = scmp.eq.s32.totalorder %s75, 7
    %p135 = scmp.ne.s32.totalorder %s130, %s132
    %p136 = scmp.eq.s32.totalorder %s75, 0
    %p137 = por %p135, %p136
    %p138 = scmp.ne.s32.totalorder %s130, %s132
    %p139 = scmp.eq.s32.totalorder %s80, 7
    %p140 = por %p138, %p139
    %p141 = scmp.ne.s32.totalorder %s132, %s133
    %p142 = scmp.eq.s32.totalorder %s80, 0
    %p143 = por %p141, %p142
    %p144 = scmp.ne.s32.totalorder %s132, %s133
    %p145 = scmp.eq.s32.totalorder %s81, 7
    %p146 = por %p144, %p145
    %p148 = scmp.ne.s32.totalorder %s133, %s147
    %p149 = scmp.eq.s32.totalorder %s81, 0
    %p150 = por %p148, %p149
    %s152 = sadd.s32 %s151, 1
    %p155 = scmp.eq.s32.totalorder %s75, 7
    %p156 = scmp.ne.s32.totalorder %s151, %s153
    %p157 = scmp.eq.s32.totalorder %s75, 0
    %p158 = por %p156, %p157
    %p159 = scmp.ne.s32.totalorder %s151, %s153
    %p160 = scmp.eq.s32.totalorder %s80, 7
    %p161 = por %p159, %p160
    %p162 = scmp.ne.s32.totalorder %s153, %s154
    %p163 = scmp.eq.s32.totalorder %s80, 0
    %p164 = por %p162, %p163
    %p165 = scmp.ne.s32.totalorder %s153, %s154
    %p166 = scmp.eq.s32.totalorder %s81, 7
    %p167 = por %p165, %p166
    %p169 = scmp.ne.s32.totalorder %s154, %s168
    %p170 = scmp.eq.s32.totalorder %s81, 0
    %p171 = por %p169, %p170
    %s173 = sadd.s32 %s172, 1
    %p176 = scmp.eq.s32.totalorder %s75, 7
    %p177 = scmp.ne.s32.totalorder %s172, %s174
    %p178 = scmp.eq.s32.totalorder %s75, 0
    %p179 = por %p177, %p178
    %p180 = scmp.ne.s32.totalorder %s172, %s174
    %p181 = scmp.eq.s32.totalorder %s80, 7
    %p182 = por %p180, %p181
    %p183 = scmp.ne.s32.totalorder %s174, %s175
    %p184 = scmp.eq.s32.totalorder %s80, 0
    %p185 = por %p183, %p184
    %p186 = scmp.ne.s32.totalorder %s174, %s175
    %p187 = scmp.eq.s32.totalorder %s81, 7
    %p188 = por %p186, %p187
    %p190 = scmp.ne.s32.totalorder %s175, %s189
    %p191 = scmp.eq.s32.totalorder %s81, 0
    %p192 = por %p190, %p191
    %s194 = sadd.s32 %s193, 1
    %p197 = scmp.eq.s32.totalorder %s75, 7
    %p198 = scmp.ne.s32.totalorder %s193, %s195
    %p199 = scmp.eq.s32.totalorder %s75, 0
    %p200 = por %p198, %p199
    %p201 = scmp.ne.s32.totalorder %s193, %s195
    %p202 = scmp.eq.s32.totalorder %s80, 7
    %p203 = por %p201, %p202
    %p204 = scmp.ne.s32.totalorder %s195, %s196
    %p205 = scmp.eq.s32.totalorder %s80, 0
    %p206 = por %p204, %p205
    %p207 = scmp.ne.s32.totalorder %s195, %s196
    %p208 = scmp.eq.s32.totalorder %s81, 7
    %p209 = por %p207, %p208
    %p211 = scmp.ne.s32.totalorder %s196, %s210
    %p212 = scmp.eq.s32.totalorder %s81, 0
    %p213 = por %p211, %p212
    %s215 = sadd.s32 %s214, 1
    %p218 = scmp.eq.s32.totalorder %s75, 7
    %p219 = scmp.ne.s32.totalorder %s214, %s216
    %p220 = scmp.eq.s32.totalorder %s75, 0
    %p221 = por %p219, %p220
    %p222 = scmp.ne.s32.totalorder %s214, %s216
    %p223 = scmp.eq.s32.totalorder %s80, 7
    %p224 = por %p222, %p223
    %p225 = scmp.ne.s32.totalorder %s216, %s217
    %p226 = scmp.eq.s32.totalorder %s80, 0
    %p227 = por %p225, %p226
    %p228 = scmp.ne.s32.totalorder %s216, %s217
    %p229 = scmp.eq.s32.totalorder %s81, 7
    %p230 = por %p228, %p229
    %p232 = scmp.ne.s32.totalorder %s217, %s231
    %p233 = scmp.eq.s32.totalorder %s81, 0
    %p234 = por %p232, %p233
    %s236 = sadd.s32 %s235, 1
    %p239 = scmp.eq.s32.totalorder %s75, 7
    %p240 = scmp.ne.s32.totalorder %s235, %s237
    %p241 = scmp.eq.s32.totalorder %s75, 0
    %p242 = por %p240, %p241
    %p243 = scmp.ne.s32.totalorder %s235, %s237
    %p244 = scmp.eq.s32.totalorder %s80, 7
    %p245 = por %p243, %p244
    %p246 = scmp.ne.s32.totalorder %s237, %s238
    %p247 = scmp.eq.s32.totalorder %s80, 0
    %p248 = por %p246, %p247
    %p249 = scmp.ne.s32.totalorder %s237, %s238
    %p250 = scmp.eq.s32.totalorder %s81, 7
    %p251 = por %p249, %p250
    %p253 = scmp.ne.s32.totalorder %s238, %s252
    %p254 = scmp.eq.s32.totalorder %s81, 0
    %p255 = por %p253, %p254
    %s257 = sadd.s32 %s256, 1
    %p260 = scmp.eq.s32.totalorder %s75, 7
    %p261 = scmp.ne.s32.totalorder %s256, %s258
    %p262 = scmp.eq.s32.totalorder %s75, 0
    %p263 = por %p261, %p262
    %p264 = scmp.ne.s32.totalorder %s256, %s258
    %p265 = scmp.eq.s32.totalorder %s80, 7
    %p266 = por %p264, %p265
    %p267 = scmp.ne.s32.totalorder %s258, %s259
    %p268 = scmp.eq.s32.totalorder %s80, 0
    %p269 = por %p267, %p268
    %p270 = scmp.ne.s32.totalorder %s258, %s259
    %p271 = scmp.eq.s32.totalorder %s81, 7
    %p272 = por %p270, %p271
    %p274 = scmp.ne.s32.totalorder %s259, %s273
    %p275 = scmp.eq.s32.totalorder %s81, 0
    %p276 = por %p274, %p275
    %s278 = sadd.s32 %s277, 1
    %p281 = scmp.eq.s32.totalorder %s75, 7
    %p282 = scmp.ne.s32.totalorder %s277, %s279
    %p283 = scmp.eq.s32.totalorder %s75, 0
    %p284 = por %p282, %p283
    %p285 = scmp.ne.s32.totalorder %s277, %s279
    %p286 = scmp.eq.s32.totalorder %s80, 7
    %p287 = por %p285, %p286
    %p288 = scmp.ne.s32.totalorder %s279, %s280
    %p289 = scmp.eq.s32.totalorder %s80, 0
    %p290 = por %p288, %p289
    %p291 = scmp.ne.s32.totalorder %s279, %s280
    %p292 = scmp.eq.s32.totalorder %s81, 7
    %p293 = por %p291, %p292
    %p295 = scmp.ne.s32.totalorder %s280, %s294
    %p296 = scmp.eq.s32.totalorder %s81, 0
    %p297 = por %p295, %p296
    %s299 = sadd.s32 %s298, 1
    %p302 = scmp.eq.s32.totalorder %s75, 7
    %p303 = scmp.ne.s32.totalorder %s298, %s300
    %p304 = scmp.eq.s32.totalorder %s75, 0
    %p305 = por %p303, %p304
    %p306 = scmp.ne.s32.totalorder %s298, %s300
    %p307 = scmp.eq.s32.totalorder %s80, 7
    %p308 = por %p306, %p307
    %p309 = scmp.ne.s32.totalorder %s300, %s301
    %p310 = scmp.eq.s32.totalorder %s80, 0
    %p311 = por %p309, %p310
    %p312 = scmp.ne.s32.totalorder %s300, %s301
    %p313 = scmp.eq.s32.totalorder %s81, 7
    %p314 = por %p312, %p313
    %p316 = scmp.ne.s32.totalorder %s301, %s315
    %p317 = scmp.eq.s32.totalorder %s81, 0
    %p318 = por %p316, %p317
    %s320 = sadd.s32 %s319, 1
    %p323 = scmp.eq.s32.totalorder %s75, 7
    %p324 = scmp.ne.s32.totalorder %s319, %s321
    %p325 = scmp.eq.s32.totalorder %s75, 0
    %p326 = por %p324, %p325
    %p327 = scmp.ne.s32.totalorder %s319, %s321
    %p328 = scmp.eq.s32.totalorder %s80, 7
    %p329 = por %p327, %p328
    %p330 = scmp.ne.s32.totalorder %s321, %s322
    %p331 = scmp.eq.s32.totalorder %s80, 0
    %p332 = por %p330, %p331
    %p333 = scmp.ne.s32.totalorder %s321, %s322
    %p334 = scmp.eq.s32.totalorder %s81, 7
    %p335 = por %p333, %p334
    %p337 = scmp.ne.s32.totalorder %s322, %s336
    %p338 = scmp.eq.s32.totalorder %s81, 0
    %p339 = por %p337, %p338
    %s341 = sadd.s32 %s340, 1
    %p344 = scmp.eq.s32.totalorder %s75, 7
    %p345 = scmp.ne.s32.totalorder %s340, %s342
    %p346 = scmp.eq.s32.totalorder %s75, 0
    %p347 = por %p345, %p346
    %p348 = scmp.ne.s32.totalorder %s340, %s342
    %p349 = scmp.eq.s32.totalorder %s80, 7
    %p350 = por %p348, %p349
    %p351 = scmp.ne.s32.totalorder %s342, %s343
    %p352 = scmp.eq.s32.totalorder %s80, 0
    %p353 = por %p351, %p352
    %p354 = scmp.ne.s32.totalorder %s342, %s343
    %p355 = scmp.eq.s32.totalorder %s81, 7
    %p356 = por %p354, %p355
    %p358 = scmp.ne.s32.totalorder %s343, %s357
    %p359 = scmp.eq.s32.totalorder %s81, 0
    %p360 = por %p358, %p359
    %s362 = sadd.s32 %s361, 1
    %p365 = scmp.eq.s32.totalorder %s75, 7
    %p366 = scmp.ne.s32.totalorder %s361, %s363
    %p367 = scmp.eq.s32.totalorder %s75, 0
    %p368 = por %p366, %p367
    %p369 = scmp.ne.s32.totalorder %s361, %s363
    %p370 = scmp.eq.s32.totalorder %s80, 7
    %p371 = por %p369, %p370
    %p372 = scmp.ne.s32.totalorder %s363, %s364
    %p373 = scmp.eq.s32.totalorder %s80, 0
    %p374 = por %p372, %p373
    %p375 = scmp.ne.s32.totalorder %s363, %s364
    %p376 = scmp.eq.s32.totalorder %s81, 7
    %p377 = por %p375, %p376
    %p379 = scmp.ne.s32.totalorder %s364, %s378
    %p380 = scmp.eq.s32.totalorder %s81, 0
    %p381 = por %p379, %p380
    %s383 = sadd.s32 %s382, 1
    %p386 = scmp.eq.s32.totalorder %s75, 7
    %p387 = scmp.ne.s32.totalorder %s382, %s384
    %p388 = scmp.eq.s32.totalorder %s75, 0
    %p389 = por %p387, %p388
    %p390 = scmp.ne.s32.totalorder %s382, %s384
    %p391 = scmp.eq.s32.totalorder %s80, 7
    %p392 = por %p390, %p391
    %p393 = scmp.ne.s32.totalorder %s384, %s385
    %p394 = scmp.eq.s32.totalorder %s80, 0
    %p395 = por %p393, %p394
    %p396 = scmp.ne.s32.totalorder %s384, %s385
    %p397 = scmp.eq.s32.totalorder %s81, 7
    %p398 = por %p396, %p397
    %p400 = scmp.ne.s32.totalorder %s385, %s399
    %p401 = scmp.eq.s32.totalorder %s81, 0
    %p402 = por %p400, %p401
    %s404 = sadd.s32 %s403, 1
    %p407 = scmp.eq.s32.totalorder %s75, 7
    %p408 = scmp.ne.s32.totalorder %s403, %s405
    %p409 = scmp.eq.s32.totalorder %s75, 0
    %p410 = por %p408, %p409
    %p411 = scmp.ne.s32.totalorder %s403, %s405
    %p412 = scmp.eq.s32.totalorder %s80, 7
    %p413 = por %p411, %p412
    %p414 = scmp.ne.s32.totalorder %s405, %s406
    %p415 = scmp.eq.s32.totalorder %s80, 0
    %p416 = por %p414, %p415
    %p417 = scmp.ne.s32.totalorder %s405, %s406
    %p418 = scmp.eq.s32.totalorder %s81, 7
    %p419 = por %p417, %p418
    %p421 = scmp.ne.s32.totalorder %s406, %s420
    %p422 = scmp.eq.s32.totalorder %s81, 0
    %p423 = por %p421, %p422
    %s425 = sadd.s32 %s424, 1
    %p428 = scmp.eq.s32.totalorder %s75, 7
    %p429 = scmp.ne.s32.totalorder %s424, %s426
    %p430 = scmp.eq.s32.totalorder %s75, 0
    %p431 = por %p429, %p430
    %p432 = scmp.ne.s32.totalorder %s424, %s426
    %p433 = scmp.eq.s32.totalorder %s80, 7
    %p434 = por %p432, %p433
    %p435 = scmp.ne.s32.totalorder %s426, %s427
    %p436 = scmp.eq.s32.totalorder %s80, 0
    %p437 = por %p435, %p436
    %p438 = scmp.ne.s32.totalorder %s426, %s427
    %p439 = scmp.eq.s32.totalorder %s81, 7
    %p440 = por %p438, %p439
    %p442 = scmp.ne.s32.totalorder %s427, %s441
    %p443 = scmp.eq.s32.totalorder %s81, 0
    %p444 = por %p442, %p443
    %s446 = sadd.s32 %s445, 1
    %p449 = scmp.eq.s32.totalorder %s75, 7
    %p450 = scmp.ne.s32.totalorder %s445, %s447
    %p451 = scmp.eq.s32.totalorder %s75, 0
    %p452 = por %p450, %p451
    %p453 = scmp.ne.s32.totalorder %s445, %s447
    %p454 = scmp.eq.s32.totalorder %s80, 7
    %p455 = por %p453, %p454
    %p456 = scmp.ne.s32.totalorder %s447, %s448
    %p457 = scmp.eq.s32.totalorder %s80, 0
    %p458 = por %p456, %p457
    %p459 = scmp.ne.s32.totalorder %s447, %s448
    %p460 = scmp.eq.s32.totalorder %s81, 7
    %p461 = por %p459, %p460
    %p463 = scmp.ne.s32.totalorder %s448, %s462
    %p464 = scmp.eq.s32.totalorder %s81, 0
    %p465 = por %p463, %p464
    %s467 = sadd.s32 %s466, 1
    %p470 = scmp.eq.s32.totalorder %s75, 7
    %p471 = scmp.ne.s32.totalorder %s466, %s468
    %p472 = scmp.eq.s32.totalorder %s75, 0
    %p473 = por %p471, %p472
    %p474 = scmp.ne.s32.totalorder %s466, %s468
    %p475 = scmp.eq.s32.totalorder %s80, 7
    %p476 = por %p474, %p475
    %p477 = scmp.ne.s32.totalorder %s468, %s469
    %p478 = scmp.eq.s32.totalorder %s80, 0
    %p479 = por %p477, %p478
    %p480 = scmp.ne.s32.totalorder %s468, %s469
    %p481 = scmp.eq.s32.totalorder %s81, 7
    %p482 = por %p480, %p481
    %p484 = scmp.ne.s32.totalorder %s469, %s483
    %p485 = scmp.eq.s32.totalorder %s81, 0
    %p486 = por %p484, %p485
    %s488 = sadd.s32 %s487, 1
    %p491 = scmp.eq.s32.totalorder %s75, 7
    %p492 = scmp.ne.s32.totalorder %s487, %s489
    %p493 = scmp.eq.s32.totalorder %s75, 0
    %p494 = por %p492, %p493
    %p495 = scmp.ne.s32.totalorder %s487, %s489
    %p496 = scmp.eq.s32.totalorder %s80, 7
    %p497 = por %p495, %p496
    %p498 = scmp.ne.s32.totalorder %s489, %s490
    %p499 = scmp.eq.s32.totalorder %s80, 0
    %p500 = por %p498, %p499
    %p501 = scmp.ne.s32.totalorder %s489, %s490
    %p502 = scmp.eq.s32.totalorder %s81, 7
    %p503 = por %p501, %p502
    %p505 = scmp.ne.s32.totalorder %s490, %s504
    %p506 = scmp.eq.s32.totalorder %s81, 0
    %p507 = por %p505, %p506
    %s509 = sadd.s32 %s508, 1
    %p512 = scmp.eq.s32.totalorder %s75, 7
    %p513 = scmp.ne.s32.totalorder %s508, %s510
    %p514 = scmp.eq.s32.totalorder %s75, 0
    %p515 = por %p513, %p514
    %p516 = scmp.ne.s32.totalorder %s508, %s510
    %p517 = scmp.eq.s32.totalorder %s80, 7
    %p518 = por %p516, %p517
    %p519 = scmp.ne.s32.totalorder %s510, %s511
    %p520 = scmp.eq.s32.totalorder %s80, 0
    %p521 = por %p519, %p520
    %p522 = scmp.ne.s32.totalorder %s510, %s511
    %p523 = scmp.eq.s32.totalorder %s81, 7
    %p524 = por %p522, %p523
    %p526 = scmp.ne.s32.totalorder %s511, %s525
    %p527 = scmp.eq.s32.totalorder %s81, 0
    %p528 = por %p526, %p527
    %s530 = sadd.s32 %s529, 1
    %p533 = scmp.eq.s32.totalorder %s75, 7
    %p534 = scmp.ne.s32.totalorder %s529, %s531
    %p535 = scmp.eq.s32.totalorder %s75, 0
    %p536 = por %p534, %p535
    %p537 = scmp.ne.s32.totalorder %s529, %s531
    %p538 = scmp.eq.s32.totalorder %s80, 7
    %p539 = por %p537, %p538
    %p540 = scmp.ne.s32.totalorder %s531, %s532
    %p541 = scmp.eq.s32.totalorder %s80, 0
    %p542 = por %p540, %p541
    %p543 = scmp.ne.s32.totalorder %s531, %s532
    %p544 = scmp.eq.s32.totalorder %s81, 7
    %p545 = por %p543, %p544
    %p547 = scmp.ne.s32.totalorder %s532, %s546
    %p548 = scmp.eq.s32.totalorder %s81, 0
    %p549 = por %p547, %p548
    %s551 = sadd.s32 %s550, 1
    %p554 = scmp.eq.s32.totalorder %s75, 7
    %p555 = scmp.ne.s32.totalorder %s550, %s552
    %p556 = scmp.eq.s32.totalorder %s75, 0
    %p557 = por %p555, %p556
    %p558 = scmp.ne.s32.totalorder %s550, %s552
    %p559 = scmp.eq.s32.totalorder %s80, 7
    %p560 = por %p558, %p559
    %p561 = scmp.ne.s32.totalorder %s552, %s553
    %p562 = scmp.eq.s32.totalorder %s80, 0
    %p563 = por %p561, %p562
    %p564 = scmp.ne.s32.totalorder %s552, %s553
    %p565 = scmp.eq.s32.totalorder %s81, 7
    %p566 = por %p564, %p565
    %p568 = scmp.ne.s32.totalorder %s553, %s567
    %p569 = scmp.eq.s32.totalorder %s81, 0
    %p570 = por %p568, %p569
    %s572 = sadd.s32 %s571, 1
    %p575 = scmp.eq.s32.totalorder %s75, 7
    %p576 = scmp.ne.s32.totalorder %s571, %s573
    %p577 = scmp.eq.s32.totalorder %s75, 0
    %p578 = por %p576, %p577
    %p579 = scmp.ne.s32.totalorder %s571, %s573
    %p580 = scmp.eq.s32.totalorder %s80, 7
    %p581 = por %p579, %p580
    %p582 = scmp.ne.s32.totalorder %s573, %s574
    %p583 = scmp.eq.s32.totalorder %s80, 0
    %p584 = por %p582, %p583
    %p585 = scmp.ne.s32.totalorder %s573, %s574
    %p586 = scmp.eq.s32.totalorder %s81, 7
    %p587 = por %p585, %p586
    %p589 = scmp.ne.s32.totalorder %s574, %s588
    %p590 = scmp.eq.s32.totalorder %s81, 0
    %p591 = por %p589, %p590
    %s593 = sadd.s32 %s592, 1
    %p596 = scmp.eq.s32.totalorder %s75, 7
    %p597 = scmp.ne.s32.totalorder %s592, %s594
    %p598 = scmp.eq.s32.totalorder %s75, 0
    %p599 = por %p597, %p598
    %p600 = scmp.ne.s32.totalorder %s592, %s594
    %p601 = scmp.eq.s32.totalorder %s80, 7
    %p602 = por %p600, %p601
    %p603 = scmp.ne.s32.totalorder %s594, %s595
    %p604 = scmp.eq.s32.totalorder %s80, 0
    %p605 = por %p603, %p604
    %p606 = scmp.ne.s32.totalorder %s594, %s595
    %p607 = scmp.eq.s32.totalorder %s81, 7
    %p608 = por %p606, %p607
    %p610 = scmp.ne.s32.totalorder %s595, %s609
    %p611 = scmp.eq.s32.totalorder %s81, 0
    %p612 = por %p610, %p611
    %s614 = sadd.s32 %s613, 1
    %p617 = scmp.eq.s32.totalorder %s75, 7
    %p618 = scmp.ne.s32.totalorder %s613, %s615
    %p619 = scmp.eq.s32.totalorder %s75, 0
    %p620 = por %p618, %p619
    %p621 = scmp.ne.s32.totalorder %s613, %s615
    %p622 = scmp.eq.s32.totalorder %s80, 7
    %p623 = por %p621, %p622
    %p624 = scmp.ne.s32.totalorder %s615, %s616
    %p625 = scmp.eq.s32.totalorder %s80, 0
    %p626 = por %p624, %p625
    %p627 = scmp.ne.s32.totalorder %s615, %s616
    %p628 = scmp.eq.s32.totalorder %s81, 7
    %p629 = por %p627, %p628
    %p631 = scmp.ne.s32.totalorder %s616, %s630
    %p632 = scmp.eq.s32.totalorder %s81, 0
    %p633 = por %p631, %p632
    %s635 = sadd.s32 %s634, 1
    %p638 = scmp.eq.s32.totalorder %s75, 7
    %p639 = scmp.ne.s32.totalorder %s634, %s636
    %p640 = scmp.eq.s32.totalorder %s75, 0
    %p641 = por %p639, %p640
    %p642 = scmp.ne.s32.totalorder %s634, %s636
    %p643 = scmp.eq.s32.totalorder %s80, 7
    %p644 = por %p642, %p643
    %p645 = scmp.ne.s32.totalorder %s636, %s637
    %p646 = scmp.eq.s32.totalorder %s80, 0
    %p647 = por %p645, %p646
    %p648 = scmp.ne.s32.totalorder %s636, %s637
    %p649 = scmp.eq.s32.totalorder %s81, 7
    %p650 = por %p648, %p649
    %p652 = scmp.ne.s32.totalorder %s637, %s651
    %p653 = scmp.eq.s32.totalorder %s81, 0
    %p654 = por %p652, %p653
    %s656 = sadd.s32 %s655, 1
    %p659 = scmp.eq.s32.totalorder %s75, 7
    %p660 = scmp.ne.s32.totalorder %s655, %s657
    %p661 = scmp.eq.s32.totalorder %s75, 0
    %p662 = por %p660, %p661
    %p663 = scmp.ne.s32.totalorder %s655, %s657
    %p664 = scmp.eq.s32.totalorder %s80, 7
    %p665 = por %p663, %p664
    %p666 = scmp.ne.s32.totalorder %s657, %s658
    %p667 = scmp.eq.s32.totalorder %s80, 0
    %p668 = por %p666, %p667
    %p669 = scmp.ne.s32.totalorder %s657, %s658
    %p670 = scmp.eq.s32.totalorder %s81, 7
    %p671 = por %p669, %p670
    %p673 = scmp.ne.s32.totalorder %s658, %s672
    %p674 = scmp.eq.s32.totalorder %s81, 0
    %p675 = por %p673, %p674
    %s677 = sadd.s32 %s676, 1
    %p680 = scmp.eq.s32.totalorder %s75, 7
    %p681 = scmp.ne.s32.totalorder %s676, %s678
    %p682 = scmp.eq.s32.totalorder %s75, 0
    %p683 = por %p681, %p682
    %p684 = scmp.ne.s32.totalorder %s676, %s678
    %p685 = scmp.eq.s32.totalorder %s80, 7
    %p686 = por %p684, %p685
    %p687 = scmp.ne.s32.totalorder %s678, %s679
    %p688 = scmp.eq.s32.totalorder %s80, 0
    %p689 = por %p687, %p688
    %p690 = scmp.ne.s32.totalorder %s678, %s679
    %p691 = scmp.eq.s32.totalorder %s81, 7
    %p692 = por %p690, %p691
    %p694 = scmp.ne.s32.totalorder %s679, %s693
    %p695 = scmp.eq.s32.totalorder %s81, 0
    %p696 = por %p694, %p695
    %s698 = sadd.s32 %s697, 1
    %p701 = scmp.eq.s32.totalorder %s75, 7
    %p702 = scmp.ne.s32.totalorder %s697, %s699
    %p703 = scmp.eq.s32.totalorder %s75, 0
    %p704 = por %p702, %p703
    %p705 = scmp.ne.s32.totalorder %s697, %s699
    %p706 = scmp.eq.s32.totalorder %s80, 7
    %p707 = por %p705, %p706
    %p708 = scmp.ne.s32.totalorder %s699, %s700
    %p709 = scmp.eq.s32.totalorder %s80, 0
    %p710 = por %p708, %p709
    %p711 = scmp.ne.s32.totalorder %s699, %s700
    %p712 = scmp.eq.s32.totalorder %s81, 7
    %p713 = por %p711, %p712
    %p715 = scmp.ne.s32.totalorder %s700, %s714
    %p716 = scmp.eq.s32.totalorder %s81, 0
    %p717 = por %p715, %p716
    %s719 = sadd.s32 %s718, 1
    %p722 = scmp.eq.s32.totalorder %s75, 7
    %p723 = scmp.ne.s32.totalorder %s718, %s720
    %p724 = scmp.eq.s32.totalorder %s75, 0
    %p725 = por %p723, %p724
    %p726 = scmp.ne.s32.totalorder %s718, %s720
    %p727 = scmp.eq.s32.totalorder %s80, 7
    %p728 = por %p726, %p727
    %p729 = scmp.ne.s32.totalorder %s720, %s721
    %p730 = scmp.eq.s32.totalorder %s80, 0
    %p731 = por %p729, %p730
    %p732 = scmp.ne.s32.totalorder %s720, %s721
    %p733 = scmp.eq.s32.totalorder %s81, 7
    %p734 = por %p732, %p733
    %p736 = scmp.ne.s32.totalorder %s721, %s735
    %p737 = scmp.eq.s32.totalorder %s81, 0
    %p738 = por %p736, %p737
    %s740 = sadd.s32 %s739, 1
    %p743 = scmp.eq.s32.totalorder %s75, 7
    %p744 = scmp.ne.s32.totalorder %s739, %s741
    %p745 = scmp.eq.s32.totalorder %s75, 0
    %p746 = por %p744, %p745
    %p747 = scmp.ne.s32.totalorder %s739, %s741
    %p748 = scmp.eq.s32.totalorder %s80, 7
    %p749 = por %p747, %p748
    %p750 = scmp.ne.s32.totalorder %s741, %s742
    %p751 = scmp.eq.s32.totalorder %s80, 0
    %p752 = por %p750, %p751
    %p753 = scmp.ne.s32.totalorder %s741, %s742
    %p754 = scmp.eq.s32.totalorder %s81, 7
    %p755 = por %p753, %p754
    %p757 = scmp.ne.s32.totalorder %s742, %s756
    %p758 = scmp.eq.s32.totalorder %s81, 0
    %p759 = por %p757, %p758
    %s761 = sadd.s32 %s760, 1
    %p764 = scmp.eq.s32.totalorder %s75, 7
    %p765 = scmp.ne.s32.totalorder %s760, %s762
    %p766 = scmp.eq.s32.totalorder %s75, 0
    %p767 = por %p765, %p766
    %p768 = scmp.ne.s32.totalorder %s760, %s762
    %p769 = scmp.eq.s32.totalorder %s80, 7
    %p770 = por %p768, %p769
    %p771 = scmp.ne.s32.totalorder %s762, %s763
    %p772 = scmp.eq.s32.totalorder %s80, 0
    %p773 = por %p771, %p772
    %p774 = scmp.ne.s32.totalorder %s762, %s763
    %p775 = scmp.eq.s32.totalorder %s81, 7
    %p776 = por %p774, %p775
    %p778 = scmp.ne.s32.totalorder %s763, %s777
    %p779 = scmp.eq.s32.totalorder %s81, 0
    %p780 = por %p778, %p779
    %s782 = sadd.s32 %s781, 1
    %p785 = scmp.eq.s32.totalorder %s75, 7
    %p786 = scmp.ne.s32.totalorder %s781, %s783
    %p787 = scmp.eq.s32.totalorder %s75, 0
    %p788 = por %p786, %p787
    %p789 = scmp.ne.s32.totalorder %s781, %s783
    %p790 = scmp.eq.s32.totalorder %s80, 7
    %p791 = por %p789, %p790
    %p792 = scmp.ne.s32.totalorder %s783, %s784
    %p793 = scmp.eq.s32.totalorder %s80, 0
    %p794 = por %p792, %p793
    %p795 = scmp.ne.s32.totalorder %s783, %s784
    %p796 = scmp.eq.s32.totalorder %s81, 7
    %p797 = por %p795, %p796
    %p799 = scmp.ne.s32.totalorder %s784, %s798
    %p800 = scmp.eq.s32.totalorder %s81, 0
    %p801 = por %p799, %p800
    %s802 = ssub.s32 %s75, %s82
    %p803 = scmp.eq.s32.totalorder %s802, 0
    %s805 = sadd.s32 %s804, 1
    %s806 = scalar_select %p803, %s804, %s805
    %p809 = pneg %p803
    %p810 = scmp.eq.s32.totalorder %s75, 7
    %p811 = por %p809, %p810
    %p812 = scmp.ne.s32.totalorder %s804, %s807
    %p813 = scmp.eq.s32.totalorder %s75, 0
    %p814 = por %p812, %p813
    %p815 = scmp.ne.s32.totalorder %s804, %s807
    %p816 = scmp.eq.s32.totalorder %s80, 7
    %p817 = por %p815, %p816
    %p818 = scmp.ne.s32.totalorder %s807, %s808
    %p819 = scmp.eq.s32.totalorder %s80, 0
    %p820 = por %p818, %p819
    %p821 = scmp.ne.s32.totalorder %s807, %s808
    %p822 = scmp.eq.s32.totalorder %s81, 7
    %p823 = por %p821, %p822
    %p825 = scmp.ne.s32.totalorder %s808, %s824
    %p826 = scmp.eq.s32.totalorder %s81, 0
    %p827 = por %p825, %p826
    %p828 = scmp.le.s32.totalorder 1, %s75
    %p829 = scmp.lt.s32.totalorder %s75, 9
    %p830 = pnand %p828, %p829
    %p831 = pneg %p830
    // Predicated region
    $region9: #{logollm_forward.1} parent=5 // pred_check
      _
    $region10: #{logollm_forward.1} parent=5 // pred_check_branch
      %833 = sbr.rel (%p830) target = $region12
    $region11: #{logollm_forward.1} parent=5 // pred_region
      %s834 = ssub.s32 %s75, 1
      // Predicated region
      $region13: #{logollm_forward.1} parent=11 // pred_check
        %p835 = pneg %p122
      $region14: #{logollm_forward.1} parent=11 // pred_check_branch
        %837 = sbr.rel (%p835) target = $region16
      $region15: #{logollm_forward.1} parent=11 // pred_region
        _
      $region16: #{logollm_forward.1} parent=11 // pred_fallthru
        _
      // Predicated region
      $region17: #{logollm_forward.1} parent=11 // pred_check
        %p838 = pneg %p143
      $region18: #{logollm_forward.1} parent=11 // pred_check_branch
        %840 = sbr.rel (%p838) target = $region20
      $region19: #{logollm_forward.1} parent=11 // pred_region
        _
      $region20: #{logollm_forward.1} parent=11 // pred_fallthru
        _
      // Predicated region
      $region21: #{logollm_forward.1} parent=11 // pred_check
        %p841 = pneg %p164
      $region22: #{logollm_forward.1} parent=11 // pred_check_branch
        %843 = sbr.rel (%p841) target = $region24
      $region23: #{logollm_forward.1} parent=11 // pred_region
        _
      $region24: #{logollm_forward.1} parent=11 // pred_fallthru
        _
      // Predicated region
      $region25: #{logollm_forward.1} parent=11 // pred_check
        %p844 = pneg %p185
      $region26: #{logollm_forward.1} parent=11 // pred_check_branch
        %846 = sbr.rel (%p844) target = $region28
      $region27: #{logollm_forward.1} parent=11 // pred_region
        _
      $region28: #{logollm_forward.1} parent=11 // pred_fallthru
        _
      // Predicated region
      $region29: #{logollm_forward.1} parent=11 // pred_check
        %p847 = pneg %p206
      $region30: #{logollm_forward.1} parent=11 // pred_check_branch
        %849 = sbr.rel (%p847) target = $region32
      $region31: #{logollm_forward.1} parent=11 // pred_region
        _
      $region32: #{logollm_forward.1} parent=11 // pred_fallthru
        _
      // Predicated region
      $region33: #{logollm_forward.1} parent=11 // pred_check
        %p850 = pneg %p227
      $region34: #{logollm_forward.1} parent=11 // pred_check_branch
        %852 = sbr.rel (%p850) target = $region36
      $region35: #{logollm_forward.1} parent=11 // pred_region
        _
      $region36: #{logollm_forward.1} parent=11 // pred_fallthru
        _
      // Predicated region
      $region37: #{logollm_forward.1} parent=11 // pred_check
        %p853 = pneg %p248
      $region38: #{logollm_forward.1} parent=11 // pred_check_branch
        %855 = sbr.rel (%p853) target = $region40
      $region39: #{logollm_forward.1} parent=11 // pred_region
        _
      $region40: #{logollm_forward.1} parent=11 // pred_fallthru
        _
      // Predicated region
      $region41: #{logollm_forward.1} parent=11 // pred_check
        %p856 = pneg %p269
      $region42: #{logollm_forward.1} parent=11 // pred_check_branch
        %858 = sbr.rel (%p856) target = $region44
      $region43: #{logollm_forward.1} parent=11 // pred_region
        _
      $region44: #{logollm_forward.1} parent=11 // pred_fallthru
        _
      // Predicated region
      $region45: #{logollm_forward.1} parent=11 // pred_check
        %p859 = pneg %p290
      $region46: #{logollm_forward.1} parent=11 // pred_check_branch
        %861 = sbr.rel (%p859) target = $region48
      $region47: #{logollm_forward.1} parent=11 // pred_region
        _
      $region48: #{logollm_forward.1} parent=11 // pred_fallthru
        _
      // Predicated region
      $region49: #{logollm_forward.1} parent=11 // pred_check
        %p862 = pneg %p311
      $region50: #{logollm_forward.1} parent=11 // pred_check_branch
        %864 = sbr.rel (%p862) target = $region52
      $region51: #{logollm_forward.1} parent=11 // pred_region
        _
      $region52: #{logollm_forward.1} parent=11 // pred_fallthru
        _
      // Predicated region
      $region53: #{logollm_forward.1} parent=11 // pred_check
        %p865 = pneg %p332
      $region54: #{logollm_forward.1} parent=11 // pred_check_branch
        %867 = sbr.rel (%p865) target = $region56
      $region55: #{logollm_forward.1} parent=11 // pred_region
        _
      $region56: #{logollm_forward.1} parent=11 // pred_fallthru
        _
      // Predicated region
      $region57: #{logollm_forward.1} parent=11 // pred_check
        %p868 = pneg %p353
      $region58: #{logollm_forward.1} parent=11 // pred_check_branch
        %870 = sbr.rel (%p868) target = $region60
      $region59: #{logollm_forward.1} parent=11 // pred_region
        _
      $region60: #{logollm_forward.1} parent=11 // pred_fallthru
        _
      // Predicated region
      $region61: #{logollm_forward.1} parent=11 // pred_check
        %p871 = pneg %p374
      $region62: #{logollm_forward.1} parent=11 // pred_check_branch
        %873 = sbr.rel (%p871) target = $region64
      $region63: #{logollm_forward.1} parent=11 // pred_region
        _
      $region64: #{logollm_forward.1} parent=11 // pred_fallthru
        _
      // Predicated region
      $region65: #{logollm_forward.1} parent=11 // pred_check
        %p874 = pneg %p395
      $region66: #{logollm_forward.1} parent=11 // pred_check_branch
        %876 = sbr.rel (%p874) target = $region68
      $region67: #{logollm_forward.1} parent=11 // pred_region
        _
      $region68: #{logollm_forward.1} parent=11 // pred_fallthru
        _
      // Predicated region
      $region69: #{logollm_forward.1} parent=11 // pred_check
        %p877 = pneg %p416
      $region70: #{logollm_forward.1} parent=11 // pred_check_branch
        %879 = sbr.rel (%p877) target = $region72
      $region71: #{logollm_forward.1} parent=11 // pred_region
        _
      $region72: #{logollm_forward.1} parent=11 // pred_fallthru
        _
      // Predicated region
      $region73: #{logollm_forward.1} parent=11 // pred_check
        %p880 = pneg %p437
      $region74: #{logollm_forward.1} parent=11 // pred_check_branch
        %882 = sbr.rel (%p880) target = $region76
      $region75: #{logollm_forward.1} parent=11 // pred_region
        _
      $region76: #{logollm_forward.1} parent=11 // pred_fallthru
        _
      // Predicated region
      $region77: #{logollm_forward.1} parent=11 // pred_check
        %p883 = pneg %p458
      $region78: #{logollm_forward.1} parent=11 // pred_check_branch
        %885 = sbr.rel (%p883) target = $region80
      $region79: #{logollm_forward.1} parent=11 // pred_region
        _
      $region80: #{logollm_forward.1} parent=11 // pred_fallthru
        _
      // Predicated region
      $region81: #{logollm_forward.1} parent=11 // pred_check
        %p886 = pneg %p479
      $region82: #{logollm_forward.1} parent=11 // pred_check_branch
        %888 = sbr.rel (%p886) target = $region84
      $region83: #{logollm_forward.1} parent=11 // pred_region
        _
      $region84: #{logollm_forward.1} parent=11 // pred_fallthru
        _
      // Predicated region
      $region85: #{logollm_forward.1} parent=11 // pred_check
        %p889 = pneg %p500
      $region86: #{logollm_forward.1} parent=11 // pred_check_branch
        %891 = sbr.rel (%p889) target = $region88
      $region87: #{logollm_forward.1} parent=11 // pred_region
        _
      $region88: #{logollm_forward.1} parent=11 // pred_fallthru
        _
      // Predicated region
      $region89: #{logollm_forward.1} parent=11 // pred_check
        %p892 = pneg %p521
      $region90: #{logollm_forward.1} parent=11 // pred_check_branch
        %894 = sbr.rel (%p892) target = $region92
      $region91: #{logollm_forward.1} parent=11 // pred_region
        _
      $region92: #{logollm_forward.1} parent=11 // pred_fallthru
        _
      // Predicated region
      $region93: #{logollm_forward.1} parent=11 // pred_check
        %p895 = pneg %p542
      $region94: #{logollm_forward.1} parent=11 // pred_check_branch
        %897 = sbr.rel (%p895) target = $region96
      $region95: #{logollm_forward.1} parent=11 // pred_region
        _
      $region96: #{logollm_forward.1} parent=11 // pred_fallthru
        _
      // Predicated region
      $region97: #{logollm_forward.1} parent=11 // pred_check
        %p898 = pneg %p563
      $region98: #{logollm_forward.1} parent=11 // pred_check_branch
        %900 = sbr.rel (%p898) target = $region100
      $region99: #{logollm_forward.1} parent=11 // pred_region
        _
      $region100: #{logollm_forward.1} parent=11 // pred_fallthru
        _
      // Predicated region
      $region101: #{logollm_forward.1} parent=11 // pred_check
        %p901 = pneg %p584
      $region102: #{logollm_forward.1} parent=11 // pred_check_branch
        %903 = sbr.rel (%p901) target = $region104
      $region103: #{logollm_forward.1} parent=11 // pred_region
        _
      $region104: #{logollm_forward.1} parent=11 // pred_fallthru
        _
      // Predicated region
      $region105: #{logollm_forward.1} parent=11 // pred_check
        %p904 = pneg %p605
      $region106: #{logollm_forward.1} parent=11 // pred_check_branch
        %906 = sbr.rel (%p904) target = $region108
      $region107: #{logollm_forward.1} parent=11 // pred_region
        _
      $region108: #{logollm_forward.1} parent=11 // pred_fallthru
        _
      // Predicated region
      $region109: #{logollm_forward.1} parent=11 // pred_check
        %p907 = pneg %p626
      $region110: #{logollm_forward.1} parent=11 // pred_check_branch
        %909 = sbr.rel (%p907) target = $region112
      $region111: #{logollm_forward.1} parent=11 // pred_region
        _
      $region112: #{logollm_forward.1} parent=11 // pred_fallthru
        _
      // Predicated region
      $region113: #{logollm_forward.1} parent=11 // pred_check
        %p910 = pneg %p647
      $region114: #{logollm_forward.1} parent=11 // pred_check_branch
        %912 = sbr.rel (%p910) target = $region116
      $region115: #{logollm_forward.1} parent=11 // pred_region
        _
      $region116: #{logollm_forward.1} parent=11 // pred_fallthru
        _
      // Predicated region
      $region117: #{logollm_forward.1} parent=11 // pred_check
        %p913 = pneg %p668
      $region118: #{logollm_forward.1} parent=11 // pred_check_branch
        %915 = sbr.rel (%p913) target = $region120
      $region119: #{logollm_forward.1} parent=11 // pred_region
        _
      $region120: #{logollm_forward.1} parent=11 // pred_fallthru
        _
      // Predicated region
      $region121: #{logollm_forward.1} parent=11 // pred_check
        %p916 = pneg %p689
      $region122: #{logollm_forward.1} parent=11 // pred_check_branch
        %918 = sbr.rel (%p916) target = $region124
      $region123: #{logollm_forward.1} parent=11 // pred_region
        _
      $region124: #{logollm_forward.1} parent=11 // pred_fallthru
        _
      // Predicated region
      $region125: #{logollm_forward.1} parent=11 // pred_check
        %p919 = pneg %p710
      $region126: #{logollm_forward.1} parent=11 // pred_check_branch
        %921 = sbr.rel (%p919) target = $region128
      $region127: #{logollm_forward.1} parent=11 // pred_region
        _
      $region128: #{logollm_forward.1} parent=11 // pred_fallthru
        _
      // Predicated region
      $region129: #{logollm_forward.1} parent=11 // pred_check
        %p922 = pneg %p731
      $region130: #{logollm_forward.1} parent=11 // pred_check_branch
        %924 = sbr.rel (%p922) target = $region132
      $region131: #{logollm_forward.1} parent=11 // pred_region
        _
      $region132: #{logollm_forward.1} parent=11 // pred_fallthru
        _
      // Predicated region
      $region133: #{logollm_forward.1} parent=11 // pred_check
        %p925 = pneg %p752
      $region134: #{logollm_forward.1} parent=11 // pred_check_branch
        %927 = sbr.rel (%p925) target = $region136
      $region135: #{logollm_forward.1} parent=11 // pred_region
        _
      $region136: #{logollm_forward.1} parent=11 // pred_fallthru
        _
      // Predicated region
      $region137: #{logollm_forward.1} parent=11 // pred_check
        %p928 = pneg %p773
      $region138: #{logollm_forward.1} parent=11 // pred_check_branch
        %930 = sbr.rel (%p928) target = $region140
      $region139: #{logollm_forward.1} parent=11 // pred_region
        _
      $region140: #{logollm_forward.1} parent=11 // pred_fallthru
        _
      // Predicated region
      $region141: #{logollm_forward.1} parent=11 // pred_check
        %p931 = pneg %p794
      $region142: #{logollm_forward.1} parent=11 // pred_check_branch
        %933 = sbr.rel (%p931) target = $region144
      $region143: #{logollm_forward.1} parent=11 // pred_region
        _
      $region144: #{logollm_forward.1} parent=11 // pred_fallthru
        _
    $region12: #{logollm_forward.1} parent=5 // pred_fallthru
      _
    %p934 = scmp.lt.s32.totalorder %s75, 8
    // Predicated region
    $region145: #{logollm_forward.1} parent=5 // pred_check
      %p935 = pneg %p934
    $region146: #{logollm_forward.1} parent=5 // pred_check_branch
      %937 = sbr.rel (%p935) target = $region148
    $region147: #{logollm_forward.1} parent=5 // pred_region
      // Predicated region
      $region149: #{logollm_forward.1} parent=147 // pred_check
        %p938 = pneg %p95
      $region150: #{logollm_forward.1} parent=147 // pred_check_branch
        %940 = sbr.rel (%p938) target = $region152
      $region151: #{logollm_forward.1} parent=147 // pred_region
        %p941 = scmp.lt.s32.totalorder %s75, 7
        %s942 = scalar_select %p941, %s75, 7
        %s943 = smul.addr %s942, 8
        %s944 = scalar_lea.vmem %s1, %s943
      $region152: #{logollm_forward.1} parent=147 // pred_fallthru
        _
    $region148: #{logollm_forward.1} parent=5 // pred_fallthru
      _
    %p945 = scmp.le.s32.totalorder 1, %s75
    %p946 = scmp.lt.s32.totalorder %s75, 9
    %p947 = pnand %p945, %p946
    %p948 = pneg %p947
    // Predicated region
    $region153: #{logollm_forward.1} parent=5 // pred_check
      _
    $region154: #{logollm_forward.1} parent=5 // pred_check_branch
      %950 = sbr.rel (%p947) target = $region156
    $region155: #{logollm_forward.1} parent=5 // pred_region
      %s951 = ssub.s32 %s75, 1
      %p952 = scmp.lt.s32.totalorder %s80, 7
      %s953 = scalar_select %p952, %s80, 7
      %s954 = smul.addr %s953, 8
      %s955 = scalar_lea.vmem %s1, %s954
      %p956 = pneg %p101
      %p957 = pneg %p98
      %p958 = pneg %p122
      %p959 = pneg %p119
      %p960 = pneg %p143
      %p961 = pneg %p140
      %p962 = pneg %p164
      %p963 = pneg %p161
      %p964 = pneg %p185
      %p965 = pneg %p182
      %p966 = pneg %p206
      %p967 = pneg %p203
      %p968 = pneg %p227
      %p969 = pneg %p224
      %p970 = pneg %p248
      %p971 = pneg %p245
      %p972 = pneg %p269
      %p973 = pneg %p266
      %p974 = pneg %p290
      %p975 = pneg %p287
      %p976 = pneg %p311
      %p977 = pneg %p308
      %p978 = pneg %p332
      %p979 = pneg %p329
      %p980 = pneg %p353
      %p981 = pneg %p350
      %p982 = pneg %p374
      %p983 = pneg %p371
      %p984 = pneg %p395
      %p985 = pneg %p392
      %p986 = pneg %p416
      %p987 = pneg %p413
      %p988 = pneg %p437
      %p989 = pneg %p434
      %p990 = pneg %p458
      %p991 = pneg %p455
      %p992 = pneg %p479
      %p993 = pneg %p476
      %p994 = pneg %p500
      %p995 = pneg %p497
      %p996 = pneg %p521
      %p997 = pneg %p518
      %p998 = pneg %p542
      %p999 = pneg %p539
      %p1000 = pneg %p563
      %p1001 = pneg %p560
      %p1002 = pneg %p584
      %p1003 = pneg %p581
      %p1004 = pneg %p605
      %p1005 = pneg %p602
      %p1006 = pneg %p626
      %p1007 = pneg %p623
      %p1008 = pneg %p647
      %p1009 = pneg %p644
      %p1010 = pneg %p668
      %p1011 = pneg %p665
      %p1012 = pneg %p689
      %p1013 = pneg %p686
      %p1014 = pneg %p710
      %p1015 = pneg %p707
      %p1016 = pneg %p731
      %p1017 = pneg %p728
      %p1018 = pneg %p752
      %p1019 = pneg %p749
      %p1020 = pneg %p773
      %p1021 = pneg %p770
      %p1022 = pneg %p794
      %p1023 = pneg %p791
      %p1024 = pneg %p820
      %p1025 = pneg %p817
      %p1026 = scmp.lt.s32.totalorder %s80, 7
      %s1027 = scalar_select %p1026, %s80, 7
      %s1028 = scalar_lea.vmem %s69, %s1027
      %p1029 = scmp.lt.s32.totalorder %s80, 7
      %s1030 = scalar_select %p1029, %s80, 7
      %s1031 = smul.addr %s1030, 8
      %s1032 = scalar_lea.vmem %s1, %s1031
      %p1033 = scmp.lt.s32.totalorder %s80, 7
      %s1034 = scalar_select %p1033, %s80, 7
      %s1035 = scalar_lea.vmem %s69, %s1034
      %v1036 = vld [vmem:[%s1032] sm:$0x1f]
      %v1037 = vld [vmem:[%s3] sm:$0xf]
      %v1038 = vld [vmem:[%s5] sm:$0x1]
      %v1040 = vperm.slane %v1038, 0
      %vm1042 = vcmask 31744
      %v1044 = vsel %vm1042, %v1036, 0
      %vm1046 = vcmask 1043456
      %v1048 = vsel %vm1046, %v1037, 0
      %1050 = vmatpush.msra.mxu0 0.0
      %1051 = vmatpush.msra.mxu0 0.0
      %1052 = vmatpush.msra.mxu0 0.0
      %1053 = vmatpush.msra.mxu0 0.0
      %1054 = vmatpush.msra.mxu0 0.0
      %1055 = vmatpush.msra.mxu0 0.0
      %1056 = vmatpush.msra.mxu0 0.0
      %1057 = vmatpush.msra.mxu0 0.0
      %1058 = vmatpush.msra.mxu0 0.0
      %1059 = vmatpush.msra.mxu0 0.0
      %1060 = vmatpush.msra.mxu0 0.0
      %1061 = vmatpush.msra.mxu0 0.0
      %1062 = vmatpush.msra.mxu0 0.0
      %1063 = vmatpush.msra.mxu0 0.0
      %1064 = vmatpush.msra.mxu0 0.0
      %1065 = vmatpush.msra.mxu0 %v1048
      %1066 = vmatmul.f32.gmra.mxu0 %v1044
      %v1067 = vpop.f32.mrf.mxu0
      %v1068 = vadd.f32 %v1040, %v1067
      %1069 = vdwg.mxu0
      %v1070 = vld [vmem:[%s7] sm:$0x1f]
      %v1071 = vadd.f32 %v1068, %v1070
      %v1072 = vlaneseq
      %v1073 = vshrl.u32 %v1072, 7
      %v1074 = vlaneseq
      %v1075 = vand.u32 %v1074, 127
      %vm1076 = vcmp.ge.s32.totalorder %v1073, %v1075
      %v1077 = vld [vmem:[%s9] sm:$0x1]
      %v1078 = vld [vmem:[%s11] sm:$0x1]
      %vm1079 = vcmask 258048
      %v1080 = vsel %vm1079, %v1071, 0.0
      %1081 = vadd.xlane.f32.xlu0 %v1080
      %v1082 = vpop.xlane.xlu0 %1081
      %v1083 = vrcp.pop 32.0
      %v1084 = vmul.f32 32.0, %v1083
      %v1085 = vsub.f32 1.0, %v1084
      %v1086 = vmul.f32 %v1083, %v1085
      %v1087 = vadd.f32 %v1083, %v1086
      %vm1088 = vweird.f32 %v1083
      %v1089 = vsel %vm1088, %v1083, %v1087
      %v1090 = vmul.f32 %v1082, %v1089
      %v1091 = vsub.f32 %v1071, %v1090
      %v1092 = vmul.f32 %v1091, %v1091
      %v1093 = vsel %vm1079, %v1092, 0.0
      %1094 = vadd.xlane.f32.xlu0 %v1093
      %v1095 = vpop.xlane.xlu0 %1094
      %v1096 = vmul.f32 %v1095, %v1089
      %v1097 = vadd.f32 %v1096, 1e-05
      %v1098 = vrsqrt.pop %v1097
      %v1099 = vmul.f32 %v1098, %v1097
      %v1100 = vmul.f32 %v1099, %v1098
      %v1101 = vmul.f32 0.5, %v1100
      %v1102 = vsub.f32 1.5, %v1101
      %v1103 = vmul.f32 %v1098, %v1102
      %vm1104 = vweird.f32 %v1097
      %vm1105 = vweird.f32 %v1098
      %vm1106 = vmor %vm1104, %vm1105
      %v1107 = vsel %vm1106, %v1098, %v1103
      %v1108 = vmul.f32 %v1091, %v1107
      %v1110 = vperm.slane %v1077, 0
      %v1112 = vmul.f32 %v1108, %v1110
      %v1114 = vperm.slane %v1078, 0
      %v1116 = vadd.f32 %v1112, %v1114
      %v1117 = vld [vmem:[%s13] sm:$0xff]
      %v1118 = vld [vmem:[%s13 + $0x8] sm:$0xff]
      %v1119 = vld [vmem:[%s13 + $0x10] sm:$0xff]
      %v1120 = vld [vmem:[%s13 + $0x18] sm:$0xff]
      %v1121 = vld [vmem:[%s15] sm:$0x1]
      %v1123 = vperm.slane %v1121, 0
      %vm1125 = vcmask 261120
      %v1127 = vsel %vm1125, %v1116, 0
      %1129 = vmatpush.msra.mxu0 0.0
      %1130 = vmatpush.msra.mxu0 0.0
      %1131 = vmatpush.msra.mxu0 0.0
      %1132 = vmatpush.msra.mxu0 0.0
      %1133 = vmatpush.msra.mxu0 0.0
      %1134 = vmatpush.msra.mxu0 0.0
      %1135 = vmatpush.msra.mxu0 0.0
      %1136 = vmatpush.msra.mxu0 0.0
      %1137 = vmatpush.msra.mxu0 0.0
      %1138 = vmatpush.msra.mxu0 0.0
      %1139 = vmatpush.msra.mxu0 0.0
      %1140 = vmatpush.msra.mxu0 0.0
      %1141 = vmatpush.msra.mxu0 %v1120
      %1142 = vmatpush.msra.mxu0 %v1119
      %1143 = vmatpush.msra.mxu0 %v1118
      %1144 = vmatpush.msra.mxu0 %v1117
      %1145 = vmatmul.f32.gmra.mxu0 %v1127
      %v1146 = vpop.f32.mrf.mxu0
      %v1147 = vadd.f32 %v1123, %v1146
      %1148 = vdwg.mxu0
      %v1149 = vld [vmem:[%s17] sm:$0xff]
      %v1150 = vld [vmem:[%s17 + $0x8] sm:$0xff]
      %v1151 = vld [vmem:[%s17 + $0x10] sm:$0xff]
      %v1152 = vld [vmem:[%s17 + $0x18] sm:$0xff]
      %v1153 = vld [vmem:[%s19] sm:$0x1]
      %v1155 = vperm.slane %v1153, 0
      %1157 = vmatpush.msra.mxu0 0.0
      %1158 = vmatpush.msra.mxu0 0.0
      %1159 = vmatpush.msra.mxu0 0.0
      %1160 = vmatpush.msra.mxu0 0.0
      %1161 = vmatpush.msra.mxu0 0.0
      %1162 = vmatpush.msra.mxu0 0.0
      %1163 = vmatpush.msra.mxu0 0.0
      %1164 = vmatpush.msra.mxu0 0.0
      %1165 = vmatpush.msra.mxu0 0.0
      %1166 = vmatpush.msra.mxu0 0.0
      %1167 = vmatpush.msra.mxu0 0.0
      %1168 = vmatpush.msra.mxu0 0.0
      %1169 = vmatpush.msra.mxu0 %v1152
      %1170 = vmatpush.msra.mxu0 %v1151
      %1171 = vmatpush.msra.mxu0 %v1150
      %1172 = vmatpush.msra.mxu0 %v1149
      %1173 = vmatmul.f32.gmra.mxu0 %v1127
      %v1174 = vpop.f32.mrf.mxu0
      %v1175 = vadd.f32 %v1155, %v1174
      %1176 = vdwg.mxu0
      %v1177 = vld [vmem:[%s21] sm:$0xff]
      %v1178 = vld [vmem:[%s21 + $0x8] sm:$0xff]
      %v1179 = vld [vmem:[%s21 + $0x10] sm:$0xff]
      %v1180 = vld [vmem:[%s21 + $0x18] sm:$0xff]
      %v1181 = vld [vmem:[%s23] sm:$0x1]
      %v1183 = vperm.slane %v1181, 0
      %1185 = vmatpush.msra.mxu0 0.0
      %1186 = vmatpush.msra.mxu0 0.0
      %1187 = vmatpush.msra.mxu0 0.0
      %1188 = vmatpush.msra.mxu0 0.0
      %1189 = vmatpush.msra.mxu0 0.0
      %1190 = vmatpush.msra.mxu0 0.0
      %1191 = vmatpush.msra.mxu0 0.0
      %1192 = vmatpush.msra.mxu0 0.0
      %1193 = vmatpush.msra.mxu0 0.0
      %1194 = vmatpush.msra.mxu0 0.0
      %1195 = vmatpush.msra.mxu0 0.0
      %1196 = vmatpush.msra.mxu0 0.0
      %1197 = vmatpush.msra.mxu0 %v1180
      %1198 = vmatpush.msra.mxu0 %v1179
      %1199 = vmatpush.msra.mxu0 %v1178
      %1200 = vmatpush.msra.mxu0 %v1177
      %1201 = vmatmul.f32.gmra.mxu0 %v1127
      %v1202 = vpop.f32.mrf.mxu0
      %v1203 = vadd.f32 %v1183, %v1202
      %1204 = vdwg.mxu0
      %vm1205 = vcmask 64512
      %v1207 = vsel %vm1205, %v1147, 0
      %v1210 = vsel %vm1205, %v1175, 0
      %1212 = vmatpush.xpose.msra.mxu0 0.0
      %1213 = vmatpush.xpose.msra.mxu0 0.0
      %1214 = vmatpush.xpose.msra.mxu0 0.0
      %1215 = vmatpush.xpose.msra.mxu0 0.0
      %1216 = vmatpush.xpose.msra.mxu0 0.0
      %1217 = vmatpush.xpose.msra.mxu0 0.0
      %1218 = vmatpush.xpose.msra.mxu0 0.0
      %1219 = vmatpush.xpose.msra.mxu0 0.0
      %1220 = vmatpush.xpose.msra.mxu0 0.0
      %1221 = vmatpush.xpose.msra.mxu0 0.0
      %1222 = vmatpush.xpose.msra.mxu0 0.0
      %1223 = vmatpush.xpose.msra.mxu0 0.0
      %1224 = vmatpush.xpose.msra.mxu0 0.0
      %1225 = vmatpush.xpose.msra.mxu0 0.0
      %1226 = vmatpush.xpose.msra.mxu0 0.0
      %1227 = vmatpush.xpose.msra.mxu0 %v1210
      %1228 = vmatmul.f32.gmra.mxu0 %v1207
      %v1229 = vpop.f32.mrf.mxu0
      %v1230 = vadd.f32 0.0, %v1229
      %1231 = vdwg.mxu0
      %v1232 = vmul.f32 %v1230, 0.35355338
      %v1233 = vsel %vm1076, %v1232, -1e+30
      %vm1234 = vcmask 36864
      %v1235 = vsel %vm1234, %v1233, -inf
      %1236 = vmax.xlane.f32.xlu0 %v1235
      %v1237 = vpop.xlane.xlu0 %1236
      %v1238 = vsub.f32 %v1233, %v1237
      %v1239 = vmul.f32 %v1238, 1.442695
      %v1240 = vpow.pop %v1239
      %v1241 = vsel %vm1234, %v1240, 0.0
      %1242 = vadd.xlane.f32.xlu0 %v1241
      %v1243 = vpop.xlane.xlu0 %1242
      %v1244 = vrcp.pop %v1243
      %v1245 = vmul.f32 %v1240, %v1244
      %vm1246 = vcmask 39936
      %v1248 = vsel %vm1246, %v1245, 0
      %vm1250 = vcmask 1044480
      %v1252 = vsel %vm1250, %v1203, 0
      %1254 = vmatpush.msra.mxu0 0.0
      %1255 = vmatpush.msra.mxu0 0.0
      %1256 = vmatpush.msra.mxu0 0.0
      %1257 = vmatpush.msra.mxu0 0.0
      %1258 = vmatpush.msra.mxu0 0.0
      %1259 = vmatpush.msra.mxu0 0.0
      %1260 = vmatpush.msra.mxu0 0.0
      %1261 = vmatpush.msra.mxu0 0.0
      %1262 = vmatpush.msra.mxu0 0.0
      %1263 = vmatpush.msra.mxu0 0.0
      %1264 = vmatpush.msra.mxu0 0.0
      %1265 = vmatpush.msra.mxu0 0.0
      %1266 = vmatpush.msra.mxu0 0.0
      %1267 = vmatpush.msra.mxu0 0.0
      %1268 = vmatpush.msra.mxu0 0.0
      %1269 = vmatpush.msra.mxu0 %v1252
      %1270 = vmatmul.f32.gmra.mxu0 %v1248
      %v1271 = vpop.f32.mrf.mxu0
      %v1272 = vadd.f32 0.0, %v1271
      %1273 = vdwg.mxu0
      %v1274 = vld [vmem:[%s25] sm:$0xff]
      %s1275 = scalar_lea.vmem %s13, 32
      %v1276 = vld [vmem:[%s1275] sm:$0xff]
      %v1277 = vld [vmem:[%s1275 + $0x8] sm:$0xff]
      %v1278 = vld [vmem:[%s1275 + $0x10] sm:$0xff]
      %v1279 = vld [vmem:[%s1275 + $0x18] sm:$0xff]
      %s1280 = scalar_lea.vmem %s15, 1
      %v1281 = vld [vmem:[%s1280] sm:$0x1]
      %v1283 = vperm.slane %v1281, 0
      %1285 = vmatpush.msra.mxu0 0.0
      %1286 = vmatpush.msra.mxu0 0.0
      %1287 = vmatpush.msra.mxu0 0.0
      %1288 = vmatpush.msra.mxu0 0.0
      %1289 = vmatpush.msra.mxu0 0.0
      %1290 = vmatpush.msra.mxu0 0.0
      %1291 = vmatpush.msra.mxu0 0.0
      %1292 = vmatpush.msra.mxu0 0.0
      %1293 = vmatpush.msra.mxu0 0.0
      %1294 = vmatpush.msra.mxu0 0.0
      %1295 = vmatpush.msra.mxu0 0.0
      %1296 = vmatpush.msra.mxu0 0.0
      %1297 = vmatpush.msra.mxu0 %v1279
      %1298 = vmatpush.msra.mxu0 %v1278
      %1299 = vmatpush.msra.mxu0 %v1277
      %1300 = vmatpush.msra.mxu0 %v1276
      %1301 = vmatmul.f32.gmra.mxu0 %v1127
      %v1302 = vpop.f32.mrf.mxu0
      %v1303 = vadd.f32 %v1283, %v1302
      %1304 = vdwg.mxu0
      %s1305 = scalar_lea.vmem %s17, 32
      %v1306 = vld [vmem:[%s1305] sm:$0xff]
      %v1307 = vld [vmem:[%s1305 + $0x8] sm:$0xff]
      %v1308 = vld [vmem:[%s1305 + $0x10] sm:$0xff]
      %v1309 = vld [vmem:[%s1305 + $0x18] sm:$0xff]
      %s1310 = scalar_lea.vmem %s19, 1
      %v1311 = vld [vmem:[%s1310] sm:$0x1]
      %v1313 = vperm.slane %v1311, 0
      %1315 = vmatpush.msra.mxu0 0.0
      %1316 = vmatpush.msra.mxu0 0.0
      %1317 = vmatpush.msra.mxu0 0.0
      %1318 = vmatpush.msra.mxu0 0.0
      %1319 = vmatpush.msra.mxu0 0.0
      %1320 = vmatpush.msra.mxu0 0.0
      %1321 = vmatpush.msra.mxu0 0.0
      %1322 = vmatpush.msra.mxu0 0.0
      %1323 = vmatpush.msra.mxu0 0.0
      %1324 = vmatpush.msra.mxu0 0.0
      %1325 = vmatpush.msra.mxu0 0.0
      %1326 = vmatpush.msra.mxu0 0.0
      %1327 = vmatpush.msra.mxu0 %v1309
      %1328 = vmatpush.msra.mxu0 %v1308
      %1329 = vmatpush.msra.mxu0 %v1307
      %1330 = vmatpush.msra.mxu0 %v1306
      %1331 = vmatmul.f32.gmra.mxu0 %v1127
      %v1332 = vpop.f32.mrf.mxu0
      %v1333 = vadd.f32 %v1313, %v1332
      %1334 = vdwg.mxu0
      %s1335 = scalar_lea.vmem %s21, 32
      %v1336 = vld [vmem:[%s1335] sm:$0xff]
      %v1337 = vld [vmem:[%s1335 + $0x8] sm:$0xff]
      %v1338 = vld [vmem:[%s1335 + $0x10] sm:$0xff]
      %v1339 = vld [vmem:[%s1335 + $0x18] sm:$0xff]
      %s1340 = scalar_lea.vmem %s23, 1
      %v1341 = vld [vmem:[%s1340] sm:$0x1]
      %v1343 = vperm.slane %v1341, 0
      %1345 = vmatpush.msra.mxu0 0.0
      %1346 = vmatpush.msra.mxu0 0.0
      %1347 = vmatpush.msra.mxu0 0.0
      %1348 = vmatpush.msra.mxu0 0.0
      %1349 = vmatpush.msra.mxu0 0.0
      %1350 = vmatpush.msra.mxu0 0.0
      %1351 = vmatpush.msra.mxu0 0.0
      %1352 = vmatpush.msra.mxu0 0.0
      %1353 = vmatpush.msra.mxu0 0.0
      %1354 = vmatpush.msra.mxu0 0.0
      %1355 = vmatpush.msra.mxu0 0.0
      %1356 = vmatpush.msra.mxu0 0.0
      %1357 = vmatpush.msra.mxu0 %v1339
      %1358 = vmatpush.msra.mxu0 %v1338
      %1359 = vmatpush.msra.mxu0 %v1337
      %1360 = vmatpush.msra.mxu0 %v1336
      %1361 = vmatmul.f32.gmra.mxu0 %v1127
      %v1362 = vpop.f32.mrf.mxu0
      %v1363 = vadd.f32 %v1343, %v1362
      %1364 = vdwg.mxu0
      %v1366 = vsel %vm1205, %v1303, 0
      %v1369 = vsel %vm1205, %v1333, 0
      %1371 = vmatpush.xpose.msra.mxu0 0.0
      %1372 = vmatpush.xpose.msra.mxu0 0.0
      %1373 = vmatpush.xpose.msra.mxu0 0.0
      %1374 = vmatpush.xpose.msra.mxu0 0.0
      %1375 = vmatpush.xpose.msra.mxu0 0.0
      %1376 = vmatpush.xpose.msra.mxu0 0.0
      %1377 = vmatpush.xpose.msra.mxu0 0.0
      %1378 = vmatpush.xpose.msra.mxu0 0.0
      %1379 = vmatpush.xpose.msra.mxu0 0.0
      %1380 = vmatpush.xpose.msra.mxu0 0.0
      %1381 = vmatpush.xpose.msra.mxu0 0.0
      %1382 = vmatpush.xpose.msra.mxu0 0.0
      %1383 = vmatpush.xpose.msra.mxu0 0.0
      %1384 = vmatpush.xpose.msra.mxu0 0.0
      %1385 = vmatpush.xpose.msra.mxu0 0.0
      %1386 = vmatpush.xpose.msra.mxu0 %v1369
      %1387 = vmatmul.f32.gmra.mxu0 %v1366
      %v1388 = vpop.f32.mrf.mxu0
      %v1389 = vadd.f32 0.0, %v1388
      %1390 = vdwg.mxu0
      %v1391 = vmul.f32 %v1389, 0.35355338
      %v1392 = vsel %vm1076, %v1391, -1e+30
      %v1393 = vsel %vm1234, %v1392, -inf
      %1394 = vmax.xlane.f32.xlu0 %v1393
      %v1395 = vpop.xlane.xlu0 %1394
      %v1396 = vsub.f32 %v1392, %v1395
      %v1397 = vmul.f32 %v1396, 1.442695
      %v1398 = vpow.pop %v1397
      %v1399 = vsel %vm1234, %v1398, 0.0
      %1400 = vadd.xlane.f32.xlu0 %v1399
      %v1401 = vpop.xlane.xlu0 %1400
      %v1402 = vrcp.pop %v1401
      %v1403 = vmul.f32 %v1398, %v1402
      %v1405 = vsel %vm1246, %v1403, 0
      %v1408 = vsel %vm1250, %v1363, 0
      %1410 = vmatpush.msra.mxu0 0.0
      %1411 = vmatpush.msra.mxu0 0.0
      %1412 = vmatpush.msra.mxu0 0.0
      %1413 = vmatpush.msra.mxu0 0.0
      %1414 = vmatpush.msra.mxu0 0.0
      %1415 = vmatpush.msra.mxu0 0.0
      %1416 = vmatpush.msra.mxu0 0.0
      %1417 = vmatpush.msra.mxu0 0.0
      %1418 = vmatpush.msra.mxu0 0.0
      %1419 = vmatpush.msra.mxu0 0.0
      %1420 = vmatpush.msra.mxu0 0.0
      %1421 = vmatpush.msra.mxu0 0.0
      %1422 = vmatpush.msra.mxu0 0.0
      %1423 = vmatpush.msra.mxu0 0.0
      %1424 = vmatpush.msra.mxu0 0.0
      %1425 = vmatpush.msra.mxu0 %v1408
      %1426 = vmatmul.f32.gmra.mxu0 %v1405
      %v1427 = vpop.f32.mrf.mxu0
      %v1428 = vadd.f32 0.0, %v1427
      %1429 = vdwg.mxu0
      %s1430 = scalar_lea.vmem %s25, 8
      %v1431 = vld [vmem:[%s1430] sm:$0xff]
      %v1433 = vsel %vm1205, %v1428, 0
      %1435 = vmatpush.msra.mxu0 0.0
      %1436 = vmatpush.msra.mxu0 0.0
      %1437 = vmatpush.msra.mxu0 0.0
      %1438 = vmatpush.msra.mxu0 0.0
      %1439 = vmatpush.msra.mxu0 0.0
      %1440 = vmatpush.msra.mxu0 0.0
      %1441 = vmatpush.msra.mxu0 0.0
      %1442 = vmatpush.msra.mxu0 0.0
      %1443 = vmatpush.msra.mxu0 0.0
      %1444 = vmatpush.msra.mxu0 0.0
      %1445 = vmatpush.msra.mxu0 0.0
      %1446 = vmatpush.msra.mxu0 0.0
      %1447 = vmatpush.msra.mxu0 0.0
      %1448 = vmatpush.msra.mxu0 0.0
      %1449 = vmatpush.msra.mxu0 0.0
      %1450 = vmatpush.msra.mxu0 %v1431
      %1451 = vmatmul.f32.gmra.mxu0 %v1433
      %v1452 = vpop.f32.mrf.mxu0
      %v1453 = vadd.f32 0.0, %v1452
      %1454 = vdwg.mxu0
      %v1456 = vsel %vm1205, %v1272, 0
      %1458 = vmatpush.msra.mxu0 0.0
      %1459 = vmatpush.msra.mxu0 0.0
      %1460 = vmatpush.msra.mxu0 0.0
      %1461 = vmatpush.msra.mxu0 0.0
      %1462 = vmatpush.msra.mxu0 0.0
      %1463 = vmatpush.msra.mxu0 0.0
      %1464 = vmatpush.msra.mxu0 0.0
      %1465 = vmatpush.msra.mxu0 0.0
      %1466 = vmatpush.msra.mxu0 0.0
      %1467 = vmatpush.msra.mxu0 0.0
      %1468 = vmatpush.msra.mxu0 0.0
      %1469 = vmatpush.msra.mxu0 0.0
      %1470 = vmatpush.msra.mxu0 0.0
      %1471 = vmatpush.msra.mxu0 0.0
      %1472 = vmatpush.msra.mxu0 0.0
      %1473 = vmatpush.msra.mxu0 %v1274
      %1474 = vmatmul.f32.gmra.mxu0 %v1456
      %v1475 = vpop.f32.mrf.mxu0
      %v1476 = vadd.f32 %v1453, %v1475
      %1477 = vdwg.mxu0
      %s1478 = scalar_lea.vmem %s13, 64
      %v1479 = vld [vmem:[%s1478] sm:$0xff]
      %v1480 = vld [vmem:[%s1478 + $0x8] sm:$0xff]
      %v1481 = vld [vmem:[%s1478 + $0x10] sm:$0xff]
      %v1482 = vld [vmem:[%s1478 + $0x18] sm:$0xff]
      %s1483 = scalar_lea.vmem %s15, 2
      %v1484 = vld [vmem:[%s1483] sm:$0x1]
      %v1486 = vperm.slane %v1484, 0
      %1488 = vmatpush.msra.mxu0 0.0
      %1489 = vmatpush.msra.mxu0 0.0
      %1490 = vmatpush.msra.mxu0 0.0
      %1491 = vmatpush.msra.mxu0 0.0
      %1492 = vmatpush.msra.mxu0 0.0
      %1493 = vmatpush.msra.mxu0 0.0
      %1494 = vmatpush.msra.mxu0 0.0
      %1495 = vmatpush.msra.mxu0 0.0
      %1496 = vmatpush.msra.mxu0 0.0
      %1497 = vmatpush.msra.mxu0 0.0
      %1498 = vmatpush.msra.mxu0 0.0
      %1499 = vmatpush.msra.mxu0 0.0
      %1500 = vmatpush.msra.mxu0 %v1482
      %1501 = vmatpush.msra.mxu0 %v1481
      %1502 = vmatpush.msra.mxu0 %v1480
      %1503 = vmatpush.msra.mxu0 %v1479
      %1504 = vmatmul.f32.gmra.mxu0 %v1127
      %v1505 = vpop.f32.mrf.mxu0
      %v1506 = vadd.f32 %v1486, %v1505
      %1507 = vdwg.mxu0
      %s1508 = scalar_lea.vmem %s17, 64
      %v1509 = vld [vmem:[%s1508] sm:$0xff]
      %v1510 = vld [vmem:[%s1508 + $0x8] sm:$0xff]
      %v1511 = vld [vmem:[%s1508 + $0x10] sm:$0xff]
      %v1512 = vld [vmem:[%s1508 + $0x18] sm:$0xff]
      %s1513 = scalar_lea.vmem %s19, 2
      %v1514 = vld [vmem:[%s1513] sm:$0x1]
      %v1516 = vperm.slane %v1514, 0
      %1518 = vmatpush.msra.mxu0 0.0
      %1519 = vmatpush.msra.mxu0 0.0
      %1520 = vmatpush.msra.mxu0 0.0
      %1521 = vmatpush.msra.mxu0 0.0
      %1522 = vmatpush.msra.mxu0 0.0
      %1523 = vmatpush.msra.mxu0 0.0
      %1524 = vmatpush.msra.mxu0 0.0
      %1525 = vmatpush.msra.mxu0 0.0
      %1526 = vmatpush.msra.mxu0 0.0
      %1527 = vmatpush.msra.mxu0 0.0
      %1528 = vmatpush.msra.mxu0 0.0
      %1529 = vmatpush.msra.mxu0 0.0
      %1530 = vmatpush.msra.mxu0 %v1512
      %1531 = vmatpush.msra.mxu0 %v1511
      %1532 = vmatpush.msra.mxu0 %v1510
      %1533 = vmatpush.msra.mxu0 %v1509
      %1534 = vmatmul.f32.gmra.mxu0 %v1127
      %v1535 = vpop.f32.mrf.mxu0
      %v1536 = vadd.f32 %v1516, %v1535
      %1537 = vdwg.mxu0
      %s1538 = scalar_lea.vmem %s21, 64
      %v1539 = vld [vmem:[%s1538] sm:$0xff]
      %v1540 = vld [vmem:[%s1538 + $0x8] sm:$0xff]
      %v1541 = vld [vmem:[%s1538 + $0x10] sm:$0xff]
      %v1542 = vld [vmem:[%s1538 + $0x18] sm:$0xff]
      %s1543 = scalar_lea.vmem %s23, 2
      %v1544 = vld [vmem:[%s1543] sm:$0x1]
      %v1546 = vperm.slane %v1544, 0
      %1548 = vmatpush.msra.mxu0 0.0
      %1549 = vmatpush.msra.mxu0 0.0
      %1550 = vmatpush.msra.mxu0 0.0
      %1551 = vmatpush.msra.mxu0 0.0
      %1552 = vmatpush.msra.mxu0 0.0
      %1553 = vmatpush.msra.mxu0 0.0
      %1554 = vmatpush.msra.mxu0 0.0
      %1555 = vmatpush.msra.mxu0 0.0
      %1556 = vmatpush.msra.mxu0 0.0
      %1557 = vmatpush.msra.mxu0 0.0
      %1558 = vmatpush.msra.mxu0 0.0
      %1559 = vmatpush.msra.mxu0 0.0
      %1560 = vmatpush.msra.mxu0 %v1542
      %1561 = vmatpush.msra.mxu0 %v1541
      %1562 = vmatpush.msra.mxu0 %v1540
      %1563 = vmatpush.msra.mxu0 %v1539
      %1564 = vmatmul.f32.gmra.mxu0 %v1127
      %v1565 = vpop.f32.mrf.mxu0
      %v1566 = vadd.f32 %v1546, %v1565
      %1567 = vdwg.mxu0
      %v1569 = vsel %vm1205, %v1506, 0
      %v1572 = vsel %vm1205, %v1536, 0
      %1574 = vmatpush.xpose.msra.mxu0 0.0
      %1575 = vmatpush.xpose.msra.mxu0 0.0
      %1576 = vmatpush.xpose.msra.mxu0 0.0
      %1577 = vmatpush.xpose.msra.mxu0 0.0
      %1578 = vmatpush.xpose.msra.mxu0 0.0
      %1579 = vmatpush.xpose.msra.mxu0 0.0
      %1580 = vmatpush.xpose.msra.mxu0 0.0
      %1581 = vmatpush.xpose.msra.mxu0 0.0
      %1582 = vmatpush.xpose.msra.mxu0 0.0
      %1583 = vmatpush.xpose.msra.mxu0 0.0
      %1584 = vmatpush.xpose.msra.mxu0 0.0
      %1585 = vmatpush.xpose.msra.mxu0 0.0
      %1586 = vmatpush.xpose.msra.mxu0 0.0
      %1587 = vmatpush.xpose.msra.mxu0 0.0
      %1588 = vmatpush.xpose.msra.mxu0 0.0
      %1589 = vmatpush.xpose.msra.mxu0 %v1572
      %1590 = vmatmul.f32.gmra.mxu0 %v1569
      %v1591 = vpop.f32.mrf.mxu0
      %v1592 = vadd.f32 0.0, %v1591
      %1593 = vdwg.mxu0
      %v1594 = vmul.f32 %v1592, 0.35355338
      %v1595 = vsel %vm1076, %v1594, -1e+30
      %v1596 = vsel %vm1234, %v1595, -inf
      %1597 = vmax.xlane.f32.xlu0 %v1596
      %v1598 = vpop.xlane.xlu0 %1597
      %v1599 = vsub.f32 %v1595, %v1598
      %v1600 = vmul.f32 %v1599, 1.442695
      %v1601 = vpow.pop %v1600
      %v1602 = vsel %vm1234, %v1601, 0.0
      %1603 = vadd.xlane.f32.xlu0 %v1602
      %v1604 = vpop.xlane.xlu0 %1603
      %v1605 = vrcp.pop %v1604
      %v1606 = vmul.f32 %v1601, %v1605
      %v1608 = vsel %vm1246, %v1606, 0
      %v1611 = vsel %vm1250, %v1566, 0
      %1613 = vmatpush.msra.mxu0 0.0
      %1614 = vmatpush.msra.mxu0 0.0
      %1615 = vmatpush.msra.mxu0 0.0
      %1616 = vmatpush.msra.mxu0 0.0
      %1617 = vmatpush.msra.mxu0 0.0
      %1618 = vmatpush.msra.mxu0 0.0
      %1619 = vmatpush.msra.mxu0 0.0
      %1620 = vmatpush.msra.mxu0 0.0
      %1621 = vmatpush.msra.mxu0 0.0
      %1622 = vmatpush.msra.mxu0 0.0
      %1623 = vmatpush.msra.mxu0 0.0
      %1624 = vmatpush.msra.mxu0 0.0
      %1625 = vmatpush.msra.mxu0 0.0
      %1626 = vmatpush.msra.mxu0 0.0
      %1627 = vmatpush.msra.mxu0 0.0
      %1628 = vmatpush.msra.mxu0 %v1611
      %1629 = vmatmul.f32.gmra.mxu0 %v1608
      %v1630 = vpop.f32.mrf.mxu0
      %v1631 = vadd.f32 0.0, %v1630
      %1632 = vdwg.mxu0
      %s1633 = scalar_lea.vmem %s25, 16
      %v1634 = vld [vmem:[%s1633] sm:$0xff]
      %v1636 = vsel %vm1205, %v1631, 0
      %1638 = vmatpush.msra.mxu0 0.0
      %1639 = vmatpush.msra.mxu0 0.0
      %1640 = vmatpush.msra.mxu0 0.0
      %1641 = vmatpush.msra.mxu0 0.0
      %1642 = vmatpush.msra.mxu0 0.0
      %1643 = vmatpush.msra.mxu0 0.0
      %1644 = vmatpush.msra.mxu0 0.0
      %1645 = vmatpush.msra.mxu0 0.0
      %1646 = vmatpush.msra.mxu0 0.0
      %1647 = vmatpush.msra.mxu0 0.0
      %1648 = vmatpush.msra.mxu0 0.0
      %1649 = vmatpush.msra.mxu0 0.0
      %1650 = vmatpush.msra.mxu0 0.0
      %1651 = vmatpush.msra.mxu0 0.0
      %1652 = vmatpush.msra.mxu0 0.0
      %1653 = vmatpush.msra.mxu0 %v1634
      %1654 = vmatmul.f32.gmra.mxu0 %v1636
      %v1655 = vpop.f32.mrf.mxu0
      %v1656 = vadd.f32 0.0, %v1655
      %1657 = vdwg.mxu0
      %v1658 = vadd.f32 %v1476, %v1656
      %s1659 = scalar_lea.vmem %s13, 96
      %v1660 = vld [vmem:[%s1659] sm:$0xff]
      %v1661 = vld [vmem:[%s1659 + $0x8] sm:$0xff]
      %v1662 = vld [vmem:[%s1659 + $0x10] sm:$0xff]
      %v1663 = vld [vmem:[%s1659 + $0x18] sm:$0xff]
      %s1664 = scalar_lea.vmem %s15, 3
      %v1665 = vld [vmem:[%s1664] sm:$0x1]
      %v1667 = vperm.slane %v1665, 0
      %1669 = vmatpush.msra.mxu0 0.0
      %1670 = vmatpush.msra.mxu0 0.0
      %1671 = vmatpush.msra.mxu0 0.0
      %1672 = vmatpush.msra.mxu0 0.0
      %1673 = vmatpush.msra.mxu0 0.0
      %1674 = vmatpush.msra.mxu0 0.0
      %1675 = vmatpush.msra.mxu0 0.0
      %1676 = vmatpush.msra.mxu0 0.0
      %1677 = vmatpush.msra.mxu0 0.0
      %1678 = vmatpush.msra.mxu0 0.0
      %1679 = vmatpush.msra.mxu0 0.0
      %1680 = vmatpush.msra.mxu0 0.0
      %1681 = vmatpush.msra.mxu0 %v1663
      %1682 = vmatpush.msra.mxu0 %v1662
      %1683 = vmatpush.msra.mxu0 %v1661
      %1684 = vmatpush.msra.mxu0 %v1660
      %1685 = vmatmul.f32.gmra.mxu0 %v1127
      %v1686 = vpop.f32.mrf.mxu0
      %v1687 = vadd.f32 %v1667, %v1686
      %1688 = vdwg.mxu0
      %s1689 = scalar_lea.vmem %s17, 96
      %v1690 = vld [vmem:[%s1689] sm:$0xff]
      %v1691 = vld [vmem:[%s1689 + $0x8] sm:$0xff]
      %v1692 = vld [vmem:[%s1689 + $0x10] sm:$0xff]
      %v1693 = vld [vmem:[%s1689 + $0x18] sm:$0xff]
      %s1694 = scalar_lea.vmem %s19, 3
      %v1695 = vld [vmem:[%s1694] sm:$0x1]
      %v1697 = vperm.slane %v1695, 0
      %1699 = vmatpush.msra.mxu0 0.0
      %1700 = vmatpush.msra.mxu0 0.0
      %1701 = vmatpush.msra.mxu0 0.0
      %1702 = vmatpush.msra.mxu0 0.0
      %1703 = vmatpush.msra.mxu0 0.0
      %1704 = vmatpush.msra.mxu0 0.0
      %1705 = vmatpush.msra.mxu0 0.0
      %1706 = vmatpush.msra.mxu0 0.0
      %1707 = vmatpush.msra.mxu0 0.0
      %1708 = vmatpush.msra.mxu0 0.0
      %1709 = vmatpush.msra.mxu0 0.0
      %1710 = vmatpush.msra.mxu0 0.0
      %1711 = vmatpush.msra.mxu0 %v1693
      %1712 = vmatpush.msra.mxu0 %v1692
      %1713 = vmatpush.msra.mxu0 %v1691
      %1714 = vmatpush.msra.mxu0 %v1690
      %1715 = vmatmul.f32.gmra.mxu0 %v1127
      %v1716 = vpop.f32.mrf.mxu0
      %v1717 = vadd.f32 %v1697, %v1716
      %1718 = vdwg.mxu0
      %s1719 = scalar_lea.vmem %s21, 96
      %v1720 = vld [vmem:[%s1719] sm:$0xff]
      %v1721 = vld [vmem:[%s1719 + $0x8] sm:$0xff]
      %v1722 = vld [vmem:[%s1719 + $0x10] sm:$0xff]
      %v1723 = vld [vmem:[%s1719 + $0x18] sm:$0xff]
      %s1724 = scalar_lea.vmem %s23, 3
      %v1725 = vld [vmem:[%s1724] sm:$0x1]
      %v1727 = vperm.slane %v1725, 0
      %1729 = vmatpush.msra.mxu0 0.0
      %1730 = vmatpush.msra.mxu0 0.0
      %1731 = vmatpush.msra.mxu0 0.0
      %1732 = vmatpush.msra.mxu0 0.0
      %1733 = vmatpush.msra.mxu0 0.0
      %1734 = vmatpush.msra.mxu0 0.0
      %1735 = vmatpush.msra.mxu0 0.0
      %1736 = vmatpush.msra.mxu0 0.0
      %1737 = vmatpush.msra.mxu0 0.0
      %1738 = vmatpush.msra.mxu0 0.0
      %1739 = vmatpush.msra.mxu0 0.0
      %1740 = vmatpush.msra.mxu0 0.0
      %1741 = vmatpush.msra.mxu0 %v1723
      %1742 = vmatpush.msra.mxu0 %v1722
      %1743 = vmatpush.msra.mxu0 %v1721
      %1744 = vmatpush.msra.mxu0 %v1720
      %1745 = vmatmul.f32.gmra.mxu0 %v1127
      %v1746 = vpop.f32.mrf.mxu0
      %v1747 = vadd.f32 %v1727, %v1746
      %1748 = vdwg.mxu0
      %v1750 = vsel %vm1205, %v1687, 0
      %v1753 = vsel %vm1205, %v1717, 0
      %1755 = vmatpush.xpose.msra.mxu0 0.0
      %1756 = vmatpush.xpose.msra.mxu0 0.0
      %1757 = vmatpush.xpose.msra.mxu0 0.0
      %1758 = vmatpush.xpose.msra.mxu0 0.0
      %1759 = vmatpush.xpose.msra.mxu0 0.0
      %1760 = vmatpush.xpose.msra.mxu0 0.0
      %1761 = vmatpush.xpose.msra.mxu0 0.0
      %1762 = vmatpush.xpose.msra.mxu0 0.0
      %1763 = vmatpush.xpose.msra.mxu0 0.0
      %1764 = vmatpush.xpose.msra.mxu0 0.0
      %1765 = vmatpush.xpose.msra.mxu0 0.0
      %1766 = vmatpush.xpose.msra.mxu0 0.0
      %1767 = vmatpush.xpose.msra.mxu0 0.0
      %1768 = vmatpush.xpose.msra.mxu0 0.0
      %1769 = vmatpush.xpose.msra.mxu0 0.0
      %1770 = vmatpush.xpose.msra.mxu0 %v1753
      %1771 = vmatmul.f32.gmra.mxu0 %v1750
      %v1772 = vpop.f32.mrf.mxu0
      %v1773 = vadd.f32 0.0, %v1772
      %1774 = vdwg.mxu0
      %v1775 = vmul.f32 %v1773, 0.35355338
      %v1776 = vsel %vm1076, %v1775, -1e+30
      %v1777 = vsel %vm1234, %v1776, -inf
      %1778 = vmax.xlane.f32.xlu0 %v1777
      %v1779 = vpop.xlane.xlu0 %1778
      %v1780 = vsub.f32 %v1776, %v1779
      %v1781 = vmul.f32 %v1780, 1.442695
      %v1782 = vpow.pop %v1781
      %v1783 = vsel %vm1234, %v1782, 0.0
      %1784 = vadd.xlane.f32.xlu0 %v1783
      %v1785 = vpop.xlane.xlu0 %1784
      %v1786 = vrcp.pop %v1785
      %v1787 = vmul.f32 %v1782, %v1786
      %v1789 = vsel %vm1246, %v1787, 0
      %v1792 = vsel %vm1250, %v1747, 0
      %1794 = vmatpush.msra.mxu0 0.0
      %1795 = vmatpush.msra.mxu0 0.0
      %1796 = vmatpush.msra.mxu0 0.0
      %1797 = vmatpush.msra.mxu0 0.0
      %1798 = vmatpush.msra.mxu0 0.0
      %1799 = vmatpush.msra.mxu0 0.0
      %1800 = vmatpush.msra.mxu0 0.0
      %1801 = vmatpush.msra.mxu0 0.0
      %1802 = vmatpush.msra.mxu0 0.0
      %1803 = vmatpush.msra.mxu0 0.0
      %1804 = vmatpush.msra.mxu0 0.0
      %1805 = vmatpush.msra.mxu0 0.0
      %1806 = vmatpush.msra.mxu0 0.0
      %1807 = vmatpush.msra.mxu0 0.0
      %1808 = vmatpush.msra.mxu0 0.0
      %1809 = vmatpush.msra.mxu0 %v1792
      %1810 = vmatmul.f32.gmra.mxu0 %v1789
      %v1811 = vpop.f32.mrf.mxu0
      %v1812 = vadd.f32 0.0, %v1811
      %1813 = vdwg.mxu0
      %s1814 = scalar_lea.vmem %s25, 24
      %v1815 = vld [vmem:[%s1814] sm:$0xff]
      %v1817 = vsel %vm1205, %v1812, 0
      %1819 = vmatpush.msra.mxu0 0.0
      %1820 = vmatpush.msra.mxu0 0.0
      %1821 = vmatpush.msra.mxu0 0.0
      %1822 = vmatpush.msra.mxu0 0.0
      %1823 = vmatpush.msra.mxu0 0.0
      %1824 = vmatpush.msra.mxu0 0.0
      %1825 = vmatpush.msra.mxu0 0.0
      %1826 = vmatpush.msra.mxu0 0.0
      %1827 = vmatpush.msra.mxu0 0.0
      %1828 = vmatpush.msra.mxu0 0.0
      %1829 = vmatpush.msra.mxu0 0.0
      %1830 = vmatpush.msra.mxu0 0.0
      %1831 = vmatpush.msra.mxu0 0.0
      %1832 = vmatpush.msra.mxu0 0.0
      %1833 = vmatpush.msra.mxu0 0.0
      %1834 = vmatpush.msra.mxu0 %v1815
      %1835 = vmatmul.f32.gmra.mxu0 %v1817
      %v1836 = vpop.f32.mrf.mxu0
      %v1837 = vadd.f32 0.0, %v1836
      %1838 = vdwg.mxu0
      %v1839 = vadd.f32 %v1658, %v1837
      %v1840 = vadd.f32 %v1071, %v1839
      %v1841 = vld [vmem:[%s27] sm:$0x1]
      %v1843 = vperm.slane %v1841, 0
      %v1845 = vadd.f32 %v1840, %v1843
      %v1846 = vld [vmem:[%s29] sm:$0x1]
      %v1847 = vld [vmem:[%s31] sm:$0x1]
      %v1848 = vsel %vm1079, %v1845, 0.0
      %1849 = vadd.xlane.f32.xlu0 %v1848
      %v1850 = vpop.xlane.xlu0 %1849
      %v1851 = vmul.f32 %v1850, %v1089
      %v1852 = vsub.f32 %v1845, %v1851
      %v1853 = vmul.f32 %v1852, %v1852
      %v1854 = vsel %vm1079, %v1853, 0.0
      %1855 = vadd.xlane.f32.xlu0 %v1854
      %v1856 = vpop.xlane.xlu0 %1855
      %v1857 = vmul.f32 %v1856, %v1089
      %v1858 = vadd.f32 %v1857, 1e-05
      %v1859 = vrsqrt.pop %v1858
      %v1860 = vmul.f32 %v1859, %v1858
      %v1861 = vmul.f32 %v1860, %v1859
      %v1862 = vmul.f32 0.5, %v1861
      %v1863 = vsub.f32 1.5, %v1862
      %v1864 = vmul.f32 %v1859, %v1863
      %vm1865 = vweird.f32 %v1858
      %vm1866 = vweird.f32 %v1859
      %vm1867 = vmor %vm1865, %vm1866
      %v1868 = vsel %vm1867, %v1859, %v1864
      %v1869 = vmul.f32 %v1852, %v1868
      %v1871 = vperm.slane %v1846, 0
      %v1873 = vmul.f32 %v1869, %v1871
      %v1875 = vperm.slane %v1847, 0
      %v1877 = vadd.f32 %v1873, %v1875
      %v1878 = vld [vmem:[%s33] sm:$0xff]
      %v1879 = vld [vmem:[%s33 + $0x8] sm:$0xff]
      %v1880 = vld [vmem:[%s33 + $0x10] sm:$0xff]
      %v1881 = vld [vmem:[%s33 + $0x18] sm:$0xff]
      %v1882 = vld [vmem:[%s35] sm:$0x1]
      %v1884 = vperm.slane %v1882, 0
      %v1887 = vsel %vm1125, %v1877, 0
      %1889 = vmatpush.msra.mxu0 0.0
      %1890 = vmatpush.msra.mxu0 0.0
      %1891 = vmatpush.msra.mxu0 0.0
      %1892 = vmatpush.msra.mxu0 0.0
      %1893 = vmatpush.msra.mxu0 0.0
      %1894 = vmatpush.msra.mxu0 0.0
      %1895 = vmatpush.msra.mxu0 0.0
      %1896 = vmatpush.msra.mxu0 0.0
      %1897 = vmatpush.msra.mxu0 0.0
      %1898 = vmatpush.msra.mxu0 0.0
      %1899 = vmatpush.msra.mxu0 0.0
      %1900 = vmatpush.msra.mxu0 0.0
      %1901 = vmatpush.msra.mxu0 %v1881
      %1902 = vmatpush.msra.mxu0 %v1880
      %1903 = vmatpush.msra.mxu0 %v1879
      %1904 = vmatpush.msra.mxu0 %v1878
      %1905 = vmatmul.f32.gmra.mxu0 %v1887
      %v1906 = vpop.f32.mrf.mxu0
      %v1907 = vadd.f32 %v1884, %v1906
      %1908 = vdwg.mxu0
      %v1909 = vmul.f32 %v1907, 0.5
      %v1910 = vmul.f32 %v1907, 0.044715
      %v1911 = vmul.f32 %v1910, %v1907
      %v1912 = vmul.f32 %v1911, %v1907
      %v1913 = vadd.f32 %v1907, %v1912
      %v1914 = vmul.f32 %v1913, 0.7978846
      %v1915 = vtanh.pop %v1914
      %v1916 = vadd.f32 %v1915, 1.0
      %v1917 = vmul.f32 %v1909, %v1916
      %v1918 = vld [vmem:[%s37] sm:$0xff]
      %v1919 = vld [vmem:[%s37 + $0x8] sm:$0xff]
      %v1920 = vld [vmem:[%s37 + $0x10] sm:$0xff]
      %v1921 = vld [vmem:[%s37 + $0x18] sm:$0xff]
      %v1922 = vld [vmem:[%s37 + $0x20] sm:$0xff]
      %v1923 = vld [vmem:[%s37 + $0x28] sm:$0xff]
      %v1924 = vld [vmem:[%s37 + $0x30] sm:$0xff]
      %v1925 = vld [vmem:[%s37 + $0x38] sm:$0xff]
      %v1926 = vld [vmem:[%s37 + $0x40] sm:$0xff]
      %v1927 = vld [vmem:[%s37 + $0x48] sm:$0xff]
      %v1928 = vld [vmem:[%s37 + $0x50] sm:$0xff]
      %v1929 = vld [vmem:[%s37 + $0x58] sm:$0xff]
      %v1930 = vld [vmem:[%s37 + $0x60] sm:$0xff]
      %v1931 = vld [vmem:[%s37 + $0x68] sm:$0xff]
      %v1932 = vld [vmem:[%s37 + $0x70] sm:$0xff]
      %v1933 = vld [vmem:[%s37 + $0x78] sm:$0xff]
      %1934 = vmatpush.msra.mxu0 %v1933
      %1935 = vmatpush.msra.mxu0 %v1932
      %1936 = vmatpush.msra.mxu0 %v1931
      %1937 = vmatpush.msra.mxu0 %v1930
      %1938 = vmatpush.msra.mxu0 %v1929
      %1939 = vmatpush.msra.mxu0 %v1928
      %1940 = vmatpush.msra.mxu0 %v1927
      %1941 = vmatpush.msra.mxu0 %v1926
      %1942 = vmatpush.msra.mxu0 %v1925
      %1943 = vmatpush.msra.mxu0 %v1924
      %1944 = vmatpush.msra.mxu0 %v1923
      %1945 = vmatpush.msra.mxu0 %v1922
      %1946 = vmatpush.msra.mxu0 %v1921
      %1947 = vmatpush.msra.mxu0 %v1920
      %1948 = vmatpush.msra.mxu0 %v1919
      %1949 = vmatpush.msra.mxu0 %v1918
      %1950 = vmatmul.f32.gmra.mxu0 %v1917
      %v1951 = vpop.f32.mrf.mxu0
      %v1952 = vadd.f32 0.0, %v1951
      %1953 = vdwg.mxu0
      %v1954 = vadd.f32 %v1845, %v1952
      %v1955 = vld [vmem:[%s39] sm:$0x1]
      %v1957 = vperm.slane %v1955, 0
      %v1959 = vadd.f32 %v1954, %v1957
      %s1960 = scalar_lea.vmem %s9, 1
      %v1961 = vld [vmem:[%s1960] sm:$0x1]
      %s1962 = scalar_lea.vmem %s11, 1
      %v1963 = vld [vmem:[%s1962] sm:$0x1]
      %v1964 = vsel %vm1079, %v1959, 0.0
      %1965 = vadd.xlane.f32.xlu0 %v1964
      %v1966 = vpop.xlane.xlu0 %1965
      %v1967 = vmul.f32 %v1966, %v1089
      %v1968 = vsub.f32 %v1959, %v1967
      %v1969 = vmul.f32 %v1968, %v1968
      %v1970 = vsel %vm1079, %v1969, 0.0
      %1971 = vadd.xlane.f32.xlu0 %v1970
      %v1972 = vpop.xlane.xlu0 %1971
      %v1973 = vmul.f32 %v1972, %v1089
      %v1974 = vadd.f32 %v1973, 1e-05
      %v1975 = vrsqrt.pop %v1974
      %v1976 = vmul.f32 %v1975, %v1974
      %v1977 = vmul.f32 %v1976, %v1975
      %v1978 = vmul.f32 0.5, %v1977
      %v1979 = vsub.f32 1.5, %v1978
      %v1980 = vmul.f32 %v1975, %v1979
      %vm1981 = vweird.f32 %v1974
      %vm1982 = vweird.f32 %v1975
      %vm1983 = vmor %vm1981, %vm1982
      %v1984 = vsel %vm1983, %v1975, %v1980
      %v1985 = vmul.f32 %v1968, %v1984
      %v1987 = vperm.slane %v1961, 0
      %v1989 = vmul.f32 %v1985, %v1987
      %v1991 = vperm.slane %v1963, 0
      %v1993 = vadd.f32 %v1989, %v1991
      %s1994 = scalar_lea.vmem %s13, 128
      %v1995 = vld [vmem:[%s1994] sm:$0xff]
      %v1996 = vld [vmem:[%s1994 + $0x8] sm:$0xff]
      %v1997 = vld [vmem:[%s1994 + $0x10] sm:$0xff]
      %v1998 = vld [vmem:[%s1994 + $0x18] sm:$0xff]
      %s1999 = scalar_lea.vmem %s15, 4
      %v2000 = vld [vmem:[%s1999] sm:$0x1]
      %v2002 = vperm.slane %v2000, 0
      %v2005 = vsel %vm1125, %v1993, 0
      %2007 = vmatpush.msra.mxu0 0.0
      %2008 = vmatpush.msra.mxu0 0.0
      %2009 = vmatpush.msra.mxu0 0.0
      %2010 = vmatpush.msra.mxu0 0.0
      %2011 = vmatpush.msra.mxu0 0.0
      %2012 = vmatpush.msra.mxu0 0.0
      %2013 = vmatpush.msra.mxu0 0.0
      %2014 = vmatpush.msra.mxu0 0.0
      %2015 = vmatpush.msra.mxu0 0.0
      %2016 = vmatpush.msra.mxu0 0.0
      %2017 = vmatpush.msra.mxu0 0.0
      %2018 = vmatpush.msra.mxu0 0.0
      %2019 = vmatpush.msra.mxu0 %v1998
      %2020 = vmatpush.msra.mxu0 %v1997
      %2021 = vmatpush.msra.mxu0 %v1996
      %2022 = vmatpush.msra.mxu0 %v1995
      %2023 = vmatmul.f32.gmra.mxu0 %v2005
      %v2024 = vpop.f32.mrf.mxu0
      %v2025 = vadd.f32 %v2002, %v2024
      %2026 = vdwg.mxu0
      %s2027 = scalar_lea.vmem %s17, 128
      %v2028 = vld [vmem:[%s2027] sm:$0xff]
      %v2029 = vld [vmem:[%s2027 + $0x8] sm:$0xff]
      %v2030 = vld [vmem:[%s2027 + $0x10] sm:$0xff]
      %v2031 = vld [vmem:[%s2027 + $0x18] sm:$0xff]
      %s2032 = scalar_lea.vmem %s19, 4
      %v2033 = vld [vmem:[%s2032] sm:$0x1]
      %v2035 = vperm.slane %v2033, 0
      %2037 = vmatpush.msra.mxu0 0.0
      %2038 = vmatpush.msra.mxu0 0.0
      %2039 = vmatpush.msra.mxu0 0.0
      %2040 = vmatpush.msra.mxu0 0.0
      %2041 = vmatpush.msra.mxu0 0.0
      %2042 = vmatpush.msra.mxu0 0.0
      %2043 = vmatpush.msra.mxu0 0.0
      %2044 = vmatpush.msra.mxu0 0.0
      %2045 = vmatpush.msra.mxu0 0.0
      %2046 = vmatpush.msra.mxu0 0.0
      %2047 = vmatpush.msra.mxu0 0.0
      %2048 = vmatpush.msra.mxu0 0.0
      %2049 = vmatpush.msra.mxu0 %v2031
      %2050 = vmatpush.msra.mxu0 %v2030
      %2051 = vmatpush.msra.mxu0 %v2029
      %2052 = vmatpush.msra.mxu0 %v2028
      %2053 = vmatmul.f32.gmra.mxu0 %v2005
      %v2054 = vpop.f32.mrf.mxu0
      %v2055 = vadd.f32 %v2035, %v2054
      %2056 = vdwg.mxu0
      %s2057 = scalar_lea.vmem %s21, 128
      %v2058 = vld [vmem:[%s2057] sm:$0xff]
      %v2059 = vld [vmem:[%s2057 + $0x8] sm:$0xff]
      %v2060 = vld [vmem:[%s2057 + $0x10] sm:$0xff]
      %v2061 = vld [vmem:[%s2057 + $0x18] sm:$0xff]
      %s2062 = scalar_lea.vmem %s23, 4
      %v2063 = vld [vmem:[%s2062] sm:$0x1]
      %v2065 = vperm.slane %v2063, 0
      %2067 = vmatpush.msra.mxu0 0.0
      %2068 = vmatpush.msra.mxu0 0.0
      %2069 = vmatpush.msra.mxu0 0.0
      %2070 = vmatpush.msra.mxu0 0.0
      %2071 = vmatpush.msra.mxu0 0.0
      %2072 = vmatpush.msra.mxu0 0.0
      %2073 = vmatpush.msra.mxu0 0.0
      %2074 = vmatpush.msra.mxu0 0.0
      %2075 = vmatpush.msra.mxu0 0.0
      %2076 = vmatpush.msra.mxu0 0.0
      %2077 = vmatpush.msra.mxu0 0.0
      %2078 = vmatpush.msra.mxu0 0.0
      %2079 = vmatpush.msra.mxu0 %v2061
      %2080 = vmatpush.msra.mxu0 %v2060
      %2081 = vmatpush.msra.mxu0 %v2059
      %2082 = vmatpush.msra.mxu0 %v2058
      %2083 = vmatmul.f32.gmra.mxu0 %v2005
      %v2084 = vpop.f32.mrf.mxu0
      %v2085 = vadd.f32 %v2065, %v2084
      %2086 = vdwg.mxu0
      %v2088 = vsel %vm1205, %v2025, 0
      %v2091 = vsel %vm1205, %v2055, 0
      %2093 = vmatpush.xpose.msra.mxu0 0.0
      %2094 = vmatpush.xpose.msra.mxu0 0.0
      %2095 = vmatpush.xpose.msra.mxu0 0.0
      %2096 = vmatpush.xpose.msra.mxu0 0.0
      %2097 = vmatpush.xpose.msra.mxu0 0.0
      %2098 = vmatpush.xpose.msra.mxu0 0.0
      %2099 = vmatpush.xpose.msra.mxu0 0.0
      %2100 = vmatpush.xpose.msra.mxu0 0.0
      %2101 = vmatpush.xpose.msra.mxu0 0.0
      %2102 = vmatpush.xpose.msra.mxu0 0.0
      %2103 = vmatpush.xpose.msra.mxu0 0.0
      %2104 = vmatpush.xpose.msra.mxu0 0.0
      %2105 = vmatpush.xpose.msra.mxu0 0.0
      %2106 = vmatpush.xpose.msra.mxu0 0.0
      %2107 = vmatpush.xpose.msra.mxu0 0.0
      %2108 = vmatpush.xpose.msra.mxu0 %v2091
      %2109 = vmatmul.f32.gmra.mxu0 %v2088
      %v2110 = vpop.f32.mrf.mxu0
      %v2111 = vadd.f32 0.0, %v2110
      %2112 = vdwg.mxu0
      %v2113 = vmul.f32 %v2111, 0.35355338
      %v2114 = vsel %vm1076, %v2113, -1e+30
      %v2115 = vsel %vm1234, %v2114, -inf
      %2116 = vmax.xlane.f32.xlu0 %v2115
      %v2117 = vpop.xlane.xlu0 %2116
      %v2118 = vsub.f32 %v2114, %v2117
      %v2119 = vmul.f32 %v2118, 1.442695
      %v2120 = vpow.pop %v2119
      %v2121 = vsel %vm1234, %v2120, 0.0
      %2122 = vadd.xlane.f32.xlu0 %v2121
      %v2123 = vpop.xlane.xlu0 %2122
      %v2124 = vrcp.pop %v2123
      %v2125 = vmul.f32 %v2120, %v2124
      %v2127 = vsel %vm1246, %v2125, 0
      %v2130 = vsel %vm1250, %v2085, 0
      %2132 = vmatpush.msra.mxu0 0.0
      %2133 = vmatpush.msra.mxu0 0.0
      %2134 = vmatpush.msra.mxu0 0.0
      %2135 = vmatpush.msra.mxu0 0.0
      %2136 = vmatpush.msra.mxu0 0.0
      %2137 = vmatpush.msra.mxu0 0.0
      %2138 = vmatpush.msra.mxu0 0.0
      %2139 = vmatpush.msra.mxu0 0.0
      %2140 = vmatpush.msra.mxu0 0.0
      %2141 = vmatpush.msra.mxu0 0.0
      %2142 = vmatpush.msra.mxu0 0.0
      %2143 = vmatpush.msra.mxu0 0.0
      %2144 = vmatpush.msra.mxu0 0.0
      %2145 = vmatpush.msra.mxu0 0.0
      %2146 = vmatpush.msra.mxu0 0.0
      %2147 = vmatpush.msra.mxu0 %v2130
      %2148 = vmatmul.f32.gmra.mxu0 %v2127
      %v2149 = vpop.f32.mrf.mxu0
      %v2150 = vadd.f32 0.0, %v2149
      %2151 = vdwg.mxu0
      %s2152 = scalar_lea.vmem %s25, 32
      %v2153 = vld [vmem:[%s2152] sm:$0xff]
      %s2154 = scalar_lea.vmem %s13, 160
      %v2155 = vld [vmem:[%s2154] sm:$0xff]
      %v2156 = vld [vmem:[%s2154 + $0x8] sm:$0xff]
      %v2157 = vld [vmem:[%s2154 + $0x10] sm:$0xff]
      %v2158 = vld [vmem:[%s2154 + $0x18] sm:$0xff]
      %s2159 = scalar_lea.vmem %s15, 5
      %v2160 = vld [vmem:[%s2159] sm:$0x1]
      %v2162 = vperm.slane %v2160, 0
      %2164 = vmatpush.msra.mxu0 0.0
      %2165 = vmatpush.msra.mxu0 0.0
      %2166 = vmatpush.msra.mxu0 0.0
      %2167 = vmatpush.msra.mxu0 0.0
      %2168 = vmatpush.msra.mxu0 0.0
      %2169 = vmatpush.msra.mxu0 0.0
      %2170 = vmatpush.msra.mxu0 0.0
      %2171 = vmatpush.msra.mxu0 0.0
      %2172 = vmatpush.msra.mxu0 0.0
      %2173 = vmatpush.msra.mxu0 0.0
      %2174 = vmatpush.msra.mxu0 0.0
      %2175 = vmatpush.msra.mxu0 0.0
      %2176 = vmatpush.msra.mxu0 %v2158
      %2177 = vmatpush.msra.mxu0 %v2157
      %2178 = vmatpush.msra.mxu0 %v2156
      %2179 = vmatpush.msra.mxu0 %v2155
      %2180 = vmatmul.f32.gmra.mxu0 %v2005
      %v2181 = vpop.f32.mrf.mxu0
      %v2182 = vadd.f32 %v2162, %v2181
      %2183 = vdwg.mxu0
      %s2184 = scalar_lea.vmem %s17, 160
      %v2185 = vld [vmem:[%s2184] sm:$0xff]
      %v2186 = vld [vmem:[%s2184 + $0x8] sm:$0xff]
      %v2187 = vld [vmem:[%s2184 + $0x10] sm:$0xff]
      %v2188 = vld [vmem:[%s2184 + $0x18] sm:$0xff]
      %s2189 = scalar_lea.vmem %s19, 5
      %v2190 = vld [vmem:[%s2189] sm:$0x1]
      %v2192 = vperm.slane %v2190, 0
      %2194 = vmatpush.msra.mxu0 0.0
      %2195 = vmatpush.msra.mxu0 0.0
      %2196 = vmatpush.msra.mxu0 0.0
      %2197 = vmatpush.msra.mxu0 0.0
      %2198 = vmatpush.msra.mxu0 0.0
      %2199 = vmatpush.msra.mxu0 0.0
      %2200 = vmatpush.msra.mxu0 0.0
      %2201 = vmatpush.msra.mxu0 0.0
      %2202 = vmatpush.msra.mxu0 0.0
      %2203 = vmatpush.msra.mxu0 0.0
      %2204 = vmatpush.msra.mxu0 0.0
      %2205 = vmatpush.msra.mxu0 0.0
      %2206 = vmatpush.msra.mxu0 %v2188
      %2207 = vmatpush.msra.mxu0 %v2187
      %2208 = vmatpush.msra.mxu0 %v2186
      %2209 = vmatpush.msra.mxu0 %v2185
      %2210 = vmatmul.f32.gmra.mxu0 %v2005
      %v2211 = vpop.f32.mrf.mxu0
      %v2212 = vadd.f32 %v2192, %v2211
      %2213 = vdwg.mxu0
      %s2214 = scalar_lea.vmem %s21, 160
      %v2215 = vld [vmem:[%s2214] sm:$0xff]
      %v2216 = vld [vmem:[%s2214 + $0x8] sm:$0xff]
      %v2217 = vld [vmem:[%s2214 + $0x10] sm:$0xff]
      %v2218 = vld [vmem:[%s2214 + $0x18] sm:$0xff]
      %s2219 = scalar_lea.vmem %s23, 5
      %v2220 = vld [vmem:[%s2219] sm:$0x1]
      %v2222 = vperm.slane %v2220, 0
      %2224 = vmatpush.msra.mxu0 0.0
      %2225 = vmatpush.msra.mxu0 0.0
      %2226 = vmatpush.msra.mxu0 0.0
      %2227 = vmatpush.msra.mxu0 0.0
      %2228 = vmatpush.msra.mxu0 0.0
      %2229 = vmatpush.msra.mxu0 0.0
      %2230 = vmatpush.msra.mxu0 0.0
      %2231 = vmatpush.msra.mxu0 0.0
      %2232 = vmatpush.msra.mxu0 0.0
      %2233 = vmatpush.msra.mxu0 0.0
      %2234 = vmatpush.msra.mxu0 0.0
      %2235 = vmatpush.msra.mxu0 0.0
      %2236 = vmatpush.msra.mxu0 %v2218
      %2237 = vmatpush.msra.mxu0 %v2217
      %2238 = vmatpush.msra.mxu0 %v2216
      %2239 = vmatpush.msra.mxu0 %v2215
      %2240 = vmatmul.f32.gmra.mxu0 %v2005
      %v2241 = vpop.f32.mrf.mxu0
      %v2242 = vadd.f32 %v2222, %v2241
      %2243 = vdwg.mxu0
      %v2245 = vsel %vm1205, %v2182, 0
      %v2248 = vsel %vm1205, %v2212, 0
      %2250 = vmatpush.xpose.msra.mxu0 0.0
      %2251 = vmatpush.xpose.msra.mxu0 0.0
      %2252 = vmatpush.xpose.msra.mxu0 0.0
      %2253 = vmatpush.xpose.msra.mxu0 0.0
      %2254 = vmatpush.xpose.msra.mxu0 0.0
      %2255 = vmatpush.xpose.msra.mxu0 0.0
      %2256 = vmatpush.xpose.msra.mxu0 0.0
      %2257 = vmatpush.xpose.msra.mxu0 0.0
      %2258 = vmatpush.xpose.msra.mxu0 0.0
      %2259 = vmatpush.xpose.msra.mxu0 0.0
      %2260 = vmatpush.xpose.msra.mxu0 0.0
      %2261 = vmatpush.xpose.msra.mxu0 0.0
      %2262 = vmatpush.xpose.msra.mxu0 0.0
      %2263 = vmatpush.xpose.msra.mxu0 0.0
      %2264 = vmatpush.xpose.msra.mxu0 0.0
      %2265 = vmatpush.xpose.msra.mxu0 %v2248
      %2266 = vmatmul.f32.gmra.mxu0 %v2245
      %v2267 = vpop.f32.mrf.mxu0
      %v2268 = vadd.f32 0.0, %v2267
      %2269 = vdwg.mxu0
      %v2270 = vmul.f32 %v2268, 0.35355338
      %v2271 = vsel %vm1076, %v2270, -1e+30
      %v2272 = vsel %vm1234, %v2271, -inf
      %2273 = vmax.xlane.f32.xlu0 %v2272
      %v2274 = vpop.xlane.xlu0 %2273
      %v2275 = vsub.f32 %v2271, %v2274
      %v2276 = vmul.f32 %v2275, 1.442695
      %v2277 = vpow.pop %v2276
      %v2278 = vsel %vm1234, %v2277, 0.0
      %2279 = vadd.xlane.f32.xlu0 %v2278
      %v2280 = vpop.xlane.xlu0 %2279
      %v2281 = vrcp.pop %v2280
      %v2282 = vmul.f32 %v2277, %v2281
      %v2284 = vsel %vm1246, %v2282, 0
      %v2287 = vsel %vm1250, %v2242, 0
      %2289 = vmatpush.msra.mxu0 0.0
      %2290 = vmatpush.msra.mxu0 0.0
      %2291 = vmatpush.msra.mxu0 0.0
      %2292 = vmatpush.msra.mxu0 0.0
      %2293 = vmatpush.msra.mxu0 0.0
      %2294 = vmatpush.msra.mxu0 0.0
      %2295 = vmatpush.msra.mxu0 0.0
      %2296 = vmatpush.msra.mxu0 0.0
      %2297 = vmatpush.msra.mxu0 0.0
      %2298 = vmatpush.msra.mxu0 0.0
      %2299 = vmatpush.msra.mxu0 0.0
      %2300 = vmatpush.msra.mxu0 0.0
      %2301 = vmatpush.msra.mxu0 0.0
      %2302 = vmatpush.msra.mxu0 0.0
      %2303 = vmatpush.msra.mxu0 0.0
      %2304 = vmatpush.msra.mxu0 %v2287
      %2305 = vmatmul.f32.gmra.mxu0 %v2284
      %v2306 = vpop.f32.mrf.mxu0
      %v2307 = vadd.f32 0.0, %v2306
      %2308 = vdwg.mxu0
      %s2309 = scalar_lea.vmem %s25, 40
      %v2310 = vld [vmem:[%s2309] sm:$0xff]
      %v2312 = vsel %vm1205, %v2307, 0
      %2314 = vmatpush.msra.mxu0 0.0
      %2315 = vmatpush.msra.mxu0 0.0
      %2316 = vmatpush.msra.mxu0 0.0
      %2317 = vmatpush.msra.mxu0 0.0
      %2318 = vmatpush.msra.mxu0 0.0
      %2319 = vmatpush.msra.mxu0 0.0
      %2320 = vmatpush.msra.mxu0 0.0
      %2321 = vmatpush.msra.mxu0 0.0
      %2322 = vmatpush.msra.mxu0 0.0
      %2323 = vmatpush.msra.mxu0 0.0
      %2324 = vmatpush.msra.mxu0 0.0
      %2325 = vmatpush.msra.mxu0 0.0
      %2326 = vmatpush.msra.mxu0 0.0
      %2327 = vmatpush.msra.mxu0 0.0
      %2328 = vmatpush.msra.mxu0 0.0
      %2329 = vmatpush.msra.mxu0 %v2310
      %2330 = vmatmul.f32.gmra.mxu0 %v2312
      %v2331 = vpop.f32.mrf.mxu0
      %v2332 = vadd.f32 0.0, %v2331
      %2333 = vdwg.mxu0
      %v2335 = vsel %vm1205, %v2150, 0
      %2337 = vmatpush.msra.mxu0 0.0
      %2338 = vmatpush.msra.mxu0 0.0
      %2339 = vmatpush.msra.mxu0 0.0
      %2340 = vmatpush.msra.mxu0 0.0
      %2341 = vmatpush.msra.mxu0 0.0
      %2342 = vmatpush.msra.mxu0 0.0
      %2343 = vmatpush.msra.mxu0 0.0
      %2344 = vmatpush.msra.mxu0 0.0
      %2345 = vmatpush.msra.mxu0 0.0
      %2346 = vmatpush.msra.mxu0 0.0
      %2347 = vmatpush.msra.mxu0 0.0
      %2348 = vmatpush.msra.mxu0 0.0
      %2349 = vmatpush.msra.mxu0 0.0
      %2350 = vmatpush.msra.mxu0 0.0
      %2351 = vmatpush.msra.mxu0 0.0
      %2352 = vmatpush.msra.mxu0 %v2153
      %2353 = vmatmul.f32.gmra.mxu0 %v2335
      %v2354 = vpop.f32.mrf.mxu0
      %v2355 = vadd.f32 %v2332, %v2354
      %2356 = vdwg.mxu0
      %s2357 = scalar_lea.vmem %s13, 192
      %v2358 = vld [vmem:[%s2357] sm:$0xff]
      %v2359 = vld [vmem:[%s2357 + $0x8] sm:$0xff]
      %v2360 = vld [vmem:[%s2357 + $0x10] sm:$0xff]
      %v2361 = vld [vmem:[%s2357 + $0x18] sm:$0xff]
      %s2362 = scalar_lea.vmem %s15, 6
      %v2363 = vld [vmem:[%s2362] sm:$0x1]
      %v2365 = vperm.slane %v2363, 0
      %2367 = vmatpush.msra.mxu0 0.0
      %2368 = vmatpush.msra.mxu0 0.0
      %2369 = vmatpush.msra.mxu0 0.0
      %2370 = vmatpush.msra.mxu0 0.0
      %2371 = vmatpush.msra.mxu0 0.0
      %2372 = vmatpush.msra.mxu0 0.0
      %2373 = vmatpush.msra.mxu0 0.0
      %2374 = vmatpush.msra.mxu0 0.0
      %2375 = vmatpush.msra.mxu0 0.0
      %2376 = vmatpush.msra.mxu0 0.0
      %2377 = vmatpush.msra.mxu0 0.0
      %2378 = vmatpush.msra.mxu0 0.0
      %2379 = vmatpush.msra.mxu0 %v2361
      %2380 = vmatpush.msra.mxu0 %v2360
      %2381 = vmatpush.msra.mxu0 %v2359
      %2382 = vmatpush.msra.mxu0 %v2358
      %2383 = vmatmul.f32.gmra.mxu0 %v2005
      %v2384 = vpop.f32.mrf.mxu0
      %v2385 = vadd.f32 %v2365, %v2384
      %2386 = vdwg.mxu0
      %s2387 = scalar_lea.vmem %s17, 192
      %v2388 = vld [vmem:[%s2387] sm:$0xff]
      %v2389 = vld [vmem:[%s2387 + $0x8] sm:$0xff]
      %v2390 = vld [vmem:[%s2387 + $0x10] sm:$0xff]
      %v2391 = vld [vmem:[%s2387 + $0x18] sm:$0xff]
      %s2392 = scalar_lea.vmem %s19, 6
      %v2393 = vld [vmem:[%s2392] sm:$0x1]
      %v2395 = vperm.slane %v2393, 0
      %2397 = vmatpush.msra.mxu0 0.0
      %2398 = vmatpush.msra.mxu0 0.0
      %2399 = vmatpush.msra.mxu0 0.0
      %2400 = vmatpush.msra.mxu0 0.0
      %2401 = vmatpush.msra.mxu0 0.0
      %2402 = vmatpush.msra.mxu0 0.0
      %2403 = vmatpush.msra.mxu0 0.0
      %2404 = vmatpush.msra.mxu0 0.0
      %2405 = vmatpush.msra.mxu0 0.0
      %2406 = vmatpush.msra.mxu0 0.0
      %2407 = vmatpush.msra.mxu0 0.0
      %2408 = vmatpush.msra.mxu0 0.0
      %2409 = vmatpush.msra.mxu0 %v2391
      %2410 = vmatpush.msra.mxu0 %v2390
      %2411 = vmatpush.msra.mxu0 %v2389
      %2412 = vmatpush.msra.mxu0 %v2388
      %2413 = vmatmul.f32.gmra.mxu0 %v2005
      %v2414 = vpop.f32.mrf.mxu0
      %v2415 = vadd.f32 %v2395, %v2414
      %2416 = vdwg.mxu0
      %s2417 = scalar_lea.vmem %s21, 192
      %v2418 = vld [vmem:[%s2417] sm:$0xff]
      %v2419 = vld [vmem:[%s2417 + $0x8] sm:$0xff]
      %v2420 = vld [vmem:[%s2417 + $0x10] sm:$0xff]
      %v2421 = vld [vmem:[%s2417 + $0x18] sm:$0xff]
      %s2422 = scalar_lea.vmem %s23, 6
      %v2423 = vld [vmem:[%s2422] sm:$0x1]
      %v2425 = vperm.slane %v2423, 0
      %2427 = vmatpush.msra.mxu0 0.0
      %2428 = vmatpush.msra.mxu0 0.0
      %2429 = vmatpush.msra.mxu0 0.0
      %2430 = vmatpush.msra.mxu0 0.0
      %2431 = vmatpush.msra.mxu0 0.0
      %2432 = vmatpush.msra.mxu0 0.0
      %2433 = vmatpush.msra.mxu0 0.0
      %2434 = vmatpush.msra.mxu0 0.0
      %2435 = vmatpush.msra.mxu0 0.0
      %2436 = vmatpush.msra.mxu0 0.0
      %2437 = vmatpush.msra.mxu0 0.0
      %2438 = vmatpush.msra.mxu0 0.0
      %2439 = vmatpush.msra.mxu0 %v2421
      %2440 = vmatpush.msra.mxu0 %v2420
      %2441 = vmatpush.msra.mxu0 %v2419
      %2442 = vmatpush.msra.mxu0 %v2418
      %2443 = vmatmul.f32.gmra.mxu0 %v2005
      %v2444 = vpop.f32.mrf.mxu0
      %v2445 = vadd.f32 %v2425, %v2444
      %2446 = vdwg.mxu0
      %v2448 = vsel %vm1205, %v2385, 0
      %v2451 = vsel %vm1205, %v2415, 0
      %2453 = vmatpush.xpose.msra.mxu0 0.0
      %2454 = vmatpush.xpose.msra.mxu0 0.0
      %2455 = vmatpush.xpose.msra.mxu0 0.0
      %2456 = vmatpush.xpose.msra.mxu0 0.0
      %2457 = vmatpush.xpose.msra.mxu0 0.0
      %2458 = vmatpush.xpose.msra.mxu0 0.0
      %2459 = vmatpush.xpose.msra.mxu0 0.0
      %2460 = vmatpush.xpose.msra.mxu0 0.0
      %2461 = vmatpush.xpose.msra.mxu0 0.0
      %2462 = vmatpush.xpose.msra.mxu0 0.0
      %2463 = vmatpush.xpose.msra.mxu0 0.0
      %2464 = vmatpush.xpose.msra.mxu0 0.0
      %2465 = vmatpush.xpose.msra.mxu0 0.0
      %2466 = vmatpush.xpose.msra.mxu0 0.0
      %2467 = vmatpush.xpose.msra.mxu0 0.0
      %2468 = vmatpush.xpose.msra.mxu0 %v2451
      %2469 = vmatmul.f32.gmra.mxu0 %v2448
      %v2470 = vpop.f32.mrf.mxu0
      %v2471 = vadd.f32 0.0, %v2470
      %2472 = vdwg.mxu0
      %v2473 = vmul.f32 %v2471, 0.35355338
      %v2474 = vsel %vm1076, %v2473, -1e+30
      %v2475 = vsel %vm1234, %v2474, -inf
      %2476 = vmax.xlane.f32.xlu0 %v2475
      %v2477 = vpop.xlane.xlu0 %2476
      %v2478 = vsub.f32 %v2474, %v2477
      %v2479 = vmul.f32 %v2478, 1.442695
      %v2480 = vpow.pop %v2479
      %v2481 = vsel %vm1234, %v2480, 0.0
      %2482 = vadd.xlane.f32.xlu0 %v2481
      %v2483 = vpop.xlane.xlu0 %2482
      %v2484 = vrcp.pop %v2483
      %v2485 = vmul.f32 %v2480, %v2484
      %v2487 = vsel %vm1246, %v2485, 0
      %v2490 = vsel %vm1250, %v2445, 0
      %2492 = vmatpush.msra.mxu0 0.0
      %2493 = vmatpush.msra.mxu0 0.0
      %2494 = vmatpush.msra.mxu0 0.0
      %2495 = vmatpush.msra.mxu0 0.0
      %2496 = vmatpush.msra.mxu0 0.0
      %2497 = vmatpush.msra.mxu0 0.0
      %2498 = vmatpush.msra.mxu0 0.0
      %2499 = vmatpush.msra.mxu0 0.0
      %2500 = vmatpush.msra.mxu0 0.0
      %2501 = vmatpush.msra.mxu0 0.0
      %2502 = vmatpush.msra.mxu0 0.0
      %2503 = vmatpush.msra.mxu0 0.0
      %2504 = vmatpush.msra.mxu0 0.0
      %2505 = vmatpush.msra.mxu0 0.0
      %2506 = vmatpush.msra.mxu0 0.0
      %2507 = vmatpush.msra.mxu0 %v2490
      %2508 = vmatmul.f32.gmra.mxu0 %v2487
      %v2509 = vpop.f32.mrf.mxu0
      %v2510 = vadd.f32 0.0, %v2509
      %2511 = vdwg.mxu0
      %s2512 = scalar_lea.vmem %s25, 48
      %v2513 = vld [vmem:[%s2512] sm:$0xff]
      %v2515 = vsel %vm1205, %v2510, 0
      %2517 = vmatpush.msra.mxu0 0.0
      %2518 = vmatpush.msra.mxu0 0.0
      %2519 = vmatpush.msra.mxu0 0.0
      %2520 = vmatpush.msra.mxu0 0.0
      %2521 = vmatpush.msra.mxu0 0.0
      %2522 = vmatpush.msra.mxu0 0.0
      %2523 = vmatpush.msra.mxu0 0.0
      %2524 = vmatpush.msra.mxu0 0.0
      %2525 = vmatpush.msra.mxu0 0.0
      %2526 = vmatpush.msra.mxu0 0.0
      %2527 = vmatpush.msra.mxu0 0.0
      %2528 = vmatpush.msra.mxu0 0.0
      %2529 = vmatpush.msra.mxu0 0.0
      %2530 = vmatpush.msra.mxu0 0.0
      %2531 = vmatpush.msra.mxu0 0.0
      %2532 = vmatpush.msra.mxu0 %v2513
      %2533 = vmatmul.f32.gmra.mxu0 %v2515
      %v2534 = vpop.f32.mrf.mxu0
      %v2535 = vadd.f32 0.0, %v2534
      %2536 = vdwg.mxu0
      %v2537 = vadd.f32 %v2355, %v2535
      %s2538 = scalar_lea.vmem %s13, 224
      %v2539 = vld [vmem:[%s2538] sm:$0xff]
      %v2540 = vld [vmem:[%s2538 + $0x8] sm:$0xff]
      %v2541 = vld [vmem:[%s2538 + $0x10] sm:$0xff]
      %v2542 = vld [vmem:[%s2538 + $0x18] sm:$0xff]
      %s2543 = scalar_lea.vmem %s15, 7
      %v2544 = vld [vmem:[%s2543] sm:$0x1]
      %v2546 = vperm.slane %v2544, 0
      %2548 = vmatpush.msra.mxu0 0.0
      %2549 = vmatpush.msra.mxu0 0.0
      %2550 = vmatpush.msra.mxu0 0.0
      %2551 = vmatpush.msra.mxu0 0.0
      %2552 = vmatpush.msra.mxu0 0.0
      %2553 = vmatpush.msra.mxu0 0.0
      %2554 = vmatpush.msra.mxu0 0.0
      %2555 = vmatpush.msra.mxu0 0.0
      %2556 = vmatpush.msra.mxu0 0.0
      %2557 = vmatpush.msra.mxu0 0.0
      %2558 = vmatpush.msra.mxu0 0.0
      %2559 = vmatpush.msra.mxu0 0.0
      %2560 = vmatpush.msra.mxu0 %v2542
      %2561 = vmatpush.msra.mxu0 %v2541
      %2562 = vmatpush.msra.mxu0 %v2540
      %2563 = vmatpush.msra.mxu0 %v2539
      %2564 = vmatmul.f32.gmra.mxu0 %v2005
      %v2565 = vpop.f32.mrf.mxu0
      %v2566 = vadd.f32 %v2546, %v2565
      %2567 = vdwg.mxu0
      %s2568 = scalar_lea.vmem %s17, 224
      %v2569 = vld [vmem:[%s2568] sm:$0xff]
      %v2570 = vld [vmem:[%s2568 + $0x8] sm:$0xff]
      %v2571 = vld [vmem:[%s2568 + $0x10] sm:$0xff]
      %v2572 = vld [vmem:[%s2568 + $0x18] sm:$0xff]
      %s2573 = scalar_lea.vmem %s19, 7
      %v2574 = vld [vmem:[%s2573] sm:$0x1]
      %v2576 = vperm.slane %v2574, 0
      %2578 = vmatpush.msra.mxu0 0.0
      %2579 = vmatpush.msra.mxu0 0.0
      %2580 = vmatpush.msra.mxu0 0.0
      %2581 = vmatpush.msra.mxu0 0.0
      %2582 = vmatpush.msra.mxu0 0.0
      %2583 = vmatpush.msra.mxu0 0.0
      %2584 = vmatpush.msra.mxu0 0.0
      %2585 = vmatpush.msra.mxu0 0.0
      %2586 = vmatpush.msra.mxu0 0.0
      %2587 = vmatpush.msra.mxu0 0.0
      %2588 = vmatpush.msra.mxu0 0.0
      %2589 = vmatpush.msra.mxu0 0.0
      %2590 = vmatpush.msra.mxu0 %v2572
      %2591 = vmatpush.msra.mxu0 %v2571
      %2592 = vmatpush.msra.mxu0 %v2570
      %2593 = vmatpush.msra.mxu0 %v2569
      %2594 = vmatmul.f32.gmra.mxu0 %v2005
      %v2595 = vpop.f32.mrf.mxu0
      %v2596 = vadd.f32 %v2576, %v2595
      %2597 = vdwg.mxu0
      %s2598 = scalar_lea.vmem %s21, 224
      %v2599 = vld [vmem:[%s2598] sm:$0xff]
      %v2600 = vld [vmem:[%s2598 + $0x8] sm:$0xff]
      %v2601 = vld [vmem:[%s2598 + $0x10] sm:$0xff]
      %v2602 = vld [vmem:[%s2598 + $0x18] sm:$0xff]
      %s2603 = scalar_lea.vmem %s23, 7
      %v2604 = vld [vmem:[%s2603] sm:$0x1]
      %v2606 = vperm.slane %v2604, 0
      %2608 = vmatpush.msra.mxu0 0.0
      %2609 = vmatpush.msra.mxu0 0.0
      %2610 = vmatpush.msra.mxu0 0.0
      %2611 = vmatpush.msra.mxu0 0.0
      %2612 = vmatpush.msra.mxu0 0.0
      %2613 = vmatpush.msra.mxu0 0.0
      %2614 = vmatpush.msra.mxu0 0.0
      %2615 = vmatpush.msra.mxu0 0.0
      %2616 = vmatpush.msra.mxu0 0.0
      %2617 = vmatpush.msra.mxu0 0.0
      %2618 = vmatpush.msra.mxu0 0.0
      %2619 = vmatpush.msra.mxu0 0.0
      %2620 = vmatpush.msra.mxu0 %v2602
      %2621 = vmatpush.msra.mxu0 %v2601
      %2622 = vmatpush.msra.mxu0 %v2600
      %2623 = vmatpush.msra.mxu0 %v2599
      %2624 = vmatmul.f32.gmra.mxu0 %v2005
      %v2625 = vpop.f32.mrf.mxu0
      %v2626 = vadd.f32 %v2606, %v2625
      %2627 = vdwg.mxu0
      %v2629 = vsel %vm1205, %v2566, 0
      %v2632 = vsel %vm1205, %v2596, 0
      %2634 = vmatpush.xpose.msra.mxu0 0.0
      %2635 = vmatpush.xpose.msra.mxu0 0.0
      %2636 = vmatpush.xpose.msra.mxu0 0.0
      %2637 = vmatpush.xpose.msra.mxu0 0.0
      %2638 = vmatpush.xpose.msra.mxu0 0.0
      %2639 = vmatpush.xpose.msra.mxu0 0.0
      %2640 = vmatpush.xpose.msra.mxu0 0.0
      %2641 = vmatpush.xpose.msra.mxu0 0.0
      %2642 = vmatpush.xpose.msra.mxu0 0.0
      %2643 = vmatpush.xpose.msra.mxu0 0.0
      %2644 = vmatpush.xpose.msra.mxu0 0.0
      %2645 = vmatpush.xpose.msra.mxu0 0.0
      %2646 = vmatpush.xpose.msra.mxu0 0.0
      %2647 = vmatpush.xpose.msra.mxu0 0.0
      %2648 = vmatpush.xpose.msra.mxu0 0.0
      %2649 = vmatpush.xpose.msra.mxu0 %v2632
      %2650 = vmatmul.f32.gmra.mxu0 %v2629
      %v2651 = vpop.f32.mrf.mxu0
      %v2652 = vadd.f32 0.0, %v2651
      %2653 = vdwg.mxu0
      %v2654 = vmul.f32 %v2652, 0.35355338
      %v2655 = vsel %vm1076, %v2654, -1e+30
      %v2656 = vsel %vm1234, %v2655, -inf
      %2657 = vmax.xlane.f32.xlu0 %v2656
      %v2658 = vpop.xlane.xlu0 %2657
      %v2659 = vsub.f32 %v2655, %v2658
      %v2660 = vmul.f32 %v2659, 1.442695
      %v2661 = vpow.pop %v2660
      %v2662 = vsel %vm1234, %v2661, 0.0
      %2663 = vadd.xlane.f32.xlu0 %v2662
      %v2664 = vpop.xlane.xlu0 %2663
      %v2665 = vrcp.pop %v2664
      %v2666 = vmul.f32 %v2661, %v2665
      %v2668 = vsel %vm1246, %v2666, 0
      %v2671 = vsel %vm1250, %v2626, 0
      %2673 = vmatpush.msra.mxu0 0.0
      %2674 = vmatpush.msra.mxu0 0.0
      %2675 = vmatpush.msra.mxu0 0.0
      %2676 = vmatpush.msra.mxu0 0.0
      %2677 = vmatpush.msra.mxu0 0.0
      %2678 = vmatpush.msra.mxu0 0.0
      %2679 = vmatpush.msra.mxu0 0.0
      %2680 = vmatpush.msra.mxu0 0.0
      %2681 = vmatpush.msra.mxu0 0.0
      %2682 = vmatpush.msra.mxu0 0.0
      %2683 = vmatpush.msra.mxu0 0.0
      %2684 = vmatpush.msra.mxu0 0.0
      %2685 = vmatpush.msra.mxu0 0.0
      %2686 = vmatpush.msra.mxu0 0.0
      %2687 = vmatpush.msra.mxu0 0.0
      %2688 = vmatpush.msra.mxu0 %v2671
      %2689 = vmatmul.f32.gmra.mxu0 %v2668
      %v2690 = vpop.f32.mrf.mxu0
      %v2691 = vadd.f32 0.0, %v2690
      %2692 = vdwg.mxu0
      %s2693 = scalar_lea.vmem %s25, 56
      %v2694 = vld [vmem:[%s2693] sm:$0xff]
      %v2696 = vsel %vm1205, %v2691, 0
      %2698 = vmatpush.msra.mxu0 0.0
      %2699 = vmatpush.msra.mxu0 0.0
      %2700 = vmatpush.msra.mxu0 0.0
      %2701 = vmatpush.msra.mxu0 0.0
      %2702 = vmatpush.msra.mxu0 0.0
      %2703 = vmatpush.msra.mxu0 0.0
      %2704 = vmatpush.msra.mxu0 0.0
      %2705 = vmatpush.msra.mxu0 0.0
      %2706 = vmatpush.msra.mxu0 0.0
      %2707 = vmatpush.msra.mxu0 0.0
      %2708 = vmatpush.msra.mxu0 0.0
      %2709 = vmatpush.msra.mxu0 0.0
      %2710 = vmatpush.msra.mxu0 0.0
      %2711 = vmatpush.msra.mxu0 0.0
      %2712 = vmatpush.msra.mxu0 0.0
      %2713 = vmatpush.msra.mxu0 %v2694
      %2714 = vmatmul.f32.gmra.mxu0 %v2696
      %v2715 = vpop.f32.mrf.mxu0
      %v2716 = vadd.f32 0.0, %v2715
      %2717 = vdwg.mxu0
      %v2718 = vadd.f32 %v2537, %v2716
      %v2719 = vadd.f32 %v1959, %v2718
      %s2720 = scalar_lea.vmem %s27, 1
      %v2721 = vld [vmem:[%s2720] sm:$0x1]
      %v2723 = vperm.slane %v2721, 0
      %v2725 = vadd.f32 %v2719, %v2723
      %s2726 = scalar_lea.vmem %s29, 1
      %v2727 = vld [vmem:[%s2726] sm:$0x1]
      %s2728 = scalar_lea.vmem %s31, 1
      %v2729 = vld [vmem:[%s2728] sm:$0x1]
      %v2730 = vsel %vm1079, %v2725, 0.0
      %2731 = vadd.xlane.f32.xlu0 %v2730
      %v2732 = vpop.xlane.xlu0 %2731
      %v2733 = vmul.f32 %v2732, %v1089
      %v2734 = vsub.f32 %v2725, %v2733
      %v2735 = vmul.f32 %v2734, %v2734
      %v2736 = vsel %vm1079, %v2735, 0.0
      %2737 = vadd.xlane.f32.xlu0 %v2736
      %v2738 = vpop.xlane.xlu0 %2737
      %v2739 = vmul.f32 %v2738, %v1089
      %v2740 = vadd.f32 %v2739, 1e-05
      %v2741 = vrsqrt.pop %v2740
      %v2742 = vmul.f32 %v2741, %v2740
      %v2743 = vmul.f32 %v2742, %v2741
      %v2744 = vmul.f32 0.5, %v2743
      %v2745 = vsub.f32 1.5, %v2744
      %v2746 = vmul.f32 %v2741, %v2745
      %vm2747 = vweird.f32 %v2740
      %vm2748 = vweird.f32 %v2741
      %vm2749 = vmor %vm2747, %vm2748
      %v2750 = vsel %vm2749, %v2741, %v2746
      %v2751 = vmul.f32 %v2734, %v2750
      %v2753 = vperm.slane %v2727, 0
      %v2755 = vmul.f32 %v2751, %v2753
      %v2757 = vperm.slane %v2729, 0
      %v2759 = vadd.f32 %v2755, %v2757
      %s2760 = scalar_lea.vmem %s33, 32
      %v2761 = vld [vmem:[%s2760] sm:$0xff]
      %v2762 = vld [vmem:[%s2760 + $0x8] sm:$0xff]
      %v2763 = vld [vmem:[%s2760 + $0x10] sm:$0xff]
      %v2764 = vld [vmem:[%s2760 + $0x18] sm:$0xff]
      %s2765 = scalar_lea.vmem %s35, 1
      %v2766 = vld [vmem:[%s2765] sm:$0x1]
      %v2768 = vperm.slane %v2766, 0
      %v2771 = vsel %vm1125, %v2759, 0
      %2773 = vmatpush.msra.mxu0 0.0
      %2774 = vmatpush.msra.mxu0 0.0
      %2775 = vmatpush.msra.mxu0 0.0
      %2776 = vmatpush.msra.mxu0 0.0
      %2777 = vmatpush.msra.mxu0 0.0
      %2778 = vmatpush.msra.mxu0 0.0
      %2779 = vmatpush.msra.mxu0 0.0
      %2780 = vmatpush.msra.mxu0 0.0
      %2781 = vmatpush.msra.mxu0 0.0
      %2782 = vmatpush.msra.mxu0 0.0
      %2783 = vmatpush.msra.mxu0 0.0
      %2784 = vmatpush.msra.mxu0 0.0
      %2785 = vmatpush.msra.mxu0 %v2764
      %2786 = vmatpush.msra.mxu0 %v2763
      %2787 = vmatpush.msra.mxu0 %v2762
      %2788 = vmatpush.msra.mxu0 %v2761
      %2789 = vmatmul.f32.gmra.mxu0 %v2771
      %v2790 = vpop.f32.mrf.mxu0
      %v2791 = vadd.f32 %v2768, %v2790
      %2792 = vdwg.mxu0
      %v2793 = vmul.f32 %v2791, 0.5
      %v2794 = vmul.f32 %v2791, 0.044715
      %v2795 = vmul.f32 %v2794, %v2791
      %v2796 = vmul.f32 %v2795, %v2791
      %v2797 = vadd.f32 %v2791, %v2796
      %v2798 = vmul.f32 %v2797, 0.7978846
      %v2799 = vtanh.pop %v2798
      %v2800 = vadd.f32 %v2799, 1.0
      %v2801 = vmul.f32 %v2793, %v2800
      %s2802 = scalar_lea.vmem %s37, 128
      %v2803 = vld [vmem:[%s2802] sm:$0xff]
      %v2804 = vld [vmem:[%s2802 + $0x8] sm:$0xff]
      %v2805 = vld [vmem:[%s2802 + $0x10] sm:$0xff]
      %v2806 = vld [vmem:[%s2802 + $0x18] sm:$0xff]
      %v2807 = vld [vmem:[%s2802 + $0x20] sm:$0xff]
      %v2808 = vld [vmem:[%s2802 + $0x28] sm:$0xff]
      %v2809 = vld [vmem:[%s2802 + $0x30] sm:$0xff]
      %v2810 = vld [vmem:[%s2802 + $0x38] sm:$0xff]
      %v2811 = vld [vmem:[%s2802 + $0x40] sm:$0xff]
      %v2812 = vld [vmem:[%s2802 + $0x48] sm:$0xff]
      %v2813 = vld [vmem:[%s2802 + $0x50] sm:$0xff]
      %v2814 = vld [vmem:[%s2802 + $0x58] sm:$0xff]
      %v2815 = vld [vmem:[%s2802 + $0x60] sm:$0xff]
      %v2816 = vld [vmem:[%s2802 + $0x68] sm:$0xff]
      %v2817 = vld [vmem:[%s2802 + $0x70] sm:$0xff]
      %v2818 = vld [vmem:[%s2802 + $0x78] sm:$0xff]
      %2819 = vmatpush.msra.mxu0 %v2818
      %2820 = vmatpush.msra.mxu0 %v2817
      %2821 = vmatpush.msra.mxu0 %v2816
      %2822 = vmatpush.msra.mxu0 %v2815
      %2823 = vmatpush.msra.mxu0 %v2814
      %2824 = vmatpush.msra.mxu0 %v2813
      %2825 = vmatpush.msra.mxu0 %v2812
      %2826 = vmatpush.msra.mxu0 %v2811
      %2827 = vmatpush.msra.mxu0 %v2810
      %2828 = vmatpush.msra.mxu0 %v2809
      %2829 = vmatpush.msra.mxu0 %v2808
      %2830 = vmatpush.msra.mxu0 %v2807
      %2831 = vmatpush.msra.mxu0 %v2806
      %2832 = vmatpush.msra.mxu0 %v2805
      %2833 = vmatpush.msra.mxu0 %v2804
      %2834 = vmatpush.msra.mxu0 %v2803
      %2835 = vmatmul.f32.gmra.mxu0 %v2801
      %v2836 = vpop.f32.mrf.mxu0
      %v2837 = vadd.f32 0.0, %v2836
      %2838 = vdwg.mxu0
      %v2839 = vadd.f32 %v2725, %v2837
      %s2840 = scalar_lea.vmem %s39, 1
      %v2841 = vld [vmem:[%s2840] sm:$0x1]
      %v2843 = vperm.slane %v2841, 0
      %v2845 = vadd.f32 %v2839, %v2843
      %s2846 = scalar_lea.vmem %s9, 2
      %v2847 = vld [vmem:[%s2846] sm:$0x1]
      %s2848 = scalar_lea.vmem %s11, 2
      %v2849 = vld [vmem:[%s2848] sm:$0x1]
      %v2850 = vsel %vm1079, %v2845, 0.0
      %2851 = vadd.xlane.f32.xlu0 %v2850
      %v2852 = vpop.xlane.xlu0 %2851
      %v2853 = vmul.f32 %v2852, %v1089
      %v2854 = vsub.f32 %v2845, %v2853
      %v2855 = vmul.f32 %v2854, %v2854
      %v2856 = vsel %vm1079, %v2855, 0.0
      %2857 = vadd.xlane.f32.xlu0 %v2856
      %v2858 = vpop.xlane.xlu0 %2857
      %v2859 = vmul.f32 %v2858, %v1089
      %v2860 = vadd.f32 %v2859, 1e-05
      %v2861 = vrsqrt.pop %v2860
      %v2862 = vmul.f32 %v2861, %v2860
      %v2863 = vmul.f32 %v2862, %v2861
      %v2864 = vmul.f32 0.5, %v2863
      %v2865 = vsub.f32 1.5, %v2864
      %v2866 = vmul.f32 %v2861, %v2865
      %vm2867 = vweird.f32 %v2860
      %vm2868 = vweird.f32 %v2861
      %vm2869 = vmor %vm2867, %vm2868
      %v2870 = vsel %vm2869, %v2861, %v2866
      %v2871 = vmul.f32 %v2854, %v2870
      %v2873 = vperm.slane %v2847, 0
      %v2875 = vmul.f32 %v2871, %v2873
      %v2877 = vperm.slane %v2849, 0
      %v2879 = vadd.f32 %v2875, %v2877
      %s2880 = scalar_lea.vmem %s13, 256
      %v2881 = vld [vmem:[%s2880] sm:$0xff]
      %v2882 = vld [vmem:[%s2880 + $0x8] sm:$0xff]
      %v2883 = vld [vmem:[%s2880 + $0x10] sm:$0xff]
      %v2884 = vld [vmem:[%s2880 + $0x18] sm:$0xff]
      %s2885 = scalar_lea.vmem %s15, 8
      %v2886 = vld [vmem:[%s2885] sm:$0x1]
      %v2888 = vperm.slane %v2886, 0
      %v2891 = vsel %vm1125, %v2879, 0
      %2893 = vmatpush.msra.mxu0 0.0
      %2894 = vmatpush.msra.mxu0 0.0
      %2895 = vmatpush.msra.mxu0 0.0
      %2896 = vmatpush.msra.mxu0 0.0
      %2897 = vmatpush.msra.mxu0 0.0
      %2898 = vmatpush.msra.mxu0 0.0
      %2899 = vmatpush.msra.mxu0 0.0
      %2900 = vmatpush.msra.mxu0 0.0
      %2901 = vmatpush.msra.mxu0 0.0
      %2902 = vmatpush.msra.mxu0 0.0
      %2903 = vmatpush.msra.mxu0 0.0
      %2904 = vmatpush.msra.mxu0 0.0
      %2905 = vmatpush.msra.mxu0 %v2884
      %2906 = vmatpush.msra.mxu0 %v2883
      %2907 = vmatpush.msra.mxu0 %v2882
      %2908 = vmatpush.msra.mxu0 %v2881
      %2909 = vmatmul.f32.gmra.mxu0 %v2891
      %v2910 = vpop.f32.mrf.mxu0
      %v2911 = vadd.f32 %v2888, %v2910
      %2912 = vdwg.mxu0
      %s2913 = scalar_lea.vmem %s17, 256
      %v2914 = vld [vmem:[%s2913] sm:$0xff]
      %v2915 = vld [vmem:[%s2913 + $0x8] sm:$0xff]
      %v2916 = vld [vmem:[%s2913 + $0x10] sm:$0xff]
      %v2917 = vld [vmem:[%s2913 + $0x18] sm:$0xff]
      %s2918 = scalar_lea.vmem %s19, 8
      %v2919 = vld [vmem:[%s2918] sm:$0x1]
      %v2921 = vperm.slane %v2919, 0
      %2923 = vmatpush.msra.mxu0 0.0
      %2924 = vmatpush.msra.mxu0 0.0
      %2925 = vmatpush.msra.mxu0 0.0
      %2926 = vmatpush.msra.mxu0 0.0
      %2927 = vmatpush.msra.mxu0 0.0
      %2928 = vmatpush.msra.mxu0 0.0
      %2929 = vmatpush.msra.mxu0 0.0
      %2930 = vmatpush.msra.mxu0 0.0
      %2931 = vmatpush.msra.mxu0 0.0
      %2932 = vmatpush.msra.mxu0 0.0
      %2933 = vmatpush.msra.mxu0 0.0
      %2934 = vmatpush.msra.mxu0 0.0
      %2935 = vmatpush.msra.mxu0 %v2917
      %2936 = vmatpush.msra.mxu0 %v2916
      %2937 = vmatpush.msra.mxu0 %v2915
      %2938 = vmatpush.msra.mxu0 %v2914
      %2939 = vmatmul.f32.gmra.mxu0 %v2891
      %v2940 = vpop.f32.mrf.mxu0
      %v2941 = vadd.f32 %v2921, %v2940
      %2942 = vdwg.mxu0
      %s2943 = scalar_lea.vmem %s21, 256
      %v2944 = vld [vmem:[%s2943] sm:$0xff]
      %v2945 = vld [vmem:[%s2943 + $0x8] sm:$0xff]
      %v2946 = vld [vmem:[%s2943 + $0x10] sm:$0xff]
      %v2947 = vld [vmem:[%s2943 + $0x18] sm:$0xff]
      %s2948 = scalar_lea.vmem %s23, 8
      %v2949 = vld [vmem:[%s2948] sm:$0x1]
      %v2951 = vperm.slane %v2949, 0
      %2953 = vmatpush.msra.mxu0 0.0
      %2954 = vmatpush.msra.mxu0 0.0
      %2955 = vmatpush.msra.mxu0 0.0
      %2956 = vmatpush.msra.mxu0 0.0
      %2957 = vmatpush.msra.mxu0 0.0
      %2958 = vmatpush.msra.mxu0 0.0
      %2959 = vmatpush.msra.mxu0 0.0
      %2960 = vmatpush.msra.mxu0 0.0
      %2961 = vmatpush.msra.mxu0 0.0
      %2962 = vmatpush.msra.mxu0 0.0
      %2963 = vmatpush.msra.mxu0 0.0
      %2964 = vmatpush.msra.mxu0 0.0
      %2965 = vmatpush.msra.mxu0 %v2947
      %2966 = vmatpush.msra.mxu0 %v2946
      %2967 = vmatpush.msra.mxu0 %v2945
      %2968 = vmatpush.msra.mxu0 %v2944
      %2969 = vmatmul.f32.gmra.mxu0 %v2891
      %v2970 = vpop.f32.mrf.mxu0
      %v2971 = vadd.f32 %v2951, %v2970
      %2972 = vdwg.mxu0
      %v2974 = vsel %vm1205, %v2911, 0
      %v2977 = vsel %vm1205, %v2941, 0
      %2979 = vmatpush.xpose.msra.mxu0 0.0
      %2980 = vmatpush.xpose.msra.mxu0 0.0
      %2981 = vmatpush.xpose.msra.mxu0 0.0
      %2982 = vmatpush.xpose.msra.mxu0 0.0
      %2983 = vmatpush.xpose.msra.mxu0 0.0
      %2984 = vmatpush.xpose.msra.mxu0 0.0
      %2985 = vmatpush.xpose.msra.mxu0 0.0
      %2986 = vmatpush.xpose.msra.mxu0 0.0
      %2987 = vmatpush.xpose.msra.mxu0 0.0
      %2988 = vmatpush.xpose.msra.mxu0 0.0
      %2989 = vmatpush.xpose.msra.mxu0 0.0
      %2990 = vmatpush.xpose.msra.mxu0 0.0
      %2991 = vmatpush.xpose.msra.mxu0 0.0
      %2992 = vmatpush.xpose.msra.mxu0 0.0
      %2993 = vmatpush.xpose.msra.mxu0 0.0
      %2994 = vmatpush.xpose.msra.mxu0 %v2977
      %2995 = vmatmul.f32.gmra.mxu0 %v2974
      %v2996 = vpop.f32.mrf.mxu0
      %v2997 = vadd.f32 0.0, %v2996
      %2998 = vdwg.mxu0
      %v2999 = vmul.f32 %v2997, 0.35355338
      %v3000 = vsel %vm1076, %v2999, -1e+30
      %v3001 = vsel %vm1234, %v3000, -inf
      %3002 = vmax.xlane.f32.xlu0 %v3001
      %v3003 = vpop.xlane.xlu0 %3002
      %v3004 = vsub.f32 %v3000, %v3003
      %v3005 = vmul.f32 %v3004, 1.442695
      %v3006 = vpow.pop %v3005
      %v3007 = vsel %vm1234, %v3006, 0.0
      %3008 = vadd.xlane.f32.xlu0 %v3007
      %v3009 = vpop.xlane.xlu0 %3008
      %v3010 = vrcp.pop %v3009
      %v3011 = vmul.f32 %v3006, %v3010
      %v3013 = vsel %vm1246, %v3011, 0
      %v3016 = vsel %vm1250, %v2971, 0
      %3018 = vmatpush.msra.mxu0 0.0
      %3019 = vmatpush.msra.mxu0 0.0
      %3020 = vmatpush.msra.mxu0 0.0
      %3021 = vmatpush.msra.mxu0 0.0
      %3022 = vmatpush.msra.mxu0 0.0
      %3023 = vmatpush.msra.mxu0 0.0
      %3024 = vmatpush.msra.mxu0 0.0
      %3025 = vmatpush.msra.mxu0 0.0
      %3026 = vmatpush.msra.mxu0 0.0
      %3027 = vmatpush.msra.mxu0 0.0
      %3028 = vmatpush.msra.mxu0 0.0
      %3029 = vmatpush.msra.mxu0 0.0
      %3030 = vmatpush.msra.mxu0 0.0
      %3031 = vmatpush.msra.mxu0 0.0
      %3032 = vmatpush.msra.mxu0 0.0
      %3033 = vmatpush.msra.mxu0 %v3016
      %3034 = vmatmul.f32.gmra.mxu0 %v3013
      %v3035 = vpop.f32.mrf.mxu0
      %v3036 = vadd.f32 0.0, %v3035
      %3037 = vdwg.mxu0
      %s3038 = scalar_lea.vmem %s25, 64
      %v3039 = vld [vmem:[%s3038] sm:$0xff]
      %s3040 = scalar_lea.vmem %s13, 288
      %v3041 = vld [vmem:[%s3040] sm:$0xff]
      %v3042 = vld [vmem:[%s3040 + $0x8] sm:$0xff]
      %v3043 = vld [vmem:[%s3040 + $0x10] sm:$0xff]
      %v3044 = vld [vmem:[%s3040 + $0x18] sm:$0xff]
      %s3045 = scalar_lea.vmem %s15, 9
      %v3046 = vld [vmem:[%s3045] sm:$0x1]
      %v3048 = vperm.slane %v3046, 0
      %3050 = vmatpush.msra.mxu0 0.0
      %3051 = vmatpush.msra.mxu0 0.0
      %3052 = vmatpush.msra.mxu0 0.0
      %3053 = vmatpush.msra.mxu0 0.0
      %3054 = vmatpush.msra.mxu0 0.0
      %3055 = vmatpush.msra.mxu0 0.0
      %3056 = vmatpush.msra.mxu0 0.0
      %3057 = vmatpush.msra.mxu0 0.0
      %3058 = vmatpush.msra.mxu0 0.0
      %3059 = vmatpush.msra.mxu0 0.0
      %3060 = vmatpush.msra.mxu0 0.0
      %3061 = vmatpush.msra.mxu0 0.0
      %3062 = vmatpush.msra.mxu0 %v3044
      %3063 = vmatpush.msra.mxu0 %v3043
      %3064 = vmatpush.msra.mxu0 %v3042
      %3065 = vmatpush.msra.mxu0 %v3041
      %3066 = vmatmul.f32.gmra.mxu0 %v2891
      %v3067 = vpop.f32.mrf.mxu0
      %v3068 = vadd.f32 %v3048, %v3067
      %3069 = vdwg.mxu0
      %s3070 = scalar_lea.vmem %s17, 288
      %v3071 = vld [vmem:[%s3070] sm:$0xff]
      %v3072 = vld [vmem:[%s3070 + $0x8] sm:$0xff]
      %v3073 = vld [vmem:[%s3070 + $0x10] sm:$0xff]
      %v3074 = vld [vmem:[%s3070 + $0x18] sm:$0xff]
      %s3075 = scalar_lea.vmem %s19, 9
      %v3076 = vld [vmem:[%s3075] sm:$0x1]
      %v3078 = vperm.slane %v3076, 0
      %3080 = vmatpush.msra.mxu0 0.0
      %3081 = vmatpush.msra.mxu0 0.0
      %3082 = vmatpush.msra.mxu0 0.0
      %3083 = vmatpush.msra.mxu0 0.0
      %3084 = vmatpush.msra.mxu0 0.0
      %3085 = vmatpush.msra.mxu0 0.0
      %3086 = vmatpush.msra.mxu0 0.0
      %3087 = vmatpush.msra.mxu0 0.0
      %3088 = vmatpush.msra.mxu0 0.0
      %3089 = vmatpush.msra.mxu0 0.0
      %3090 = vmatpush.msra.mxu0 0.0
      %3091 = vmatpush.msra.mxu0 0.0
      %3092 = vmatpush.msra.mxu0 %v3074
      %3093 = vmatpush.msra.mxu0 %v3073
      %3094 = vmatpush.msra.mxu0 %v3072
      %3095 = vmatpush.msra.mxu0 %v3071
      %3096 = vmatmul.f32.gmra.mxu0 %v2891
      %v3097 = vpop.f32.mrf.mxu0
      %v3098 = vadd.f32 %v3078, %v3097
      %3099 = vdwg.mxu0
      %s3100 = scalar_lea.vmem %s21, 288
      %v3101 = vld [vmem:[%s3100] sm:$0xff]
      %v3102 = vld [vmem:[%s3100 + $0x8] sm:$0xff]
      %v3103 = vld [vmem:[%s3100 + $0x10] sm:$0xff]
      %v3104 = vld [vmem:[%s3100 + $0x18] sm:$0xff]
      %s3105 = scalar_lea.vmem %s23, 9
      %v3106 = vld [vmem:[%s3105] sm:$0x1]
      %v3108 = vperm.slane %v3106, 0
      %3110 = vmatpush.msra.mxu0 0.0
      %3111 = vmatpush.msra.mxu0 0.0
      %3112 = vmatpush.msra.mxu0 0.0
      %3113 = vmatpush.msra.mxu0 0.0
      %3114 = vmatpush.msra.mxu0 0.0
      %3115 = vmatpush.msra.mxu0 0.0
      %3116 = vmatpush.msra.mxu0 0.0
      %3117 = vmatpush.msra.mxu0 0.0
      %3118 = vmatpush.msra.mxu0 0.0
      %3119 = vmatpush.msra.mxu0 0.0
      %3120 = vmatpush.msra.mxu0 0.0
      %3121 = vmatpush.msra.mxu0 0.0
      %3122 = vmatpush.msra.mxu0 %v3104
      %3123 = vmatpush.msra.mxu0 %v3103
      %3124 = vmatpush.msra.mxu0 %v3102
      %3125 = vmatpush.msra.mxu0 %v3101
      %3126 = vmatmul.f32.gmra.mxu0 %v2891
      %v3127 = vpop.f32.mrf.mxu0
      %v3128 = vadd.f32 %v3108, %v3127
      %3129 = vdwg.mxu0
      %v3131 = vsel %vm1205, %v3068, 0
      %v3134 = vsel %vm1205, %v3098, 0
      %3136 = vmatpush.xpose.msra.mxu0 0.0
      %3137 = vmatpush.xpose.msra.mxu0 0.0
      %3138 = vmatpush.xpose.msra.mxu0 0.0
      %3139 = vmatpush.xpose.msra.mxu0 0.0
      %3140 = vmatpush.xpose.msra.mxu0 0.0
      %3141 = vmatpush.xpose.msra.mxu0 0.0
      %3142 = vmatpush.xpose.msra.mxu0 0.0
      %3143 = vmatpush.xpose.msra.mxu0 0.0
      %3144 = vmatpush.xpose.msra.mxu0 0.0
      %3145 = vmatpush.xpose.msra.mxu0 0.0
      %3146 = vmatpush.xpose.msra.mxu0 0.0
      %3147 = vmatpush.xpose.msra.mxu0 0.0
      %3148 = vmatpush.xpose.msra.mxu0 0.0
      %3149 = vmatpush.xpose.msra.mxu0 0.0
      %3150 = vmatpush.xpose.msra.mxu0 0.0
      %3151 = vmatpush.xpose.msra.mxu0 %v3134
      %3152 = vmatmul.f32.gmra.mxu0 %v3131
      %v3153 = vpop.f32.mrf.mxu0
      %v3154 = vadd.f32 0.0, %v3153
      %3155 = vdwg.mxu0
      %v3156 = vmul.f32 %v3154, 0.35355338
      %v3157 = vsel %vm1076, %v3156, -1e+30
      %v3158 = vsel %vm1234, %v3157, -inf
      %3159 = vmax.xlane.f32.xlu0 %v3158
      %v3160 = vpop.xlane.xlu0 %3159
      %v3161 = vsub.f32 %v3157, %v3160
      %v3162 = vmul.f32 %v3161, 1.442695
      %v3163 = vpow.pop %v3162
      %v3164 = vsel %vm1234, %v3163, 0.0
      %3165 = vadd.xlane.f32.xlu0 %v3164
      %v3166 = vpop.xlane.xlu0 %3165
      %v3167 = vrcp.pop %v3166
      %v3168 = vmul.f32 %v3163, %v3167
      %v3170 = vsel %vm1246, %v3168, 0
      %v3173 = vsel %vm1250, %v3128, 0
      %3175 = vmatpush.msra.mxu0 0.0
      %3176 = vmatpush.msra.mxu0 0.0
      %3177 = vmatpush.msra.mxu0 0.0
      %3178 = vmatpush.msra.mxu0 0.0
      %3179 = vmatpush.msra.mxu0 0.0
      %3180 = vmatpush.msra.mxu0 0.0
      %3181 = vmatpush.msra.mxu0 0.0
      %3182 = vmatpush.msra.mxu0 0.0
      %3183 = vmatpush.msra.mxu0 0.0
      %3184 = vmatpush.msra.mxu0 0.0
      %3185 = vmatpush.msra.mxu0 0.0
      %3186 = vmatpush.msra.mxu0 0.0
      %3187 = vmatpush.msra.mxu0 0.0
      %3188 = vmatpush.msra.mxu0 0.0
      %3189 = vmatpush.msra.mxu0 0.0
      %3190 = vmatpush.msra.mxu0 %v3173
      %3191 = vmatmul.f32.gmra.mxu0 %v3170
      %v3192 = vpop.f32.mrf.mxu0
      %v3193 = vadd.f32 0.0, %v3192
      %3194 = vdwg.mxu0
      %s3195 = scalar_lea.vmem %s25, 72
      %v3196 = vld [vmem:[%s3195] sm:$0xff]
      %v3198 = vsel %vm1205, %v3193, 0
      %3200 = vmatpush.msra.mxu0 0.0
      %3201 = vmatpush.msra.mxu0 0.0
      %3202 = vmatpush.msra.mxu0 0.0
      %3203 = vmatpush.msra.mxu0 0.0
      %3204 = vmatpush.msra.mxu0 0.0
      %3205 = vmatpush.msra.mxu0 0.0
      %3206 = vmatpush.msra.mxu0 0.0
      %3207 = vmatpush.msra.mxu0 0.0
      %3208 = vmatpush.msra.mxu0 0.0
      %3209 = vmatpush.msra.mxu0 0.0
      %3210 = vmatpush.msra.mxu0 0.0
      %3211 = vmatpush.msra.mxu0 0.0
      %3212 = vmatpush.msra.mxu0 0.0
      %3213 = vmatpush.msra.mxu0 0.0
      %3214 = vmatpush.msra.mxu0 0.0
      %3215 = vmatpush.msra.mxu0 %v3196
      %3216 = vmatmul.f32.gmra.mxu0 %v3198
      %v3217 = vpop.f32.mrf.mxu0
      %v3218 = vadd.f32 0.0, %v3217
      %3219 = vdwg.mxu0
      %v3221 = vsel %vm1205, %v3036, 0
      %3223 = vmatpush.msra.mxu0 0.0
      %3224 = vmatpush.msra.mxu0 0.0
      %3225 = vmatpush.msra.mxu0 0.0
      %3226 = vmatpush.msra.mxu0 0.0
      %3227 = vmatpush.msra.mxu0 0.0
      %3228 = vmatpush.msra.mxu0 0.0
      %3229 = vmatpush.msra.mxu0 0.0
      %3230 = vmatpush.msra.mxu0 0.0
      %3231 = vmatpush.msra.mxu0 0.0
      %3232 = vmatpush.msra.mxu0 0.0
      %3233 = vmatpush.msra.mxu0 0.0
      %3234 = vmatpush.msra.mxu0 0.0
      %3235 = vmatpush.msra.mxu0 0.0
      %3236 = vmatpush.msra.mxu0 0.0
      %3237 = vmatpush.msra.mxu0 0.0
      %3238 = vmatpush.msra.mxu0 %v3039
      %3239 = vmatmul.f32.gmra.mxu0 %v3221
      %v3240 = vpop.f32.mrf.mxu0
      %v3241 = vadd.f32 %v3218, %v3240
      %3242 = vdwg.mxu0
      %s3243 = scalar_lea.vmem %s13, 320
      %v3244 = vld [vmem:[%s3243] sm:$0xff]
      %v3245 = vld [vmem:[%s3243 + $0x8] sm:$0xff]
      %v3246 = vld [vmem:[%s3243 + $0x10] sm:$0xff]
      %v3247 = vld [vmem:[%s3243 + $0x18] sm:$0xff]
      %s3248 = scalar_lea.vmem %s15, 10
      %v3249 = vld [vmem:[%s3248] sm:$0x1]
      %v3251 = vperm.slane %v3249, 0
      %3253 = vmatpush.msra.mxu0 0.0
      %3254 = vmatpush.msra.mxu0 0.0
      %3255 = vmatpush.msra.mxu0 0.0
      %3256 = vmatpush.msra.mxu0 0.0
      %3257 = vmatpush.msra.mxu0 0.0
      %3258 = vmatpush.msra.mxu0 0.0
      %3259 = vmatpush.msra.mxu0 0.0
      %3260 = vmatpush.msra.mxu0 0.0
      %3261 = vmatpush.msra.mxu0 0.0
      %3262 = vmatpush.msra.mxu0 0.0
      %3263 = vmatpush.msra.mxu0 0.0
      %3264 = vmatpush.msra.mxu0 0.0
      %3265 = vmatpush.msra.mxu0 %v3247
      %3266 = vmatpush.msra.mxu0 %v3246
      %3267 = vmatpush.msra.mxu0 %v3245
      %3268 = vmatpush.msra.mxu0 %v3244
      %3269 = vmatmul.f32.gmra.mxu0 %v2891
      %v3270 = vpop.f32.mrf.mxu0
      %v3271 = vadd.f32 %v3251, %v3270
      %3272 = vdwg.mxu0
      %s3273 = scalar_lea.vmem %s17, 320
      %v3274 = vld [vmem:[%s3273] sm:$0xff]
      %v3275 = vld [vmem:[%s3273 + $0x8] sm:$0xff]
      %v3276 = vld [vmem:[%s3273 + $0x10] sm:$0xff]
      %v3277 = vld [vmem:[%s3273 + $0x18] sm:$0xff]
      %s3278 = scalar_lea.vmem %s19, 10
      %v3279 = vld [vmem:[%s3278] sm:$0x1]
      %v3281 = vperm.slane %v3279, 0
      %3283 = vmatpush.msra.mxu0 0.0
      %3284 = vmatpush.msra.mxu0 0.0
      %3285 = vmatpush.msra.mxu0 0.0
      %3286 = vmatpush.msra.mxu0 0.0
      %3287 = vmatpush.msra.mxu0 0.0
      %3288 = vmatpush.msra.mxu0 0.0
      %3289 = vmatpush.msra.mxu0 0.0
      %3290 = vmatpush.msra.mxu0 0.0
      %3291 = vmatpush.msra.mxu0 0.0
      %3292 = vmatpush.msra.mxu0 0.0
      %3293 = vmatpush.msra.mxu0 0.0
      %3294 = vmatpush.msra.mxu0 0.0
      %3295 = vmatpush.msra.mxu0 %v3277
      %3296 = vmatpush.msra.mxu0 %v3276
      %3297 = vmatpush.msra.mxu0 %v3275
      %3298 = vmatpush.msra.mxu0 %v3274
      %3299 = vmatmul.f32.gmra.mxu0 %v2891
      %v3300 = vpop.f32.mrf.mxu0
      %v3301 = vadd.f32 %v3281, %v3300
      %3302 = vdwg.mxu0
      %s3303 = scalar_lea.vmem %s21, 320
      %v3304 = vld [vmem:[%s3303] sm:$0xff]
      %v3305 = vld [vmem:[%s3303 + $0x8] sm:$0xff]
      %v3306 = vld [vmem:[%s3303 + $0x10] sm:$0xff]
      %v3307 = vld [vmem:[%s3303 + $0x18] sm:$0xff]
      %s3308 = scalar_lea.vmem %s23, 10
      %v3309 = vld [vmem:[%s3308] sm:$0x1]
      %v3311 = vperm.slane %v3309, 0
      %3313 = vmatpush.msra.mxu0 0.0
      %3314 = vmatpush.msra.mxu0 0.0
      %3315 = vmatpush.msra.mxu0 0.0
      %3316 = vmatpush.msra.mxu0 0.0
      %3317 = vmatpush.msra.mxu0 0.0
      %3318 = vmatpush.msra.mxu0 0.0
      %3319 = vmatpush.msra.mxu0 0.0
      %3320 = vmatpush.msra.mxu0 0.0
      %3321 = vmatpush.msra.mxu0 0.0
      %3322 = vmatpush.msra.mxu0 0.0
      %3323 = vmatpush.msra.mxu0 0.0
      %3324 = vmatpush.msra.mxu0 0.0
      %3325 = vmatpush.msra.mxu0 %v3307
      %3326 = vmatpush.msra.mxu0 %v3306
      %3327 = vmatpush.msra.mxu0 %v3305
      %3328 = vmatpush.msra.mxu0 %v3304
      %3329 = vmatmul.f32.gmra.mxu0 %v2891
      %v3330 = vpop.f32.mrf.mxu0
      %v3331 = vadd.f32 %v3311, %v3330
      %3332 = vdwg.mxu0
      %v3334 = vsel %vm1205, %v3271, 0
      %v3337 = vsel %vm1205, %v3301, 0
      %3339 = vmatpush.xpose.msra.mxu0 0.0
      %3340 = vmatpush.xpose.msra.mxu0 0.0
      %3341 = vmatpush.xpose.msra.mxu0 0.0
      %3342 = vmatpush.xpose.msra.mxu0 0.0
      %3343 = vmatpush.xpose.msra.mxu0 0.0
      %3344 = vmatpush.xpose.msra.mxu0 0.0
      %3345 = vmatpush.xpose.msra.mxu0 0.0
      %3346 = vmatpush.xpose.msra.mxu0 0.0
      %3347 = vmatpush.xpose.msra.mxu0 0.0
      %3348 = vmatpush.xpose.msra.mxu0 0.0
      %3349 = vmatpush.xpose.msra.mxu0 0.0
      %3350 = vmatpush.xpose.msra.mxu0 0.0
      %3351 = vmatpush.xpose.msra.mxu0 0.0
      %3352 = vmatpush.xpose.msra.mxu0 0.0
      %3353 = vmatpush.xpose.msra.mxu0 0.0
      %3354 = vmatpush.xpose.msra.mxu0 %v3337
      %3355 = vmatmul.f32.gmra.mxu0 %v3334
      %v3356 = vpop.f32.mrf.mxu0
      %v3357 = vadd.f32 0.0, %v3356
      %3358 = vdwg.mxu0
      %v3359 = vmul.f32 %v3357, 0.35355338
      %v3360 = vsel %vm1076, %v3359, -1e+30
      %v3361 = vsel %vm1234, %v3360, -inf
      %3362 = vmax.xlane.f32.xlu0 %v3361
      %v3363 = vpop.xlane.xlu0 %3362
      %v3364 = vsub.f32 %v3360, %v3363
      %v3365 = vmul.f32 %v3364, 1.442695
      %v3366 = vpow.pop %v3365
      %v3367 = vsel %vm1234, %v3366, 0.0
      %3368 = vadd.xlane.f32.xlu0 %v3367
      %v3369 = vpop.xlane.xlu0 %3368
      %v3370 = vrcp.pop %v3369
      %v3371 = vmul.f32 %v3366, %v3370
      %v3373 = vsel %vm1246, %v3371, 0
      %v3376 = vsel %vm1250, %v3331, 0
      %3378 = vmatpush.msra.mxu0 0.0
      %3379 = vmatpush.msra.mxu0 0.0
      %3380 = vmatpush.msra.mxu0 0.0
      %3381 = vmatpush.msra.mxu0 0.0
      %3382 = vmatpush.msra.mxu0 0.0
      %3383 = vmatpush.msra.mxu0 0.0
      %3384 = vmatpush.msra.mxu0 0.0
      %3385 = vmatpush.msra.mxu0 0.0
      %3386 = vmatpush.msra.mxu0 0.0
      %3387 = vmatpush.msra.mxu0 0.0
      %3388 = vmatpush.msra.mxu0 0.0
      %3389 = vmatpush.msra.mxu0 0.0
      %3390 = vmatpush.msra.mxu0 0.0
      %3391 = vmatpush.msra.mxu0 0.0
      %3392 = vmatpush.msra.mxu0 0.0
      %3393 = vmatpush.msra.mxu0 %v3376
      %3394 = vmatmul.f32.gmra.mxu0 %v3373
      %v3395 = vpop.f32.mrf.mxu0
      %v3396 = vadd.f32 0.0, %v3395
      %3397 = vdwg.mxu0
      %s3398 = scalar_lea.vmem %s25, 80
      %v3399 = vld [vmem:[%s3398] sm:$0xff]
      %v3401 = vsel %vm1205, %v3396, 0
      %3403 = vmatpush.msra.mxu0 0.0
      %3404 = vmatpush.msra.mxu0 0.0
      %3405 = vmatpush.msra.mxu0 0.0
      %3406 = vmatpush.msra.mxu0 0.0
      %3407 = vmatpush.msra.mxu0 0.0
      %3408 = vmatpush.msra.mxu0 0.0
      %3409 = vmatpush.msra.mxu0 0.0
      %3410 = vmatpush.msra.mxu0 0.0
      %3411 = vmatpush.msra.mxu0 0.0
      %3412 = vmatpush.msra.mxu0 0.0
      %3413 = vmatpush.msra.mxu0 0.0
      %3414 = vmatpush.msra.mxu0 0.0
      %3415 = vmatpush.msra.mxu0 0.0
      %3416 = vmatpush.msra.mxu0 0.0
      %3417 = vmatpush.msra.mxu0 0.0
      %3418 = vmatpush.msra.mxu0 %v3399
      %3419 = vmatmul.f32.gmra.mxu0 %v3401
      %v3420 = vpop.f32.mrf.mxu0
      %v3421 = vadd.f32 0.0, %v3420
      %3422 = vdwg.mxu0
      %v3423 = vadd.f32 %v3241, %v3421
      %s3424 = scalar_lea.vmem %s13, 352
      %v3425 = vld [vmem:[%s3424] sm:$0xff]
      %v3426 = vld [vmem:[%s3424 + $0x8] sm:$0xff]
      %v3427 = vld [vmem:[%s3424 + $0x10] sm:$0xff]
      %v3428 = vld [vmem:[%s3424 + $0x18] sm:$0xff]
      %s3429 = scalar_lea.vmem %s15, 11
      %v3430 = vld [vmem:[%s3429] sm:$0x1]
      %v3432 = vperm.slane %v3430, 0
      %3434 = vmatpush.msra.mxu0 0.0
      %3435 = vmatpush.msra.mxu0 0.0
      %3436 = vmatpush.msra.mxu0 0.0
      %3437 = vmatpush.msra.mxu0 0.0
      %3438 = vmatpush.msra.mxu0 0.0
      %3439 = vmatpush.msra.mxu0 0.0
      %3440 = vmatpush.msra.mxu0 0.0
      %3441 = vmatpush.msra.mxu0 0.0
      %3442 = vmatpush.msra.mxu0 0.0
      %3443 = vmatpush.msra.mxu0 0.0
      %3444 = vmatpush.msra.mxu0 0.0
      %3445 = vmatpush.msra.mxu0 0.0
      %3446 = vmatpush.msra.mxu0 %v3428
      %3447 = vmatpush.msra.mxu0 %v3427
      %3448 = vmatpush.msra.mxu0 %v3426
      %3449 = vmatpush.msra.mxu0 %v3425
      %3450 = vmatmul.f32.gmra.mxu0 %v2891
      %v3451 = vpop.f32.mrf.mxu0
      %v3452 = vadd.f32 %v3432, %v3451
      %3453 = vdwg.mxu0
      %s3454 = scalar_lea.vmem %s17, 352
      %v3455 = vld [vmem:[%s3454] sm:$0xff]
      %v3456 = vld [vmem:[%s3454 + $0x8] sm:$0xff]
      %v3457 = vld [vmem:[%s3454 + $0x10] sm:$0xff]
      %v3458 = vld [vmem:[%s3454 + $0x18] sm:$0xff]
      %s3459 = scalar_lea.vmem %s19, 11
      %v3460 = vld [vmem:[%s3459] sm:$0x1]
      %v3462 = vperm.slane %v3460, 0
      %3464 = vmatpush.msra.mxu0 0.0
      %3465 = vmatpush.msra.mxu0 0.0
      %3466 = vmatpush.msra.mxu0 0.0
      %3467 = vmatpush.msra.mxu0 0.0
      %3468 = vmatpush.msra.mxu0 0.0
      %3469 = vmatpush.msra.mxu0 0.0
      %3470 = vmatpush.msra.mxu0 0.0
      %3471 = vmatpush.msra.mxu0 0.0
      %3472 = vmatpush.msra.mxu0 0.0
      %3473 = vmatpush.msra.mxu0 0.0
      %3474 = vmatpush.msra.mxu0 0.0
      %3475 = vmatpush.msra.mxu0 0.0
      %3476 = vmatpush.msra.mxu0 %v3458
      %3477 = vmatpush.msra.mxu0 %v3457
      %3478 = vmatpush.msra.mxu0 %v3456
      %3479 = vmatpush.msra.mxu0 %v3455
      %3480 = vmatmul.f32.gmra.mxu0 %v2891
      %v3481 = vpop.f32.mrf.mxu0
      %v3482 = vadd.f32 %v3462, %v3481
      %3483 = vdwg.mxu0
      %s3484 = scalar_lea.vmem %s21, 352
      %v3485 = vld [vmem:[%s3484] sm:$0xff]
      %v3486 = vld [vmem:[%s3484 + $0x8] sm:$0xff]
      %v3487 = vld [vmem:[%s3484 + $0x10] sm:$0xff]
      %v3488 = vld [vmem:[%s3484 + $0x18] sm:$0xff]
      %s3489 = scalar_lea.vmem %s23, 11
      %v3490 = vld [vmem:[%s3489] sm:$0x1]
      %v3492 = vperm.slane %v3490, 0
      %3494 = vmatpush.msra.mxu0 0.0
      %3495 = vmatpush.msra.mxu0 0.0
      %3496 = vmatpush.msra.mxu0 0.0
      %3497 = vmatpush.msra.mxu0 0.0
      %3498 = vmatpush.msra.mxu0 0.0
      %3499 = vmatpush.msra.mxu0 0.0
      %3500 = vmatpush.msra.mxu0 0.0
      %3501 = vmatpush.msra.mxu0 0.0
      %3502 = vmatpush.msra.mxu0 0.0
      %3503 = vmatpush.msra.mxu0 0.0
      %3504 = vmatpush.msra.mxu0 0.0
      %3505 = vmatpush.msra.mxu0 0.0
      %3506 = vmatpush.msra.mxu0 %v3488
      %3507 = vmatpush.msra.mxu0 %v3487
      %3508 = vmatpush.msra.mxu0 %v3486
      %3509 = vmatpush.msra.mxu0 %v3485
      %3510 = vmatmul.f32.gmra.mxu0 %v2891
      %v3511 = vpop.f32.mrf.mxu0
      %v3512 = vadd.f32 %v3492, %v3511
      %3513 = vdwg.mxu0
      %v3515 = vsel %vm1205, %v3452, 0
      %v3518 = vsel %vm1205, %v3482, 0
      %3520 = vmatpush.xpose.msra.mxu0 0.0
      %3521 = vmatpush.xpose.msra.mxu0 0.0
      %3522 = vmatpush.xpose.msra.mxu0 0.0
      %3523 = vmatpush.xpose.msra.mxu0 0.0
      %3524 = vmatpush.xpose.msra.mxu0 0.0
      %3525 = vmatpush.xpose.msra.mxu0 0.0
      %3526 = vmatpush.xpose.msra.mxu0 0.0
      %3527 = vmatpush.xpose.msra.mxu0 0.0
      %3528 = vmatpush.xpose.msra.mxu0 0.0
      %3529 = vmatpush.xpose.msra.mxu0 0.0
      %3530 = vmatpush.xpose.msra.mxu0 0.0
      %3531 = vmatpush.xpose.msra.mxu0 0.0
      %3532 = vmatpush.xpose.msra.mxu0 0.0
      %3533 = vmatpush.xpose.msra.mxu0 0.0
      %3534 = vmatpush.xpose.msra.mxu0 0.0
      %3535 = vmatpush.xpose.msra.mxu0 %v3518
      %3536 = vmatmul.f32.gmra.mxu0 %v3515
      %v3537 = vpop.f32.mrf.mxu0
      %v3538 = vadd.f32 0.0, %v3537
      %3539 = vdwg.mxu0
      %v3540 = vmul.f32 %v3538, 0.35355338
      %v3541 = vsel %vm1076, %v3540, -1e+30
      %v3542 = vsel %vm1234, %v3541, -inf
      %3543 = vmax.xlane.f32.xlu0 %v3542
      %v3544 = vpop.xlane.xlu0 %3543
      %v3545 = vsub.f32 %v3541, %v3544
      %v3546 = vmul.f32 %v3545, 1.442695
      %v3547 = vpow.pop %v3546
      %v3548 = vsel %vm1234, %v3547, 0.0
      %3549 = vadd.xlane.f32.xlu0 %v3548
      %v3550 = vpop.xlane.xlu0 %3549
      %v3551 = vrcp.pop %v3550
      %v3552 = vmul.f32 %v3547, %v3551
      %v3554 = vsel %vm1246, %v3552, 0
      %v3557 = vsel %vm1250, %v3512, 0
      %3559 = vmatpush.msra.mxu0 0.0
      %3560 = vmatpush.msra.mxu0 0.0
      %3561 = vmatpush.msra.mxu0 0.0
      %3562 = vmatpush.msra.mxu0 0.0
      %3563 = vmatpush.msra.mxu0 0.0
      %3564 = vmatpush.msra.mxu0 0.0
      %3565 = vmatpush.msra.mxu0 0.0
      %3566 = vmatpush.msra.mxu0 0.0
      %3567 = vmatpush.msra.mxu0 0.0
      %3568 = vmatpush.msra.mxu0 0.0
      %3569 = vmatpush.msra.mxu0 0.0
      %3570 = vmatpush.msra.mxu0 0.0
      %3571 = vmatpush.msra.mxu0 0.0
      %3572 = vmatpush.msra.mxu0 0.0
      %3573 = vmatpush.msra.mxu0 0.0
      %3574 = vmatpush.msra.mxu0 %v3557
      %3575 = vmatmul.f32.gmra.mxu0 %v3554
      %v3576 = vpop.f32.mrf.mxu0
      %v3577 = vadd.f32 0.0, %v3576
      %3578 = vdwg.mxu0
      %s3579 = scalar_lea.vmem %s25, 88
      %v3580 = vld [vmem:[%s3579] sm:$0xff]
      %v3582 = vsel %vm1205, %v3577, 0
      %3584 = vmatpush.msra.mxu0 0.0
      %3585 = vmatpush.msra.mxu0 0.0
      %3586 = vmatpush.msra.mxu0 0.0
      %3587 = vmatpush.msra.mxu0 0.0
      %3588 = vmatpush.msra.mxu0 0.0
      %3589 = vmatpush.msra.mxu0 0.0
      %3590 = vmatpush.msra.mxu0 0.0
      %3591 = vmatpush.msra.mxu0 0.0
      %3592 = vmatpush.msra.mxu0 0.0
      %3593 = vmatpush.msra.mxu0 0.0
      %3594 = vmatpush.msra.mxu0 0.0
      %3595 = vmatpush.msra.mxu0 0.0
      %3596 = vmatpush.msra.mxu0 0.0
      %3597 = vmatpush.msra.mxu0 0.0
      %3598 = vmatpush.msra.mxu0 0.0
      %3599 = vmatpush.msra.mxu0 %v3580
      %3600 = vmatmul.f32.gmra.mxu0 %v3582
      %v3601 = vpop.f32.mrf.mxu0
      %v3602 = vadd.f32 0.0, %v3601
      %3603 = vdwg.mxu0
      %v3604 = vadd.f32 %v3423, %v3602
      %v3605 = vadd.f32 %v2845, %v3604
      %s3606 = scalar_lea.vmem %s27, 2
      %v3607 = vld [vmem:[%s3606] sm:$0x1]
      %v3609 = vperm.slane %v3607, 0
      %v3611 = vadd.f32 %v3605, %v3609
      %s3612 = scalar_lea.vmem %s29, 2
      %v3613 = vld [vmem:[%s3612] sm:$0x1]
      %s3614 = scalar_lea.vmem %s31, 2
      %v3615 = vld [vmem:[%s3614] sm:$0x1]
      %v3616 = vsel %vm1079, %v3611, 0.0
      %3617 = vadd.xlane.f32.xlu0 %v3616
      %v3618 = vpop.xlane.xlu0 %3617
      %v3619 = vmul.f32 %v3618, %v1089
      %v3620 = vsub.f32 %v3611, %v3619
      %v3621 = vmul.f32 %v3620, %v3620
      %v3622 = vsel %vm1079, %v3621, 0.0
      %3623 = vadd.xlane.f32.xlu0 %v3622
      %v3624 = vpop.xlane.xlu0 %3623
      %v3625 = vmul.f32 %v3624, %v1089
      %v3626 = vadd.f32 %v3625, 1e-05
      %v3627 = vrsqrt.pop %v3626
      %v3628 = vmul.f32 %v3627, %v3626
      %v3629 = vmul.f32 %v3628, %v3627
      %v3630 = vmul.f32 0.5, %v3629
      %v3631 = vsub.f32 1.5, %v3630
      %v3632 = vmul.f32 %v3627, %v3631
      %vm3633 = vweird.f32 %v3626
      %vm3634 = vweird.f32 %v3627
      %vm3635 = vmor %vm3633, %vm3634
      %v3636 = vsel %vm3635, %v3627, %v3632
      %v3637 = vmul.f32 %v3620, %v3636
      %v3639 = vperm.slane %v3613, 0
      %v3641 = vmul.f32 %v3637, %v3639
      %v3643 = vperm.slane %v3615, 0
      %v3645 = vadd.f32 %v3641, %v3643
      %s3646 = scalar_lea.vmem %s33, 64
      %v3647 = vld [vmem:[%s3646] sm:$0xff]
      %v3648 = vld [vmem:[%s3646 + $0x8] sm:$0xff]
      %v3649 = vld [vmem:[%s3646 + $0x10] sm:$0xff]
      %v3650 = vld [vmem:[%s3646 + $0x18] sm:$0xff]
      %s3651 = scalar_lea.vmem %s35, 2
      %v3652 = vld [vmem:[%s3651] sm:$0x1]
      %v3654 = vperm.slane %v3652, 0
      %v3657 = vsel %vm1125, %v3645, 0
      %3659 = vmatpush.msra.mxu0 0.0
      %3660 = vmatpush.msra.mxu0 0.0
      %3661 = vmatpush.msra.mxu0 0.0
      %3662 = vmatpush.msra.mxu0 0.0
      %3663 = vmatpush.msra.mxu0 0.0
      %3664 = vmatpush.msra.mxu0 0.0
      %3665 = vmatpush.msra.mxu0 0.0
      %3666 = vmatpush.msra.mxu0 0.0
      %3667 = vmatpush.msra.mxu0 0.0
      %3668 = vmatpush.msra.mxu0 0.0
      %3669 = vmatpush.msra.mxu0 0.0
      %3670 = vmatpush.msra.mxu0 0.0
      %3671 = vmatpush.msra.mxu0 %v3650
      %3672 = vmatpush.msra.mxu0 %v3649
      %3673 = vmatpush.msra.mxu0 %v3648
      %3674 = vmatpush.msra.mxu0 %v3647
      %3675 = vmatmul.f32.gmra.mxu0 %v3657
      %v3676 = vpop.f32.mrf.mxu0
      %v3677 = vadd.f32 %v3654, %v3676
      %3678 = vdwg.mxu0
      %v3679 = vmul.f32 %v3677, 0.5
      %v3680 = vmul.f32 %v3677, 0.044715
      %v3681 = vmul.f32 %v3680, %v3677
      %v3682 = vmul.f32 %v3681, %v3677
      %v3683 = vadd.f32 %v3677, %v3682
      %v3684 = vmul.f32 %v3683, 0.7978846
      %v3685 = vtanh.pop %v3684
      %v3686 = vadd.f32 %v3685, 1.0
      %v3687 = vmul.f32 %v3679, %v3686
      %s3688 = scalar_lea.vmem %s37, 256
      %v3689 = vld [vmem:[%s3688] sm:$0xff]
      %v3690 = vld [vmem:[%s3688 + $0x8] sm:$0xff]
      %v3691 = vld [vmem:[%s3688 + $0x10] sm:$0xff]
      %v3692 = vld [vmem:[%s3688 + $0x18] sm:$0xff]
      %v3693 = vld [vmem:[%s3688 + $0x20] sm:$0xff]
      %v3694 = vld [vmem:[%s3688 + $0x28] sm:$0xff]
      %v3695 = vld [vmem:[%s3688 + $0x30] sm:$0xff]
      %v3696 = vld [vmem:[%s3688 + $0x38] sm:$0xff]
      %v3697 = vld [vmem:[%s3688 + $0x40] sm:$0xff]
      %v3698 = vld [vmem:[%s3688 + $0x48] sm:$0xff]
      %v3699 = vld [vmem:[%s3688 + $0x50] sm:$0xff]
      %v3700 = vld [vmem:[%s3688 + $0x58] sm:$0xff]
      %v3701 = vld [vmem:[%s3688 + $0x60] sm:$0xff]
      %v3702 = vld [vmem:[%s3688 + $0x68] sm:$0xff]
      %v3703 = vld [vmem:[%s3688 + $0x70] sm:$0xff]
      %v3704 = vld [vmem:[%s3688 + $0x78] sm:$0xff]
      %3705 = vmatpush.msra.mxu0 %v3704
      %3706 = vmatpush.msra.mxu0 %v3703
      %3707 = vmatpush.msra.mxu0 %v3702
      %3708 = vmatpush.msra.mxu0 %v3701
      %3709 = vmatpush.msra.mxu0 %v3700
      %3710 = vmatpush.msra.mxu0 %v3699
      %3711 = vmatpush.msra.mxu0 %v3698
      %3712 = vmatpush.msra.mxu0 %v3697
      %3713 = vmatpush.msra.mxu0 %v3696
      %3714 = vmatpush.msra.mxu0 %v3695
      %3715 = vmatpush.msra.mxu0 %v3694
      %3716 = vmatpush.msra.mxu0 %v3693
      %3717 = vmatpush.msra.mxu0 %v3692
      %3718 = vmatpush.msra.mxu0 %v3691
      %3719 = vmatpush.msra.mxu0 %v3690
      %3720 = vmatpush.msra.mxu0 %v3689
      %3721 = vmatmul.f32.gmra.mxu0 %v3687
      %v3722 = vpop.f32.mrf.mxu0
      %v3723 = vadd.f32 0.0, %v3722
      %3724 = vdwg.mxu0
      %v3725 = vadd.f32 %v3611, %v3723
      %s3726 = scalar_lea.vmem %s39, 2
      %v3727 = vld [vmem:[%s3726] sm:$0x1]
      %v3729 = vperm.slane %v3727, 0
      %v3731 = vadd.f32 %v3725, %v3729
      %s3732 = scalar_lea.vmem %s9, 3
      %v3733 = vld [vmem:[%s3732] sm:$0x1]
      %s3734 = scalar_lea.vmem %s11, 3
      %v3735 = vld [vmem:[%s3734] sm:$0x1]
      %v3736 = vsel %vm1079, %v3731, 0.0
      %3737 = vadd.xlane.f32.xlu0 %v3736
      %v3738 = vpop.xlane.xlu0 %3737
      %v3739 = vmul.f32 %v3738, %v1089
      %v3740 = vsub.f32 %v3731, %v3739
      %v3741 = vmul.f32 %v3740, %v3740
      %v3742 = vsel %vm1079, %v3741, 0.0
      %3743 = vadd.xlane.f32.xlu0 %v3742
      %v3744 = vpop.xlane.xlu0 %3743
      %v3745 = vmul.f32 %v3744, %v1089
      %v3746 = vadd.f32 %v3745, 1e-05
      %v3747 = vrsqrt.pop %v3746
      %v3748 = vmul.f32 %v3747, %v3746
      %v3749 = vmul.f32 %v3748, %v3747
      %v3750 = vmul.f32 0.5, %v3749
      %v3751 = vsub.f32 1.5, %v3750
      %v3752 = vmul.f32 %v3747, %v3751
      %vm3753 = vweird.f32 %v3746
      %vm3754 = vweird.f32 %v3747
      %vm3755 = vmor %vm3753, %vm3754
      %v3756 = vsel %vm3755, %v3747, %v3752
      %v3757 = vmul.f32 %v3740, %v3756
      %v3759 = vperm.slane %v3733, 0
      %v3761 = vmul.f32 %v3757, %v3759
      %v3763 = vperm.slane %v3735, 0
      %v3765 = vadd.f32 %v3761, %v3763
      %s3766 = scalar_lea.vmem %s13, 384
      %v3767 = vld [vmem:[%s3766] sm:$0xff]
      %v3768 = vld [vmem:[%s3766 + $0x8] sm:$0xff]
      %v3769 = vld [vmem:[%s3766 + $0x10] sm:$0xff]
      %v3770 = vld [vmem:[%s3766 + $0x18] sm:$0xff]
      %s3771 = scalar_lea.vmem %s15, 12
      %v3772 = vld [vmem:[%s3771] sm:$0x1]
      %v3774 = vperm.slane %v3772, 0
      %v3777 = vsel %vm1125, %v3765, 0
      %3779 = vmatpush.msra.mxu0 0.0
      %3780 = vmatpush.msra.mxu0 0.0
      %3781 = vmatpush.msra.mxu0 0.0
      %3782 = vmatpush.msra.mxu0 0.0
      %3783 = vmatpush.msra.mxu0 0.0
      %3784 = vmatpush.msra.mxu0 0.0
      %3785 = vmatpush.msra.mxu0 0.0
      %3786 = vmatpush.msra.mxu0 0.0
      %3787 = vmatpush.msra.mxu0 0.0
      %3788 = vmatpush.msra.mxu0 0.0
      %3789 = vmatpush.msra.mxu0 0.0
      %3790 = vmatpush.msra.mxu0 0.0
      %3791 = vmatpush.msra.mxu0 %v3770
      %3792 = vmatpush.msra.mxu0 %v3769
      %3793 = vmatpush.msra.mxu0 %v3768
      %3794 = vmatpush.msra.mxu0 %v3767
      %3795 = vmatmul.f32.gmra.mxu0 %v3777
      %v3796 = vpop.f32.mrf.mxu0
      %v3797 = vadd.f32 %v3774, %v3796
      %3798 = vdwg.mxu0
      %s3799 = scalar_lea.vmem %s17, 384
      %v3800 = vld [vmem:[%s3799] sm:$0xff]
      %v3801 = vld [vmem:[%s3799 + $0x8] sm:$0xff]
      %v3802 = vld [vmem:[%s3799 + $0x10] sm:$0xff]
      %v3803 = vld [vmem:[%s3799 + $0x18] sm:$0xff]
      %s3804 = scalar_lea.vmem %s19, 12
      %v3805 = vld [vmem:[%s3804] sm:$0x1]
      %v3807 = vperm.slane %v3805, 0
      %3809 = vmatpush.msra.mxu0 0.0
      %3810 = vmatpush.msra.mxu0 0.0
      %3811 = vmatpush.msra.mxu0 0.0
      %3812 = vmatpush.msra.mxu0 0.0
      %3813 = vmatpush.msra.mxu0 0.0
      %3814 = vmatpush.msra.mxu0 0.0
      %3815 = vmatpush.msra.mxu0 0.0
      %3816 = vmatpush.msra.mxu0 0.0
      %3817 = vmatpush.msra.mxu0 0.0
      %3818 = vmatpush.msra.mxu0 0.0
      %3819 = vmatpush.msra.mxu0 0.0
      %3820 = vmatpush.msra.mxu0 0.0
      %3821 = vmatpush.msra.mxu0 %v3803
      %3822 = vmatpush.msra.mxu0 %v3802
      %3823 = vmatpush.msra.mxu0 %v3801
      %3824 = vmatpush.msra.mxu0 %v3800
      %3825 = vmatmul.f32.gmra.mxu0 %v3777
      %v3826 = vpop.f32.mrf.mxu0
      %v3827 = vadd.f32 %v3807, %v3826
      %3828 = vdwg.mxu0
      %s3829 = scalar_lea.vmem %s21, 384
      %v3830 = vld [vmem:[%s3829] sm:$0xff]
      %v3831 = vld [vmem:[%s3829 + $0x8] sm:$0xff]
      %v3832 = vld [vmem:[%s3829 + $0x10] sm:$0xff]
      %v3833 = vld [vmem:[%s3829 + $0x18] sm:$0xff]
      %s3834 = scalar_lea.vmem %s23, 12
      %v3835 = vld [vmem:[%s3834] sm:$0x1]
      %v3837 = vperm.slane %v3835, 0
      %3839 = vmatpush.msra.mxu0 0.0
      %3840 = vmatpush.msra.mxu0 0.0
      %3841 = vmatpush.msra.mxu0 0.0
      %3842 = vmatpush.msra.mxu0 0.0
      %3843 = vmatpush.msra.mxu0 0.0
      %3844 = vmatpush.msra.mxu0 0.0
      %3845 = vmatpush.msra.mxu0 0.0
      %3846 = vmatpush.msra.mxu0 0.0
      %3847 = vmatpush.msra.mxu0 0.0
      %3848 = vmatpush.msra.mxu0 0.0
      %3849 = vmatpush.msra.mxu0 0.0
      %3850 = vmatpush.msra.mxu0 0.0
      %3851 = vmatpush.msra.mxu0 %v3833
      %3852 = vmatpush.msra.mxu0 %v3832
      %3853 = vmatpush.msra.mxu0 %v3831
      %3854 = vmatpush.msra.mxu0 %v3830
      %3855 = vmatmul.f32.gmra.mxu0 %v3777
      %v3856 = vpop.f32.mrf.mxu0
      %v3857 = vadd.f32 %v3837, %v3856
      %3858 = vdwg.mxu0
      %v3860 = vsel %vm1205, %v3797, 0
      %v3863 = vsel %vm1205, %v3827, 0
      %3865 = vmatpush.xpose.msra.mxu0 0.0
      %3866 = vmatpush.xpose.msra.mxu0 0.0
      %3867 = vmatpush.xpose.msra.mxu0 0.0
      %3868 = vmatpush.xpose.msra.mxu0 0.0
      %3869 = vmatpush.xpose.msra.mxu0 0.0
      %3870 = vmatpush.xpose.msra.mxu0 0.0
      %3871 = vmatpush.xpose.msra.mxu0 0.0
      %3872 = vmatpush.xpose.msra.mxu0 0.0
      %3873 = vmatpush.xpose.msra.mxu0 0.0
      %3874 = vmatpush.xpose.msra.mxu0 0.0
      %3875 = vmatpush.xpose.msra.mxu0 0.0
      %3876 = vmatpush.xpose.msra.mxu0 0.0
      %3877 = vmatpush.xpose.msra.mxu0 0.0
      %3878 = vmatpush.xpose.msra.mxu0 0.0
      %3879 = vmatpush.xpose.msra.mxu0 0.0
      %3880 = vmatpush.xpose.msra.mxu0 %v3863
      %3881 = vmatmul.f32.gmra.mxu0 %v3860
      %v3882 = vpop.f32.mrf.mxu0
      %v3883 = vadd.f32 0.0, %v3882
      %3884 = vdwg.mxu0
      %v3885 = vmul.f32 %v3883, 0.35355338
      %v3886 = vsel %vm1076, %v3885, -1e+30
      %v3887 = vsel %vm1234, %v3886, -inf
      %3888 = vmax.xlane.f32.xlu0 %v3887
      %v3889 = vpop.xlane.xlu0 %3888
      %v3890 = vsub.f32 %v3886, %v3889
      %v3891 = vmul.f32 %v3890, 1.442695
      %v3892 = vpow.pop %v3891
      %v3893 = vsel %vm1234, %v3892, 0.0
      %3894 = vadd.xlane.f32.xlu0 %v3893
      %v3895 = vpop.xlane.xlu0 %3894
      %v3896 = vrcp.pop %v3895
      %v3897 = vmul.f32 %v3892, %v3896
      %v3899 = vsel %vm1246, %v3897, 0
      %v3902 = vsel %vm1250, %v3857, 0
      %3904 = vmatpush.msra.mxu0 0.0
      %3905 = vmatpush.msra.mxu0 0.0
      %3906 = vmatpush.msra.mxu0 0.0
      %3907 = vmatpush.msra.mxu0 0.0
      %3908 = vmatpush.msra.mxu0 0.0
      %3909 = vmatpush.msra.mxu0 0.0
      %3910 = vmatpush.msra.mxu0 0.0
      %3911 = vmatpush.msra.mxu0 0.0
      %3912 = vmatpush.msra.mxu0 0.0
      %3913 = vmatpush.msra.mxu0 0.0
      %3914 = vmatpush.msra.mxu0 0.0
      %3915 = vmatpush.msra.mxu0 0.0
      %3916 = vmatpush.msra.mxu0 0.0
      %3917 = vmatpush.msra.mxu0 0.0
      %3918 = vmatpush.msra.mxu0 0.0
      %3919 = vmatpush.msra.mxu0 %v3902
      %3920 = vmatmul.f32.gmra.mxu0 %v3899
      %v3921 = vpop.f32.mrf.mxu0
      %v3922 = vadd.f32 0.0, %v3921
      %3923 = vdwg.mxu0
      %s3924 = scalar_lea.vmem %s25, 96
      %v3925 = vld [vmem:[%s3924] sm:$0xff]
      %s3926 = scalar_lea.vmem %s13, 416
      %v3927 = vld [vmem:[%s3926] sm:$0xff]
      %v3928 = vld [vmem:[%s3926 + $0x8] sm:$0xff]
      %v3929 = vld [vmem:[%s3926 + $0x10] sm:$0xff]
      %v3930 = vld [vmem:[%s3926 + $0x18] sm:$0xff]
      %s3931 = scalar_lea.vmem %s15, 13
      %v3932 = vld [vmem:[%s3931] sm:$0x1]
      %v3934 = vperm.slane %v3932, 0
      %3936 = vmatpush.msra.mxu0 0.0
      %3937 = vmatpush.msra.mxu0 0.0
      %3938 = vmatpush.msra.mxu0 0.0
      %3939 = vmatpush.msra.mxu0 0.0
      %3940 = vmatpush.msra.mxu0 0.0
      %3941 = vmatpush.msra.mxu0 0.0
      %3942 = vmatpush.msra.mxu0 0.0
      %3943 = vmatpush.msra.mxu0 0.0
      %3944 = vmatpush.msra.mxu0 0.0
      %3945 = vmatpush.msra.mxu0 0.0
      %3946 = vmatpush.msra.mxu0 0.0
      %3947 = vmatpush.msra.mxu0 0.0
      %3948 = vmatpush.msra.mxu0 %v3930
      %3949 = vmatpush.msra.mxu0 %v3929
      %3950 = vmatpush.msra.mxu0 %v3928
      %3951 = vmatpush.msra.mxu0 %v3927
      %3952 = vmatmul.f32.gmra.mxu0 %v3777
      %v3953 = vpop.f32.mrf.mxu0
      %v3954 = vadd.f32 %v3934, %v3953
      %3955 = vdwg.mxu0
      %s3956 = scalar_lea.vmem %s17, 416
      %v3957 = vld [vmem:[%s3956] sm:$0xff]
      %v3958 = vld [vmem:[%s3956 + $0x8] sm:$0xff]
      %v3959 = vld [vmem:[%s3956 + $0x10] sm:$0xff]
      %v3960 = vld [vmem:[%s3956 + $0x18] sm:$0xff]
      %s3961 = scalar_lea.vmem %s19, 13
      %v3962 = vld [vmem:[%s3961] sm:$0x1]
      %v3964 = vperm.slane %v3962, 0
      %3966 = vmatpush.msra.mxu0 0.0
      %3967 = vmatpush.msra.mxu0 0.0
      %3968 = vmatpush.msra.mxu0 0.0
      %3969 = vmatpush.msra.mxu0 0.0
      %3970 = vmatpush.msra.mxu0 0.0
      %3971 = vmatpush.msra.mxu0 0.0
      %3972 = vmatpush.msra.mxu0 0.0
      %3973 = vmatpush.msra.mxu0 0.0
      %3974 = vmatpush.msra.mxu0 0.0
      %3975 = vmatpush.msra.mxu0 0.0
      %3976 = vmatpush.msra.mxu0 0.0
      %3977 = vmatpush.msra.mxu0 0.0
      %3978 = vmatpush.msra.mxu0 %v3960
      %3979 = vmatpush.msra.mxu0 %v3959
      %3980 = vmatpush.msra.mxu0 %v3958
      %3981 = vmatpush.msra.mxu0 %v3957
      %3982 = vmatmul.f32.gmra.mxu0 %v3777
      %v3983 = vpop.f32.mrf.mxu0
      %v3984 = vadd.f32 %v3964, %v3983
      %3985 = vdwg.mxu0
      %s3986 = scalar_lea.vmem %s21, 416
      %v3987 = vld [vmem:[%s3986] sm:$0xff]
      %v3988 = vld [vmem:[%s3986 + $0x8] sm:$0xff]
      %v3989 = vld [vmem:[%s3986 + $0x10] sm:$0xff]
      %v3990 = vld [vmem:[%s3986 + $0x18] sm:$0xff]
      %s3991 = scalar_lea.vmem %s23, 13
      %v3992 = vld [vmem:[%s3991] sm:$0x1]
      %v3994 = vperm.slane %v3992, 0
      %3996 = vmatpush.msra.mxu0 0.0
      %3997 = vmatpush.msra.mxu0 0.0
      %3998 = vmatpush.msra.mxu0 0.0
      %3999 = vmatpush.msra.mxu0 0.0
      %4000 = vmatpush.msra.mxu0 0.0
      %4001 = vmatpush.msra.mxu0 0.0
      %4002 = vmatpush.msra.mxu0 0.0
      %4003 = vmatpush.msra.mxu0 0.0
      %4004 = vmatpush.msra.mxu0 0.0
      %4005 = vmatpush.msra.mxu0 0.0
      %4006 = vmatpush.msra.mxu0 0.0
      %4007 = vmatpush.msra.mxu0 0.0
      %4008 = vmatpush.msra.mxu0 %v3990
      %4009 = vmatpush.msra.mxu0 %v3989
      %4010 = vmatpush.msra.mxu0 %v3988
      %4011 = vmatpush.msra.mxu0 %v3987
      %4012 = vmatmul.f32.gmra.mxu0 %v3777
      %v4013 = vpop.f32.mrf.mxu0
      %v4014 = vadd.f32 %v3994, %v4013
      %4015 = vdwg.mxu0
      %v4017 = vsel %vm1205, %v3954, 0
      %v4020 = vsel %vm1205, %v3984, 0
      %4022 = vmatpush.xpose.msra.mxu0 0.0
      %4023 = vmatpush.xpose.msra.mxu0 0.0
      %4024 = vmatpush.xpose.msra.mxu0 0.0
      %4025 = vmatpush.xpose.msra.mxu0 0.0
      %4026 = vmatpush.xpose.msra.mxu0 0.0
      %4027 = vmatpush.xpose.msra.mxu0 0.0
      %4028 = vmatpush.xpose.msra.mxu0 0.0
      %4029 = vmatpush.xpose.msra.mxu0 0.0
      %4030 = vmatpush.xpose.msra.mxu0 0.0
      %4031 = vmatpush.xpose.msra.mxu0 0.0
      %4032 = vmatpush.xpose.msra.mxu0 0.0
      %4033 = vmatpush.xpose.msra.mxu0 0.0
      %4034 = vmatpush.xpose.msra.mxu0 0.0
      %4035 = vmatpush.xpose.msra.mxu0 0.0
      %4036 = vmatpush.xpose.msra.mxu0 0.0
      %4037 = vmatpush.xpose.msra.mxu0 %v4020
      %4038 = vmatmul.f32.gmra.mxu0 %v4017
      %v4039 = vpop.f32.mrf.mxu0
      %v4040 = vadd.f32 0.0, %v4039
      %4041 = vdwg.mxu0
      %v4042 = vmul.f32 %v4040, 0.35355338
      %v4043 = vsel %vm1076, %v4042, -1e+30
      %v4044 = vsel %vm1234, %v4043, -inf
      %4045 = vmax.xlane.f32.xlu0 %v4044
      %v4046 = vpop.xlane.xlu0 %4045
      %v4047 = vsub.f32 %v4043, %v4046
      %v4048 = vmul.f32 %v4047, 1.442695
      %v4049 = vpow.pop %v4048
      %v4050 = vsel %vm1234, %v4049, 0.0
      %4051 = vadd.xlane.f32.xlu0 %v4050
      %v4052 = vpop.xlane.xlu0 %4051
      %v4053 = vrcp.pop %v4052
      %v4054 = vmul.f32 %v4049, %v4053
      %v4056 = vsel %vm1246, %v4054, 0
      %v4059 = vsel %vm1250, %v4014, 0
      %4061 = vmatpush.msra.mxu0 0.0
      %4062 = vmatpush.msra.mxu0 0.0
      %4063 = vmatpush.msra.mxu0 0.0
      %4064 = vmatpush.msra.mxu0 0.0
      %4065 = vmatpush.msra.mxu0 0.0
      %4066 = vmatpush.msra.mxu0 0.0
      %4067 = vmatpush.msra.mxu0 0.0
      %4068 = vmatpush.msra.mxu0 0.0
      %4069 = vmatpush.msra.mxu0 0.0
      %4070 = vmatpush.msra.mxu0 0.0
      %4071 = vmatpush.msra.mxu0 0.0
      %4072 = vmatpush.msra.mxu0 0.0
      %4073 = vmatpush.msra.mxu0 0.0
      %4074 = vmatpush.msra.mxu0 0.0
      %4075 = vmatpush.msra.mxu0 0.0
      %4076 = vmatpush.msra.mxu0 %v4059
      %4077 = vmatmul.f32.gmra.mxu0 %v4056
      %v4078 = vpop.f32.mrf.mxu0
      %v4079 = vadd.f32 0.0, %v4078
      %4080 = vdwg.mxu0
      %s4081 = scalar_lea.vmem %s25, 104
      %v4082 = vld [vmem:[%s4081] sm:$0xff]
      %v4084 = vsel %vm1205, %v4079, 0
      %4086 = vmatpush.msra.mxu0 0.0
      %4087 = vmatpush.msra.mxu0 0.0
      %4088 = vmatpush.msra.mxu0 0.0
      %4089 = vmatpush.msra.mxu0 0.0
      %4090 = vmatpush.msra.mxu0 0.0
      %4091 = vmatpush.msra.mxu0 0.0
      %4092 = vmatpush.msra.mxu0 0.0
      %4093 = vmatpush.msra.mxu0 0.0
      %4094 = vmatpush.msra.mxu0 0.0
      %4095 = vmatpush.msra.mxu0 0.0
      %4096 = vmatpush.msra.mxu0 0.0
      %4097 = vmatpush.msra.mxu0 0.0
      %4098 = vmatpush.msra.mxu0 0.0
      %4099 = vmatpush.msra.mxu0 0.0
      %4100 = vmatpush.msra.mxu0 0.0
      %4101 = vmatpush.msra.mxu0 %v4082
      %4102 = vmatmul.f32.gmra.mxu0 %v4084
      %v4103 = vpop.f32.mrf.mxu0
      %v4104 = vadd.f32 0.0, %v4103
      %4105 = vdwg.mxu0
      %v4107 = vsel %vm1205, %v3922, 0
      %4109 = vmatpush.msra.mxu0 0.0
      %4110 = vmatpush.msra.mxu0 0.0
      %4111 = vmatpush.msra.mxu0 0.0
      %4112 = vmatpush.msra.mxu0 0.0
      %4113 = vmatpush.msra.mxu0 0.0
      %4114 = vmatpush.msra.mxu0 0.0
      %4115 = vmatpush.msra.mxu0 0.0
      %4116 = vmatpush.msra.mxu0 0.0
      %4117 = vmatpush.msra.mxu0 0.0
      %4118 = vmatpush.msra.mxu0 0.0
      %4119 = vmatpush.msra.mxu0 0.0
      %4120 = vmatpush.msra.mxu0 0.0
      %4121 = vmatpush.msra.mxu0 0.0
      %4122 = vmatpush.msra.mxu0 0.0
      %4123 = vmatpush.msra.mxu0 0.0
      %4124 = vmatpush.msra.mxu0 %v3925
      %4125 = vmatmul.f32.gmra.mxu0 %v4107
      %v4126 = vpop.f32.mrf.mxu0
      %v4127 = vadd.f32 %v4104, %v4126
      %4128 = vdwg.mxu0
      %s4129 = scalar_lea.vmem %s13, 448
      %v4130 = vld [vmem:[%s4129] sm:$0xff]
      %v4131 = vld [vmem:[%s4129 + $0x8] sm:$0xff]
      %v4132 = vld [vmem:[%s4129 + $0x10] sm:$0xff]
      %v4133 = vld [vmem:[%s4129 + $0x18] sm:$0xff]
      %s4134 = scalar_lea.vmem %s15, 14
      %v4135 = vld [vmem:[%s4134] sm:$0x1]
      %v4137 = vperm.slane %v4135, 0
      %4139 = vmatpush.msra.mxu0 0.0
      %4140 = vmatpush.msra.mxu0 0.0
      %4141 = vmatpush.msra.mxu0 0.0
      %4142 = vmatpush.msra.mxu0 0.0
      %4143 = vmatpush.msra.mxu0 0.0
      %4144 = vmatpush.msra.mxu0 0.0
      %4145 = vmatpush.msra.mxu0 0.0
      %4146 = vmatpush.msra.mxu0 0.0
      %4147 = vmatpush.msra.mxu0 0.0
      %4148 = vmatpush.msra.mxu0 0.0
      %4149 = vmatpush.msra.mxu0 0.0
      %4150 = vmatpush.msra.mxu0 0.0
      %4151 = vmatpush.msra.mxu0 %v4133
      %4152 = vmatpush.msra.mxu0 %v4132
      %4153 = vmatpush.msra.mxu0 %v4131
      %4154 = vmatpush.msra.mxu0 %v4130
      %4155 = vmatmul.f32.gmra.mxu0 %v3777
      %v4156 = vpop.f32.mrf.mxu0
      %v4157 = vadd.f32 %v4137, %v4156
      %4158 = vdwg.mxu0
      %s4159 = scalar_lea.vmem %s17, 448
      %v4160 = vld [vmem:[%s4159] sm:$0xff]
      %v4161 = vld [vmem:[%s4159 + $0x8] sm:$0xff]
      %v4162 = vld [vmem:[%s4159 + $0x10] sm:$0xff]
      %v4163 = vld [vmem:[%s4159 + $0x18] sm:$0xff]
      %s4164 = scalar_lea.vmem %s19, 14
      %v4165 = vld [vmem:[%s4164] sm:$0x1]
      %v4167 = vperm.slane %v4165, 0
      %4169 = vmatpush.msra.mxu0 0.0
      %4170 = vmatpush.msra.mxu0 0.0
      %4171 = vmatpush.msra.mxu0 0.0
      %4172 = vmatpush.msra.mxu0 0.0
      %4173 = vmatpush.msra.mxu0 0.0
      %4174 = vmatpush.msra.mxu0 0.0
      %4175 = vmatpush.msra.mxu0 0.0
      %4176 = vmatpush.msra.mxu0 0.0
      %4177 = vmatpush.msra.mxu0 0.0
      %4178 = vmatpush.msra.mxu0 0.0
      %4179 = vmatpush.msra.mxu0 0.0
      %4180 = vmatpush.msra.mxu0 0.0
      %4181 = vmatpush.msra.mxu0 %v4163
      %4182 = vmatpush.msra.mxu0 %v4162
      %4183 = vmatpush.msra.mxu0 %v4161
      %4184 = vmatpush.msra.mxu0 %v4160
      %4185 = vmatmul.f32.gmra.mxu0 %v3777
      %v4186 = vpop.f32.mrf.mxu0
      %v4187 = vadd.f32 %v4167, %v4186
      %4188 = vdwg.mxu0
      %s4189 = scalar_lea.vmem %s21, 448
      %v4190 = vld [vmem:[%s4189] sm:$0xff]
      %v4191 = vld [vmem:[%s4189 + $0x8] sm:$0xff]
      %v4192 = vld [vmem:[%s4189 + $0x10] sm:$0xff]
      %v4193 = vld [vmem:[%s4189 + $0x18] sm:$0xff]
      %s4194 = scalar_lea.vmem %s23, 14
      %v4195 = vld [vmem:[%s4194] sm:$0x1]
      %v4197 = vperm.slane %v4195, 0
      %4199 = vmatpush.msra.mxu0 0.0
      %4200 = vmatpush.msra.mxu0 0.0
      %4201 = vmatpush.msra.mxu0 0.0
      %4202 = vmatpush.msra.mxu0 0.0
      %4203 = vmatpush.msra.mxu0 0.0
      %4204 = vmatpush.msra.mxu0 0.0
      %4205 = vmatpush.msra.mxu0 0.0
      %4206 = vmatpush.msra.mxu0 0.0
      %4207 = vmatpush.msra.mxu0 0.0
      %4208 = vmatpush.msra.mxu0 0.0
      %4209 = vmatpush.msra.mxu0 0.0
      %4210 = vmatpush.msra.mxu0 0.0
      %4211 = vmatpush.msra.mxu0 %v4193
      %4212 = vmatpush.msra.mxu0 %v4192
      %4213 = vmatpush.msra.mxu0 %v4191
      %4214 = vmatpush.msra.mxu0 %v4190
      %4215 = vmatmul.f32.gmra.mxu0 %v3777
      %v4216 = vpop.f32.mrf.mxu0
      %v4217 = vadd.f32 %v4197, %v4216
      %4218 = vdwg.mxu0
      %v4220 = vsel %vm1205, %v4157, 0
      %v4223 = vsel %vm1205, %v4187, 0
      %4225 = vmatpush.xpose.msra.mxu0 0.0
      %4226 = vmatpush.xpose.msra.mxu0 0.0
      %4227 = vmatpush.xpose.msra.mxu0 0.0
      %4228 = vmatpush.xpose.msra.mxu0 0.0
      %4229 = vmatpush.xpose.msra.mxu0 0.0
      %4230 = vmatpush.xpose.msra.mxu0 0.0
      %4231 = vmatpush.xpose.msra.mxu0 0.0
      %4232 = vmatpush.xpose.msra.mxu0 0.0
      %4233 = vmatpush.xpose.msra.mxu0 0.0
      %4234 = vmatpush.xpose.msra.mxu0 0.0
      %4235 = vmatpush.xpose.msra.mxu0 0.0
      %4236 = vmatpush.xpose.msra.mxu0 0.0
      %4237 = vmatpush.xpose.msra.mxu0 0.0
      %4238 = vmatpush.xpose.msra.mxu0 0.0
      %4239 = vmatpush.xpose.msra.mxu0 0.0
      %4240 = vmatpush.xpose.msra.mxu0 %v4223
      %4241 = vmatmul.f32.gmra.mxu0 %v4220
      %v4242 = vpop.f32.mrf.mxu0
      %v4243 = vadd.f32 0.0, %v4242
      %4244 = vdwg.mxu0
      %v4245 = vmul.f32 %v4243, 0.35355338
      %v4246 = vsel %vm1076, %v4245, -1e+30
      %v4247 = vsel %vm1234, %v4246, -inf
      %4248 = vmax.xlane.f32.xlu0 %v4247
      %v4249 = vpop.xlane.xlu0 %4248
      %v4250 = vsub.f32 %v4246, %v4249
      %v4251 = vmul.f32 %v4250, 1.442695
      %v4252 = vpow.pop %v4251
      %v4253 = vsel %vm1234, %v4252, 0.0
      %4254 = vadd.xlane.f32.xlu0 %v4253
      %v4255 = vpop.xlane.xlu0 %4254
      %v4256 = vrcp.pop %v4255
      %v4257 = vmul.f32 %v4252, %v4256
      %v4259 = vsel %vm1246, %v4257, 0
      %v4262 = vsel %vm1250, %v4217, 0
      %4264 = vmatpush.msra.mxu0 0.0
      %4265 = vmatpush.msra.mxu0 0.0
      %4266 = vmatpush.msra.mxu0 0.0
      %4267 = vmatpush.msra.mxu0 0.0
      %4268 = vmatpush.msra.mxu0 0.0
      %4269 = vmatpush.msra.mxu0 0.0
      %4270 = vmatpush.msra.mxu0 0.0
      %4271 = vmatpush.msra.mxu0 0.0
      %4272 = vmatpush.msra.mxu0 0.0
      %4273 = vmatpush.msra.mxu0 0.0
      %4274 = vmatpush.msra.mxu0 0.0
      %4275 = vmatpush.msra.mxu0 0.0
      %4276 = vmatpush.msra.mxu0 0.0
      %4277 = vmatpush.msra.mxu0 0.0
      %4278 = vmatpush.msra.mxu0 0.0
      %4279 = vmatpush.msra.mxu0 %v4262
      %4280 = vmatmul.f32.gmra.mxu0 %v4259
      %v4281 = vpop.f32.mrf.mxu0
      %v4282 = vadd.f32 0.0, %v4281
      %4283 = vdwg.mxu0
      %s4284 = scalar_lea.vmem %s25, 112
      %v4285 = vld [vmem:[%s4284] sm:$0xff]
      %v4287 = vsel %vm1205, %v4282, 0
      %4289 = vmatpush.msra.mxu0 0.0
      %4290 = vmatpush.msra.mxu0 0.0
      %4291 = vmatpush.msra.mxu0 0.0
      %4292 = vmatpush.msra.mxu0 0.0
      %4293 = vmatpush.msra.mxu0 0.0
      %4294 = vmatpush.msra.mxu0 0.0
      %4295 = vmatpush.msra.mxu0 0.0
      %4296 = vmatpush.msra.mxu0 0.0
      %4297 = vmatpush.msra.mxu0 0.0
      %4298 = vmatpush.msra.mxu0 0.0
      %4299 = vmatpush.msra.mxu0 0.0
      %4300 = vmatpush.msra.mxu0 0.0
      %4301 = vmatpush.msra.mxu0 0.0
      %4302 = vmatpush.msra.mxu0 0.0
      %4303 = vmatpush.msra.mxu0 0.0
      %4304 = vmatpush.msra.mxu0 %v4285
      %4305 = vmatmul.f32.gmra.mxu0 %v4287
      %v4306 = vpop.f32.mrf.mxu0
      %v4307 = vadd.f32 0.0, %v4306
      %4308 = vdwg.mxu0
      %v4309 = vadd.f32 %v4127, %v4307
      %s4310 = scalar_lea.vmem %s13, 480
      %v4311 = vld [vmem:[%s4310] sm:$0xff]
      %v4312 = vld [vmem:[%s4310 + $0x8] sm:$0xff]
      %v4313 = vld [vmem:[%s4310 + $0x10] sm:$0xff]
      %v4314 = vld [vmem:[%s4310 + $0x18] sm:$0xff]
      %s4315 = scalar_lea.vmem %s15, 15
      %v4316 = vld [vmem:[%s4315] sm:$0x1]
      %v4318 = vperm.slane %v4316, 0
      %4320 = vmatpush.msra.mxu0 0.0
      %4321 = vmatpush.msra.mxu0 0.0
      %4322 = vmatpush.msra.mxu0 0.0
      %4323 = vmatpush.msra.mxu0 0.0
      %4324 = vmatpush.msra.mxu0 0.0
      %4325 = vmatpush.msra.mxu0 0.0
      %4326 = vmatpush.msra.mxu0 0.0
      %4327 = vmatpush.msra.mxu0 0.0
      %4328 = vmatpush.msra.mxu0 0.0
      %4329 = vmatpush.msra.mxu0 0.0
      %4330 = vmatpush.msra.mxu0 0.0
      %4331 = vmatpush.msra.mxu0 0.0
      %4332 = vmatpush.msra.mxu0 %v4314
      %4333 = vmatpush.msra.mxu0 %v4313
      %4334 = vmatpush.msra.mxu0 %v4312
      %4335 = vmatpush.msra.mxu0 %v4311
      %4336 = vmatmul.f32.gmra.mxu0 %v3777
      %v4337 = vpop.f32.mrf.mxu0
      %v4338 = vadd.f32 %v4318, %v4337
      %4339 = vdwg.mxu0
      %s4340 = scalar_lea.vmem %s17, 480
      %v4341 = vld [vmem:[%s4340] sm:$0xff]
      %v4342 = vld [vmem:[%s4340 + $0x8] sm:$0xff]
      %v4343 = vld [vmem:[%s4340 + $0x10] sm:$0xff]
      %v4344 = vld [vmem:[%s4340 + $0x18] sm:$0xff]
      %s4345 = scalar_lea.vmem %s19, 15
      %v4346 = vld [vmem:[%s4345] sm:$0x1]
      %v4348 = vperm.slane %v4346, 0
      %4350 = vmatpush.msra.mxu0 0.0
      %4351 = vmatpush.msra.mxu0 0.0
      %4352 = vmatpush.msra.mxu0 0.0
      %4353 = vmatpush.msra.mxu0 0.0
      %4354 = vmatpush.msra.mxu0 0.0
      %4355 = vmatpush.msra.mxu0 0.0
      %4356 = vmatpush.msra.mxu0 0.0
      %4357 = vmatpush.msra.mxu0 0.0
      %4358 = vmatpush.msra.mxu0 0.0
      %4359 = vmatpush.msra.mxu0 0.0
      %4360 = vmatpush.msra.mxu0 0.0
      %4361 = vmatpush.msra.mxu0 0.0
      %4362 = vmatpush.msra.mxu0 %v4344
      %4363 = vmatpush.msra.mxu0 %v4343
      %4364 = vmatpush.msra.mxu0 %v4342
      %4365 = vmatpush.msra.mxu0 %v4341
      %4366 = vmatmul.f32.gmra.mxu0 %v3777
      %v4367 = vpop.f32.mrf.mxu0
      %v4368 = vadd.f32 %v4348, %v4367
      %4369 = vdwg.mxu0
      %s4370 = scalar_lea.vmem %s21, 480
      %v4371 = vld [vmem:[%s4370] sm:$0xff]
      %v4372 = vld [vmem:[%s4370 + $0x8] sm:$0xff]
      %v4373 = vld [vmem:[%s4370 + $0x10] sm:$0xff]
      %v4374 = vld [vmem:[%s4370 + $0x18] sm:$0xff]
      %s4375 = scalar_lea.vmem %s23, 15
      %v4376 = vld [vmem:[%s4375] sm:$0x1]
      %v4378 = vperm.slane %v4376, 0
      %4380 = vmatpush.msra.mxu0 0.0
      %4381 = vmatpush.msra.mxu0 0.0
      %4382 = vmatpush.msra.mxu0 0.0
      %4383 = vmatpush.msra.mxu0 0.0
      %4384 = vmatpush.msra.mxu0 0.0
      %4385 = vmatpush.msra.mxu0 0.0
      %4386 = vmatpush.msra.mxu0 0.0
      %4387 = vmatpush.msra.mxu0 0.0
      %4388 = vmatpush.msra.mxu0 0.0
      %4389 = vmatpush.msra.mxu0 0.0
      %4390 = vmatpush.msra.mxu0 0.0
      %4391 = vmatpush.msra.mxu0 0.0
      %4392 = vmatpush.msra.mxu0 %v4374
      %4393 = vmatpush.msra.mxu0 %v4373
      %4394 = vmatpush.msra.mxu0 %v4372
      %4395 = vmatpush.msra.mxu0 %v4371
      %4396 = vmatmul.f32.gmra.mxu0 %v3777
      %v4397 = vpop.f32.mrf.mxu0
      %v4398 = vadd.f32 %v4378, %v4397
      %4399 = vdwg.mxu0
      %v4401 = vsel %vm1205, %v4338, 0
      %v4404 = vsel %vm1205, %v4368, 0
      %4406 = vmatpush.xpose.msra.mxu0 0.0
      %4407 = vmatpush.xpose.msra.mxu0 0.0
      %4408 = vmatpush.xpose.msra.mxu0 0.0
      %4409 = vmatpush.xpose.msra.mxu0 0.0
      %4410 = vmatpush.xpose.msra.mxu0 0.0
      %4411 = vmatpush.xpose.msra.mxu0 0.0
      %4412 = vmatpush.xpose.msra.mxu0 0.0
      %4413 = vmatpush.xpose.msra.mxu0 0.0
      %4414 = vmatpush.xpose.msra.mxu0 0.0
      %4415 = vmatpush.xpose.msra.mxu0 0.0
      %4416 = vmatpush.xpose.msra.mxu0 0.0
      %4417 = vmatpush.xpose.msra.mxu0 0.0
      %4418 = vmatpush.xpose.msra.mxu0 0.0
      %4419 = vmatpush.xpose.msra.mxu0 0.0
      %4420 = vmatpush.xpose.msra.mxu0 0.0
      %4421 = vmatpush.xpose.msra.mxu0 %v4404
      %4422 = vmatmul.f32.gmra.mxu0 %v4401
      %v4423 = vpop.f32.mrf.mxu0
      %v4424 = vadd.f32 0.0, %v4423
      %4425 = vdwg.mxu0
      %v4426 = vmul.f32 %v4424, 0.35355338
      %v4427 = vsel %vm1076, %v4426, -1e+30
      %v4428 = vsel %vm1234, %v4427, -inf
      %4429 = vmax.xlane.f32.xlu0 %v4428
      %v4430 = vpop.xlane.xlu0 %4429
      %v4431 = vsub.f32 %v4427, %v4430
      %v4432 = vmul.f32 %v4431, 1.442695
      %v4433 = vpow.pop %v4432
      %v4434 = vsel %vm1234, %v4433, 0.0
      %4435 = vadd.xlane.f32.xlu0 %v4434
      %v4436 = vpop.xlane.xlu0 %4435
      %v4437 = vrcp.pop %v4436
      %v4438 = vmul.f32 %v4433, %v4437
      %v4440 = vsel %vm1246, %v4438, 0
      %v4443 = vsel %vm1250, %v4398, 0
      %4445 = vmatpush.msra.mxu0 0.0
      %4446 = vmatpush.msra.mxu0 0.0
      %4447 = vmatpush.msra.mxu0 0.0
      %4448 = vmatpush.msra.mxu0 0.0
      %4449 = vmatpush.msra.mxu0 0.0
      %4450 = vmatpush.msra.mxu0 0.0
      %4451 = vmatpush.msra.mxu0 0.0
      %4452 = vmatpush.msra.mxu0 0.0
      %4453 = vmatpush.msra.mxu0 0.0
      %4454 = vmatpush.msra.mxu0 0.0
      %4455 = vmatpush.msra.mxu0 0.0
      %4456 = vmatpush.msra.mxu0 0.0
      %4457 = vmatpush.msra.mxu0 0.0
      %4458 = vmatpush.msra.mxu0 0.0
      %4459 = vmatpush.msra.mxu0 0.0
      %4460 = vmatpush.msra.mxu0 %v4443
      %4461 = vmatmul.f32.gmra.mxu0 %v4440
      %v4462 = vpop.f32.mrf.mxu0
      %v4463 = vadd.f32 0.0, %v4462
      %4464 = vdwg.mxu0
      %s4465 = scalar_lea.vmem %s25, 120
      %v4466 = vld [vmem:[%s4465] sm:$0xff]
      %v4468 = vsel %vm1205, %v4463, 0
      %4470 = vmatpush.msra.mxu0 0.0
      %4471 = vmatpush.msra.mxu0 0.0
      %4472 = vmatpush.msra.mxu0 0.0
      %4473 = vmatpush.msra.mxu0 0.0
      %4474 = vmatpush.msra.mxu0 0.0
      %4475 = vmatpush.msra.mxu0 0.0
      %4476 = vmatpush.msra.mxu0 0.0
      %4477 = vmatpush.msra.mxu0 0.0
      %4478 = vmatpush.msra.mxu0 0.0
      %4479 = vmatpush.msra.mxu0 0.0
      %4480 = vmatpush.msra.mxu0 0.0
      %4481 = vmatpush.msra.mxu0 0.0
      %4482 = vmatpush.msra.mxu0 0.0
      %4483 = vmatpush.msra.mxu0 0.0
      %4484 = vmatpush.msra.mxu0 0.0
      %4485 = vmatpush.msra.mxu0 %v4466
      %4486 = vmatmul.f32.gmra.mxu0 %v4468
      %v4487 = vpop.f32.mrf.mxu0
      %v4488 = vadd.f32 0.0, %v4487
      %4489 = vdwg.mxu0
      %v4490 = vadd.f32 %v4309, %v4488
      %v4491 = vadd.f32 %v3731, %v4490
      %s4492 = scalar_lea.vmem %s27, 3
      %v4493 = vld [vmem:[%s4492] sm:$0x1]
      %v4495 = vperm.slane %v4493, 0
      %v4497 = vadd.f32 %v4491, %v4495
      %s4498 = scalar_lea.vmem %s29, 3
      %v4499 = vld [vmem:[%s4498] sm:$0x1]
      %s4500 = scalar_lea.vmem %s31, 3
      %v4501 = vld [vmem:[%s4500] sm:$0x1]
      %v4502 = vsel %vm1079, %v4497, 0.0
      %4503 = vadd.xlane.f32.xlu0 %v4502
      %v4504 = vpop.xlane.xlu0 %4503
      %v4505 = vmul.f32 %v4504, %v1089
      %v4506 = vsub.f32 %v4497, %v4505
      %v4507 = vmul.f32 %v4506, %v4506
      %v4508 = vsel %vm1079, %v4507, 0.0
      %4509 = vadd.xlane.f32.xlu0 %v4508
      %v4510 = vpop.xlane.xlu0 %4509
      %v4511 = vmul.f32 %v4510, %v1089
      %v4512 = vadd.f32 %v4511, 1e-05
      %v4513 = vrsqrt.pop %v4512
      %v4514 = vmul.f32 %v4513, %v4512
      %v4515 = vmul.f32 %v4514, %v4513
      %v4516 = vmul.f32 0.5, %v4515
      %v4517 = vsub.f32 1.5, %v4516
      %v4518 = vmul.f32 %v4513, %v4517
      %vm4519 = vweird.f32 %v4512
      %vm4520 = vweird.f32 %v4513
      %vm4521 = vmor %vm4519, %vm4520
      %v4522 = vsel %vm4521, %v4513, %v4518
      %v4523 = vmul.f32 %v4506, %v4522
      %v4525 = vperm.slane %v4499, 0
      %v4527 = vmul.f32 %v4523, %v4525
      %v4529 = vperm.slane %v4501, 0
      %v4531 = vadd.f32 %v4527, %v4529
      %s4532 = scalar_lea.vmem %s33, 96
      %v4533 = vld [vmem:[%s4532] sm:$0xff]
      %v4534 = vld [vmem:[%s4532 + $0x8] sm:$0xff]
      %v4535 = vld [vmem:[%s4532 + $0x10] sm:$0xff]
      %v4536 = vld [vmem:[%s4532 + $0x18] sm:$0xff]
      %s4537 = scalar_lea.vmem %s35, 3
      %v4538 = vld [vmem:[%s4537] sm:$0x1]
      %v4540 = vperm.slane %v4538, 0
      %v4543 = vsel %vm1125, %v4531, 0
      %4545 = vmatpush.msra.mxu0 0.0
      %4546 = vmatpush.msra.mxu0 0.0
      %4547 = vmatpush.msra.mxu0 0.0
      %4548 = vmatpush.msra.mxu0 0.0
      %4549 = vmatpush.msra.mxu0 0.0
      %4550 = vmatpush.msra.mxu0 0.0
      %4551 = vmatpush.msra.mxu0 0.0
      %4552 = vmatpush.msra.mxu0 0.0
      %4553 = vmatpush.msra.mxu0 0.0
      %4554 = vmatpush.msra.mxu0 0.0
      %4555 = vmatpush.msra.mxu0 0.0
      %4556 = vmatpush.msra.mxu0 0.0
      %4557 = vmatpush.msra.mxu0 %v4536
      %4558 = vmatpush.msra.mxu0 %v4535
      %4559 = vmatpush.msra.mxu0 %v4534
      %4560 = vmatpush.msra.mxu0 %v4533
      %4561 = vmatmul.f32.gmra.mxu0 %v4543
      %v4562 = vpop.f32.mrf.mxu0
      %v4563 = vadd.f32 %v4540, %v4562
      %4564 = vdwg.mxu0
      %v4565 = vmul.f32 %v4563, 0.5
      %v4566 = vmul.f32 %v4563, 0.044715
      %v4567 = vmul.f32 %v4566, %v4563
      %v4568 = vmul.f32 %v4567, %v4563
      %v4569 = vadd.f32 %v4563, %v4568
      %v4570 = vmul.f32 %v4569, 0.7978846
      %v4571 = vtanh.pop %v4570
      %v4572 = vadd.f32 %v4571, 1.0
      %v4573 = vmul.f32 %v4565, %v4572
      %s4574 = scalar_lea.vmem %s37, 384
      %v4575 = vld [vmem:[%s4574] sm:$0xff]
      %v4576 = vld [vmem:[%s4574 + $0x8] sm:$0xff]
      %v4577 = vld [vmem:[%s4574 + $0x10] sm:$0xff]
      %v4578 = vld [vmem:[%s4574 + $0x18] sm:$0xff]
      %v4579 = vld [vmem:[%s4574 + $0x20] sm:$0xff]
      %v4580 = vld [vmem:[%s4574 + $0x28] sm:$0xff]
      %v4581 = vld [vmem:[%s4574 + $0x30] sm:$0xff]
      %v4582 = vld [vmem:[%s4574 + $0x38] sm:$0xff]
      %v4583 = vld [vmem:[%s4574 + $0x40] sm:$0xff]
      %v4584 = vld [vmem:[%s4574 + $0x48] sm:$0xff]
      %v4585 = vld [vmem:[%s4574 + $0x50] sm:$0xff]
      %v4586 = vld [vmem:[%s4574 + $0x58] sm:$0xff]
      %v4587 = vld [vmem:[%s4574 + $0x60] sm:$0xff]
      %v4588 = vld [vmem:[%s4574 + $0x68] sm:$0xff]
      %v4589 = vld [vmem:[%s4574 + $0x70] sm:$0xff]
      %v4590 = vld [vmem:[%s4574 + $0x78] sm:$0xff]
      %4591 = vmatpush.msra.mxu0 %v4590
      %4592 = vmatpush.msra.mxu0 %v4589
      %4593 = vmatpush.msra.mxu0 %v4588
      %4594 = vmatpush.msra.mxu0 %v4587
      %4595 = vmatpush.msra.mxu0 %v4586
      %4596 = vmatpush.msra.mxu0 %v4585
      %4597 = vmatpush.msra.mxu0 %v4584
      %4598 = vmatpush.msra.mxu0 %v4583
      %4599 = vmatpush.msra.mxu0 %v4582
      %4600 = vmatpush.msra.mxu0 %v4581
      %4601 = vmatpush.msra.mxu0 %v4580
      %4602 = vmatpush.msra.mxu0 %v4579
      %4603 = vmatpush.msra.mxu0 %v4578
      %4604 = vmatpush.msra.mxu0 %v4577
      %4605 = vmatpush.msra.mxu0 %v4576
      %4606 = vmatpush.msra.mxu0 %v4575
      %4607 = vmatmul.f32.gmra.mxu0 %v4573
      %v4608 = vpop.f32.mrf.mxu0
      %v4609 = vadd.f32 0.0, %v4608
      %4610 = vdwg.mxu0
      %v4611 = vadd.f32 %v4497, %v4609
      %s4612 = scalar_lea.vmem %s39, 3
      %v4613 = vld [vmem:[%s4612] sm:$0x1]
      %v4615 = vperm.slane %v4613, 0
      %v4617 = vadd.f32 %v4611, %v4615
      %s4618 = scalar_lea.vmem %s9, 4
      %v4619 = vld [vmem:[%s4618] sm:$0x1]
      %s4620 = scalar_lea.vmem %s11, 4
      %v4621 = vld [vmem:[%s4620] sm:$0x1]
      %v4622 = vsel %vm1079, %v4617, 0.0
      %4623 = vadd.xlane.f32.xlu0 %v4622
      %v4624 = vpop.xlane.xlu0 %4623
      %v4625 = vmul.f32 %v4624, %v1089
      %v4626 = vsub.f32 %v4617, %v4625
      %v4627 = vmul.f32 %v4626, %v4626
      %v4628 = vsel %vm1079, %v4627, 0.0
      %4629 = vadd.xlane.f32.xlu0 %v4628
      %v4630 = vpop.xlane.xlu0 %4629
      %v4631 = vmul.f32 %v4630, %v1089
      %v4632 = vadd.f32 %v4631, 1e-05
      %v4633 = vrsqrt.pop %v4632
      %v4634 = vmul.f32 %v4633, %v4632
      %v4635 = vmul.f32 %v4634, %v4633
      %v4636 = vmul.f32 0.5, %v4635
      %v4637 = vsub.f32 1.5, %v4636
      %v4638 = vmul.f32 %v4633, %v4637
      %vm4639 = vweird.f32 %v4632
      %vm4640 = vweird.f32 %v4633
      %vm4641 = vmor %vm4639, %vm4640
      %v4642 = vsel %vm4641, %v4633, %v4638
      %v4643 = vmul.f32 %v4626, %v4642
      %v4645 = vperm.slane %v4619, 0
      %v4647 = vmul.f32 %v4643, %v4645
      %v4649 = vperm.slane %v4621, 0
      %v4651 = vadd.f32 %v4647, %v4649
      %s4652 = scalar_lea.vmem %s13, 512
      %v4653 = vld [vmem:[%s4652] sm:$0xff]
      %v4654 = vld [vmem:[%s4652 + $0x8] sm:$0xff]
      %v4655 = vld [vmem:[%s4652 + $0x10] sm:$0xff]
      %v4656 = vld [vmem:[%s4652 + $0x18] sm:$0xff]
      %s4657 = scalar_lea.vmem %s15, 16
      %v4658 = vld [vmem:[%s4657] sm:$0x1]
      %v4660 = vperm.slane %v4658, 0
      %v4663 = vsel %vm1125, %v4651, 0
      %4665 = vmatpush.msra.mxu0 0.0
      %4666 = vmatpush.msra.mxu0 0.0
      %4667 = vmatpush.msra.mxu0 0.0
      %4668 = vmatpush.msra.mxu0 0.0
      %4669 = vmatpush.msra.mxu0 0.0
      %4670 = vmatpush.msra.mxu0 0.0
      %4671 = vmatpush.msra.mxu0 0.0
      %4672 = vmatpush.msra.mxu0 0.0
      %4673 = vmatpush.msra.mxu0 0.0
      %4674 = vmatpush.msra.mxu0 0.0
      %4675 = vmatpush.msra.mxu0 0.0
      %4676 = vmatpush.msra.mxu0 0.0
      %4677 = vmatpush.msra.mxu0 %v4656
      %4678 = vmatpush.msra.mxu0 %v4655
      %4679 = vmatpush.msra.mxu0 %v4654
      %4680 = vmatpush.msra.mxu0 %v4653
      %4681 = vmatmul.f32.gmra.mxu0 %v4663
      %v4682 = vpop.f32.mrf.mxu0
      %v4683 = vadd.f32 %v4660, %v4682
      %4684 = vdwg.mxu0
      %s4685 = scalar_lea.vmem %s17, 512
      %v4686 = vld [vmem:[%s4685] sm:$0xff]
      %v4687 = vld [vmem:[%s4685 + $0x8] sm:$0xff]
      %v4688 = vld [vmem:[%s4685 + $0x10] sm:$0xff]
      %v4689 = vld [vmem:[%s4685 + $0x18] sm:$0xff]
      %s4690 = scalar_lea.vmem %s19, 16
      %v4691 = vld [vmem:[%s4690] sm:$0x1]
      %v4693 = vperm.slane %v4691, 0
      %4695 = vmatpush.msra.mxu0 0.0
      %4696 = vmatpush.msra.mxu0 0.0
      %4697 = vmatpush.msra.mxu0 0.0
      %4698 = vmatpush.msra.mxu0 0.0
      %4699 = vmatpush.msra.mxu0 0.0
      %4700 = vmatpush.msra.mxu0 0.0
      %4701 = vmatpush.msra.mxu0 0.0
      %4702 = vmatpush.msra.mxu0 0.0
      %4703 = vmatpush.msra.mxu0 0.0
      %4704 = vmatpush.msra.mxu0 0.0
      %4705 = vmatpush.msra.mxu0 0.0
      %4706 = vmatpush.msra.mxu0 0.0
      %4707 = vmatpush.msra.mxu0 %v4689
      %4708 = vmatpush.msra.mxu0 %v4688
      %4709 = vmatpush.msra.mxu0 %v4687
      %4710 = vmatpush.msra.mxu0 %v4686
      %4711 = vmatmul.f32.gmra.mxu0 %v4663
      %v4712 = vpop.f32.mrf.mxu0
      %v4713 = vadd.f32 %v4693, %v4712
      %4714 = vdwg.mxu0
      %s4715 = scalar_lea.vmem %s21, 512
      %v4716 = vld [vmem:[%s4715] sm:$0xff]
      %v4717 = vld [vmem:[%s4715 + $0x8] sm:$0xff]
      %v4718 = vld [vmem:[%s4715 + $0x10] sm:$0xff]
      %v4719 = vld [vmem:[%s4715 + $0x18] sm:$0xff]
      %s4720 = scalar_lea.vmem %s23, 16
      %v4721 = vld [vmem:[%s4720] sm:$0x1]
      %v4723 = vperm.slane %v4721, 0
      %4725 = vmatpush.msra.mxu0 0.0
      %4726 = vmatpush.msra.mxu0 0.0
      %4727 = vmatpush.msra.mxu0 0.0
      %4728 = vmatpush.msra.mxu0 0.0
      %4729 = vmatpush.msra.mxu0 0.0
      %4730 = vmatpush.msra.mxu0 0.0
      %4731 = vmatpush.msra.mxu0 0.0
      %4732 = vmatpush.msra.mxu0 0.0
      %4733 = vmatpush.msra.mxu0 0.0
      %4734 = vmatpush.msra.mxu0 0.0
      %4735 = vmatpush.msra.mxu0 0.0
      %4736 = vmatpush.msra.mxu0 0.0
      %4737 = vmatpush.msra.mxu0 %v4719
      %4738 = vmatpush.msra.mxu0 %v4718
      %4739 = vmatpush.msra.mxu0 %v4717
      %4740 = vmatpush.msra.mxu0 %v4716
      %4741 = vmatmul.f32.gmra.mxu0 %v4663
      %v4742 = vpop.f32.mrf.mxu0
      %v4743 = vadd.f32 %v4723, %v4742
      %4744 = vdwg.mxu0
      %v4746 = vsel %vm1205, %v4683, 0
      %v4749 = vsel %vm1205, %v4713, 0
      %4751 = vmatpush.xpose.msra.mxu0 0.0
      %4752 = vmatpush.xpose.msra.mxu0 0.0
      %4753 = vmatpush.xpose.msra.mxu0 0.0
      %4754 = vmatpush.xpose.msra.mxu0 0.0
      %4755 = vmatpush.xpose.msra.mxu0 0.0
      %4756 = vmatpush.xpose.msra.mxu0 0.0
      %4757 = vmatpush.xpose.msra.mxu0 0.0
      %4758 = vmatpush.xpose.msra.mxu0 0.0
      %4759 = vmatpush.xpose.msra.mxu0 0.0
      %4760 = vmatpush.xpose.msra.mxu0 0.0
      %4761 = vmatpush.xpose.msra.mxu0 0.0
      %4762 = vmatpush.xpose.msra.mxu0 0.0
      %4763 = vmatpush.xpose.msra.mxu0 0.0
      %4764 = vmatpush.xpose.msra.mxu0 0.0
      %4765 = vmatpush.xpose.msra.mxu0 0.0
      %4766 = vmatpush.xpose.msra.mxu0 %v4749
      %4767 = vmatmul.f32.gmra.mxu0 %v4746
      %v4768 = vpop.f32.mrf.mxu0
      %v4769 = vadd.f32 0.0, %v4768
      %4770 = vdwg.mxu0
      %v4771 = vmul.f32 %v4769, 0.35355338
      %v4772 = vsel %vm1076, %v4771, -1e+30
      %v4773 = vsel %vm1234, %v4772, -inf
      %4774 = vmax.xlane.f32.xlu0 %v4773
      %v4775 = vpop.xlane.xlu0 %4774
      %v4776 = vsub.f32 %v4772, %v4775
      %v4777 = vmul.f32 %v4776, 1.442695
      %v4778 = vpow.pop %v4777
      %v4779 = vsel %vm1234, %v4778, 0.0
      %4780 = vadd.xlane.f32.xlu0 %v4779
      %v4781 = vpop.xlane.xlu0 %4780
      %v4782 = vrcp.pop %v4781
      %v4783 = vmul.f32 %v4778, %v4782
      %v4785 = vsel %vm1246, %v4783, 0
      %v4788 = vsel %vm1250, %v4743, 0
      %4790 = vmatpush.msra.mxu0 0.0
      %4791 = vmatpush.msra.mxu0 0.0
      %4792 = vmatpush.msra.mxu0 0.0
      %4793 = vmatpush.msra.mxu0 0.0
      %4794 = vmatpush.msra.mxu0 0.0
      %4795 = vmatpush.msra.mxu0 0.0
      %4796 = vmatpush.msra.mxu0 0.0
      %4797 = vmatpush.msra.mxu0 0.0
      %4798 = vmatpush.msra.mxu0 0.0
      %4799 = vmatpush.msra.mxu0 0.0
      %4800 = vmatpush.msra.mxu0 0.0
      %4801 = vmatpush.msra.mxu0 0.0
      %4802 = vmatpush.msra.mxu0 0.0
      %4803 = vmatpush.msra.mxu0 0.0
      %4804 = vmatpush.msra.mxu0 0.0
      %4805 = vmatpush.msra.mxu0 %v4788
      %4806 = vmatmul.f32.gmra.mxu0 %v4785
      %v4807 = vpop.f32.mrf.mxu0
      %v4808 = vadd.f32 0.0, %v4807
      %4809 = vdwg.mxu0
      %s4810 = scalar_lea.vmem %s25, 128
      %v4811 = vld [vmem:[%s4810] sm:$0xff]
      %s4812 = scalar_lea.vmem %s13, 544
      %v4813 = vld [vmem:[%s4812] sm:$0xff]
      %v4814 = vld [vmem:[%s4812 + $0x8] sm:$0xff]
      %v4815 = vld [vmem:[%s4812 + $0x10] sm:$0xff]
      %v4816 = vld [vmem:[%s4812 + $0x18] sm:$0xff]
      %s4817 = scalar_lea.vmem %s15, 17
      %v4818 = vld [vmem:[%s4817] sm:$0x1]
      %v4820 = vperm.slane %v4818, 0
      %4822 = vmatpush.msra.mxu0 0.0
      %4823 = vmatpush.msra.mxu0 0.0
      %4824 = vmatpush.msra.mxu0 0.0
      %4825 = vmatpush.msra.mxu0 0.0
      %4826 = vmatpush.msra.mxu0 0.0
      %4827 = vmatpush.msra.mxu0 0.0
      %4828 = vmatpush.msra.mxu0 0.0
      %4829 = vmatpush.msra.mxu0 0.0
      %4830 = vmatpush.msra.mxu0 0.0
      %4831 = vmatpush.msra.mxu0 0.0
      %4832 = vmatpush.msra.mxu0 0.0
      %4833 = vmatpush.msra.mxu0 0.0
      %4834 = vmatpush.msra.mxu0 %v4816
      %4835 = vmatpush.msra.mxu0 %v4815
      %4836 = vmatpush.msra.mxu0 %v4814
      %4837 = vmatpush.msra.mxu0 %v4813
      %4838 = vmatmul.f32.gmra.mxu0 %v4663
      %v4839 = vpop.f32.mrf.mxu0
      %v4840 = vadd.f32 %v4820, %v4839
      %4841 = vdwg.mxu0
      %s4842 = scalar_lea.vmem %s17, 544
      %v4843 = vld [vmem:[%s4842] sm:$0xff]
      %v4844 = vld [vmem:[%s4842 + $0x8] sm:$0xff]
      %v4845 = vld [vmem:[%s4842 + $0x10] sm:$0xff]
      %v4846 = vld [vmem:[%s4842 + $0x18] sm:$0xff]
      %s4847 = scalar_lea.vmem %s19, 17
      %v4848 = vld [vmem:[%s4847] sm:$0x1]
      %v4850 = vperm.slane %v4848, 0
      %4852 = vmatpush.msra.mxu0 0.0
      %4853 = vmatpush.msra.mxu0 0.0
      %4854 = vmatpush.msra.mxu0 0.0
      %4855 = vmatpush.msra.mxu0 0.0
      %4856 = vmatpush.msra.mxu0 0.0
      %4857 = vmatpush.msra.mxu0 0.0
      %4858 = vmatpush.msra.mxu0 0.0
      %4859 = vmatpush.msra.mxu0 0.0
      %4860 = vmatpush.msra.mxu0 0.0
      %4861 = vmatpush.msra.mxu0 0.0
      %4862 = vmatpush.msra.mxu0 0.0
      %4863 = vmatpush.msra.mxu0 0.0
      %4864 = vmatpush.msra.mxu0 %v4846
      %4865 = vmatpush.msra.mxu0 %v4845
      %4866 = vmatpush.msra.mxu0 %v4844
      %4867 = vmatpush.msra.mxu0 %v4843
      %4868 = vmatmul.f32.gmra.mxu0 %v4663
      %v4869 = vpop.f32.mrf.mxu0
      %v4870 = vadd.f32 %v4850, %v4869
      %4871 = vdwg.mxu0
      %s4872 = scalar_lea.vmem %s21, 544
      %v4873 = vld [vmem:[%s4872] sm:$0xff]
      %v4874 = vld [vmem:[%s4872 + $0x8] sm:$0xff]
      %v4875 = vld [vmem:[%s4872 + $0x10] sm:$0xff]
      %v4876 = vld [vmem:[%s4872 + $0x18] sm:$0xff]
      %s4877 = scalar_lea.vmem %s23, 17
      %v4878 = vld [vmem:[%s4877] sm:$0x1]
      %v4880 = vperm.slane %v4878, 0
      %4882 = vmatpush.msra.mxu0 0.0
      %4883 = vmatpush.msra.mxu0 0.0
      %4884 = vmatpush.msra.mxu0 0.0
      %4885 = vmatpush.msra.mxu0 0.0
      %4886 = vmatpush.msra.mxu0 0.0
      %4887 = vmatpush.msra.mxu0 0.0
      %4888 = vmatpush.msra.mxu0 0.0
      %4889 = vmatpush.msra.mxu0 0.0
      %4890 = vmatpush.msra.mxu0 0.0
      %4891 = vmatpush.msra.mxu0 0.0
      %4892 = vmatpush.msra.mxu0 0.0
      %4893 = vmatpush.msra.mxu0 0.0
      %4894 = vmatpush.msra.mxu0 %v4876
      %4895 = vmatpush.msra.mxu0 %v4875
      %4896 = vmatpush.msra.mxu0 %v4874
      %4897 = vmatpush.msra.mxu0 %v4873
      %4898 = vmatmul.f32.gmra.mxu0 %v4663
      %v4899 = vpop.f32.mrf.mxu0
      %v4900 = vadd.f32 %v4880, %v4899
      %4901 = vdwg.mxu0
      %v4903 = vsel %vm1205, %v4840, 0
      %v4906 = vsel %vm1205, %v4870, 0
      %4908 = vmatpush.xpose.msra.mxu0 0.0
      %4909 = vmatpush.xpose.msra.mxu0 0.0
      %4910 = vmatpush.xpose.msra.mxu0 0.0
      %4911 = vmatpush.xpose.msra.mxu0 0.0
      %4912 = vmatpush.xpose.msra.mxu0 0.0
      %4913 = vmatpush.xpose.msra.mxu0 0.0
      %4914 = vmatpush.xpose.msra.mxu0 0.0
      %4915 = vmatpush.xpose.msra.mxu0 0.0
      %4916 = vmatpush.xpose.msra.mxu0 0.0
      %4917 = vmatpush.xpose.msra.mxu0 0.0
      %4918 = vmatpush.xpose.msra.mxu0 0.0
      %4919 = vmatpush.xpose.msra.mxu0 0.0
      %4920 = vmatpush.xpose.msra.mxu0 0.0
      %4921 = vmatpush.xpose.msra.mxu0 0.0
      %4922 = vmatpush.xpose.msra.mxu0 0.0
      %4923 = vmatpush.xpose.msra.mxu0 %v4906
      %4924 = vmatmul.f32.gmra.mxu0 %v4903
      %v4925 = vpop.f32.mrf.mxu0
      %v4926 = vadd.f32 0.0, %v4925
      %4927 = vdwg.mxu0
      %v4928 = vmul.f32 %v4926, 0.35355338
      %v4929 = vsel %vm1076, %v4928, -1e+30
      %v4930 = vsel %vm1234, %v4929, -inf
      %4931 = vmax.xlane.f32.xlu0 %v4930
      %v4932 = vpop.xlane.xlu0 %4931
      %v4933 = vsub.f32 %v4929, %v4932
      %v4934 = vmul.f32 %v4933, 1.442695
      %v4935 = vpow.pop %v4934
      %v4936 = vsel %vm1234, %v4935, 0.0
      %4937 = vadd.xlane.f32.xlu0 %v4936
      %v4938 = vpop.xlane.xlu0 %4937
      %v4939 = vrcp.pop %v4938
      %v4940 = vmul.f32 %v4935, %v4939
      %v4942 = vsel %vm1246, %v4940, 0
      %v4945 = vsel %vm1250, %v4900, 0
      %4947 = vmatpush.msra.mxu0 0.0
      %4948 = vmatpush.msra.mxu0 0.0
      %4949 = vmatpush.msra.mxu0 0.0
      %4950 = vmatpush.msra.mxu0 0.0
      %4951 = vmatpush.msra.mxu0 0.0
      %4952 = vmatpush.msra.mxu0 0.0
      %4953 = vmatpush.msra.mxu0 0.0
      %4954 = vmatpush.msra.mxu0 0.0
      %4955 = vmatpush.msra.mxu0 0.0
      %4956 = vmatpush.msra.mxu0 0.0
      %4957 = vmatpush.msra.mxu0 0.0
      %4958 = vmatpush.msra.mxu0 0.0
      %4959 = vmatpush.msra.mxu0 0.0
      %4960 = vmatpush.msra.mxu0 0.0
      %4961 = vmatpush.msra.mxu0 0.0
      %4962 = vmatpush.msra.mxu0 %v4945
      %4963 = vmatmul.f32.gmra.mxu0 %v4942
      %v4964 = vpop.f32.mrf.mxu0
      %v4965 = vadd.f32 0.0, %v4964
      %4966 = vdwg.mxu0
      %s4967 = scalar_lea.vmem %s25, 136
      %v4968 = vld [vmem:[%s4967] sm:$0xff]
      %v4970 = vsel %vm1205, %v4965, 0
      %4972 = vmatpush.msra.mxu0 0.0
      %4973 = vmatpush.msra.mxu0 0.0
      %4974 = vmatpush.msra.mxu0 0.0
      %4975 = vmatpush.msra.mxu0 0.0
      %4976 = vmatpush.msra.mxu0 0.0
      %4977 = vmatpush.msra.mxu0 0.0
      %4978 = vmatpush.msra.mxu0 0.0
      %4979 = vmatpush.msra.mxu0 0.0
      %4980 = vmatpush.msra.mxu0 0.0
      %4981 = vmatpush.msra.mxu0 0.0
      %4982 = vmatpush.msra.mxu0 0.0
      %4983 = vmatpush.msra.mxu0 0.0
      %4984 = vmatpush.msra.mxu0 0.0
      %4985 = vmatpush.msra.mxu0 0.0
      %4986 = vmatpush.msra.mxu0 0.0
      %4987 = vmatpush.msra.mxu0 %v4968
      %4988 = vmatmul.f32.gmra.mxu0 %v4970
      %v4989 = vpop.f32.mrf.mxu0
      %v4990 = vadd.f32 0.0, %v4989
      %4991 = vdwg.mxu0
      %v4993 = vsel %vm1205, %v4808, 0
      %4995 = vmatpush.msra.mxu0 0.0
      %4996 = vmatpush.msra.mxu0 0.0
      %4997 = vmatpush.msra.mxu0 0.0
      %4998 = vmatpush.msra.mxu0 0.0
      %4999 = vmatpush.msra.mxu0 0.0
      %5000 = vmatpush.msra.mxu0 0.0
      %5001 = vmatpush.msra.mxu0 0.0
      %5002 = vmatpush.msra.mxu0 0.0
      %5003 = vmatpush.msra.mxu0 0.0
      %5004 = vmatpush.msra.mxu0 0.0
      %5005 = vmatpush.msra.mxu0 0.0
      %5006 = vmatpush.msra.mxu0 0.0
      %5007 = vmatpush.msra.mxu0 0.0
      %5008 = vmatpush.msra.mxu0 0.0
      %5009 = vmatpush.msra.mxu0 0.0
      %5010 = vmatpush.msra.mxu0 %v4811
      %5011 = vmatmul.f32.gmra.mxu0 %v4993
      %v5012 = vpop.f32.mrf.mxu0
      %v5013 = vadd.f32 %v4990, %v5012
      %5014 = vdwg.mxu0
      %s5015 = scalar_lea.vmem %s13, 576
      %v5016 = vld [vmem:[%s5015] sm:$0xff]
      %v5017 = vld [vmem:[%s5015 + $0x8] sm:$0xff]
      %v5018 = vld [vmem:[%s5015 + $0x10] sm:$0xff]
      %v5019 = vld [vmem:[%s5015 + $0x18] sm:$0xff]
      %s5020 = scalar_lea.vmem %s15, 18
      %v5021 = vld [vmem:[%s5020] sm:$0x1]
      %v5023 = vperm.slane %v5021, 0
      %5025 = vmatpush.msra.mxu0 0.0
      %5026 = vmatpush.msra.mxu0 0.0
      %5027 = vmatpush.msra.mxu0 0.0
      %5028 = vmatpush.msra.mxu0 0.0
      %5029 = vmatpush.msra.mxu0 0.0
      %5030 = vmatpush.msra.mxu0 0.0
      %5031 = vmatpush.msra.mxu0 0.0
      %5032 = vmatpush.msra.mxu0 0.0
      %5033 = vmatpush.msra.mxu0 0.0
      %5034 = vmatpush.msra.mxu0 0.0
      %5035 = vmatpush.msra.mxu0 0.0
      %5036 = vmatpush.msra.mxu0 0.0
      %5037 = vmatpush.msra.mxu0 %v5019
      %5038 = vmatpush.msra.mxu0 %v5018
      %5039 = vmatpush.msra.mxu0 %v5017
      %5040 = vmatpush.msra.mxu0 %v5016
      %5041 = vmatmul.f32.gmra.mxu0 %v4663
      %v5042 = vpop.f32.mrf.mxu0
      %v5043 = vadd.f32 %v5023, %v5042
      %5044 = vdwg.mxu0
      %s5045 = scalar_lea.vmem %s17, 576
      %v5046 = vld [vmem:[%s5045] sm:$0xff]
      %v5047 = vld [vmem:[%s5045 + $0x8] sm:$0xff]
      %v5048 = vld [vmem:[%s5045 + $0x10] sm:$0xff]
      %v5049 = vld [vmem:[%s5045 + $0x18] sm:$0xff]
      %s5050 = scalar_lea.vmem %s19, 18
      %v5051 = vld [vmem:[%s5050] sm:$0x1]
      %v5053 = vperm.slane %v5051, 0
      %5055 = vmatpush.msra.mxu0 0.0
      %5056 = vmatpush.msra.mxu0 0.0
      %5057 = vmatpush.msra.mxu0 0.0
      %5058 = vmatpush.msra.mxu0 0.0
      %5059 = vmatpush.msra.mxu0 0.0
      %5060 = vmatpush.msra.mxu0 0.0
      %5061 = vmatpush.msra.mxu0 0.0
      %5062 = vmatpush.msra.mxu0 0.0
      %5063 = vmatpush.msra.mxu0 0.0
      %5064 = vmatpush.msra.mxu0 0.0
      %5065 = vmatpush.msra.mxu0 0.0
      %5066 = vmatpush.msra.mxu0 0.0
      %5067 = vmatpush.msra.mxu0 %v5049
      %5068 = vmatpush.msra.mxu0 %v5048
      %5069 = vmatpush.msra.mxu0 %v5047
      %5070 = vmatpush.msra.mxu0 %v5046
      %5071 = vmatmul.f32.gmra.mxu0 %v4663
      %v5072 = vpop.f32.mrf.mxu0
      %v5073 = vadd.f32 %v5053, %v5072
      %5074 = vdwg.mxu0
      %s5075 = scalar_lea.vmem %s21, 576
      %v5076 = vld [vmem:[%s5075] sm:$0xff]
      %v5077 = vld [vmem:[%s5075 + $0x8] sm:$0xff]
      %v5078 = vld [vmem:[%s5075 + $0x10] sm:$0xff]
      %v5079 = vld [vmem:[%s5075 + $0x18] sm:$0xff]
      %s5080 = scalar_lea.vmem %s23, 18
      %v5081 = vld [vmem:[%s5080] sm:$0x1]
      %v5083 = vperm.slane %v5081, 0
      %5085 = vmatpush.msra.mxu0 0.0
      %5086 = vmatpush.msra.mxu0 0.0
      %5087 = vmatpush.msra.mxu0 0.0
      %5088 = vmatpush.msra.mxu0 0.0
      %5089 = vmatpush.msra.mxu0 0.0
      %5090 = vmatpush.msra.mxu0 0.0
      %5091 = vmatpush.msra.mxu0 0.0
      %5092 = vmatpush.msra.mxu0 0.0
      %5093 = vmatpush.msra.mxu0 0.0
      %5094 = vmatpush.msra.mxu0 0.0
      %5095 = vmatpush.msra.mxu0 0.0
      %5096 = vmatpush.msra.mxu0 0.0
      %5097 = vmatpush.msra.mxu0 %v5079
      %5098 = vmatpush.msra.mxu0 %v5078
      %5099 = vmatpush.msra.mxu0 %v5077
      %5100 = vmatpush.msra.mxu0 %v5076
      %5101 = vmatmul.f32.gmra.mxu0 %v4663
      %v5102 = vpop.f32.mrf.mxu0
      %v5103 = vadd.f32 %v5083, %v5102
      %5104 = vdwg.mxu0
      %v5106 = vsel %vm1205, %v5043, 0
      %v5109 = vsel %vm1205, %v5073, 0
      %5111 = vmatpush.xpose.msra.mxu0 0.0
      %5112 = vmatpush.xpose.msra.mxu0 0.0
      %5113 = vmatpush.xpose.msra.mxu0 0.0
      %5114 = vmatpush.xpose.msra.mxu0 0.0
      %5115 = vmatpush.xpose.msra.mxu0 0.0
      %5116 = vmatpush.xpose.msra.mxu0 0.0
      %5117 = vmatpush.xpose.msra.mxu0 0.0
      %5118 = vmatpush.xpose.msra.mxu0 0.0
      %5119 = vmatpush.xpose.msra.mxu0 0.0
      %5120 = vmatpush.xpose.msra.mxu0 0.0
      %5121 = vmatpush.xpose.msra.mxu0 0.0
      %5122 = vmatpush.xpose.msra.mxu0 0.0
      %5123 = vmatpush.xpose.msra.mxu0 0.0
      %5124 = vmatpush.xpose.msra.mxu0 0.0
      %5125 = vmatpush.xpose.msra.mxu0 0.0
      %5126 = vmatpush.xpose.msra.mxu0 %v5109
      %5127 = vmatmul.f32.gmra.mxu0 %v5106
      %v5128 = vpop.f32.mrf.mxu0
      %v5129 = vadd.f32 0.0, %v5128
      %5130 = vdwg.mxu0
      %v5131 = vmul.f32 %v5129, 0.35355338
      %v5132 = vsel %vm1076, %v5131, -1e+30
      %v5133 = vsel %vm1234, %v5132, -inf
      %5134 = vmax.xlane.f32.xlu0 %v5133
      %v5135 = vpop.xlane.xlu0 %5134
      %v5136 = vsub.f32 %v5132, %v5135
      %v5137 = vmul.f32 %v5136, 1.442695
      %v5138 = vpow.pop %v5137
      %v5139 = vsel %vm1234, %v5138, 0.0
      %5140 = vadd.xlane.f32.xlu0 %v5139
      %v5141 = vpop.xlane.xlu0 %5140
      %v5142 = vrcp.pop %v5141
      %v5143 = vmul.f32 %v5138, %v5142
      %v5145 = vsel %vm1246, %v5143, 0
      %v5148 = vsel %vm1250, %v5103, 0
      %5150 = vmatpush.msra.mxu0 0.0
      %5151 = vmatpush.msra.mxu0 0.0
      %5152 = vmatpush.msra.mxu0 0.0
      %5153 = vmatpush.msra.mxu0 0.0
      %5154 = vmatpush.msra.mxu0 0.0
      %5155 = vmatpush.msra.mxu0 0.0
      %5156 = vmatpush.msra.mxu0 0.0
      %5157 = vmatpush.msra.mxu0 0.0
      %5158 = vmatpush.msra.mxu0 0.0
      %5159 = vmatpush.msra.mxu0 0.0
      %5160 = vmatpush.msra.mxu0 0.0
      %5161 = vmatpush.msra.mxu0 0.0
      %5162 = vmatpush.msra.mxu0 0.0
      %5163 = vmatpush.msra.mxu0 0.0
      %5164 = vmatpush.msra.mxu0 0.0
      %5165 = vmatpush.msra.mxu0 %v5148
      %5166 = vmatmul.f32.gmra.mxu0 %v5145
      %v5167 = vpop.f32.mrf.mxu0
      %v5168 = vadd.f32 0.0, %v5167
      %5169 = vdwg.mxu0
      %s5170 = scalar_lea.vmem %s25, 144
      %v5171 = vld [vmem:[%s5170] sm:$0xff]
      %v5173 = vsel %vm1205, %v5168, 0
      %5175 = vmatpush.msra.mxu0 0.0
      %5176 = vmatpush.msra.mxu0 0.0
      %5177 = vmatpush.msra.mxu0 0.0
      %5178 = vmatpush.msra.mxu0 0.0
      %5179 = vmatpush.msra.mxu0 0.0
      %5180 = vmatpush.msra.mxu0 0.0
      %5181 = vmatpush.msra.mxu0 0.0
      %5182 = vmatpush.msra.mxu0 0.0
      %5183 = vmatpush.msra.mxu0 0.0
      %5184 = vmatpush.msra.mxu0 0.0
      %5185 = vmatpush.msra.mxu0 0.0
      %5186 = vmatpush.msra.mxu0 0.0
      %5187 = vmatpush.msra.mxu0 0.0
      %5188 = vmatpush.msra.mxu0 0.0
      %5189 = vmatpush.msra.mxu0 0.0
      %5190 = vmatpush.msra.mxu0 %v5171
      %5191 = vmatmul.f32.gmra.mxu0 %v5173
      %v5192 = vpop.f32.mrf.mxu0
      %v5193 = vadd.f32 0.0, %v5192
      %5194 = vdwg.mxu0
      %v5195 = vadd.f32 %v5013, %v5193
      %s5196 = scalar_lea.vmem %s13, 608
      %v5197 = vld [vmem:[%s5196] sm:$0xff]
      %v5198 = vld [vmem:[%s5196 + $0x8] sm:$0xff]
      %v5199 = vld [vmem:[%s5196 + $0x10] sm:$0xff]
      %v5200 = vld [vmem:[%s5196 + $0x18] sm:$0xff]
      %s5201 = scalar_lea.vmem %s15, 19
      %v5202 = vld [vmem:[%s5201] sm:$0x1]
      %v5204 = vperm.slane %v5202, 0
      %5206 = vmatpush.msra.mxu0 0.0
      %5207 = vmatpush.msra.mxu0 0.0
      %5208 = vmatpush.msra.mxu0 0.0
      %5209 = vmatpush.msra.mxu0 0.0
      %5210 = vmatpush.msra.mxu0 0.0
      %5211 = vmatpush.msra.mxu0 0.0
      %5212 = vmatpush.msra.mxu0 0.0
      %5213 = vmatpush.msra.mxu0 0.0
      %5214 = vmatpush.msra.mxu0 0.0
      %5215 = vmatpush.msra.mxu0 0.0
      %5216 = vmatpush.msra.mxu0 0.0
      %5217 = vmatpush.msra.mxu0 0.0
      %5218 = vmatpush.msra.mxu0 %v5200
      %5219 = vmatpush.msra.mxu0 %v5199
      %5220 = vmatpush.msra.mxu0 %v5198
      %5221 = vmatpush.msra.mxu0 %v5197
      %5222 = vmatmul.f32.gmra.mxu0 %v4663
      %v5223 = vpop.f32.mrf.mxu0
      %v5224 = vadd.f32 %v5204, %v5223
      %5225 = vdwg.mxu0
      %s5226 = scalar_lea.vmem %s17, 608
      %v5227 = vld [vmem:[%s5226] sm:$0xff]
      %v5228 = vld [vmem:[%s5226 + $0x8] sm:$0xff]
      %v5229 = vld [vmem:[%s5226 + $0x10] sm:$0xff]
      %v5230 = vld [vmem:[%s5226 + $0x18] sm:$0xff]
      %s5231 = scalar_lea.vmem %s19, 19
      %v5232 = vld [vmem:[%s5231] sm:$0x1]
      %v5234 = vperm.slane %v5232, 0
      %5236 = vmatpush.msra.mxu0 0.0
      %5237 = vmatpush.msra.mxu0 0.0
      %5238 = vmatpush.msra.mxu0 0.0
      %5239 = vmatpush.msra.mxu0 0.0
      %5240 = vmatpush.msra.mxu0 0.0
      %5241 = vmatpush.msra.mxu0 0.0
      %5242 = vmatpush.msra.mxu0 0.0
      %5243 = vmatpush.msra.mxu0 0.0
      %5244 = vmatpush.msra.mxu0 0.0
      %5245 = vmatpush.msra.mxu0 0.0
      %5246 = vmatpush.msra.mxu0 0.0
      %5247 = vmatpush.msra.mxu0 0.0
      %5248 = vmatpush.msra.mxu0 %v5230
      %5249 = vmatpush.msra.mxu0 %v5229
      %5250 = vmatpush.msra.mxu0 %v5228
      %5251 = vmatpush.msra.mxu0 %v5227
      %5252 = vmatmul.f32.gmra.mxu0 %v4663
      %v5253 = vpop.f32.mrf.mxu0
      %v5254 = vadd.f32 %v5234, %v5253
      %5255 = vdwg.mxu0
      %s5256 = scalar_lea.vmem %s21, 608
      %v5257 = vld [vmem:[%s5256] sm:$0xff]
      %v5258 = vld [vmem:[%s5256 + $0x8] sm:$0xff]
      %v5259 = vld [vmem:[%s5256 + $0x10] sm:$0xff]
      %v5260 = vld [vmem:[%s5256 + $0x18] sm:$0xff]
      %s5261 = scalar_lea.vmem %s23, 19
      %v5262 = vld [vmem:[%s5261] sm:$0x1]
      %v5264 = vperm.slane %v5262, 0
      %5266 = vmatpush.msra.mxu0 0.0
      %5267 = vmatpush.msra.mxu0 0.0
      %5268 = vmatpush.msra.mxu0 0.0
      %5269 = vmatpush.msra.mxu0 0.0
      %5270 = vmatpush.msra.mxu0 0.0
      %5271 = vmatpush.msra.mxu0 0.0
      %5272 = vmatpush.msra.mxu0 0.0
      %5273 = vmatpush.msra.mxu0 0.0
      %5274 = vmatpush.msra.mxu0 0.0
      %5275 = vmatpush.msra.mxu0 0.0
      %5276 = vmatpush.msra.mxu0 0.0
      %5277 = vmatpush.msra.mxu0 0.0
      %5278 = vmatpush.msra.mxu0 %v5260
      %5279 = vmatpush.msra.mxu0 %v5259
      %5280 = vmatpush.msra.mxu0 %v5258
      %5281 = vmatpush.msra.mxu0 %v5257
      %5282 = vmatmul.f32.gmra.mxu0 %v4663
      %v5283 = vpop.f32.mrf.mxu0
      %v5284 = vadd.f32 %v5264, %v5283
      %5285 = vdwg.mxu0
      %v5287 = vsel %vm1205, %v5224, 0
      %v5290 = vsel %vm1205, %v5254, 0
      %5292 = vmatpush.xpose.msra.mxu0 0.0
      %5293 = vmatpush.xpose.msra.mxu0 0.0
      %5294 = vmatpush.xpose.msra.mxu0 0.0
      %5295 = vmatpush.xpose.msra.mxu0 0.0
      %5296 = vmatpush.xpose.msra.mxu0 0.0
      %5297 = vmatpush.xpose.msra.mxu0 0.0
      %5298 = vmatpush.xpose.msra.mxu0 0.0
      %5299 = vmatpush.xpose.msra.mxu0 0.0
      %5300 = vmatpush.xpose.msra.mxu0 0.0
      %5301 = vmatpush.xpose.msra.mxu0 0.0
      %5302 = vmatpush.xpose.msra.mxu0 0.0
      %5303 = vmatpush.xpose.msra.mxu0 0.0
      %5304 = vmatpush.xpose.msra.mxu0 0.0
      %5305 = vmatpush.xpose.msra.mxu0 0.0
      %5306 = vmatpush.xpose.msra.mxu0 0.0
      %5307 = vmatpush.xpose.msra.mxu0 %v5290
      %5308 = vmatmul.f32.gmra.mxu0 %v5287
      %v5309 = vpop.f32.mrf.mxu0
      %v5310 = vadd.f32 0.0, %v5309
      %5311 = vdwg.mxu0
      %v5312 = vmul.f32 %v5310, 0.35355338
      %v5313 = vsel %vm1076, %v5312, -1e+30
      %v5314 = vsel %vm1234, %v5313, -inf
      %5315 = vmax.xlane.f32.xlu0 %v5314
      %v5316 = vpop.xlane.xlu0 %5315
      %v5317 = vsub.f32 %v5313, %v5316
      %v5318 = vmul.f32 %v5317, 1.442695
      %v5319 = vpow.pop %v5318
      %v5320 = vsel %vm1234, %v5319, 0.0
      %5321 = vadd.xlane.f32.xlu0 %v5320
      %v5322 = vpop.xlane.xlu0 %5321
      %v5323 = vrcp.pop %v5322
      %v5324 = vmul.f32 %v5319, %v5323
      %v5326 = vsel %vm1246, %v5324, 0
      %v5329 = vsel %vm1250, %v5284, 0
      %5331 = vmatpush.msra.mxu0 0.0
      %5332 = vmatpush.msra.mxu0 0.0
      %5333 = vmatpush.msra.mxu0 0.0
      %5334 = vmatpush.msra.mxu0 0.0
      %5335 = vmatpush.msra.mxu0 0.0
      %5336 = vmatpush.msra.mxu0 0.0
      %5337 = vmatpush.msra.mxu0 0.0
      %5338 = vmatpush.msra.mxu0 0.0
      %5339 = vmatpush.msra.mxu0 0.0
      %5340 = vmatpush.msra.mxu0 0.0
      %5341 = vmatpush.msra.mxu0 0.0
      %5342 = vmatpush.msra.mxu0 0.0
      %5343 = vmatpush.msra.mxu0 0.0
      %5344 = vmatpush.msra.mxu0 0.0
      %5345 = vmatpush.msra.mxu0 0.0
      %5346 = vmatpush.msra.mxu0 %v5329
      %5347 = vmatmul.f32.gmra.mxu0 %v5326
      %v5348 = vpop.f32.mrf.mxu0
      %v5349 = vadd.f32 0.0, %v5348
      %5350 = vdwg.mxu0
      %s5351 = scalar_lea.vmem %s25, 152
      %v5352 = vld [vmem:[%s5351] sm:$0xff]
      %v5354 = vsel %vm1205, %v5349, 0
      %5356 = vmatpush.msra.mxu0 0.0
      %5357 = vmatpush.msra.mxu0 0.0
      %5358 = vmatpush.msra.mxu0 0.0
      %5359 = vmatpush.msra.mxu0 0.0
      %5360 = vmatpush.msra.mxu0 0.0
      %5361 = vmatpush.msra.mxu0 0.0
      %5362 = vmatpush.msra.mxu0 0.0
      %5363 = vmatpush.msra.mxu0 0.0
      %5364 = vmatpush.msra.mxu0 0.0
      %5365 = vmatpush.msra.mxu0 0.0
      %5366 = vmatpush.msra.mxu0 0.0
      %5367 = vmatpush.msra.mxu0 0.0
      %5368 = vmatpush.msra.mxu0 0.0
      %5369 = vmatpush.msra.mxu0 0.0
      %5370 = vmatpush.msra.mxu0 0.0
      %5371 = vmatpush.msra.mxu0 %v5352
      %5372 = vmatmul.f32.gmra.mxu0 %v5354
      %v5373 = vpop.f32.mrf.mxu0
      %v5374 = vadd.f32 0.0, %v5373
      %5375 = vdwg.mxu0
      %v5376 = vadd.f32 %v5195, %v5374
      %v5377 = vadd.f32 %v4617, %v5376
      %s5378 = scalar_lea.vmem %s27, 4
      %v5379 = vld [vmem:[%s5378] sm:$0x1]
      %v5381 = vperm.slane %v5379, 0
      %v5383 = vadd.f32 %v5377, %v5381
      %s5384 = scalar_lea.vmem %s29, 4
      %v5385 = vld [vmem:[%s5384] sm:$0x1]
      %s5386 = scalar_lea.vmem %s31, 4
      %v5387 = vld [vmem:[%s5386] sm:$0x1]
      %v5388 = vsel %vm1079, %v5383, 0.0
      %5389 = vadd.xlane.f32.xlu0 %v5388
      %v5390 = vpop.xlane.xlu0 %5389
      %v5391 = vmul.f32 %v5390, %v1089
      %v5392 = vsub.f32 %v5383, %v5391
      %v5393 = vmul.f32 %v5392, %v5392
      %v5394 = vsel %vm1079, %v5393, 0.0
      %5395 = vadd.xlane.f32.xlu0 %v5394
      %v5396 = vpop.xlane.xlu0 %5395
      %v5397 = vmul.f32 %v5396, %v1089
      %v5398 = vadd.f32 %v5397, 1e-05
      %v5399 = vrsqrt.pop %v5398
      %v5400 = vmul.f32 %v5399, %v5398
      %v5401 = vmul.f32 %v5400, %v5399
      %v5402 = vmul.f32 0.5, %v5401
      %v5403 = vsub.f32 1.5, %v5402
      %v5404 = vmul.f32 %v5399, %v5403
      %vm5405 = vweird.f32 %v5398
      %vm5406 = vweird.f32 %v5399
      %vm5407 = vmor %vm5405, %vm5406
      %v5408 = vsel %vm5407, %v5399, %v5404
      %v5409 = vmul.f32 %v5392, %v5408
      %v5411 = vperm.slane %v5385, 0
      %v5413 = vmul.f32 %v5409, %v5411
      %v5415 = vperm.slane %v5387, 0
      %v5417 = vadd.f32 %v5413, %v5415
      %s5418 = scalar_lea.vmem %s33, 128
      %v5419 = vld [vmem:[%s5418] sm:$0xff]
      %v5420 = vld [vmem:[%s5418 + $0x8] sm:$0xff]
      %v5421 = vld [vmem:[%s5418 + $0x10] sm:$0xff]
      %v5422 = vld [vmem:[%s5418 + $0x18] sm:$0xff]
      %s5423 = scalar_lea.vmem %s35, 4
      %v5424 = vld [vmem:[%s5423] sm:$0x1]
      %v5426 = vperm.slane %v5424, 0
      %v5429 = vsel %vm1125, %v5417, 0
      %5431 = vmatpush.msra.mxu0 0.0
      %5432 = vmatpush.msra.mxu0 0.0
      %5433 = vmatpush.msra.mxu0 0.0
      %5434 = vmatpush.msra.mxu0 0.0
      %5435 = vmatpush.msra.mxu0 0.0
      %5436 = vmatpush.msra.mxu0 0.0
      %5437 = vmatpush.msra.mxu0 0.0
      %5438 = vmatpush.msra.mxu0 0.0
      %5439 = vmatpush.msra.mxu0 0.0
      %5440 = vmatpush.msra.mxu0 0.0
      %5441 = vmatpush.msra.mxu0 0.0
      %5442 = vmatpush.msra.mxu0 0.0
      %5443 = vmatpush.msra.mxu0 %v5422
      %5444 = vmatpush.msra.mxu0 %v5421
      %5445 = vmatpush.msra.mxu0 %v5420
      %5446 = vmatpush.msra.mxu0 %v5419
      %5447 = vmatmul.f32.gmra.mxu0 %v5429
      %v5448 = vpop.f32.mrf.mxu0
      %v5449 = vadd.f32 %v5426, %v5448
      %5450 = vdwg.mxu0
      %v5451 = vmul.f32 %v5449, 0.5
      %v5452 = vmul.f32 %v5449, 0.044715
      %v5453 = vmul.f32 %v5452, %v5449
      %v5454 = vmul.f32 %v5453, %v5449
      %v5455 = vadd.f32 %v5449, %v5454
      %v5456 = vmul.f32 %v5455, 0.7978846
      %v5457 = vtanh.pop %v5456
      %v5458 = vadd.f32 %v5457, 1.0
      %v5459 = vmul.f32 %v5451, %v5458
      %s5460 = scalar_lea.vmem %s37, 512
      %v5461 = vld [vmem:[%s5460] sm:$0xff]
      %v5462 = vld [vmem:[%s5460 + $0x8] sm:$0xff]
      %v5463 = vld [vmem:[%s5460 + $0x10] sm:$0xff]
      %v5464 = vld [vmem:[%s5460 + $0x18] sm:$0xff]
      %v5465 = vld [vmem:[%s5460 + $0x20] sm:$0xff]
      %v5466 = vld [vmem:[%s5460 + $0x28] sm:$0xff]
      %v5467 = vld [vmem:[%s5460 + $0x30] sm:$0xff]
      %v5468 = vld [vmem:[%s5460 + $0x38] sm:$0xff]
      %v5469 = vld [vmem:[%s5460 + $0x40] sm:$0xff]
      %v5470 = vld [vmem:[%s5460 + $0x48] sm:$0xff]
      %v5471 = vld [vmem:[%s5460 + $0x50] sm:$0xff]
      %v5472 = vld [vmem:[%s5460 + $0x58] sm:$0xff]
      %v5473 = vld [vmem:[%s5460 + $0x60] sm:$0xff]
      %v5474 = vld [vmem:[%s5460 + $0x68] sm:$0xff]
      %v5475 = vld [vmem:[%s5460 + $0x70] sm:$0xff]
      %v5476 = vld [vmem:[%s5460 + $0x78] sm:$0xff]
      %5477 = vmatpush.msra.mxu0 %v5476
      %5478 = vmatpush.msra.mxu0 %v5475
      %5479 = vmatpush.msra.mxu0 %v5474
      %5480 = vmatpush.msra.mxu0 %v5473
      %5481 = vmatpush.msra.mxu0 %v5472
      %5482 = vmatpush.msra.mxu0 %v5471
      %5483 = vmatpush.msra.mxu0 %v5470
      %5484 = vmatpush.msra.mxu0 %v5469
      %5485 = vmatpush.msra.mxu0 %v5468
      %5486 = vmatpush.msra.mxu0 %v5467
      %5487 = vmatpush.msra.mxu0 %v5466
      %5488 = vmatpush.msra.mxu0 %v5465
      %5489 = vmatpush.msra.mxu0 %v5464
      %5490 = vmatpush.msra.mxu0 %v5463
      %5491 = vmatpush.msra.mxu0 %v5462
      %5492 = vmatpush.msra.mxu0 %v5461
      %5493 = vmatmul.f32.gmra.mxu0 %v5459
      %v5494 = vpop.f32.mrf.mxu0
      %v5495 = vadd.f32 0.0, %v5494
      %5496 = vdwg.mxu0
      %v5497 = vadd.f32 %v5383, %v5495
      %s5498 = scalar_lea.vmem %s39, 4
      %v5499 = vld [vmem:[%s5498] sm:$0x1]
      %v5501 = vperm.slane %v5499, 0
      %v5503 = vadd.f32 %v5497, %v5501
      %s5504 = scalar_lea.vmem %s9, 5
      %v5505 = vld [vmem:[%s5504] sm:$0x1]
      %s5506 = scalar_lea.vmem %s11, 5
      %v5507 = vld [vmem:[%s5506] sm:$0x1]
      %v5508 = vsel %vm1079, %v5503, 0.0
      %5509 = vadd.xlane.f32.xlu0 %v5508
      %v5510 = vpop.xlane.xlu0 %5509
      %v5511 = vmul.f32 %v5510, %v1089
      %v5512 = vsub.f32 %v5503, %v5511
      %v5513 = vmul.f32 %v5512, %v5512
      %v5514 = vsel %vm1079, %v5513, 0.0
      %5515 = vadd.xlane.f32.xlu0 %v5514
      %v5516 = vpop.xlane.xlu0 %5515
      %v5517 = vmul.f32 %v5516, %v1089
      %v5518 = vadd.f32 %v5517, 1e-05
      %v5519 = vrsqrt.pop %v5518
      %v5520 = vmul.f32 %v5519, %v5518
      %v5521 = vmul.f32 %v5520, %v5519
      %v5522 = vmul.f32 0.5, %v5521
      %v5523 = vsub.f32 1.5, %v5522
      %v5524 = vmul.f32 %v5519, %v5523
      %vm5525 = vweird.f32 %v5518
      %vm5526 = vweird.f32 %v5519
      %vm5527 = vmor %vm5525, %vm5526
      %v5528 = vsel %vm5527, %v5519, %v5524
      %v5529 = vmul.f32 %v5512, %v5528
      %v5531 = vperm.slane %v5505, 0
      %v5533 = vmul.f32 %v5529, %v5531
      %v5535 = vperm.slane %v5507, 0
      %v5537 = vadd.f32 %v5533, %v5535
      %s5538 = scalar_lea.vmem %s13, 640
      %v5539 = vld [vmem:[%s5538] sm:$0xff]
      %v5540 = vld [vmem:[%s5538 + $0x8] sm:$0xff]
      %v5541 = vld [vmem:[%s5538 + $0x10] sm:$0xff]
      %v5542 = vld [vmem:[%s5538 + $0x18] sm:$0xff]
      %s5543 = scalar_lea.vmem %s15, 20
      %v5544 = vld [vmem:[%s5543] sm:$0x1]
      %v5546 = vperm.slane %v5544, 0
      %v5549 = vsel %vm1125, %v5537, 0
      %5551 = vmatpush.msra.mxu0 0.0
      %5552 = vmatpush.msra.mxu0 0.0
      %5553 = vmatpush.msra.mxu0 0.0
      %5554 = vmatpush.msra.mxu0 0.0
      %5555 = vmatpush.msra.mxu0 0.0
      %5556 = vmatpush.msra.mxu0 0.0
      %5557 = vmatpush.msra.mxu0 0.0
      %5558 = vmatpush.msra.mxu0 0.0
      %5559 = vmatpush.msra.mxu0 0.0
      %5560 = vmatpush.msra.mxu0 0.0
      %5561 = vmatpush.msra.mxu0 0.0
      %5562 = vmatpush.msra.mxu0 0.0
      %5563 = vmatpush.msra.mxu0 %v5542
      %5564 = vmatpush.msra.mxu0 %v5541
      %5565 = vmatpush.msra.mxu0 %v5540
      %5566 = vmatpush.msra.mxu0 %v5539
      %5567 = vmatmul.f32.gmra.mxu0 %v5549
      %v5568 = vpop.f32.mrf.mxu0
      %v5569 = vadd.f32 %v5546, %v5568
      %5570 = vdwg.mxu0
      %s5571 = scalar_lea.vmem %s17, 640
      %v5572 = vld [vmem:[%s5571] sm:$0xff]
      %v5573 = vld [vmem:[%s5571 + $0x8] sm:$0xff]
      %v5574 = vld [vmem:[%s5571 + $0x10] sm:$0xff]
      %v5575 = vld [vmem:[%s5571 + $0x18] sm:$0xff]
      %s5576 = scalar_lea.vmem %s19, 20
      %v5577 = vld [vmem:[%s5576] sm:$0x1]
      %v5579 = vperm.slane %v5577, 0
      %5581 = vmatpush.msra.mxu0 0.0
      %5582 = vmatpush.msra.mxu0 0.0
      %5583 = vmatpush.msra.mxu0 0.0
      %5584 = vmatpush.msra.mxu0 0.0
      %5585 = vmatpush.msra.mxu0 0.0
      %5586 = vmatpush.msra.mxu0 0.0
      %5587 = vmatpush.msra.mxu0 0.0
      %5588 = vmatpush.msra.mxu0 0.0
      %5589 = vmatpush.msra.mxu0 0.0
      %5590 = vmatpush.msra.mxu0 0.0
      %5591 = vmatpush.msra.mxu0 0.0
      %5592 = vmatpush.msra.mxu0 0.0
      %5593 = vmatpush.msra.mxu0 %v5575
      %5594 = vmatpush.msra.mxu0 %v5574
      %5595 = vmatpush.msra.mxu0 %v5573
      %5596 = vmatpush.msra.mxu0 %v5572
      %5597 = vmatmul.f32.gmra.mxu0 %v5549
      %v5598 = vpop.f32.mrf.mxu0
      %v5599 = vadd.f32 %v5579, %v5598
      %5600 = vdwg.mxu0
      %s5601 = scalar_lea.vmem %s21, 640
      %v5602 = vld [vmem:[%s5601] sm:$0xff]
      %v5603 = vld [vmem:[%s5601 + $0x8] sm:$0xff]
      %v5604 = vld [vmem:[%s5601 + $0x10] sm:$0xff]
      %v5605 = vld [vmem:[%s5601 + $0x18] sm:$0xff]
      %s5606 = scalar_lea.vmem %s23, 20
      %v5607 = vld [vmem:[%s5606] sm:$0x1]
      %v5609 = vperm.slane %v5607, 0
      %5611 = vmatpush.msra.mxu0 0.0
      %5612 = vmatpush.msra.mxu0 0.0
      %5613 = vmatpush.msra.mxu0 0.0
      %5614 = vmatpush.msra.mxu0 0.0
      %5615 = vmatpush.msra.mxu0 0.0
      %5616 = vmatpush.msra.mxu0 0.0
      %5617 = vmatpush.msra.mxu0 0.0
      %5618 = vmatpush.msra.mxu0 0.0
      %5619 = vmatpush.msra.mxu0 0.0
      %5620 = vmatpush.msra.mxu0 0.0
      %5621 = vmatpush.msra.mxu0 0.0
      %5622 = vmatpush.msra.mxu0 0.0
      %5623 = vmatpush.msra.mxu0 %v5605
      %5624 = vmatpush.msra.mxu0 %v5604
      %5625 = vmatpush.msra.mxu0 %v5603
      %5626 = vmatpush.msra.mxu0 %v5602
      %5627 = vmatmul.f32.gmra.mxu0 %v5549
      %v5628 = vpop.f32.mrf.mxu0
      %v5629 = vadd.f32 %v5609, %v5628
      %5630 = vdwg.mxu0
      %v5632 = vsel %vm1205, %v5569, 0
      %v5635 = vsel %vm1205, %v5599, 0
      %5637 = vmatpush.xpose.msra.mxu0 0.0
      %5638 = vmatpush.xpose.msra.mxu0 0.0
      %5639 = vmatpush.xpose.msra.mxu0 0.0
      %5640 = vmatpush.xpose.msra.mxu0 0.0
      %5641 = vmatpush.xpose.msra.mxu0 0.0
      %5642 = vmatpush.xpose.msra.mxu0 0.0
      %5643 = vmatpush.xpose.msra.mxu0 0.0
      %5644 = vmatpush.xpose.msra.mxu0 0.0
      %5645 = vmatpush.xpose.msra.mxu0 0.0
      %5646 = vmatpush.xpose.msra.mxu0 0.0
      %5647 = vmatpush.xpose.msra.mxu0 0.0
      %5648 = vmatpush.xpose.msra.mxu0 0.0
      %5649 = vmatpush.xpose.msra.mxu0 0.0
      %5650 = vmatpush.xpose.msra.mxu0 0.0
      %5651 = vmatpush.xpose.msra.mxu0 0.0
      %5652 = vmatpush.xpose.msra.mxu0 %v5635
      %5653 = vmatmul.f32.gmra.mxu0 %v5632
      %v5654 = vpop.f32.mrf.mxu0
      %v5655 = vadd.f32 0.0, %v5654
      %5656 = vdwg.mxu0
      %v5657 = vmul.f32 %v5655, 0.35355338
      %v5658 = vsel %vm1076, %v5657, -1e+30
      %v5659 = vsel %vm1234, %v5658, -inf
      %5660 = vmax.xlane.f32.xlu0 %v5659
      %v5661 = vpop.xlane.xlu0 %5660
      %v5662 = vsub.f32 %v5658, %v5661
      %v5663 = vmul.f32 %v5662, 1.442695
      %v5664 = vpow.pop %v5663
      %v5665 = vsel %vm1234, %v5664, 0.0
      %5666 = vadd.xlane.f32.xlu0 %v5665
      %v5667 = vpop.xlane.xlu0 %5666
      %v5668 = vrcp.pop %v5667
      %v5669 = vmul.f32 %v5664, %v5668
      %v5671 = vsel %vm1246, %v5669, 0
      %v5674 = vsel %vm1250, %v5629, 0
      %5676 = vmatpush.msra.mxu0 0.0
      %5677 = vmatpush.msra.mxu0 0.0
      %5678 = vmatpush.msra.mxu0 0.0
      %5679 = vmatpush.msra.mxu0 0.0
      %5680 = vmatpush.msra.mxu0 0.0
      %5681 = vmatpush.msra.mxu0 0.0
      %5682 = vmatpush.msra.mxu0 0.0
      %5683 = vmatpush.msra.mxu0 0.0
      %5684 = vmatpush.msra.mxu0 0.0
      %5685 = vmatpush.msra.mxu0 0.0
      %5686 = vmatpush.msra.mxu0 0.0
      %5687 = vmatpush.msra.mxu0 0.0
      %5688 = vmatpush.msra.mxu0 0.0
      %5689 = vmatpush.msra.mxu0 0.0
      %5690 = vmatpush.msra.mxu0 0.0
      %5691 = vmatpush.msra.mxu0 %v5674
      %5692 = vmatmul.f32.gmra.mxu0 %v5671
      %v5693 = vpop.f32.mrf.mxu0
      %v5694 = vadd.f32 0.0, %v5693
      %5695 = vdwg.mxu0
      %s5696 = scalar_lea.vmem %s25, 160
      %v5697 = vld [vmem:[%s5696] sm:$0xff]
      %s5698 = scalar_lea.vmem %s13, 672
      %v5699 = vld [vmem:[%s5698] sm:$0xff]
      %v5700 = vld [vmem:[%s5698 + $0x8] sm:$0xff]
      %v5701 = vld [vmem:[%s5698 + $0x10] sm:$0xff]
      %v5702 = vld [vmem:[%s5698 + $0x18] sm:$0xff]
      %s5703 = scalar_lea.vmem %s15, 21
      %v5704 = vld [vmem:[%s5703] sm:$0x1]
      %v5706 = vperm.slane %v5704, 0
      %5708 = vmatpush.msra.mxu0 0.0
      %5709 = vmatpush.msra.mxu0 0.0
      %5710 = vmatpush.msra.mxu0 0.0
      %5711 = vmatpush.msra.mxu0 0.0
      %5712 = vmatpush.msra.mxu0 0.0
      %5713 = vmatpush.msra.mxu0 0.0
      %5714 = vmatpush.msra.mxu0 0.0
      %5715 = vmatpush.msra.mxu0 0.0
      %5716 = vmatpush.msra.mxu0 0.0
      %5717 = vmatpush.msra.mxu0 0.0
      %5718 = vmatpush.msra.mxu0 0.0
      %5719 = vmatpush.msra.mxu0 0.0
      %5720 = vmatpush.msra.mxu0 %v5702
      %5721 = vmatpush.msra.mxu0 %v5701
      %5722 = vmatpush.msra.mxu0 %v5700
      %5723 = vmatpush.msra.mxu0 %v5699
      %5724 = vmatmul.f32.gmra.mxu0 %v5549
      %v5725 = vpop.f32.mrf.mxu0
      %v5726 = vadd.f32 %v5706, %v5725
      %5727 = vdwg.mxu0
      %s5728 = scalar_lea.vmem %s17, 672
      %v5729 = vld [vmem:[%s5728] sm:$0xff]
      %v5730 = vld [vmem:[%s5728 + $0x8] sm:$0xff]
      %v5731 = vld [vmem:[%s5728 + $0x10] sm:$0xff]
      %v5732 = vld [vmem:[%s5728 + $0x18] sm:$0xff]
      %s5733 = scalar_lea.vmem %s19, 21
      %v5734 = vld [vmem:[%s5733] sm:$0x1]
      %v5736 = vperm.slane %v5734, 0
      %5738 = vmatpush.msra.mxu0 0.0
      %5739 = vmatpush.msra.mxu0 0.0
      %5740 = vmatpush.msra.mxu0 0.0
      %5741 = vmatpush.msra.mxu0 0.0
      %5742 = vmatpush.msra.mxu0 0.0
      %5743 = vmatpush.msra.mxu0 0.0
      %5744 = vmatpush.msra.mxu0 0.0
      %5745 = vmatpush.msra.mxu0 0.0
      %5746 = vmatpush.msra.mxu0 0.0
      %5747 = vmatpush.msra.mxu0 0.0
      %5748 = vmatpush.msra.mxu0 0.0
      %5749 = vmatpush.msra.mxu0 0.0
      %5750 = vmatpush.msra.mxu0 %v5732
      %5751 = vmatpush.msra.mxu0 %v5731
      %5752 = vmatpush.msra.mxu0 %v5730
      %5753 = vmatpush.msra.mxu0 %v5729
      %5754 = vmatmul.f32.gmra.mxu0 %v5549
      %v5755 = vpop.f32.mrf.mxu0
      %v5756 = vadd.f32 %v5736, %v5755
      %5757 = vdwg.mxu0
      %s5758 = scalar_lea.vmem %s21, 672
      %v5759 = vld [vmem:[%s5758] sm:$0xff]
      %v5760 = vld [vmem:[%s5758 + $0x8] sm:$0xff]
      %v5761 = vld [vmem:[%s5758 + $0x10] sm:$0xff]
      %v5762 = vld [vmem:[%s5758 + $0x18] sm:$0xff]
      %s5763 = scalar_lea.vmem %s23, 21
      %v5764 = vld [vmem:[%s5763] sm:$0x1]
      %v5766 = vperm.slane %v5764, 0
      %5768 = vmatpush.msra.mxu0 0.0
      %5769 = vmatpush.msra.mxu0 0.0
      %5770 = vmatpush.msra.mxu0 0.0
      %5771 = vmatpush.msra.mxu0 0.0
      %5772 = vmatpush.msra.mxu0 0.0
      %5773 = vmatpush.msra.mxu0 0.0
      %5774 = vmatpush.msra.mxu0 0.0
      %5775 = vmatpush.msra.mxu0 0.0
      %5776 = vmatpush.msra.mxu0 0.0
      %5777 = vmatpush.msra.mxu0 0.0
      %5778 = vmatpush.msra.mxu0 0.0
      %5779 = vmatpush.msra.mxu0 0.0
      %5780 = vmatpush.msra.mxu0 %v5762
      %5781 = vmatpush.msra.mxu0 %v5761
      %5782 = vmatpush.msra.mxu0 %v5760
      %5783 = vmatpush.msra.mxu0 %v5759
      %5784 = vmatmul.f32.gmra.mxu0 %v5549
      %v5785 = vpop.f32.mrf.mxu0
      %v5786 = vadd.f32 %v5766, %v5785
      %5787 = vdwg.mxu0
      %v5789 = vsel %vm1205, %v5726, 0
      %v5792 = vsel %vm1205, %v5756, 0
      %5794 = vmatpush.xpose.msra.mxu0 0.0
      %5795 = vmatpush.xpose.msra.mxu0 0.0
      %5796 = vmatpush.xpose.msra.mxu0 0.0
      %5797 = vmatpush.xpose.msra.mxu0 0.0
      %5798 = vmatpush.xpose.msra.mxu0 0.0
      %5799 = vmatpush.xpose.msra.mxu0 0.0
      %5800 = vmatpush.xpose.msra.mxu0 0.0
      %5801 = vmatpush.xpose.msra.mxu0 0.0
      %5802 = vmatpush.xpose.msra.mxu0 0.0
      %5803 = vmatpush.xpose.msra.mxu0 0.0
      %5804 = vmatpush.xpose.msra.mxu0 0.0
      %5805 = vmatpush.xpose.msra.mxu0 0.0
      %5806 = vmatpush.xpose.msra.mxu0 0.0
      %5807 = vmatpush.xpose.msra.mxu0 0.0
      %5808 = vmatpush.xpose.msra.mxu0 0.0
      %5809 = vmatpush.xpose.msra.mxu0 %v5792
      %5810 = vmatmul.f32.gmra.mxu0 %v5789
      %v5811 = vpop.f32.mrf.mxu0
      %v5812 = vadd.f32 0.0, %v5811
      %5813 = vdwg.mxu0
      %v5814 = vmul.f32 %v5812, 0.35355338
      %v5815 = vsel %vm1076, %v5814, -1e+30
      %v5816 = vsel %vm1234, %v5815, -inf
      %5817 = vmax.xlane.f32.xlu0 %v5816
      %v5818 = vpop.xlane.xlu0 %5817
      %v5819 = vsub.f32 %v5815, %v5818
      %v5820 = vmul.f32 %v5819, 1.442695
      %v5821 = vpow.pop %v5820
      %v5822 = vsel %vm1234, %v5821, 0.0
      %5823 = vadd.xlane.f32.xlu0 %v5822
      %v5824 = vpop.xlane.xlu0 %5823
      %v5825 = vrcp.pop %v5824
      %v5826 = vmul.f32 %v5821, %v5825
      %v5828 = vsel %vm1246, %v5826, 0
      %v5831 = vsel %vm1250, %v5786, 0
      %5833 = vmatpush.msra.mxu0 0.0
      %5834 = vmatpush.msra.mxu0 0.0
      %5835 = vmatpush.msra.mxu0 0.0
      %5836 = vmatpush.msra.mxu0 0.0
      %5837 = vmatpush.msra.mxu0 0.0
      %5838 = vmatpush.msra.mxu0 0.0
      %5839 = vmatpush.msra.mxu0 0.0
      %5840 = vmatpush.msra.mxu0 0.0
      %5841 = vmatpush.msra.mxu0 0.0
      %5842 = vmatpush.msra.mxu0 0.0
      %5843 = vmatpush.msra.mxu0 0.0
      %5844 = vmatpush.msra.mxu0 0.0
      %5845 = vmatpush.msra.mxu0 0.0
      %5846 = vmatpush.msra.mxu0 0.0
      %5847 = vmatpush.msra.mxu0 0.0
      %5848 = vmatpush.msra.mxu0 %v5831
      %5849 = vmatmul.f32.gmra.mxu0 %v5828
      %v5850 = vpop.f32.mrf.mxu0
      %v5851 = vadd.f32 0.0, %v5850
      %5852 = vdwg.mxu0
      %s5853 = scalar_lea.vmem %s25, 168
      %v5854 = vld [vmem:[%s5853] sm:$0xff]
      %v5856 = vsel %vm1205, %v5851, 0
      %5858 = vmatpush.msra.mxu0 0.0
      %5859 = vmatpush.msra.mxu0 0.0
      %5860 = vmatpush.msra.mxu0 0.0
      %5861 = vmatpush.msra.mxu0 0.0
      %5862 = vmatpush.msra.mxu0 0.0
      %5863 = vmatpush.msra.mxu0 0.0
      %5864 = vmatpush.msra.mxu0 0.0
      %5865 = vmatpush.msra.mxu0 0.0
      %5866 = vmatpush.msra.mxu0 0.0
      %5867 = vmatpush.msra.mxu0 0.0
      %5868 = vmatpush.msra.mxu0 0.0
      %5869 = vmatpush.msra.mxu0 0.0
      %5870 = vmatpush.msra.mxu0 0.0
      %5871 = vmatpush.msra.mxu0 0.0
      %5872 = vmatpush.msra.mxu0 0.0
      %5873 = vmatpush.msra.mxu0 %v5854
      %5874 = vmatmul.f32.gmra.mxu0 %v5856
      %v5875 = vpop.f32.mrf.mxu0
      %v5876 = vadd.f32 0.0, %v5875
      %5877 = vdwg.mxu0
      %v5879 = vsel %vm1205, %v5694, 0
      %5881 = vmatpush.msra.mxu0 0.0
      %5882 = vmatpush.msra.mxu0 0.0
      %5883 = vmatpush.msra.mxu0 0.0
      %5884 = vmatpush.msra.mxu0 0.0
      %5885 = vmatpush.msra.mxu0 0.0
      %5886 = vmatpush.msra.mxu0 0.0
      %5887 = vmatpush.msra.mxu0 0.0
      %5888 = vmatpush.msra.mxu0 0.0
      %5889 = vmatpush.msra.mxu0 0.0
      %5890 = vmatpush.msra.mxu0 0.0
      %5891 = vmatpush.msra.mxu0 0.0
      %5892 = vmatpush.msra.mxu0 0.0
      %5893 = vmatpush.msra.mxu0 0.0
      %5894 = vmatpush.msra.mxu0 0.0
      %5895 = vmatpush.msra.mxu0 0.0
      %5896 = vmatpush.msra.mxu0 %v5697
      %5897 = vmatmul.f32.gmra.mxu0 %v5879
      %v5898 = vpop.f32.mrf.mxu0
      %v5899 = vadd.f32 %v5876, %v5898
      %5900 = vdwg.mxu0
      %s5901 = scalar_lea.vmem %s13, 704
      %v5902 = vld [vmem:[%s5901] sm:$0xff]
      %v5903 = vld [vmem:[%s5901 + $0x8] sm:$0xff]
      %v5904 = vld [vmem:[%s5901 + $0x10] sm:$0xff]
      %v5905 = vld [vmem:[%s5901 + $0x18] sm:$0xff]
      %s5906 = scalar_lea.vmem %s15, 22
      %v5907 = vld [vmem:[%s5906] sm:$0x1]
      %v5909 = vperm.slane %v5907, 0
      %5911 = vmatpush.msra.mxu0 0.0
      %5912 = vmatpush.msra.mxu0 0.0
      %5913 = vmatpush.msra.mxu0 0.0
      %5914 = vmatpush.msra.mxu0 0.0
      %5915 = vmatpush.msra.mxu0 0.0
      %5916 = vmatpush.msra.mxu0 0.0
      %5917 = vmatpush.msra.mxu0 0.0
      %5918 = vmatpush.msra.mxu0 0.0
      %5919 = vmatpush.msra.mxu0 0.0
      %5920 = vmatpush.msra.mxu0 0.0
      %5921 = vmatpush.msra.mxu0 0.0
      %5922 = vmatpush.msra.mxu0 0.0
      %5923 = vmatpush.msra.mxu0 %v5905
      %5924 = vmatpush.msra.mxu0 %v5904
      %5925 = vmatpush.msra.mxu0 %v5903
      %5926 = vmatpush.msra.mxu0 %v5902
      %5927 = vmatmul.f32.gmra.mxu0 %v5549
      %v5928 = vpop.f32.mrf.mxu0
      %v5929 = vadd.f32 %v5909, %v5928
      %5930 = vdwg.mxu0
      %s5931 = scalar_lea.vmem %s17, 704
      %v5932 = vld [vmem:[%s5931] sm:$0xff]
      %v5933 = vld [vmem:[%s5931 + $0x8] sm:$0xff]
      %v5934 = vld [vmem:[%s5931 + $0x10] sm:$0xff]
      %v5935 = vld [vmem:[%s5931 + $0x18] sm:$0xff]
      %s5936 = scalar_lea.vmem %s19, 22
      %v5937 = vld [vmem:[%s5936] sm:$0x1]
      %v5939 = vperm.slane %v5937, 0
      %5941 = vmatpush.msra.mxu0 0.0
      %5942 = vmatpush.msra.mxu0 0.0
      %5943 = vmatpush.msra.mxu0 0.0
      %5944 = vmatpush.msra.mxu0 0.0
      %5945 = vmatpush.msra.mxu0 0.0
      %5946 = vmatpush.msra.mxu0 0.0
      %5947 = vmatpush.msra.mxu0 0.0
      %5948 = vmatpush.msra.mxu0 0.0
      %5949 = vmatpush.msra.mxu0 0.0
      %5950 = vmatpush.msra.mxu0 0.0
      %5951 = vmatpush.msra.mxu0 0.0
      %5952 = vmatpush.msra.mxu0 0.0
      %5953 = vmatpush.msra.mxu0 %v5935
      %5954 = vmatpush.msra.mxu0 %v5934
      %5955 = vmatpush.msra.mxu0 %v5933
      %5956 = vmatpush.msra.mxu0 %v5932
      %5957 = vmatmul.f32.gmra.mxu0 %v5549
      %v5958 = vpop.f32.mrf.mxu0
      %v5959 = vadd.f32 %v5939, %v5958
      %5960 = vdwg.mxu0
      %s5961 = scalar_lea.vmem %s21, 704
      %v5962 = vld [vmem:[%s5961] sm:$0xff]
      %v5963 = vld [vmem:[%s5961 + $0x8] sm:$0xff]
      %v5964 = vld [vmem:[%s5961 + $0x10] sm:$0xff]
      %v5965 = vld [vmem:[%s5961 + $0x18] sm:$0xff]
      %s5966 = scalar_lea.vmem %s23, 22
      %v5967 = vld [vmem:[%s5966] sm:$0x1]
      %v5969 = vperm.slane %v5967, 0
      %5971 = vmatpush.msra.mxu0 0.0
      %5972 = vmatpush.msra.mxu0 0.0
      %5973 = vmatpush.msra.mxu0 0.0
      %5974 = vmatpush.msra.mxu0 0.0
      %5975 = vmatpush.msra.mxu0 0.0
      %5976 = vmatpush.msra.mxu0 0.0
      %5977 = vmatpush.msra.mxu0 0.0
      %5978 = vmatpush.msra.mxu0 0.0
      %5979 = vmatpush.msra.mxu0 0.0
      %5980 = vmatpush.msra.mxu0 0.0
      %5981 = vmatpush.msra.mxu0 0.0
      %5982 = vmatpush.msra.mxu0 0.0
      %5983 = vmatpush.msra.mxu0 %v5965
      %5984 = vmatpush.msra.mxu0 %v5964
      %5985 = vmatpush.msra.mxu0 %v5963
      %5986 = vmatpush.msra.mxu0 %v5962
      %5987 = vmatmul.f32.gmra.mxu0 %v5549
      %v5988 = vpop.f32.mrf.mxu0
      %v5989 = vadd.f32 %v5969, %v5988
      %5990 = vdwg.mxu0
      %v5992 = vsel %vm1205, %v5929, 0
      %v5995 = vsel %vm1205, %v5959, 0
      %5997 = vmatpush.xpose.msra.mxu0 0.0
      %5998 = vmatpush.xpose.msra.mxu0 0.0
      %5999 = vmatpush.xpose.msra.mxu0 0.0
      %6000 = vmatpush.xpose.msra.mxu0 0.0
      %6001 = vmatpush.xpose.msra.mxu0 0.0
      %6002 = vmatpush.xpose.msra.mxu0 0.0
      %6003 = vmatpush.xpose.msra.mxu0 0.0
      %6004 = vmatpush.xpose.msra.mxu0 0.0
      %6005 = vmatpush.xpose.msra.mxu0 0.0
      %6006 = vmatpush.xpose.msra.mxu0 0.0
      %6007 = vmatpush.xpose.msra.mxu0 0.0
      %6008 = vmatpush.xpose.msra.mxu0 0.0
      %6009 = vmatpush.xpose.msra.mxu0 0.0
      %6010 = vmatpush.xpose.msra.mxu0 0.0
      %6011 = vmatpush.xpose.msra.mxu0 0.0
      %6012 = vmatpush.xpose.msra.mxu0 %v5995
      %6013 = vmatmul.f32.gmra.mxu0 %v5992
      %v6014 = vpop.f32.mrf.mxu0
      %v6015 = vadd.f32 0.0, %v6014
      %6016 = vdwg.mxu0
      %v6017 = vmul.f32 %v6015, 0.35355338
      %v6018 = vsel %vm1076, %v6017, -1e+30
      %v6019 = vsel %vm1234, %v6018, -inf
      %6020 = vmax.xlane.f32.xlu0 %v6019
      %v6021 = vpop.xlane.xlu0 %6020
      %v6022 = vsub.f32 %v6018, %v6021
      %v6023 = vmul.f32 %v6022, 1.442695
      %v6024 = vpow.pop %v6023
      %v6025 = vsel %vm1234, %v6024, 0.0
      %6026 = vadd.xlane.f32.xlu0 %v6025
      %v6027 = vpop.xlane.xlu0 %6026
      %v6028 = vrcp.pop %v6027
      %v6029 = vmul.f32 %v6024, %v6028
      %v6031 = vsel %vm1246, %v6029, 0
      %v6034 = vsel %vm1250, %v5989, 0
      %6036 = vmatpush.msra.mxu0 0.0
      %6037 = vmatpush.msra.mxu0 0.0
      %6038 = vmatpush.msra.mxu0 0.0
      %6039 = vmatpush.msra.mxu0 0.0
      %6040 = vmatpush.msra.mxu0 0.0
      %6041 = vmatpush.msra.mxu0 0.0
      %6042 = vmatpush.msra.mxu0 0.0
      %6043 = vmatpush.msra.mxu0 0.0
      %6044 = vmatpush.msra.mxu0 0.0
      %6045 = vmatpush.msra.mxu0 0.0
      %6046 = vmatpush.msra.mxu0 0.0
      %6047 = vmatpush.msra.mxu0 0.0
      %6048 = vmatpush.msra.mxu0 0.0
      %6049 = vmatpush.msra.mxu0 0.0
      %6050 = vmatpush.msra.mxu0 0.0
      %6051 = vmatpush.msra.mxu0 %v6034
      %6052 = vmatmul.f32.gmra.mxu0 %v6031
      %v6053 = vpop.f32.mrf.mxu0
      %v6054 = vadd.f32 0.0, %v6053
      %6055 = vdwg.mxu0
      %s6056 = scalar_lea.vmem %s25, 176
      %v6057 = vld [vmem:[%s6056] sm:$0xff]
      %v6059 = vsel %vm1205, %v6054, 0
      %6061 = vmatpush.msra.mxu0 0.0
      %6062 = vmatpush.msra.mxu0 0.0
      %6063 = vmatpush.msra.mxu0 0.0
      %6064 = vmatpush.msra.mxu0 0.0
      %6065 = vmatpush.msra.mxu0 0.0
      %6066 = vmatpush.msra.mxu0 0.0
      %6067 = vmatpush.msra.mxu0 0.0
      %6068 = vmatpush.msra.mxu0 0.0
      %6069 = vmatpush.msra.mxu0 0.0
      %6070 = vmatpush.msra.mxu0 0.0
      %6071 = vmatpush.msra.mxu0 0.0
      %6072 = vmatpush.msra.mxu0 0.0
      %6073 = vmatpush.msra.mxu0 0.0
      %6074 = vmatpush.msra.mxu0 0.0
      %6075 = vmatpush.msra.mxu0 0.0
      %6076 = vmatpush.msra.mxu0 %v6057
      %6077 = vmatmul.f32.gmra.mxu0 %v6059
      %v6078 = vpop.f32.mrf.mxu0
      %v6079 = vadd.f32 0.0, %v6078
      %6080 = vdwg.mxu0
      %v6081 = vadd.f32 %v5899, %v6079
      %s6082 = scalar_lea.vmem %s13, 736
      %v6083 = vld [vmem:[%s6082] sm:$0xff]
      %v6084 = vld [vmem:[%s6082 + $0x8] sm:$0xff]
      %v6085 = vld [vmem:[%s6082 + $0x10] sm:$0xff]
      %v6086 = vld [vmem:[%s6082 + $0x18] sm:$0xff]
      %s6087 = scalar_lea.vmem %s15, 23
      %v6088 = vld [vmem:[%s6087] sm:$0x1]
      %v6090 = vperm.slane %v6088, 0
      %6092 = vmatpush.msra.mxu0 0.0
      %6093 = vmatpush.msra.mxu0 0.0
      %6094 = vmatpush.msra.mxu0 0.0
      %6095 = vmatpush.msra.mxu0 0.0
      %6096 = vmatpush.msra.mxu0 0.0
      %6097 = vmatpush.msra.mxu0 0.0
      %6098 = vmatpush.msra.mxu0 0.0
      %6099 = vmatpush.msra.mxu0 0.0
      %6100 = vmatpush.msra.mxu0 0.0
      %6101 = vmatpush.msra.mxu0 0.0
      %6102 = vmatpush.msra.mxu0 0.0
      %6103 = vmatpush.msra.mxu0 0.0
      %6104 = vmatpush.msra.mxu0 %v6086
      %6105 = vmatpush.msra.mxu0 %v6085
      %6106 = vmatpush.msra.mxu0 %v6084
      %6107 = vmatpush.msra.mxu0 %v6083
      %6108 = vmatmul.f32.gmra.mxu0 %v5549
      %v6109 = vpop.f32.mrf.mxu0
      %v6110 = vadd.f32 %v6090, %v6109
      %6111 = vdwg.mxu0
      %s6112 = scalar_lea.vmem %s17, 736
      %v6113 = vld [vmem:[%s6112] sm:$0xff]
      %v6114 = vld [vmem:[%s6112 + $0x8] sm:$0xff]
      %v6115 = vld [vmem:[%s6112 + $0x10] sm:$0xff]
      %v6116 = vld [vmem:[%s6112 + $0x18] sm:$0xff]
      %s6117 = scalar_lea.vmem %s19, 23
      %v6118 = vld [vmem:[%s6117] sm:$0x1]
      %v6120 = vperm.slane %v6118, 0
      %6122 = vmatpush.msra.mxu0 0.0
      %6123 = vmatpush.msra.mxu0 0.0
      %6124 = vmatpush.msra.mxu0 0.0
      %6125 = vmatpush.msra.mxu0 0.0
      %6126 = vmatpush.msra.mxu0 0.0
      %6127 = vmatpush.msra.mxu0 0.0
      %6128 = vmatpush.msra.mxu0 0.0
      %6129 = vmatpush.msra.mxu0 0.0
      %6130 = vmatpush.msra.mxu0 0.0
      %6131 = vmatpush.msra.mxu0 0.0
      %6132 = vmatpush.msra.mxu0 0.0
      %6133 = vmatpush.msra.mxu0 0.0
      %6134 = vmatpush.msra.mxu0 %v6116
      %6135 = vmatpush.msra.mxu0 %v6115
      %6136 = vmatpush.msra.mxu0 %v6114
      %6137 = vmatpush.msra.mxu0 %v6113
      %6138 = vmatmul.f32.gmra.mxu0 %v5549
      %v6139 = vpop.f32.mrf.mxu0
      %v6140 = vadd.f32 %v6120, %v6139
      %6141 = vdwg.mxu0
      %s6142 = scalar_lea.vmem %s21, 736
      %v6143 = vld [vmem:[%s6142] sm:$0xff]
      %v6144 = vld [vmem:[%s6142 + $0x8] sm:$0xff]
      %v6145 = vld [vmem:[%s6142 + $0x10] sm:$0xff]
      %v6146 = vld [vmem:[%s6142 + $0x18] sm:$0xff]
      %s6147 = scalar_lea.vmem %s23, 23
      %v6148 = vld [vmem:[%s6147] sm:$0x1]
      %v6150 = vperm.slane %v6148, 0
      %6152 = vmatpush.msra.mxu0 0.0
      %6153 = vmatpush.msra.mxu0 0.0
      %6154 = vmatpush.msra.mxu0 0.0
      %6155 = vmatpush.msra.mxu0 0.0
      %6156 = vmatpush.msra.mxu0 0.0
      %6157 = vmatpush.msra.mxu0 0.0
      %6158 = vmatpush.msra.mxu0 0.0
      %6159 = vmatpush.msra.mxu0 0.0
      %6160 = vmatpush.msra.mxu0 0.0
      %6161 = vmatpush.msra.mxu0 0.0
      %6162 = vmatpush.msra.mxu0 0.0
      %6163 = vmatpush.msra.mxu0 0.0
      %6164 = vmatpush.msra.mxu0 %v6146
      %6165 = vmatpush.msra.mxu0 %v6145
      %6166 = vmatpush.msra.mxu0 %v6144
      %6167 = vmatpush.msra.mxu0 %v6143
      %6168 = vmatmul.f32.gmra.mxu0 %v5549
      %v6169 = vpop.f32.mrf.mxu0
      %v6170 = vadd.f32 %v6150, %v6169
      %6171 = vdwg.mxu0
      %v6173 = vsel %vm1205, %v6110, 0
      %v6176 = vsel %vm1205, %v6140, 0
      %6178 = vmatpush.xpose.msra.mxu0 0.0
      %6179 = vmatpush.xpose.msra.mxu0 0.0
      %6180 = vmatpush.xpose.msra.mxu0 0.0
      %6181 = vmatpush.xpose.msra.mxu0 0.0
      %6182 = vmatpush.xpose.msra.mxu0 0.0
      %6183 = vmatpush.xpose.msra.mxu0 0.0
      %6184 = vmatpush.xpose.msra.mxu0 0.0
      %6185 = vmatpush.xpose.msra.mxu0 0.0
      %6186 = vmatpush.xpose.msra.mxu0 0.0
      %6187 = vmatpush.xpose.msra.mxu0 0.0
      %6188 = vmatpush.xpose.msra.mxu0 0.0
      %6189 = vmatpush.xpose.msra.mxu0 0.0
      %6190 = vmatpush.xpose.msra.mxu0 0.0
      %6191 = vmatpush.xpose.msra.mxu0 0.0
      %6192 = vmatpush.xpose.msra.mxu0 0.0
      %6193 = vmatpush.xpose.msra.mxu0 %v6176
      %6194 = vmatmul.f32.gmra.mxu0 %v6173
      %v6195 = vpop.f32.mrf.mxu0
      %v6196 = vadd.f32 0.0, %v6195
      %6197 = vdwg.mxu0
      %v6198 = vmul.f32 %v6196, 0.35355338
      %v6199 = vsel %vm1076, %v6198, -1e+30
      %v6200 = vsel %vm1234, %v6199, -inf
      %6201 = vmax.xlane.f32.xlu0 %v6200
      %v6202 = vpop.xlane.xlu0 %6201
      %v6203 = vsub.f32 %v6199, %v6202
      %v6204 = vmul.f32 %v6203, 1.442695
      %v6205 = vpow.pop %v6204
      %v6206 = vsel %vm1234, %v6205, 0.0
      %6207 = vadd.xlane.f32.xlu0 %v6206
      %v6208 = vpop.xlane.xlu0 %6207
      %v6209 = vrcp.pop %v6208
      %v6210 = vmul.f32 %v6205, %v6209
      %v6212 = vsel %vm1246, %v6210, 0
      %v6215 = vsel %vm1250, %v6170, 0
      %6217 = vmatpush.msra.mxu0 0.0
      %6218 = vmatpush.msra.mxu0 0.0
      %6219 = vmatpush.msra.mxu0 0.0
      %6220 = vmatpush.msra.mxu0 0.0
      %6221 = vmatpush.msra.mxu0 0.0
      %6222 = vmatpush.msra.mxu0 0.0
      %6223 = vmatpush.msra.mxu0 0.0
      %6224 = vmatpush.msra.mxu0 0.0
      %6225 = vmatpush.msra.mxu0 0.0
      %6226 = vmatpush.msra.mxu0 0.0
      %6227 = vmatpush.msra.mxu0 0.0
      %6228 = vmatpush.msra.mxu0 0.0
      %6229 = vmatpush.msra.mxu0 0.0
      %6230 = vmatpush.msra.mxu0 0.0
      %6231 = vmatpush.msra.mxu0 0.0
      %6232 = vmatpush.msra.mxu0 %v6215
      %6233 = vmatmul.f32.gmra.mxu0 %v6212
      %v6234 = vpop.f32.mrf.mxu0
      %v6235 = vadd.f32 0.0, %v6234
      %6236 = vdwg.mxu0
      %s6237 = scalar_lea.vmem %s25, 184
      %v6238 = vld [vmem:[%s6237] sm:$0xff]
      %v6240 = vsel %vm1205, %v6235, 0
      %6242 = vmatpush.msra.mxu0 0.0
      %6243 = vmatpush.msra.mxu0 0.0
      %6244 = vmatpush.msra.mxu0 0.0
      %6245 = vmatpush.msra.mxu0 0.0
      %6246 = vmatpush.msra.mxu0 0.0
      %6247 = vmatpush.msra.mxu0 0.0
      %6248 = vmatpush.msra.mxu0 0.0
      %6249 = vmatpush.msra.mxu0 0.0
      %6250 = vmatpush.msra.mxu0 0.0
      %6251 = vmatpush.msra.mxu0 0.0
      %6252 = vmatpush.msra.mxu0 0.0
      %6253 = vmatpush.msra.mxu0 0.0
      %6254 = vmatpush.msra.mxu0 0.0
      %6255 = vmatpush.msra.mxu0 0.0
      %6256 = vmatpush.msra.mxu0 0.0
      %6257 = vmatpush.msra.mxu0 %v6238
      %6258 = vmatmul.f32.gmra.mxu0 %v6240
      %v6259 = vpop.f32.mrf.mxu0
      %v6260 = vadd.f32 0.0, %v6259
      %6261 = vdwg.mxu0
      %v6262 = vadd.f32 %v6081, %v6260
      %v6263 = vadd.f32 %v5503, %v6262
      %s6264 = scalar_lea.vmem %s27, 5
      %v6265 = vld [vmem:[%s6264] sm:$0x1]
      %v6267 = vperm.slane %v6265, 0
      %v6269 = vadd.f32 %v6263, %v6267
      %s6270 = scalar_lea.vmem %s29, 5
      %v6271 = vld [vmem:[%s6270] sm:$0x1]
      %s6272 = scalar_lea.vmem %s31, 5
      %v6273 = vld [vmem:[%s6272] sm:$0x1]
      %v6274 = vsel %vm1079, %v6269, 0.0
      %6275 = vadd.xlane.f32.xlu0 %v6274
      %v6276 = vpop.xlane.xlu0 %6275
      %v6277 = vmul.f32 %v6276, %v1089
      %v6278 = vsub.f32 %v6269, %v6277
      %v6279 = vmul.f32 %v6278, %v6278
      %v6280 = vsel %vm1079, %v6279, 0.0
      %6281 = vadd.xlane.f32.xlu0 %v6280
      %v6282 = vpop.xlane.xlu0 %6281
      %v6283 = vmul.f32 %v6282, %v1089
      %v6284 = vadd.f32 %v6283, 1e-05
      %v6285 = vrsqrt.pop %v6284
      %v6286 = vmul.f32 %v6285, %v6284
      %v6287 = vmul.f32 %v6286, %v6285
      %v6288 = vmul.f32 0.5, %v6287
      %v6289 = vsub.f32 1.5, %v6288
      %v6290 = vmul.f32 %v6285, %v6289
      %vm6291 = vweird.f32 %v6284
      %vm6292 = vweird.f32 %v6285
      %vm6293 = vmor %vm6291, %vm6292
      %v6294 = vsel %vm6293, %v6285, %v6290
      %v6295 = vmul.f32 %v6278, %v6294
      %v6297 = vperm.slane %v6271, 0
      %v6299 = vmul.f32 %v6295, %v6297
      %v6301 = vperm.slane %v6273, 0
      %v6303 = vadd.f32 %v6299, %v6301
      %s6304 = scalar_lea.vmem %s33, 160
      %v6305 = vld [vmem:[%s6304] sm:$0xff]
      %v6306 = vld [vmem:[%s6304 + $0x8] sm:$0xff]
      %v6307 = vld [vmem:[%s6304 + $0x10] sm:$0xff]
      %v6308 = vld [vmem:[%s6304 + $0x18] sm:$0xff]
      %s6309 = scalar_lea.vmem %s35, 5
      %v6310 = vld [vmem:[%s6309] sm:$0x1]
      %v6312 = vperm.slane %v6310, 0
      %v6315 = vsel %vm1125, %v6303, 0
      %6317 = vmatpush.msra.mxu0 0.0
      %6318 = vmatpush.msra.mxu0 0.0
      %6319 = vmatpush.msra.mxu0 0.0
      %6320 = vmatpush.msra.mxu0 0.0
      %6321 = vmatpush.msra.mxu0 0.0
      %6322 = vmatpush.msra.mxu0 0.0
      %6323 = vmatpush.msra.mxu0 0.0
      %6324 = vmatpush.msra.mxu0 0.0
      %6325 = vmatpush.msra.mxu0 0.0
      %6326 = vmatpush.msra.mxu0 0.0
      %6327 = vmatpush.msra.mxu0 0.0
      %6328 = vmatpush.msra.mxu0 0.0
      %6329 = vmatpush.msra.mxu0 %v6308
      %6330 = vmatpush.msra.mxu0 %v6307
      %6331 = vmatpush.msra.mxu0 %v6306
      %6332 = vmatpush.msra.mxu0 %v6305
      %6333 = vmatmul.f32.gmra.mxu0 %v6315
      %v6334 = vpop.f32.mrf.mxu0
      %v6335 = vadd.f32 %v6312, %v6334
      %6336 = vdwg.mxu0
      %v6337 = vmul.f32 %v6335, 0.5
      %v6338 = vmul.f32 %v6335, 0.044715
      %v6339 = vmul.f32 %v6338, %v6335
      %v6340 = vmul.f32 %v6339, %v6335
      %v6341 = vadd.f32 %v6335, %v6340
      %v6342 = vmul.f32 %v6341, 0.7978846
      %v6343 = vtanh.pop %v6342
      %v6344 = vadd.f32 %v6343, 1.0
      %v6345 = vmul.f32 %v6337, %v6344
      %s6346 = scalar_lea.vmem %s37, 640
      %v6347 = vld [vmem:[%s6346] sm:$0xff]
      %v6348 = vld [vmem:[%s6346 + $0x8] sm:$0xff]
      %v6349 = vld [vmem:[%s6346 + $0x10] sm:$0xff]
      %v6350 = vld [vmem:[%s6346 + $0x18] sm:$0xff]
      %v6351 = vld [vmem:[%s6346 + $0x20] sm:$0xff]
      %v6352 = vld [vmem:[%s6346 + $0x28] sm:$0xff]
      %v6353 = vld [vmem:[%s6346 + $0x30] sm:$0xff]
      %v6354 = vld [vmem:[%s6346 + $0x38] sm:$0xff]
      %v6355 = vld [vmem:[%s6346 + $0x40] sm:$0xff]
      %v6356 = vld [vmem:[%s6346 + $0x48] sm:$0xff]
      %v6357 = vld [vmem:[%s6346 + $0x50] sm:$0xff]
      %v6358 = vld [vmem:[%s6346 + $0x58] sm:$0xff]
      %v6359 = vld [vmem:[%s6346 + $0x60] sm:$0xff]
      %v6360 = vld [vmem:[%s6346 + $0x68] sm:$0xff]
      %v6361 = vld [vmem:[%s6346 + $0x70] sm:$0xff]
      %v6362 = vld [vmem:[%s6346 + $0x78] sm:$0xff]
      %6363 = vmatpush.msra.mxu0 %v6362
      %6364 = vmatpush.msra.mxu0 %v6361
      %6365 = vmatpush.msra.mxu0 %v6360
      %6366 = vmatpush.msra.mxu0 %v6359
      %6367 = vmatpush.msra.mxu0 %v6358
      %6368 = vmatpush.msra.mxu0 %v6357
      %6369 = vmatpush.msra.mxu0 %v6356
      %6370 = vmatpush.msra.mxu0 %v6355
      %6371 = vmatpush.msra.mxu0 %v6354
      %6372 = vmatpush.msra.mxu0 %v6353
      %6373 = vmatpush.msra.mxu0 %v6352
      %6374 = vmatpush.msra.mxu0 %v6351
      %6375 = vmatpush.msra.mxu0 %v6350
      %6376 = vmatpush.msra.mxu0 %v6349
      %6377 = vmatpush.msra.mxu0 %v6348
      %6378 = vmatpush.msra.mxu0 %v6347
      %6379 = vmatmul.f32.gmra.mxu0 %v6345
      %v6380 = vpop.f32.mrf.mxu0
      %v6381 = vadd.f32 0.0, %v6380
      %6382 = vdwg.mxu0
      %v6383 = vadd.f32 %v6269, %v6381
      %s6384 = scalar_lea.vmem %s39, 5
      %v6385 = vld [vmem:[%s6384] sm:$0x1]
      %v6387 = vperm.slane %v6385, 0
      %v6389 = vadd.f32 %v6383, %v6387
      %v6390 = vld [vmem:[%s41] sm:$0x1]
      %v6391 = vld [vmem:[%s43] sm:$0x1]
      %v6392 = vsel %vm1079, %v6389, 0.0
      %6393 = vadd.xlane.f32.xlu0 %v6392
      %v6394 = vpop.xlane.xlu0 %6393
      %v6395 = vmul.f32 %v6394, %v1089
      %v6396 = vsub.f32 %v6389, %v6395
      %v6397 = vmul.f32 %v6396, %v6396
      %v6398 = vsel %vm1079, %v6397, 0.0
      %6399 = vadd.xlane.f32.xlu0 %v6398
      %v6400 = vpop.xlane.xlu0 %6399
      %v6401 = vmul.f32 %v6400, %v1089
      %v6402 = vadd.f32 %v6401, 1e-05
      %v6403 = vrsqrt.pop %v6402
      %v6404 = vmul.f32 %v6403, %v6402
      %v6405 = vmul.f32 %v6404, %v6403
      %v6406 = vmul.f32 0.5, %v6405
      %v6407 = vsub.f32 1.5, %v6406
      %v6408 = vmul.f32 %v6403, %v6407
      %vm6409 = vweird.f32 %v6402
      %vm6410 = vweird.f32 %v6403
      %vm6411 = vmor %vm6409, %vm6410
      %v6412 = vsel %vm6411, %v6403, %v6408
      %v6413 = vmul.f32 %v6396, %v6412
      %v6415 = vperm.slane %v6390, 0
      %v6417 = vmul.f32 %v6413, %v6415
      %v6419 = vperm.slane %v6391, 0
      %v6421 = vadd.f32 %v6417, %v6419
      %v6422 = vld [vmem:[%s45] sm:$0xff]
      %v6423 = vld [vmem:[%s45 + $0x8] sm:$0xff]
      %v6424 = vld [vmem:[%s45 + $0x10] sm:$0xff]
      %v6425 = vld [vmem:[%s45 + $0x18] sm:$0xff]
      %v6426 = vld [vmem:[%s47] sm:$0xff]
      %v6427 = vld [vmem:[%s47 + $0x8] sm:$0xff]
      %v6428 = vld [vmem:[%s47 + $0x10] sm:$0xff]
      %v6429 = vld [vmem:[%s47 + $0x18] sm:$0xff]
      %v6431 = vsel %vm1125, %v5503, 0
      %6433 = vmatpush.msra.mxu0 0.0
      %6434 = vmatpush.msra.mxu0 0.0
      %6435 = vmatpush.msra.mxu0 0.0
      %6436 = vmatpush.msra.mxu0 0.0
      %6437 = vmatpush.msra.mxu0 0.0
      %6438 = vmatpush.msra.mxu0 0.0
      %6439 = vmatpush.msra.mxu0 0.0
      %6440 = vmatpush.msra.mxu0 0.0
      %6441 = vmatpush.msra.mxu0 0.0
      %6442 = vmatpush.msra.mxu0 0.0
      %6443 = vmatpush.msra.mxu0 0.0
      %6444 = vmatpush.msra.mxu0 0.0
      %6445 = vmatpush.msra.mxu0 %v6429
      %6446 = vmatpush.msra.mxu0 %v6428
      %6447 = vmatpush.msra.mxu0 %v6427
      %6448 = vmatpush.msra.mxu0 %v6426
      %6449 = vmatmul.f32.gmra.mxu0 %v6431
      %v6450 = vpop.f32.mrf.mxu0
      %v6451 = vadd.f32 0.0, %v6450
      %6452 = vdwg.mxu0
      %v6454 = vsel %vm1125, %v1068, 0
      %6456 = vmatpush.msra.mxu0 0.0
      %6457 = vmatpush.msra.mxu0 0.0
      %6458 = vmatpush.msra.mxu0 0.0
      %6459 = vmatpush.msra.mxu0 0.0
      %6460 = vmatpush.msra.mxu0 0.0
      %6461 = vmatpush.msra.mxu0 0.0
      %6462 = vmatpush.msra.mxu0 0.0
      %6463 = vmatpush.msra.mxu0 0.0
      %6464 = vmatpush.msra.mxu0 0.0
      %6465 = vmatpush.msra.mxu0 0.0
      %6466 = vmatpush.msra.mxu0 0.0
      %6467 = vmatpush.msra.mxu0 0.0
      %6468 = vmatpush.msra.mxu0 %v6425
      %6469 = vmatpush.msra.mxu0 %v6424
      %6470 = vmatpush.msra.mxu0 %v6423
      %6471 = vmatpush.msra.mxu0 %v6422
      %6472 = vmatmul.f32.gmra.mxu0 %v6454
      %v6473 = vpop.f32.mrf.mxu0
      %v6474 = vadd.f32 %v6451, %v6473
      %6475 = vdwg.mxu0
      %v6476 = vld [vmem:[%s49] sm:$0x1]
      %v6478 = vperm.slane %v6476, 0
      %v6480 = vadd.f32 %v6474, %v6478
      %v6481 = vmax.f32 %v6480, 0.0
      %v6482 = vld [vmem:[%s51] sm:$0xff]
      %v6483 = vld [vmem:[%s51 + $0x8] sm:$0xff]
      %v6484 = vld [vmem:[%s51 + $0x10] sm:$0xff]
      %v6485 = vld [vmem:[%s51 + $0x18] sm:$0xff]
      %v6486 = vld [vmem:[%s53] sm:$0x1]
      %v6488 = vperm.slane %v6486, 0
      %v6491 = vsel %vm1125, %v6481, 0
      %6493 = vmatpush.msra.mxu0 0.0
      %6494 = vmatpush.msra.mxu0 0.0
      %6495 = vmatpush.msra.mxu0 0.0
      %6496 = vmatpush.msra.mxu0 0.0
      %6497 = vmatpush.msra.mxu0 0.0
      %6498 = vmatpush.msra.mxu0 0.0
      %6499 = vmatpush.msra.mxu0 0.0
      %6500 = vmatpush.msra.mxu0 0.0
      %6501 = vmatpush.msra.mxu0 0.0
      %6502 = vmatpush.msra.mxu0 0.0
      %6503 = vmatpush.msra.mxu0 0.0
      %6504 = vmatpush.msra.mxu0 0.0
      %6505 = vmatpush.msra.mxu0 %v6485
      %6506 = vmatpush.msra.mxu0 %v6484
      %6507 = vmatpush.msra.mxu0 %v6483
      %6508 = vmatpush.msra.mxu0 %v6482
      %6509 = vmatmul.f32.gmra.mxu0 %v6491
      %v6510 = vpop.f32.mrf.mxu0
      %v6511 = vadd.f32 %v6488, %v6510
      %6512 = vdwg.mxu0
      %v6513 = vld [vmem:[%s55] sm:$0xff]
      %v6514 = vld [vmem:[%s55 + $0x8] sm:$0xff]
      %v6515 = vld [vmem:[%s55 + $0x10] sm:$0xff]
      %v6516 = vld [vmem:[%s55 + $0x18] sm:$0xff]
      %v6517 = vld [vmem:[%s57] sm:$0xff]
      %v6518 = vld [vmem:[%s57 + $0x8] sm:$0xff]
      %v6519 = vld [vmem:[%s57 + $0x10] sm:$0xff]
      %v6520 = vld [vmem:[%s57 + $0x18] sm:$0xff]
      %v6522 = vsel %vm1125, %v6421, 0
      %6524 = vmatpush.msra.mxu0 0.0
      %6525 = vmatpush.msra.mxu0 0.0
      %6526 = vmatpush.msra.mxu0 0.0
      %6527 = vmatpush.msra.mxu0 0.0
      %6528 = vmatpush.msra.mxu0 0.0
      %6529 = vmatpush.msra.mxu0 0.0
      %6530 = vmatpush.msra.mxu0 0.0
      %6531 = vmatpush.msra.mxu0 0.0
      %6532 = vmatpush.msra.mxu0 0.0
      %6533 = vmatpush.msra.mxu0 0.0
      %6534 = vmatpush.msra.mxu0 0.0
      %6535 = vmatpush.msra.mxu0 0.0
      %6536 = vmatpush.msra.mxu0 %v6520
      %6537 = vmatpush.msra.mxu0 %v6519
      %6538 = vmatpush.msra.mxu0 %v6518
      %6539 = vmatpush.msra.mxu0 %v6517
      %6540 = vmatmul.f32.gmra.mxu0 %v6522
      %v6541 = vpop.f32.mrf.mxu0
      %v6542 = vadd.f32 0.0, %v6541
      %6543 = vdwg.mxu0
      %6544 = vmatpush.msra.mxu0 0.0
      %6545 = vmatpush.msra.mxu0 0.0
      %6546 = vmatpush.msra.mxu0 0.0
      %6547 = vmatpush.msra.mxu0 0.0
      %6548 = vmatpush.msra.mxu0 0.0
      %6549 = vmatpush.msra.mxu0 0.0
      %6550 = vmatpush.msra.mxu0 0.0
      %6551 = vmatpush.msra.mxu0 0.0
      %6552 = vmatpush.msra.mxu0 0.0
      %6553 = vmatpush.msra.mxu0 0.0
      %6554 = vmatpush.msra.mxu0 0.0
      %6555 = vmatpush.msra.mxu0 0.0
      %6556 = vmatpush.msra.mxu0 %v6516
      %6557 = vmatpush.msra.mxu0 %v6515
      %6558 = vmatpush.msra.mxu0 %v6514
      %6559 = vmatpush.msra.mxu0 %v6513
      %6560 = vmatmul.f32.gmra.mxu0 %v6454
      %v6561 = vpop.f32.mrf.mxu0
      %v6562 = vadd.f32 %v6542, %v6561
      %6563 = vdwg.mxu0
      %v6564 = vld [vmem:[%s59] sm:$0x1]
      %v6566 = vperm.slane %v6564, 0
      %v6568 = vadd.f32 %v6562, %v6566
      %v6569 = vmax.f32 %v6568, 0.0
      %v6570 = vld [vmem:[%s61] sm:$0xff]
      %v6571 = vld [vmem:[%s61 + $0x8] sm:$0xff]
      %v6572 = vld [vmem:[%s61 + $0x10] sm:$0xff]
      %v6573 = vld [vmem:[%s61 + $0x18] sm:$0xff]
      %v6574 = vld [vmem:[%s63] sm:$0x1]
      %v6576 = vperm.slane %v6574, 0
      %v6579 = vsel %vm1125, %v6569, 0
      %6581 = vmatpush.msra.mxu0 0.0
      %6582 = vmatpush.msra.mxu0 0.0
      %6583 = vmatpush.msra.mxu0 0.0
      %6584 = vmatpush.msra.mxu0 0.0
      %6585 = vmatpush.msra.mxu0 0.0
      %6586 = vmatpush.msra.mxu0 0.0
      %6587 = vmatpush.msra.mxu0 0.0
      %6588 = vmatpush.msra.mxu0 0.0
      %6589 = vmatpush.msra.mxu0 0.0
      %6590 = vmatpush.msra.mxu0 0.0
      %6591 = vmatpush.msra.mxu0 0.0
      %6592 = vmatpush.msra.mxu0 0.0
      %6593 = vmatpush.msra.mxu0 %v6573
      %6594 = vmatpush.msra.mxu0 %v6572
      %6595 = vmatpush.msra.mxu0 %v6571
      %6596 = vmatpush.msra.mxu0 %v6570
      %6597 = vmatmul.f32.gmra.mxu0 %v6579
      %v6598 = vpop.f32.mrf.mxu0
      %v6599 = vadd.f32 %v6576, %v6598
      %6600 = vdwg.mxu0
      %v6601 = vadd.f32 %v1068, %v6511
      %v6602 = vadd.f32 %v6601, %v6599
      %v6603 = vmul.f32 %v6602, 0.33333334
      %v6604 = vld [vmem:[%s67] sm:$0x1]
      %v6605 = vld [vmem:[%s65] sm:$0xff]
      %v6606 = vld [vmem:[%s65 + $0x8] sm:$0xff]
      %v6607 = vld [vmem:[%s65 + $0x10] sm:$0xff]
      %v6608 = vld [vmem:[%s65 + $0x18] sm:$0xff]
      %v6610 = vsel %vm1125, %v6603, 0
      %6612 = vmatpush.msra.mxu0 0.0
      %6613 = vmatpush.msra.mxu0 0.0
      %6614 = vmatpush.msra.mxu0 0.0
      %6615 = vmatpush.msra.mxu0 0.0
      %6616 = vmatpush.msra.mxu0 0.0
      %6617 = vmatpush.msra.mxu0 0.0
      %6618 = vmatpush.msra.mxu0 0.0
      %6619 = vmatpush.msra.mxu0 0.0
      %6620 = vmatpush.msra.mxu0 0.0
      %6621 = vmatpush.msra.mxu0 0.0
      %6622 = vmatpush.msra.mxu0 0.0
      %6623 = vmatpush.msra.mxu0 0.0
      %6624 = vmatpush.msra.mxu0 %v6608
      %6625 = vmatpush.msra.mxu0 %v6607
      %6626 = vmatpush.msra.mxu0 %v6606
      %6627 = vmatpush.msra.mxu0 %v6605
      %6628 = vmatmul.f32.gmra.mxu0 %v6610
      %v6629 = vpop.f32.mrf.mxu0
      %v6630 = vadd.f32 0.0, %v6629
      %6631 = vdwg.mxu0
      %vm6632 = vcmp.eq.s32.totalorder %v1075, 0
      %v6633 = vsel %vm6632, 1, 0
      %v6634 = vcvt.s32.f32 %v6633
      %v6636 = vsel %vm1246, %v6634, 0
      %v6639 = vsel %vm1250, %v6630, 0
      %6641 = vmatpush.msra.mxu0 0.0
      %6642 = vmatpush.msra.mxu0 0.0
      %6643 = vmatpush.msra.mxu0 0.0
      %6644 = vmatpush.msra.mxu0 0.0
      %6645 = vmatpush.msra.mxu0 0.0
      %6646 = vmatpush.msra.mxu0 0.0
      %6647 = vmatpush.msra.mxu0 0.0
      %6648 = vmatpush.msra.mxu0 0.0
      %6649 = vmatpush.msra.mxu0 0.0
      %6650 = vmatpush.msra.mxu0 0.0
      %6651 = vmatpush.msra.mxu0 0.0
      %6652 = vmatpush.msra.mxu0 0.0
      %6653 = vmatpush.msra.mxu0 0.0
      %6654 = vmatpush.msra.mxu0 0.0
      %6655 = vmatpush.msra.mxu0 0.0
      %6656 = vmatpush.msra.mxu0 %v6639
      %6657 = vmatmul.f32.gmra.mxu0 %v6636
      %v6658 = vpop.f32.mrf.mxu0
      %v6659 = vadd.f32 0.0, %v6658
      %6660 = vdwg.mxu0
      %v6661 = vadd.f32 %v6604, %v6659
      %s6662 = scalar_lea.vmem %s65, 32
      %v6663 = vld [vmem:[%s6662] sm:$0xff]
      %v6664 = vld [vmem:[%s6662 + $0x8] sm:$0xff]
      %v6665 = vld [vmem:[%s6662 + $0x10] sm:$0xff]
      %v6666 = vld [vmem:[%s6662 + $0x18] sm:$0xff]
      %6667 = vmatpush.msra.mxu0 0.0
      %6668 = vmatpush.msra.mxu0 0.0
      %6669 = vmatpush.msra.mxu0 0.0
      %6670 = vmatpush.msra.mxu0 0.0
      %6671 = vmatpush.msra.mxu0 0.0
      %6672 = vmatpush.msra.mxu0 0.0
      %6673 = vmatpush.msra.mxu0 0.0
      %6674 = vmatpush.msra.mxu0 0.0
      %6675 = vmatpush.msra.mxu0 0.0
      %6676 = vmatpush.msra.mxu0 0.0
      %6677 = vmatpush.msra.mxu0 0.0
      %6678 = vmatpush.msra.mxu0 0.0
      %6679 = vmatpush.msra.mxu0 %v6666
      %6680 = vmatpush.msra.mxu0 %v6665
      %6681 = vmatpush.msra.mxu0 %v6664
      %6682 = vmatpush.msra.mxu0 %v6663
      %6683 = vmatmul.f32.gmra.mxu0 %v6610
      %v6684 = vpop.f32.mrf.mxu0
      %v6685 = vadd.f32 0.0, %v6684
      %6686 = vdwg.mxu0
      %vm6687 = vcmp.eq.s32.totalorder %v1075, 1
      %v6688 = vsel %vm6687, 1, 0
      %v6689 = vcvt.s32.f32 %v6688
      %v6691 = vsel %vm1246, %v6689, 0
      %v6694 = vsel %vm1250, %v6685, 0
      %6696 = vmatpush.msra.mxu0 0.0
      %6697 = vmatpush.msra.mxu0 0.0
      %6698 = vmatpush.msra.mxu0 0.0
      %6699 = vmatpush.msra.mxu0 0.0
      %6700 = vmatpush.msra.mxu0 0.0
      %6701 = vmatpush.msra.mxu0 0.0
      %6702 = vmatpush.msra.mxu0 0.0
      %6703 = vmatpush.msra.mxu0 0.0
      %6704 = vmatpush.msra.mxu0 0.0
      %6705 = vmatpush.msra.mxu0 0.0
      %6706 = vmatpush.msra.mxu0 0.0
      %6707 = vmatpush.msra.mxu0 0.0
      %6708 = vmatpush.msra.mxu0 0.0
      %6709 = vmatpush.msra.mxu0 0.0
      %6710 = vmatpush.msra.mxu0 0.0
      %6711 = vmatpush.msra.mxu0 %v6694
      %6712 = vmatmul.f32.gmra.mxu0 %v6691
      %v6713 = vpop.f32.mrf.mxu0
      %v6714 = vadd.f32 0.0, %v6713
      %6715 = vdwg.mxu0
      %v6716 = vadd.f32 %v6661, %v6714
      %s6717 = scalar_lea.vmem %s65, 64
      %v6718 = vld [vmem:[%s6717] sm:$0xff]
      %v6719 = vld [vmem:[%s6717 + $0x8] sm:$0xff]
      %v6720 = vld [vmem:[%s6717 + $0x10] sm:$0xff]
      %v6721 = vld [vmem:[%s6717 + $0x18] sm:$0xff]
      %6722 = vmatpush.msra.mxu0 0.0
      %6723 = vmatpush.msra.mxu0 0.0
      %6724 = vmatpush.msra.mxu0 0.0
      %6725 = vmatpush.msra.mxu0 0.0
      %6726 = vmatpush.msra.mxu0 0.0
      %6727 = vmatpush.msra.mxu0 0.0
      %6728 = vmatpush.msra.mxu0 0.0
      %6729 = vmatpush.msra.mxu0 0.0
      %6730 = vmatpush.msra.mxu0 0.0
      %6731 = vmatpush.msra.mxu0 0.0
      %6732 = vmatpush.msra.mxu0 0.0
      %6733 = vmatpush.msra.mxu0 0.0
      %6734 = vmatpush.msra.mxu0 %v6721
      %6735 = vmatpush.msra.mxu0 %v6720
      %6736 = vmatpush.msra.mxu0 %v6719
      %6737 = vmatpush.msra.mxu0 %v6718
      %6738 = vmatmul.f32.gmra.mxu0 %v6610
      %v6739 = vpop.f32.mrf.mxu0
      %v6740 = vadd.f32 0.0, %v6739
      %6741 = vdwg.mxu0
      %vm6742 = vcmp.eq.s32.totalorder %v1075, 2
      %v6743 = vsel %vm6742, 1, 0
      %v6744 = vcvt.s32.f32 %v6743
      %v6746 = vsel %vm1246, %v6744, 0
      %v6749 = vsel %vm1250, %v6740, 0
      %6751 = vmatpush.msra.mxu0 0.0
      %6752 = vmatpush.msra.mxu0 0.0
      %6753 = vmatpush.msra.mxu0 0.0
      %6754 = vmatpush.msra.mxu0 0.0
      %6755 = vmatpush.msra.mxu0 0.0
      %6756 = vmatpush.msra.mxu0 0.0
      %6757 = vmatpush.msra.mxu0 0.0
      %6758 = vmatpush.msra.mxu0 0.0
      %6759 = vmatpush.msra.mxu0 0.0
      %6760 = vmatpush.msra.mxu0 0.0
      %6761 = vmatpush.msra.mxu0 0.0
      %6762 = vmatpush.msra.mxu0 0.0
      %6763 = vmatpush.msra.mxu0 0.0
      %6764 = vmatpush.msra.mxu0 0.0
      %6765 = vmatpush.msra.mxu0 0.0
      %6766 = vmatpush.msra.mxu0 %v6749
      %6767 = vmatmul.f32.gmra.mxu0 %v6746
      %v6768 = vpop.f32.mrf.mxu0
      %v6769 = vadd.f32 0.0, %v6768
      %6770 = vdwg.mxu0
      %v6771 = vadd.f32 %v6716, %v6769
      %s6772 = scalar_lea.vmem %s65, 96
      %v6773 = vld [vmem:[%s6772] sm:$0xff]
      %v6774 = vld [vmem:[%s6772 + $0x8] sm:$0xff]
      %v6775 = vld [vmem:[%s6772 + $0x10] sm:$0xff]
      %v6776 = vld [vmem:[%s6772 + $0x18] sm:$0xff]
      %6777 = vmatpush.msra.mxu0 0.0
      %6778 = vmatpush.msra.mxu0 0.0
      %6779 = vmatpush.msra.mxu0 0.0
      %6780 = vmatpush.msra.mxu0 0.0
      %6781 = vmatpush.msra.mxu0 0.0
      %6782 = vmatpush.msra.mxu0 0.0
      %6783 = vmatpush.msra.mxu0 0.0
      %6784 = vmatpush.msra.mxu0 0.0
      %6785 = vmatpush.msra.mxu0 0.0
      %6786 = vmatpush.msra.mxu0 0.0
      %6787 = vmatpush.msra.mxu0 0.0
      %6788 = vmatpush.msra.mxu0 0.0
      %6789 = vmatpush.msra.mxu0 %v6776
      %6790 = vmatpush.msra.mxu0 %v6775
      %6791 = vmatpush.msra.mxu0 %v6774
      %6792 = vmatpush.msra.mxu0 %v6773
      %6793 = vmatmul.f32.gmra.mxu0 %v6610
      %v6794 = vpop.f32.mrf.mxu0
      %v6795 = vadd.f32 0.0, %v6794
      %6796 = vdwg.mxu0
      %vm6797 = vcmp.eq.s32.totalorder %v1075, 3
      %v6798 = vsel %vm6797, 1, 0
      %v6799 = vcvt.s32.f32 %v6798
      %v6801 = vsel %vm1246, %v6799, 0
      %v6804 = vsel %vm1250, %v6795, 0
      %6806 = vmatpush.msra.mxu0 0.0
      %6807 = vmatpush.msra.mxu0 0.0
      %6808 = vmatpush.msra.mxu0 0.0
      %6809 = vmatpush.msra.mxu0 0.0
      %6810 = vmatpush.msra.mxu0 0.0
      %6811 = vmatpush.msra.mxu0 0.0
      %6812 = vmatpush.msra.mxu0 0.0
      %6813 = vmatpush.msra.mxu0 0.0
      %6814 = vmatpush.msra.mxu0 0.0
      %6815 = vmatpush.msra.mxu0 0.0
      %6816 = vmatpush.msra.mxu0 0.0
      %6817 = vmatpush.msra.mxu0 0.0
      %6818 = vmatpush.msra.mxu0 0.0
      %6819 = vmatpush.msra.mxu0 0.0
      %6820 = vmatpush.msra.mxu0 0.0
      %6821 = vmatpush.msra.mxu0 %v6804
      %6822 = vmatmul.f32.gmra.mxu0 %v6801
      %v6823 = vpop.f32.mrf.mxu0
      %v6824 = vadd.f32 0.0, %v6823
      %6825 = vdwg.mxu0
      %v6826 = vadd.f32 %v6771, %v6824
      %s6827 = scalar_lea.vmem %s65, 128
      %v6828 = vld [vmem:[%s6827] sm:$0xff]
      %v6829 = vld [vmem:[%s6827 + $0x8] sm:$0xff]
      %v6830 = vld [vmem:[%s6827 + $0x10] sm:$0xff]
      %v6831 = vld [vmem:[%s6827 + $0x18] sm:$0xff]
      %6832 = vmatpush.msra.mxu0 0.0
      %6833 = vmatpush.msra.mxu0 0.0
      %6834 = vmatpush.msra.mxu0 0.0
      %6835 = vmatpush.msra.mxu0 0.0
      %6836 = vmatpush.msra.mxu0 0.0
      %6837 = vmatpush.msra.mxu0 0.0
      %6838 = vmatpush.msra.mxu0 0.0
      %6839 = vmatpush.msra.mxu0 0.0
      %6840 = vmatpush.msra.mxu0 0.0
      %6841 = vmatpush.msra.mxu0 0.0
      %6842 = vmatpush.msra.mxu0 0.0
      %6843 = vmatpush.msra.mxu0 0.0
      %6844 = vmatpush.msra.mxu0 %v6831
      %6845 = vmatpush.msra.mxu0 %v6830
      %6846 = vmatpush.msra.mxu0 %v6829
      %6847 = vmatpush.msra.mxu0 %v6828
      %6848 = vmatmul.f32.gmra.mxu0 %v6610
      %v6849 = vpop.f32.mrf.mxu0
      %v6850 = vadd.f32 0.0, %v6849
      %6851 = vdwg.mxu0
      %vm6852 = vcmp.eq.s32.totalorder %v1075, 4
      %v6853 = vsel %vm6852, 1, 0
      %v6854 = vcvt.s32.f32 %v6853
      %v6856 = vsel %vm1246, %v6854, 0
      %v6859 = vsel %vm1250, %v6850, 0
      %6861 = vmatpush.msra.mxu0 0.0
      %6862 = vmatpush.msra.mxu0 0.0
      %6863 = vmatpush.msra.mxu0 0.0
      %6864 = vmatpush.msra.mxu0 0.0
      %6865 = vmatpush.msra.mxu0 0.0
      %6866 = vmatpush.msra.mxu0 0.0
      %6867 = vmatpush.msra.mxu0 0.0
      %6868 = vmatpush.msra.mxu0 0.0
      %6869 = vmatpush.msra.mxu0 0.0
      %6870 = vmatpush.msra.mxu0 0.0
      %6871 = vmatpush.msra.mxu0 0.0
      %6872 = vmatpush.msra.mxu0 0.0
      %6873 = vmatpush.msra.mxu0 0.0
      %6874 = vmatpush.msra.mxu0 0.0
      %6875 = vmatpush.msra.mxu0 0.0
      %6876 = vmatpush.msra.mxu0 %v6859
      %6877 = vmatmul.f32.gmra.mxu0 %v6856
      %v6878 = vpop.f32.mrf.mxu0
      %v6879 = vadd.f32 0.0, %v6878
      %6880 = vdwg.mxu0
      %v6881 = vadd.f32 %v6826, %v6879
      %vm6882 = vcmask 57344
      %6883 = vst.msk [vmem:[%s1035] sm:$0x1] %vm6882, %v6881
      %p6884 = scmp.lt.s32.totalorder %s80, 7
      %s6885 = scalar_select %p6884, %s80, 7
      %s6886 = scalar_lea.vmem %s69, %s6885
      // Predicated region
      $region157: #{logollm_forward.1} parent=155 // pred_check
        %p6887 = pneg %p817
      $region158: #{logollm_forward.1} parent=155 // pred_check_branch
        %6889 = sbr.rel (%p6887) target = $region160
      $region159: #{logollm_forward.1} parent=155 // pred_region
        _
      $region160: #{logollm_forward.1} parent=155 // pred_fallthru
        _
    $region156: #{logollm_forward.1} parent=5 // pred_fallthru
      _
    %p6890 = scmp.le.s32.totalorder 2, %s75
    // Predicated region
    $region161: #{logollm_forward.1} parent=5 // pred_check
      %p6891 = pneg %p6890
    $region162: #{logollm_forward.1} parent=5 // pred_check_branch
      %6893 = sbr.rel (%p6891) target = $region164
    $region163: #{logollm_forward.1} parent=5 // pred_region
      %s6894 = ssub.s32 %s75, 2
      // Predicated region
      $region165: #{logollm_forward.1} parent=163 // pred_check
        %p6895 = pneg %p823
      $region166: #{logollm_forward.1} parent=163 // pred_check_branch
        %6897 = sbr.rel (%p6895) target = $region168
      $region167: #{logollm_forward.1} parent=163 // pred_region
        %p6898 = scmp.lt.s32.totalorder %s81, 7
        %s6899 = scalar_select %p6898, %s81, 7
        %s6900 = scalar_lea.vmem %s69, %s6899
      $region168: #{logollm_forward.1} parent=163 // pred_fallthru
        _
    $region164: #{logollm_forward.1} parent=5 // pred_fallthru
      _
  $region6: #{logollm_forward.1} parent=0 // loop_footer
    %s79 = sadd.s32 1, %s75
  $region7: #{logollm_forward.1} parent=0 // loop_footer_branch
    %74 = sbr.rel target = $region3
  $region8: #{logollm_forward.1} parent=0 // loop_exit
    _

</llo_original>
